<compile_context>
chip_gen: v5e
topology: v5e:2x2
jax: 0.10.0
libtpu: 0.0.40
codegen_flags: <defaults>
</compile_context>

<pallas_src>
import numpy as np
import jax
import jax.numpy as jnp
from jax.experimental import pallas as pl
from jax.experimental.pallas import tpu as pltpu


# ----------------------------------------------------------------------------
# Host-side helpers (parameter-prep time only).
# ----------------------------------------------------------------------------
def _conv_tap_selectors(H, W, OH, OW, k, stride, pad):
    """sel[t][y*W+x, oh*OW+ow] = 1 iff y == stride*oh+i-pad and
    x == stride*ow+j-pad, with t = i*k + j."""
    sel = np.zeros((k * k, H * W, OH * OW), np.float32)
    for i in range(k):
        for j in range(k):
            t = i * k + j
            for oh in range(OH):
                y = stride * oh + i - pad
                if not (0 <= y < H):
                    continue
                for ow in range(OW):
                    x = stride * ow + j - pad
                    if 0 <= x < W:
                        sel[t, y * W + x, oh * OW + ow] = 1.0
    return sel


def _im2col_T(x, kh, kw, stride):
    """x: (B, C, H, W) (already padded) -> (B, C*kh*kw, OH*OW); row order (c,i,j)
    matches PyTorch's OIHW weight flattening."""
    B, C, H, W = x.shape
    OH = (H - kh) // stride + 1
    OW = (W - kw) // stride + 1
    taps = []
    for i in range(kh):
        for j in range(kw):
            taps.append(x[:, :, i:i + stride * OH:stride, j:j + stride * OW:stride])
    col = jnp.stack(taps, axis=2)                      # (B, C, kh*kw, OH, OW)
    return col.reshape(B, C * kh * kw, OH * OW)


def _conv_xla(x, w, b, stride, pad):
    y = jax.lax.conv_general_dilated(
        x, w, (stride, stride), ((pad, pad), (pad, pad)),
        dimension_numbers=("NCHW", "OIHW", "NCHW"),
        precision=jax.lax.Precision.HIGHEST)
    return y + b.reshape(1, -1, 1, 1)


def _deconv_xla(x, w, b, stride, pad, out_pad):
    """ConvTranspose2d == stride-1 conv with flipped / in-out-swapped weights
    over the stride-dilated, (k-1-pad)-padded input."""
    k = w.shape[2]
    wf = jnp.transpose(w, (1, 0, 2, 3))[:, :, ::-1, ::-1]
    y = jax.lax.conv_general_dilated(
        x.astype(jnp.float32), wf.astype(jnp.float32), (1, 1),
        ((k - 1 - pad, k - 1 - pad + out_pad),
         (k - 1 - pad, k - 1 - pad + out_pad)),
        lhs_dilation=(stride, stride),
        dimension_numbers=("NCHW", "OIHW", "NCHW"),
        precision=jax.lax.Precision.HIGHEST)
    return y + b.reshape(1, -1, 1, 1)


# ----------------------------------------------------------------------------
# Parameters (deterministic synthetic init; PyTorch layouts) + kernel repacking
# ----------------------------------------------------------------------------
def init_params(key, input_channels=3, d=10, scale=0.15):
    ks = jax.random.split(key, 16)

    def rnd(k, shape):
        return (jax.random.normal(k, shape, jnp.float32) * scale).astype(jnp.float32)

    return {
        # encoder
        "e_conv1_w": rnd(ks[0], (16, input_channels, 4, 4)),
        "e_conv1_b": rnd(ks[1], (16,)),
        "e_conv2_w": rnd(ks[2], (32, 16, 4, 4)),
        "e_conv2_b": rnd(ks[3], (32,)),
        "e_fc1_w":   rnd(ks[4], (1152, 256)),          # stored (in, out)
        "e_fc1_b":   rnd(ks[5], (256,)),
        "e_fc2_w":   rnd(ks[6], (256, d)),
        "e_fc2_b":   rnd(ks[7], (d,)),
        # decoder
        "d_fc1_w":   rnd(ks[8], (d, d * d)),
        "d_fc1_b":   rnd(ks[9], (d * d,)),
        "d_fc2_w":   rnd(ks[10], (d * d, 1152)),
        "d_fc2_b":   rnd(ks[11], (1152,)),
        "d_deconv1_w": rnd(ks[12], (32, 16, 4, 4)),    # (Cin, Cout, kh, kw)
        "d_deconv1_b": rnd(ks[13], (16,)),
        "d_deconv2_w": rnd(ks[14], (16, input_channels, 3, 3)),
        "d_deconv2_b": rnd(ks[15], (input_channels,)),
    }


def prepare_params(p):
    """Repack PyTorch-layout params into kernel-friendly tensors:
    - conv1 weight flattened for the im2col GEMM,
    - conv2 per-tap weights + ONE lane-padded (196, 16*128) 0/1 tap selector,
    - fc1 weight as 32 per-channel (36, 256) blocks,
    - fc2 ∘ d_fc1 folded into a single (256, d^2) matrix (no ReLU between),
    - d_fc2 ∘ Reshape ∘ deconv1 ∘ deconv2 folded into one (d^2, C*784) affine
      map (no nonlinearity until the final Sigmoid), computed in f32.
    """
    f32, bf16 = jnp.float32, jnp.bfloat16
    kp = {}

    # encoder conv1 (im2col GEMM)
    kp["w1"] = p["e_conv1_w"].reshape(16, -1).astype(bf16)          # (16, C*16)
    kp["b1"] = p["e_conv1_b"].reshape(16, 1).astype(f32)

    # encoder conv2: per-tap (32,16) weights + wide lane-padded selector
    w2 = p["e_conv2_w"]                                             # (32,16,4,4)
    kp["w2"] = jnp.transpose(w2, (2, 3, 0, 1)).reshape(16, 32, 16).astype(bf16)
    kp["b2"] = p["e_conv2_b"].reshape(32, 1).astype(f32)
    sel = _conv_tap_selectors(14, 14, 6, 6, 4, 2, 0)                # (16,196,36)
    selp = np.zeros((16, 196, 128), np.float32)
    selp[:, :, :36] = sel                                           # pad taps to 128 lanes
    kp["s2cat"] = jnp.asarray(selp.transpose(1, 0, 2).reshape(196, 16 * 128), bf16)

    # encoder fc1, consumed one conv2 channel at a time (NCHW flatten order)
    kp["fc1w3"] = p["e_fc1_w"].reshape(32, 36, 256).astype(bf16)
    kp["fc1b"] = p["e_fc1_b"].reshape(1, -1).astype(f32)

    # fc2 ∘ d_fc1 folded (both linear, no activation in between)
    wmid = p["e_fc2_w"].astype(f32) @ p["d_fc1_w"].astype(f32)      # (256, d^2)
    bmid = p["e_fc2_b"].astype(f32) @ p["d_fc1_w"].astype(f32) + p["d_fc1_b"]
    kp["wmid"] = wmid.astype(bf16)
    kp["bmid"] = bmid.reshape(1, -1).astype(f32)

    # d_fc2 ∘ Reshape ∘ deconv1 ∘ deconv2 folded into one affine map.
    dd = p["d_fc1_w"].shape[1]                                      # d^2

    def dec_tail(v):                                                # (K, d^2) -> (K, C*784)
        h = (v @ p["d_fc2_w"].astype(f32) + p["d_fc2_b"]).reshape(-1, 32, 6, 6)
        h = _deconv_xla(h, p["d_deconv1_w"], p["d_deconv1_b"], 2, 0, 0)
        h = _deconv_xla(h, p["d_deconv2_w"], p["d_deconv2_b"], 2, 1, 1)
        return h.reshape(v.shape[0], -1)

    bdec = dec_tail(jnp.zeros((1, dd), f32))                        # bias image (1, C*784)
    wdec = dec_tail(jnp.eye(dd, dtype=f32)) - bdec                  # (d^2, C*784)
    kp["wdec"] = wdec.astype(bf16)
    kp["bdec"] = bdec.astype(f32)
    return kp


# ----------------------------------------------------------------------------
# The single fused Pallas kernel (one grid step == one sample).
# Activation layout: rows = channels, cols = flattened spatial, except the FC
# section and the final output which are single lane-dense rows.
# ----------------------------------------------------------------------------
def _fused_autoencoder_kernel(
    col1_ref, w1_ref, b1_ref,          # conv1 (pre-extracted patches)
    s2cat_ref, w2_ref, b2_ref,         # conv2 wide tap selector / per-tap weights
    fc1w_ref, fc1b_ref,                # Linear(1152,256) as 32 x (36,256)
    wmid_ref, bmid_ref,                # Linear(256,d) ∘ Linear(d,d^2) folded
    wdec_ref, bdec_ref,                # d_fc2 ∘ reshape ∘ deconv1 ∘ deconv2 folded
    out_ref,                           # (1, 1, C*784) float32
):
    f32, bf16 = jnp.float32, jnp.bfloat16

    def mm(a, b):                      # bf16 MXU matmul, f32 accumulation
        return jnp.dot(a.astype(bf16), b.astype(bf16), preferred_element_type=f32)

    # --- Conv2d(C,16,4,2,1) + ReLU: one GEMM on the pre-extracted patches.
    h1 = jnp.maximum(mm(w1_ref[...], col1_ref[0]) + b1_ref[...], 0.0)     # (16,196)

    # --- Conv2d(16,32,4,2,0) + ReLU: one wide spatial-gather GEMM (all 16
    #     taps, each in an aligned 128-lane block), then 16 tiny channel-mix
    #     GEMMs accumulated in f32.
    n_taps = w2_ref.shape[0]
    lane_blk = s2cat_ref.shape[1] // n_taps                               # 128
    c2 = b2_ref.shape[0]                                                  # 32
    sp2 = fc1w_ref.shape[1]                                               # 36
    p_all = mm(h1, s2cat_ref[...])                                        # (16, 2048)
    acc = jnp.zeros((c2, lane_blk), f32)
    for t in range(n_taps):
        acc = acc + mm(w2_ref[t], p_all[:, t * lane_blk:(t + 1) * lane_blk])
    h2 = jnp.maximum(acc[:, :sp2] + b2_ref[...], 0.0)                     # (32,36)

    # --- Flatten (NCHW order) + Linear(1152,256) + ReLU, as a sum of
    #     per-channel (1,36)@(36,256) GEMVs (avoids a sublane->lane relayout).
    f1 = jnp.zeros((1, fc1b_ref.shape[1]), f32)
    for c in range(fc1w_ref.shape[0]):
        f1 = f1 + mm(h2[c:c + 1, :], fc1w_ref[c])
    f1 = jnp.maximum(f1 + fc1b_ref[...], 0.0)                             # (1,256)

    # --- Linear(256,d) ∘ Linear(d,d^2) (folded) + ReLU.
    g1 = jnp.maximum(mm(f1, wmid_ref[...]) + bmid_ref[...], 0.0)          # (1,d^2)

    # --- Folded decoder tail (d_fc2 -> reshape -> two ConvTranspose2d) + Sigmoid,
    #     written as one lane-dense row per sample.
    pre = mm(g1, wdec_ref[...]) + bdec_ref[...]                           # (1, C*784)
    out_ref[0] = (1.0 / (1.0 + jnp.exp(-pre))).astype(out_ref.dtype)


# ----------------------------------------------------------------------------
# Forward wrapper: host-side work is only the conv1 im2col of the network
# input and the final (free, row-major) NCHW reshape.
# ----------------------------------------------------------------------------
def conv_autoencoder_forward(kp, x):
    """x: (B, C, 28, 28) float32 -> (B, C, 28, 28) float32 in (0, 1)."""
    B = x.shape[0]
    C = kp["w1"].shape[1] // 16
    xp = jnp.pad(x, ((0, 0), (0, 0), (1, 1), (1, 1)))
    col1 = _im2col_T(xp, 4, 4, 2).astype(jnp.bfloat16)        # (B, C*16, 196)

    out_flat = kp["bdec"].shape[1]                            # C * 28 * 28
    names = ["w1", "b1", "s2cat", "w2", "b2", "fc1w3", "fc1b",
             "wmid", "bmid", "wdec", "bdec"]

    def _const(shape):
        nd = len(shape)
        return pl.BlockSpec(shape, lambda b, _n=nd: (0,) * _n)

    out = pl.pallas_call(
        _fused_autoencoder_kernel,
        out_shape=jax.ShapeDtypeStruct((B, 1, out_flat), jnp.float32),
        grid=(B,),
        in_specs=[pl.BlockSpec((1,) + col1.shape[1:], lambda b: (b, 0, 0))]
                 + [_const(kp[n].shape) for n in names],
        out_specs=pl.BlockSpec((1, 1, out_flat), lambda b: (b, 0, 0)),
        compiler_params=pltpu.CompilerParams(
            dimension_semantics=("parallel",),          # batch across TCs (v7x)
            vmem_limit_bytes=32 * 1024 * 1024,
        ),
    )(col1, *[kp[n] for n in names])
    return out.reshape(B, C, 28, 28)


# ----------------------------------------------------------------------------
# Pure-XLA float32 reference (independent code path) for a numerical cross-check.
# ----------------------------------------------------------------------------
def _reference_forward(p, x):
    h = jax.nn.relu(_conv_xla(x, p["e_conv1_w"], p["e_conv1_b"], 2, 1))
    h = jax.nn.relu(_conv_xla(h, p["e_conv2_w"], p["e_conv2_b"], 2, 0))
    h = h.reshape(h.shape[0], -1)
    h = jax.nn.relu(h @ p["e_fc1_w"] + p["e_fc1_b"])
    z = h @ p["e_fc2_w"] + p["e_fc2_b"]
    h = jax.nn.relu(z @ p["d_fc1_w"] + p["d_fc1_b"])
    h = (h @ p["d_fc2_w"] + p["d_fc2_b"]).reshape(-1, 32, 6, 6)
    h = _deconv_xla(h, p["d_deconv1_w"], p["d_deconv1_b"], 2, 0, 0)
    h = _deconv_xla(h, p["d_deconv2_w"], p["d_deconv2_b"], 2, 1, 1)
    return jax.nn.sigmoid(h)


# ----------------------------------------------------------------------------
if __name__ == "__main__":
    key = jax.random.PRNGKey(0)
    k_params, k_x = jax.random.split(key)

    input_channels, d = 3, 10
    params = init_params(k_params, input_channels=input_channels, d=d)
    kparams = prepare_params(params)

    # Linear(1152, 256) in the encoder pins the spatial input size to 28x28.
    x = jax.random.normal(k_x, (2, input_channels, 28, 28), jnp.float32)

    fwd = jax.jit(conv_autoencoder_forward)
    y = jax.block_until_ready(fwd(kparams, x))

    assert y.shape == x.shape, y.shape
    assert y.dtype == jnp.float32
    assert bool(jnp.all(jnp.isfinite(y)))
    assert bool(jnp.all((y >= 0.0) & (y <= 1.0)))     # sigmoid output range

    # Cross-check vs. a pure-XLA float32 reference (kernel uses bf16 MXU
    # operands with f32 accumulation, hence the loose tolerance).
    with jax.default_matmul_precision("float32"):
        y_ref = jax.block_until_ready(jax.jit(_reference_forward)(params, x))
    diff = np.abs(np.asarray(y, np.float32) - np.asarray(y_ref, np.float32))
    assert float(diff.max()) < 0.10, float(diff.max())
    assert float(diff.mean()) < 0.02, float(diff.mean())

    print("KERNEL_OK")
</pallas_src>

<mosaic_0001>
module attributes {stable_mosaic.version = 11 : i64} {
  func.func @_fused_autoencoder_kernel(%arg0: i32, %arg1: memref<1x48x196xbf16, #tpu.memory_space<vmem>>, %arg2: memref<16x48xbf16, #tpu.memory_space<vmem>>, %arg3: memref<16x1xf32, #tpu.memory_space<vmem>>, %arg4: memref<196x2048xbf16, #tpu.memory_space<vmem>>, %arg5: memref<16x32x16xbf16, #tpu.memory_space<vmem>>, %arg6: memref<32x1xf32, #tpu.memory_space<vmem>>, %arg7: memref<32x36x256xbf16, #tpu.memory_space<vmem>>, %arg8: memref<1x256xf32, #tpu.memory_space<vmem>>, %arg9: memref<256x100xbf16, #tpu.memory_space<vmem>>, %arg10: memref<1x100xf32, #tpu.memory_space<vmem>>, %arg11: memref<100x2352xbf16, #tpu.memory_space<vmem>>, %arg12: memref<1x2352xf32, #tpu.memory_space<vmem>>, %arg13: memref<1x1x2352xf32, #tpu.memory_space<vmem>>) attributes {dimension_semantics = [#tpu.dimension_semantics<parallel>], iteration_bounds = array<i64: 2>, scalar_prefetch = 0 : i64, scratch_operands = 0 : i64, tpu.core_type = #tpu.core_type<tc>, window_params = [{transform_indices = @transform_0, window_bounds = array<i64: 1, 48, 196>}, {pipeline_mode = #tpu.pipeline_mode<synchronous>, transform_indices = @transform_1, window_bounds = array<i64: 16, 48>}, {pipeline_mode = #tpu.pipeline_mode<synchronous>, transform_indices = @transform_2, window_bounds = array<i64: 16, 1>}, {pipeline_mode = #tpu.pipeline_mode<synchronous>, transform_indices = @transform_3, window_bounds = array<i64: 196, 2048>}, {pipeline_mode = #tpu.pipeline_mode<synchronous>, transform_indices = @transform_4, window_bounds = array<i64: 16, 32, 16>}, {pipeline_mode = #tpu.pipeline_mode<synchronous>, transform_indices = @transform_5, window_bounds = array<i64: 32, 1>}, {pipeline_mode = #tpu.pipeline_mode<synchronous>, transform_indices = @transform_6, window_bounds = array<i64: 32, 36, 256>}, {pipeline_mode = #tpu.pipeline_mode<synchronous>, transform_indices = @transform_7, window_bounds = array<i64: 1, 256>}, {pipeline_mode = #tpu.pipeline_mode<synchronous>, transform_indices = @transform_8, window_bounds = array<i64: 256, 100>}, {pipeline_mode = #tpu.pipeline_mode<synchronous>, transform_indices = @transform_9, window_bounds = array<i64: 1, 100>}, {pipeline_mode = #tpu.pipeline_mode<synchronous>, transform_indices = @transform_10, window_bounds = array<i64: 100, 2352>}, {pipeline_mode = #tpu.pipeline_mode<synchronous>, transform_indices = @transform_11, window_bounds = array<i64: 1, 2352>}, {transform_indices = @transform_12, window_bounds = array<i64: 1, 1, 2352>}]} {
    %c0 = arith.constant 0 : index
    %c0_0 = arith.constant 0 : index
    %0 = vector.load %arg2[%c0, %c0_0] : memref<16x48xbf16, #tpu.memory_space<vmem>>, vector<16x48xbf16>
    %c0_1 = arith.constant 0 : index
    %c0_2 = arith.constant 0 : index
    %c0_3 = arith.constant 0 : index
    %1 = vector.load %arg1[%c0_1, %c0_2, %c0_3] : memref<1x48x196xbf16, #tpu.memory_space<vmem>>, vector<1x48x196xbf16>
    %2 = vector.shape_cast %1 : vector<1x48x196xbf16> to vector<48x196xbf16>
    %cst = arith.constant dense<0.000000e+00> : vector<16x196xf32>
    %3 = tpu.matmul %0, %2, %cst {dimension_numbers = #tpu.dot_dimension_numbers<[1], [0], [0], [1], [0, 0, 1, 1], [], []>} : vector<16x48xbf16>, vector<48x196xbf16>, vector<16x196xf32> -> vector<16x196xf32>
    %c0_4 = arith.constant 0 : index
    %c0_5 = arith.constant 0 : index
    %4 = vector.load %arg3[%c0_4, %c0_5] : memref<16x1xf32, #tpu.memory_space<vmem>>, vector<16x1xf32>
    %5 = vector.broadcast %4 : vector<16x1xf32> to vector<16x196xf32>
    %6 = arith.addf %3, %5 : vector<16x196xf32>
    %cst_6 = arith.constant 0.000000e+00 : f32
    %7 = vector.broadcast %cst_6 : f32 to vector<16x196xf32>
    %8 = arith.maximumf %6, %7 : vector<16x196xf32>
    %c0_7 = arith.constant 0 : index
    %c0_8 = arith.constant 0 : index
    %9 = vector.load %arg4[%c0_7, %c0_8] : memref<196x2048xbf16, #tpu.memory_space<vmem>>, vector<196x2048xbf16>
    %10 = arith.truncf %8 : vector<16x196xf32> to vector<16x196xbf16>
    %cst_9 = arith.constant dense<0.000000e+00> : vector<16x2048xf32>
    %11 = tpu.matmul %10, %9, %cst_9 {dimension_numbers = #tpu.dot_dimension_numbers<[1], [0], [0], [1], [0, 0, 1, 1], [], []>} : vector<16x196xbf16>, vector<196x2048xbf16>, vector<16x2048xf32> -> vector<16x2048xf32>
    %cst_10 = arith.constant 0.000000e+00 : f32
    %12 = vector.broadcast %cst_10 : f32 to vector<32x128xf32>
    %c0_11 = arith.constant 0 : index
    %c0_12 = arith.constant 0 : index
    %c0_13 = arith.constant 0 : index
    %13 = vector.load %arg5[%c0_11, %c0_12, %c0_13] : memref<16x32x16xbf16, #tpu.memory_space<vmem>>, vector<1x32x16xbf16>
    %14 = vector.shape_cast %13 : vector<1x32x16xbf16> to vector<32x16xbf16>
    %15 = vector.extract_strided_slice %11 {offsets = [0, 0], sizes = [16, 128], strides = [1, 1]} : vector<16x2048xf32> to vector<16x128xf32>
    %16 = arith.truncf %15 : vector<16x128xf32> to vector<16x128xbf16>
    %cst_14 = arith.constant dense<0.000000e+00> : vector<32x128xf32>
    %17 = tpu.matmul %14, %16, %cst_14 {dimension_numbers = #tpu.dot_dimension_numbers<[1], [0], [0], [1], [0, 0, 1, 1], [], []>} : vector<32x16xbf16>, vector<16x128xbf16>, vector<32x128xf32> -> vector<32x128xf32>
    %18 = arith.addf %12, %17 : vector<32x128xf32>
    %c1 = arith.constant 1 : index
    %c0_15 = arith.constant 0 : index
    %c0_16 = arith.constant 0 : index
    %19 = vector.load %arg5[%c1, %c0_15, %c0_16] : memref<16x32x16xbf16, #tpu.memory_space<vmem>>, vector<1x32x16xbf16>
    %20 = vector.shape_cast %19 : vector<1x32x16xbf16> to vector<32x16xbf16>
    %21 = vector.extract_strided_slice %11 {offsets = [0, 128], sizes = [16, 128], strides = [1, 1]} : vector<16x2048xf32> to vector<16x128xf32>
    %22 = arith.truncf %21 : vector<16x128xf32> to vector<16x128xbf16>
    %cst_17 = arith.constant dense<0.000000e+00> : vector<32x128xf32>
    %23 = tpu.matmul %20, %22, %cst_17 {dimension_numbers = #tpu.dot_dimension_numbers<[1], [0], [0], [1], [0, 0, 1, 1], [], []>} : vector<32x16xbf16>, vector<16x128xbf16>, vector<32x128xf32> -> vector<32x128xf32>
    %24 = arith.addf %18, %23 : vector<32x128xf32>
    %c2 = arith.constant 2 : index
    %c0_18 = arith.constant 0 : index
    %c0_19 = arith.constant 0 : index
    %25 = vector.load %arg5[%c2, %c0_18, %c0_19] : memref<16x32x16xbf16, #tpu.memory_space<vmem>>, vector<1x32x16xbf16>
    %26 = vector.shape_cast %25 : vector<1x32x16xbf16> to vector<32x16xbf16>
    %27 = vector.extract_strided_slice %11 {offsets = [0, 256], sizes = [16, 128], strides = [1, 1]} : vector<16x2048xf32> to vector<16x128xf32>
    %28 = arith.truncf %27 : vector<16x128xf32> to vector<16x128xbf16>
    %cst_20 = arith.constant dense<0.000000e+00> : vector<32x128xf32>
    %29 = tpu.matmul %26, %28, %cst_20 {dimension_numbers = #tpu.dot_dimension_numbers<[1], [0], [0], [1], [0, 0, 1, 1], [], []>} : vector<32x16xbf16>, vector<16x128xbf16>, vector<32x128xf32> -> vector<32x128xf32>
    %30 = arith.addf %24, %29 : vector<32x128xf32>
    %c3 = arith.constant 3 : index
    %c0_21 = arith.constant 0 : index
    %c0_22 = arith.constant 0 : index
    %31 = vector.load %arg5[%c3, %c0_21, %c0_22] : memref<16x32x16xbf16, #tpu.memory_space<vmem>>, vector<1x32x16xbf16>
    %32 = vector.shape_cast %31 : vector<1x32x16xbf16> to vector<32x16xbf16>
    %33 = vector.extract_strided_slice %11 {offsets = [0, 384], sizes = [16, 128], strides = [1, 1]} : vector<16x2048xf32> to vector<16x128xf32>
    %34 = arith.truncf %33 : vector<16x128xf32> to vector<16x128xbf16>
    %cst_23 = arith.constant dense<0.000000e+00> : vector<32x128xf32>
    %35 = tpu.matmul %32, %34, %cst_23 {dimension_numbers = #tpu.dot_dimension_numbers<[1], [0], [0], [1], [0, 0, 1, 1], [], []>} : vector<32x16xbf16>, vector<16x128xbf16>, vector<32x128xf32> -> vector<32x128xf32>
    %36 = arith.addf %30, %35 : vector<32x128xf32>
    %c4 = arith.constant 4 : index
    %c0_24 = arith.constant 0 : index
    %c0_25 = arith.constant 0 : index
    %37 = vector.load %arg5[%c4, %c0_24, %c0_25] : memref<16x32x16xbf16, #tpu.memory_space<vmem>>, vector<1x32x16xbf16>
    %38 = vector.shape_cast %37 : vector<1x32x16xbf16> to vector<32x16xbf16>
    %39 = vector.extract_strided_slice %11 {offsets = [0, 512], sizes = [16, 128], strides = [1, 1]} : vector<16x2048xf32> to vector<16x128xf32>
    %40 = arith.truncf %39 : vector<16x128xf32> to vector<16x128xbf16>
    %cst_26 = arith.constant dense<0.000000e+00> : vector<32x128xf32>
    %41 = tpu.matmul %38, %40, %cst_26 {dimension_numbers = #tpu.dot_dimension_numbers<[1], [0], [0], [1], [0, 0, 1, 1], [], []>} : vector<32x16xbf16>, vector<16x128xbf16>, vector<32x128xf32> -> vector<32x128xf32>
    %42 = arith.addf %36, %41 : vector<32x128xf32>
    %c5 = arith.constant 5 : index
    %c0_27 = arith.constant 0 : index
    %c0_28 = arith.constant 0 : index
    %43 = vector.load %arg5[%c5, %c0_27, %c0_28] : memref<16x32x16xbf16, #tpu.memory_space<vmem>>, vector<1x32x16xbf16>
    %44 = vector.shape_cast %43 : vector<1x32x16xbf16> to vector<32x16xbf16>
    %45 = vector.extract_strided_slice %11 {offsets = [0, 640], sizes = [16, 128], strides = [1, 1]} : vector<16x2048xf32> to vector<16x128xf32>
    %46 = arith.truncf %45 : vector<16x128xf32> to vector<16x128xbf16>
    %cst_29 = arith.constant dense<0.000000e+00> : vector<32x128xf32>
    %47 = tpu.matmul %44, %46, %cst_29 {dimension_numbers = #tpu.dot_dimension_numbers<[1], [0], [0], [1], [0, 0, 1, 1], [], []>} : vector<32x16xbf16>, vector<16x128xbf16>, vector<32x128xf32> -> vector<32x128xf32>
    %48 = arith.addf %42, %47 : vector<32x128xf32>
    %c6 = arith.constant 6 : index
    %c0_30 = arith.constant 0 : index
    %c0_31 = arith.constant 0 : index
    %49 = vector.load %arg5[%c6, %c0_30, %c0_31] : memref<16x32x16xbf16, #tpu.memory_space<vmem>>, vector<1x32x16xbf16>
    %50 = vector.shape_cast %49 : vector<1x32x16xbf16> to vector<32x16xbf16>
    %51 = vector.extract_strided_slice %11 {offsets = [0, 768], sizes = [16, 128], strides = [1, 1]} : vector<16x2048xf32> to vector<16x128xf32>
    %52 = arith.truncf %51 : vector<16x128xf32> to vector<16x128xbf16>
    %cst_32 = arith.constant dense<0.000000e+00> : vector<32x128xf32>
    %53 = tpu.matmul %50, %52, %cst_32 {dimension_numbers = #tpu.dot_dimension_numbers<[1], [0], [0], [1], [0, 0, 1, 1], [], []>} : vector<32x16xbf16>, vector<16x128xbf16>, vector<32x128xf32> -> vector<32x128xf32>
    %54 = arith.addf %48, %53 : vector<32x128xf32>
    %c7 = arith.constant 7 : index
    %c0_33 = arith.constant 0 : index
    %c0_34 = arith.constant 0 : index
    %55 = vector.load %arg5[%c7, %c0_33, %c0_34] : memref<16x32x16xbf16, #tpu.memory_space<vmem>>, vector<1x32x16xbf16>
    %56 = vector.shape_cast %55 : vector<1x32x16xbf16> to vector<32x16xbf16>
    %57 = vector.extract_strided_slice %11 {offsets = [0, 896], sizes = [16, 128], strides = [1, 1]} : vector<16x2048xf32> to vector<16x128xf32>
    %58 = arith.truncf %57 : vector<16x128xf32> to vector<16x128xbf16>
    %cst_35 = arith.constant dense<0.000000e+00> : vector<32x128xf32>
    %59 = tpu.matmul %56, %58, %cst_35 {dimension_numbers = #tpu.dot_dimension_numbers<[1], [0], [0], [1], [0, 0, 1, 1], [], []>} : vector<32x16xbf16>, vector<16x128xbf16>, vector<32x128xf32> -> vector<32x128xf32>
    %60 = arith.addf %54, %59 : vector<32x128xf32>
    %c8 = arith.constant 8 : index
    %c0_36 = arith.constant 0 : index
    %c0_37 = arith.constant 0 : index
    %61 = vector.load %arg5[%c8, %c0_36, %c0_37] : memref<16x32x16xbf16, #tpu.memory_space<vmem>>, vector<1x32x16xbf16>
    %62 = vector.shape_cast %61 : vector<1x32x16xbf16> to vector<32x16xbf16>
    %63 = vector.extract_strided_slice %11 {offsets = [0, 1024], sizes = [16, 128], strides = [1, 1]} : vector<16x2048xf32> to vector<16x128xf32>
    %64 = arith.truncf %63 : vector<16x128xf32> to vector<16x128xbf16>
    %cst_38 = arith.constant dense<0.000000e+00> : vector<32x128xf32>
    %65 = tpu.matmul %62, %64, %cst_38 {dimension_numbers = #tpu.dot_dimension_numbers<[1], [0], [0], [1], [0, 0, 1, 1], [], []>} : vector<32x16xbf16>, vector<16x128xbf16>, vector<32x128xf32> -> vector<32x128xf32>
    %66 = arith.addf %60, %65 : vector<32x128xf32>
    %c9 = arith.constant 9 : index
    %c0_39 = arith.constant 0 : index
    %c0_40 = arith.constant 0 : index
    %67 = vector.load %arg5[%c9, %c0_39, %c0_40] : memref<16x32x16xbf16, #tpu.memory_space<vmem>>, vector<1x32x16xbf16>
    %68 = vector.shape_cast %67 : vector<1x32x16xbf16> to vector<32x16xbf16>
    %69 = vector.extract_strided_slice %11 {offsets = [0, 1152], sizes = [16, 128], strides = [1, 1]} : vector<16x2048xf32> to vector<16x128xf32>
    %70 = arith.truncf %69 : vector<16x128xf32> to vector<16x128xbf16>
    %cst_41 = arith.constant dense<0.000000e+00> : vector<32x128xf32>
    %71 = tpu.matmul %68, %70, %cst_41 {dimension_numbers = #tpu.dot_dimension_numbers<[1], [0], [0], [1], [0, 0, 1, 1], [], []>} : vector<32x16xbf16>, vector<16x128xbf16>, vector<32x128xf32> -> vector<32x128xf32>
    %72 = arith.addf %66, %71 : vector<32x128xf32>
    %c10 = arith.constant 10 : index
    %c0_42 = arith.constant 0 : index
    %c0_43 = arith.constant 0 : index
    %73 = vector.load %arg5[%c10, %c0_42, %c0_43] : memref<16x32x16xbf16, #tpu.memory_space<vmem>>, vector<1x32x16xbf16>
    %74 = vector.shape_cast %73 : vector<1x32x16xbf16> to vector<32x16xbf16>
    %75 = vector.extract_strided_slice %11 {offsets = [0, 1280], sizes = [16, 128], strides = [1, 1]} : vector<16x2048xf32> to vector<16x128xf32>
    %76 = arith.truncf %75 : vector<16x128xf32> to vector<16x128xbf16>
    %cst_44 = arith.constant dense<0.000000e+00> : vector<32x128xf32>
    %77 = tpu.matmul %74, %76, %cst_44 {dimension_numbers = #tpu.dot_dimension_numbers<[1], [0], [0], [1], [0, 0, 1, 1], [], []>} : vector<32x16xbf16>, vector<16x128xbf16>, vector<32x128xf32> -> vector<32x128xf32>
    %78 = arith.addf %72, %77 : vector<32x128xf32>
    %c11 = arith.constant 11 : index
    %c0_45 = arith.constant 0 : index
    %c0_46 = arith.constant 0 : index
    %79 = vector.load %arg5[%c11, %c0_45, %c0_46] : memref<16x32x16xbf16, #tpu.memory_space<vmem>>, vector<1x32x16xbf16>
    %80 = vector.shape_cast %79 : vector<1x32x16xbf16> to vector<32x16xbf16>
    %81 = vector.extract_strided_slice %11 {offsets = [0, 1408], sizes = [16, 128], strides = [1, 1]} : vector<16x2048xf32> to vector<16x128xf32>
    %82 = arith.truncf %81 : vector<16x128xf32> to vector<16x128xbf16>
    %cst_47 = arith.constant dense<0.000000e+00> : vector<32x128xf32>
    %83 = tpu.matmul %80, %82, %cst_47 {dimension_numbers = #tpu.dot_dimension_numbers<[1], [0], [0], [1], [0, 0, 1, 1], [], []>} : vector<32x16xbf16>, vector<16x128xbf16>, vector<32x128xf32> -> vector<32x128xf32>
    %84 = arith.addf %78, %83 : vector<32x128xf32>
    %c12 = arith.constant 12 : index
    %c0_48 = arith.constant 0 : index
    %c0_49 = arith.constant 0 : index
    %85 = vector.load %arg5[%c12, %c0_48, %c0_49] : memref<16x32x16xbf16, #tpu.memory_space<vmem>>, vector<1x32x16xbf16>
    %86 = vector.shape_cast %85 : vector<1x32x16xbf16> to vector<32x16xbf16>
    %87 = vector.extract_strided_slice %11 {offsets = [0, 1536], sizes = [16, 128], strides = [1, 1]} : vector<16x2048xf32> to vector<16x128xf32>
    %88 = arith.truncf %87 : vector<16x128xf32> to vector<16x128xbf16>
    %cst_50 = arith.constant dense<0.000000e+00> : vector<32x128xf32>
    %89 = tpu.matmul %86, %88, %cst_50 {dimension_numbers = #tpu.dot_dimension_numbers<[1], [0], [0], [1], [0, 0, 1, 1], [], []>} : vector<32x16xbf16>, vector<16x128xbf16>, vector<32x128xf32> -> vector<32x128xf32>
    %90 = arith.addf %84, %89 : vector<32x128xf32>
    %c13 = arith.constant 13 : index
    %c0_51 = arith.constant 0 : index
    %c0_52 = arith.constant 0 : index
    %91 = vector.load %arg5[%c13, %c0_51, %c0_52] : memref<16x32x16xbf16, #tpu.memory_space<vmem>>, vector<1x32x16xbf16>
    %92 = vector.shape_cast %91 : vector<1x32x16xbf16> to vector<32x16xbf16>
    %93 = vector.extract_strided_slice %11 {offsets = [0, 1664], sizes = [16, 128], strides = [1, 1]} : vector<16x2048xf32> to vector<16x128xf32>
    %94 = arith.truncf %93 : vector<16x128xf32> to vector<16x128xbf16>
    %cst_53 = arith.constant dense<0.000000e+00> : vector<32x128xf32>
    %95 = tpu.matmul %92, %94, %cst_53 {dimension_numbers = #tpu.dot_dimension_numbers<[1], [0], [0], [1], [0, 0, 1, 1], [], []>} : vector<32x16xbf16>, vector<16x128xbf16>, vector<32x128xf32> -> vector<32x128xf32>
    %96 = arith.addf %90, %95 : vector<32x128xf32>
    %c14 = arith.constant 14 : index
    %c0_54 = arith.constant 0 : index
    %c0_55 = arith.constant 0 : index
    %97 = vector.load %arg5[%c14, %c0_54, %c0_55] : memref<16x32x16xbf16, #tpu.memory_space<vmem>>, vector<1x32x16xbf16>
    %98 = vector.shape_cast %97 : vector<1x32x16xbf16> to vector<32x16xbf16>
    %99 = vector.extract_strided_slice %11 {offsets = [0, 1792], sizes = [16, 128], strides = [1, 1]} : vector<16x2048xf32> to vector<16x128xf32>
    %100 = arith.truncf %99 : vector<16x128xf32> to vector<16x128xbf16>
    %cst_56 = arith.constant dense<0.000000e+00> : vector<32x128xf32>
    %101 = tpu.matmul %98, %100, %cst_56 {dimension_numbers = #tpu.dot_dimension_numbers<[1], [0], [0], [1], [0, 0, 1, 1], [], []>} : vector<32x16xbf16>, vector<16x128xbf16>, vector<32x128xf32> -> vector<32x128xf32>
    %102 = arith.addf %96, %101 : vector<32x128xf32>
    %c15 = arith.constant 15 : index
    %c0_57 = arith.constant 0 : index
    %c0_58 = arith.constant 0 : index
    %103 = vector.load %arg5[%c15, %c0_57, %c0_58] : memref<16x32x16xbf16, #tpu.memory_space<vmem>>, vector<1x32x16xbf16>
    %104 = vector.shape_cast %103 : vector<1x32x16xbf16> to vector<32x16xbf16>
    %105 = vector.extract_strided_slice %11 {offsets = [0, 1920], sizes = [16, 128], strides = [1, 1]} : vector<16x2048xf32> to vector<16x128xf32>
    %106 = arith.truncf %105 : vector<16x128xf32> to vector<16x128xbf16>
    %cst_59 = arith.constant dense<0.000000e+00> : vector<32x128xf32>
    %107 = tpu.matmul %104, %106, %cst_59 {dimension_numbers = #tpu.dot_dimension_numbers<[1], [0], [0], [1], [0, 0, 1, 1], [], []>} : vector<32x16xbf16>, vector<16x128xbf16>, vector<32x128xf32> -> vector<32x128xf32>
    %108 = arith.addf %102, %107 : vector<32x128xf32>
    %109 = vector.extract_strided_slice %108 {offsets = [0, 0], sizes = [32, 36], strides = [1, 1]} : vector<32x128xf32> to vector<32x36xf32>
    %c0_60 = arith.constant 0 : index
    %c0_61 = arith.constant 0 : index
    %110 = vector.load %arg6[%c0_60, %c0_61] : memref<32x1xf32, #tpu.memory_space<vmem>>, vector<32x1xf32>
    %111 = vector.broadcast %110 : vector<32x1xf32> to vector<32x36xf32>
    %112 = arith.addf %109, %111 : vector<32x36xf32>
    %cst_62 = arith.constant 0.000000e+00 : f32
    %113 = vector.broadcast %cst_62 : f32 to vector<32x36xf32>
    %114 = arith.maximumf %112, %113 : vector<32x36xf32>
    %cst_63 = arith.constant 0.000000e+00 : f32
    %115 = vector.broadcast %cst_63 : f32 to vector<1x256xf32>
    %116 = vector.extract_strided_slice %114 {offsets = [0, 0], sizes = [1, 36], strides = [1, 1]} : vector<32x36xf32> to vector<1x36xf32>
    %c0_64 = arith.constant 0 : index
    %c0_65 = arith.constant 0 : index
    %c0_66 = arith.constant 0 : index
    %117 = vector.load %arg7[%c0_64, %c0_65, %c0_66] : memref<32x36x256xbf16, #tpu.memory_space<vmem>>, vector<1x36x256xbf16>
    %118 = vector.shape_cast %117 : vector<1x36x256xbf16> to vector<36x256xbf16>
    %119 = arith.truncf %116 : vector<1x36xf32> to vector<1x36xbf16>
    %cst_67 = arith.constant dense<0.000000e+00> : vector<1x256xf32>
    %120 = tpu.matmul %119, %118, %cst_67 {dimension_numbers = #tpu.dot_dimension_numbers<[1], [0], [0], [1], [0, 0, 1, 1], [], []>} : vector<1x36xbf16>, vector<36x256xbf16>, vector<1x256xf32> -> vector<1x256xf32>
    %121 = arith.addf %115, %120 : vector<1x256xf32>
    %122 = vector.extract_strided_slice %114 {offsets = [1, 0], sizes = [1, 36], strides = [1, 1]} : vector<32x36xf32> to vector<1x36xf32>
    %c1_68 = arith.constant 1 : index
    %c0_69 = arith.constant 0 : index
    %c0_70 = arith.constant 0 : index
    %123 = vector.load %arg7[%c1_68, %c0_69, %c0_70] : memref<32x36x256xbf16, #tpu.memory_space<vmem>>, vector<1x36x256xbf16>
    %124 = vector.shape_cast %123 : vector<1x36x256xbf16> to vector<36x256xbf16>
    %125 = arith.truncf %122 : vector<1x36xf32> to vector<1x36xbf16>
    %cst_71 = arith.constant dense<0.000000e+00> : vector<1x256xf32>
    %126 = tpu.matmul %125, %124, %cst_71 {dimension_numbers = #tpu.dot_dimension_numbers<[1], [0], [0], [1], [0, 0, 1, 1], [], []>} : vector<1x36xbf16>, vector<36x256xbf16>, vector<1x256xf32> -> vector<1x256xf32>
    %127 = arith.addf %121, %126 : vector<1x256xf32>
    %128 = vector.extract_strided_slice %114 {offsets = [2, 0], sizes = [1, 36], strides = [1, 1]} : vector<32x36xf32> to vector<1x36xf32>
    %c2_72 = arith.constant 2 : index
    %c0_73 = arith.constant 0 : index
    %c0_74 = arith.constant 0 : index
    %129 = vector.load %arg7[%c2_72, %c0_73, %c0_74] : memref<32x36x256xbf16, #tpu.memory_space<vmem>>, vector<1x36x256xbf16>
    %130 = vector.shape_cast %129 : vector<1x36x256xbf16> to vector<36x256xbf16>
    %131 = arith.truncf %128 : vector<1x36xf32> to vector<1x36xbf16>
    %cst_75 = arith.constant dense<0.000000e+00> : vector<1x256xf32>
    %132 = tpu.matmul %131, %130, %cst_75 {dimension_numbers = #tpu.dot_dimension_numbers<[1], [0], [0], [1], [0, 0, 1, 1], [], []>} : vector<1x36xbf16>, vector<36x256xbf16>, vector<1x256xf32> -> vector<1x256xf32>
    %133 = arith.addf %127, %132 : vector<1x256xf32>
    %134 = vector.extract_strided_slice %114 {offsets = [3, 0], sizes = [1, 36], strides = [1, 1]} : vector<32x36xf32> to vector<1x36xf32>
    %c3_76 = arith.constant 3 : index
    %c0_77 = arith.constant 0 : index
    %c0_78 = arith.constant 0 : index
    %135 = vector.load %arg7[%c3_76, %c0_77, %c0_78] : memref<32x36x256xbf16, #tpu.memory_space<vmem>>, vector<1x36x256xbf16>
    %136 = vector.shape_cast %135 : vector<1x36x256xbf16> to vector<36x256xbf16>
    %137 = arith.truncf %134 : vector<1x36xf32> to vector<1x36xbf16>
    %cst_79 = arith.constant dense<0.000000e+00> : vector<1x256xf32>
    %138 = tpu.matmul %137, %136, %cst_79 {dimension_numbers = #tpu.dot_dimension_numbers<[1], [0], [0], [1], [0, 0, 1, 1], [], []>} : vector<1x36xbf16>, vector<36x256xbf16>, vector<1x256xf32> -> vector<1x256xf32>
    %139 = arith.addf %133, %138 : vector<1x256xf32>
    %140 = vector.extract_strided_slice %114 {offsets = [4, 0], sizes = [1, 36], strides = [1, 1]} : vector<32x36xf32> to vector<1x36xf32>
    %c4_80 = arith.constant 4 : index
    %c0_81 = arith.constant 0 : index
    %c0_82 = arith.constant 0 : index
    %141 = vector.load %arg7[%c4_80, %c0_81, %c0_82] : memref<32x36x256xbf16, #tpu.memory_space<vmem>>, vector<1x36x256xbf16>
    %142 = vector.shape_cast %141 : vector<1x36x256xbf16> to vector<36x256xbf16>
    %143 = arith.truncf %140 : vector<1x36xf32> to vector<1x36xbf16>
    %cst_83 = arith.constant dense<0.000000e+00> : vector<1x256xf32>
    %144 = tpu.matmul %143, %142, %cst_83 {dimension_numbers = #tpu.dot_dimension_numbers<[1], [0], [0], [1], [0, 0, 1, 1], [], []>} : vector<1x36xbf16>, vector<36x256xbf16>, vector<1x256xf32> -> vector<1x256xf32>
    %145 = arith.addf %139, %144 : vector<1x256xf32>
    %146 = vector.extract_strided_slice %114 {offsets = [5, 0], sizes = [1, 36], strides = [1, 1]} : vector<32x36xf32> to vector<1x36xf32>
    %c5_84 = arith.constant 5 : index
    %c0_85 = arith.constant 0 : index
    %c0_86 = arith.constant 0 : index
    %147 = vector.load %arg7[%c5_84, %c0_85, %c0_86] : memref<32x36x256xbf16, #tpu.memory_space<vmem>>, vector<1x36x256xbf16>
    %148 = vector.shape_cast %147 : vector<1x36x256xbf16> to vector<36x256xbf16>
    %149 = arith.truncf %146 : vector<1x36xf32> to vector<1x36xbf16>
    %cst_87 = arith.constant dense<0.000000e+00> : vector<1x256xf32>
    %150 = tpu.matmul %149, %148, %cst_87 {dimension_numbers = #tpu.dot_dimension_numbers<[1], [0], [0], [1], [0, 0, 1, 1], [], []>} : vector<1x36xbf16>, vector<36x256xbf16>, vector<1x256xf32> -> vector<1x256xf32>
    %151 = arith.addf %145, %150 : vector<1x256xf32>
    %152 = vector.extract_strided_slice %114 {offsets = [6, 0], sizes = [1, 36], strides = [1, 1]} : vector<32x36xf32> to vector<1x36xf32>
    %c6_88 = arith.constant 6 : index
    %c0_89 = arith.constant 0 : index
    %c0_90 = arith.constant 0 : index
    %153 = vector.load %arg7[%c6_88, %c0_89, %c0_90] : memref<32x36x256xbf16, #tpu.memory_space<vmem>>, vector<1x36x256xbf16>
    %154 = vector.shape_cast %153 : vector<1x36x256xbf16> to vector<36x256xbf16>
    %155 = arith.truncf %152 : vector<1x36xf32> to vector<1x36xbf16>
    %cst_91 = arith.constant dense<0.000000e+00> : vector<1x256xf32>
    %156 = tpu.matmul %155, %154, %cst_91 {dimension_numbers = #tpu.dot_dimension_numbers<[1], [0], [0], [1], [0, 0, 1, 1], [], []>} : vector<1x36xbf16>, vector<36x256xbf16>, vector<1x256xf32> -> vector<1x256xf32>
    %157 = arith.addf %151, %156 : vector<1x256xf32>
    %158 = vector.extract_strided_slice %114 {offsets = [7, 0], sizes = [1, 36], strides = [1, 1]} : vector<32x36xf32> to vector<1x36xf32>
    %c7_92 = arith.constant 7 : index
    %c0_93 = arith.constant 0 : index
    %c0_94 = arith.constant 0 : index
    %159 = vector.load %arg7[%c7_92, %c0_93, %c0_94] : memref<32x36x256xbf16, #tpu.memory_space<vmem>>, vector<1x36x256xbf16>
    %160 = vector.shape_cast %159 : vector<1x36x256xbf16> to vector<36x256xbf16>
    %161 = arith.truncf %158 : vector<1x36xf32> to vector<1x36xbf16>
    %cst_95 = arith.constant dense<0.000000e+00> : vector<1x256xf32>
    %162 = tpu.matmul %161, %160, %cst_95 {dimension_numbers = #tpu.dot_dimension_numbers<[1], [0], [0], [1], [0, 0, 1, 1], [], []>} : vector<1x36xbf16>, vector<36x256xbf16>, vector<1x256xf32> -> vector<1x256xf32>
    %163 = arith.addf %157, %162 : vector<1x256xf32>
    %164 = vector.extract_strided_slice %114 {offsets = [8, 0], sizes = [1, 36], strides = [1, 1]} : vector<32x36xf32> to vector<1x36xf32>
    %c8_96 = arith.constant 8 : index
    %c0_97 = arith.constant 0 : index
    %c0_98 = arith.constant 0 : index
    %165 = vector.load %arg7[%c8_96, %c0_97, %c0_98] : memref<32x36x256xbf16, #tpu.memory_space<vmem>>, vector<1x36x256xbf16>
    %166 = vector.shape_cast %165 : vector<1x36x256xbf16> to vector<36x256xbf16>
    %167 = arith.truncf %164 : vector<1x36xf32> to vector<1x36xbf16>
    %cst_99 = arith.constant dense<0.000000e+00> : vector<1x256xf32>
    %168 = tpu.matmul %167, %166, %cst_99 {dimension_numbers = #tpu.dot_dimension_numbers<[1], [0], [0], [1], [0, 0, 1, 1], [], []>} : vector<1x36xbf16>, vector<36x256xbf16>, vector<1x256xf32> -> vector<1x256xf32>
    %169 = arith.addf %163, %168 : vector<1x256xf32>
    %170 = vector.extract_strided_slice %114 {offsets = [9, 0], sizes = [1, 36], strides = [1, 1]} : vector<32x36xf32> to vector<1x36xf32>
    %c9_100 = arith.constant 9 : index
    %c0_101 = arith.constant 0 : index
    %c0_102 = arith.constant 0 : index
    %171 = vector.load %arg7[%c9_100, %c0_101, %c0_102] : memref<32x36x256xbf16, #tpu.memory_space<vmem>>, vector<1x36x256xbf16>
    %172 = vector.shape_cast %171 : vector<1x36x256xbf16> to vector<36x256xbf16>
    %173 = arith.truncf %170 : vector<1x36xf32> to vector<1x36xbf16>
    %cst_103 = arith.constant dense<0.000000e+00> : vector<1x256xf32>
    %174 = tpu.matmul %173, %172, %cst_103 {dimension_numbers = #tpu.dot_dimension_numbers<[1], [0], [0], [1], [0, 0, 1, 1], [], []>} : vector<1x36xbf16>, vector<36x256xbf16>, vector<1x256xf32> -> vector<1x256xf32>
    %175 = arith.addf %169, %174 : vector<1x256xf32>
    %176 = vector.extract_strided_slice %114 {offsets = [10, 0], sizes = [1, 36], strides = [1, 1]} : vector<32x36xf32> to vector<1x36xf32>
    %c10_104 = arith.constant 10 : index
    %c0_105 = arith.constant 0 : index
    %c0_106 = arith.constant 0 : index
    %177 = vector.load %arg7[%c10_104, %c0_105, %c0_106] : memref<32x36x256xbf16, #tpu.memory_space<vmem>>, vector<1x36x256xbf16>
    %178 = vector.shape_cast %177 : vector<1x36x256xbf16> to vector<36x256xbf16>
    %179 = arith.truncf %176 : vector<1x36xf32> to vector<1x36xbf16>
    %cst_107 = arith.constant dense<0.000000e+00> : vector<1x256xf32>
    %180 = tpu.matmul %179, %178, %cst_107 {dimension_numbers = #tpu.dot_dimension_numbers<[1], [0], [0], [1], [0, 0, 1, 1], [], []>} : vector<1x36xbf16>, vector<36x256xbf16>, vector<1x256xf32> -> vector<1x256xf32>
    %181 = arith.addf %175, %180 : vector<1x256xf32>
    %182 = vector.extract_strided_slice %114 {offsets = [11, 0], sizes = [1, 36], strides = [1, 1]} : vector<32x36xf32> to vector<1x36xf32>
    %c11_108 = arith.constant 11 : index
    %c0_109 = arith.constant 0 : index
    %c0_110 = arith.constant 0 : index
    %183 = vector.load %arg7[%c11_108, %c0_109, %c0_110] : memref<32x36x256xbf16, #tpu.memory_space<vmem>>, vector<1x36x256xbf16>
    %184 = vector.shape_cast %183 : vector<1x36x256xbf16> to vector<36x256xbf16>
    %185 = arith.truncf %182 : vector<1x36xf32> to vector<1x36xbf16>
    %cst_111 = arith.constant dense<0.000000e+00> : vector<1x256xf32>
    %186 = tpu.matmul %185, %184, %cst_111 {dimension_numbers = #tpu.dot_dimension_numbers<[1], [0], [0], [1], [0, 0, 1, 1], [], []>} : vector<1x36xbf16>, vector<36x256xbf16>, vector<1x256xf32> -> vector<1x256xf32>
    %187 = arith.addf %181, %186 : vector<1x256xf32>
    %188 = vector.extract_strided_slice %114 {offsets = [12, 0], sizes = [1, 36], strides = [1, 1]} : vector<32x36xf32> to vector<1x36xf32>
    %c12_112 = arith.constant 12 : index
    %c0_113 = arith.constant 0 : index
    %c0_114 = arith.constant 0 : index
    %189 = vector.load %arg7[%c12_112, %c0_113, %c0_114] : memref<32x36x256xbf16, #tpu.memory_space<vmem>>, vector<1x36x256xbf16>
    %190 = vector.shape_cast %189 : vector<1x36x256xbf16> to vector<36x256xbf16>
    %191 = arith.truncf %188 : vector<1x36xf32> to vector<1x36xbf16>
    %cst_115 = arith.constant dense<0.000000e+00> : vector<1x256xf32>
    %192 = tpu.matmul %191, %190, %cst_115 {dimension_numbers = #tpu.dot_dimension_numbers<[1], [0], [0], [1], [0, 0, 1, 1], [], []>} : vector<1x36xbf16>, vector<36x256xbf16>, vector<1x256xf32> -> vector<1x256xf32>
    %193 = arith.addf %187, %192 : vector<1x256xf32>
    %194 = vector.extract_strided_slice %114 {offsets = [13, 0], sizes = [1, 36], strides = [1, 1]} : vector<32x36xf32> to vector<1x36xf32>
    %c13_116 = arith.constant 13 : index
    %c0_117 = arith.constant 0 : index
    %c0_118 = arith.constant 0 : index
    %195 = vector.load %arg7[%c13_116, %c0_117, %c0_118] : memref<32x36x256xbf16, #tpu.memory_space<vmem>>, vector<1x36x256xbf16>
    %196 = vector.shape_cast %195 : vector<1x36x256xbf16> to vector<36x256xbf16>
    %197 = arith.truncf %194 : vector<1x36xf32> to vector<1x36xbf16>
    %cst_119 = arith.constant dense<0.000000e+00> : vector<1x256xf32>
    %198 = tpu.matmul %197, %196, %cst_119 {dimension_numbers = #tpu.dot_dimension_numbers<[1], [0], [0], [1], [0, 0, 1, 1], [], []>} : vector<1x36xbf16>, vector<36x256xbf16>, vector<1x256xf32> -> vector<1x256xf32>
    %199 = arith.addf %193, %198 : vector<1x256xf32>
    %200 = vector.extract_strided_slice %114 {offsets = [14, 0], sizes = [1, 36], strides = [1, 1]} : vector<32x36xf32> to vector<1x36xf32>
    %c14_120 = arith.constant 14 : index
    %c0_121 = arith.constant 0 : index
    %c0_122 = arith.constant 0 : index
    %201 = vector.load %arg7[%c14_120, %c0_121, %c0_122] : memref<32x36x256xbf16, #tpu.memory_space<vmem>>, vector<1x36x256xbf16>
    %202 = vector.shape_cast %201 : vector<1x36x256xbf16> to vector<36x256xbf16>
    %203 = arith.truncf %200 : vector<1x36xf32> to vector<1x36xbf16>
    %cst_123 = arith.constant dense<0.000000e+00> : vector<1x256xf32>
    %204 = tpu.matmul %203, %202, %cst_123 {dimension_numbers = #tpu.dot_dimension_numbers<[1], [0], [0], [1], [0, 0, 1, 1], [], []>} : vector<1x36xbf16>, vector<36x256xbf16>, vector<1x256xf32> -> vector<1x256xf32>
    %205 = arith.addf %199, %204 : vector<1x256xf32>
    %206 = vector.extract_strided_slice %114 {offsets = [15, 0], sizes = [1, 36], strides = [1, 1]} : vector<32x36xf32> to vector<1x36xf32>
    %c15_124 = arith.constant 15 : index
    %c0_125 = arith.constant 0 : index
    %c0_126 = arith.constant 0 : index
    %207 = vector.load %arg7[%c15_124, %c0_125, %c0_126] : memref<32x36x256xbf16, #tpu.memory_space<vmem>>, vector<1x36x256xbf16>
    %208 = vector.shape_cast %207 : vector<1x36x256xbf16> to vector<36x256xbf16>
    %209 = arith.truncf %206 : vector<1x36xf32> to vector<1x36xbf16>
    %cst_127 = arith.constant dense<0.000000e+00> : vector<1x256xf32>
    %210 = tpu.matmul %209, %208, %cst_127 {dimension_numbers = #tpu.dot_dimension_numbers<[1], [0], [0], [1], [0, 0, 1, 1], [], []>} : vector<1x36xbf16>, vector<36x256xbf16>, vector<1x256xf32> -> vector<1x256xf32>
    %211 = arith.addf %205, %210 : vector<1x256xf32>
    %212 = vector.extract_strided_slice %114 {offsets = [16, 0], sizes = [1, 36], strides = [1, 1]} : vector<32x36xf32> to vector<1x36xf32>
    %c16 = arith.constant 16 : index
    %c0_128 = arith.constant 0 : index
    %c0_129 = arith.constant 0 : index
    %213 = vector.load %arg7[%c16, %c0_128, %c0_129] : memref<32x36x256xbf16, #tpu.memory_space<vmem>>, vector<1x36x256xbf16>
    %214 = vector.shape_cast %213 : vector<1x36x256xbf16> to vector<36x256xbf16>
    %215 = arith.truncf %212 : vector<1x36xf32> to vector<1x36xbf16>
    %cst_130 = arith.constant dense<0.000000e+00> : vector<1x256xf32>
    %216 = tpu.matmul %215, %214, %cst_130 {dimension_numbers = #tpu.dot_dimension_numbers<[1], [0], [0], [1], [0, 0, 1, 1], [], []>} : vector<1x36xbf16>, vector<36x256xbf16>, vector<1x256xf32> -> vector<1x256xf32>
    %217 = arith.addf %211, %216 : vector<1x256xf32>
    %218 = vector.extract_strided_slice %114 {offsets = [17, 0], sizes = [1, 36], strides = [1, 1]} : vector<32x36xf32> to vector<1x36xf32>
    %c17 = arith.constant 17 : index
    %c0_131 = arith.constant 0 : index
    %c0_132 = arith.constant 0 : index
    %219 = vector.load %arg7[%c17, %c0_131, %c0_132] : memref<32x36x256xbf16, #tpu.memory_space<vmem>>, vector<1x36x256xbf16>
    %220 = vector.shape_cast %219 : vector<1x36x256xbf16> to vector<36x256xbf16>
    %221 = arith.truncf %218 : vector<1x36xf32> to vector<1x36xbf16>
    %cst_133 = arith.constant dense<0.000000e+00> : vector<1x256xf32>
    %222 = tpu.matmul %221, %220, %cst_133 {dimension_numbers = #tpu.dot_dimension_numbers<[1], [0], [0], [1], [0, 0, 1, 1], [], []>} : vector<1x36xbf16>, vector<36x256xbf16>, vector<1x256xf32> -> vector<1x256xf32>
    %223 = arith.addf %217, %222 : vector<1x256xf32>
    %224 = vector.extract_strided_slice %114 {offsets = [18, 0], sizes = [1, 36], strides = [1, 1]} : vector<32x36xf32> to vector<1x36xf32>
    %c18 = arith.constant 18 : index
    %c0_134 = arith.constant 0 : index
    %c0_135 = arith.constant 0 : index
    %225 = vector.load %arg7[%c18, %c0_134, %c0_135] : memref<32x36x256xbf16, #tpu.memory_space<vmem>>, vector<1x36x256xbf16>
    %226 = vector.shape_cast %225 : vector<1x36x256xbf16> to vector<36x256xbf16>
    %227 = arith.truncf %224 : vector<1x36xf32> to vector<1x36xbf16>
    %cst_136 = arith.constant dense<0.000000e+00> : vector<1x256xf32>
    %228 = tpu.matmul %227, %226, %cst_136 {dimension_numbers = #tpu.dot_dimension_numbers<[1], [0], [0], [1], [0, 0, 1, 1], [], []>} : vector<1x36xbf16>, vector<36x256xbf16>, vector<1x256xf32> -> vector<1x256xf32>
    %229 = arith.addf %223, %228 : vector<1x256xf32>
    %230 = vector.extract_strided_slice %114 {offsets = [19, 0], sizes = [1, 36], strides = [1, 1]} : vector<32x36xf32> to vector<1x36xf32>
    %c19 = arith.constant 19 : index
    %c0_137 = arith.constant 0 : index
    %c0_138 = arith.constant 0 : index
    %231 = vector.load %arg7[%c19, %c0_137, %c0_138] : memref<32x36x256xbf16, #tpu.memory_space<vmem>>, vector<1x36x256xbf16>
    %232 = vector.shape_cast %231 : vector<1x36x256xbf16> to vector<36x256xbf16>
    %233 = arith.truncf %230 : vector<1x36xf32> to vector<1x36xbf16>
    %cst_139 = arith.constant dense<0.000000e+00> : vector<1x256xf32>
    %234 = tpu.matmul %233, %232, %cst_139 {dimension_numbers = #tpu.dot_dimension_numbers<[1], [0], [0], [1], [0, 0, 1, 1], [], []>} : vector<1x36xbf16>, vector<36x256xbf16>, vector<1x256xf32> -> vector<1x256xf32>
    %235 = arith.addf %229, %234 : vector<1x256xf32>
    %236 = vector.extract_strided_slice %114 {offsets = [20, 0], sizes = [1, 36], strides = [1, 1]} : vector<32x36xf32> to vector<1x36xf32>
    %c20 = arith.constant 20 : index
    %c0_140 = arith.constant 0 : index
    %c0_141 = arith.constant 0 : index
    %237 = vector.load %arg7[%c20, %c0_140, %c0_141] : memref<32x36x256xbf16, #tpu.memory_space<vmem>>, vector<1x36x256xbf16>
    %238 = vector.shape_cast %237 : vector<1x36x256xbf16> to vector<36x256xbf16>
    %239 = arith.truncf %236 : vector<1x36xf32> to vector<1x36xbf16>
    %cst_142 = arith.constant dense<0.000000e+00> : vector<1x256xf32>
    %240 = tpu.matmul %239, %238, %cst_142 {dimension_numbers = #tpu.dot_dimension_numbers<[1], [0], [0], [1], [0, 0, 1, 1], [], []>} : vector<1x36xbf16>, vector<36x256xbf16>, vector<1x256xf32> -> vector<1x256xf32>
    %241 = arith.addf %235, %240 : vector<1x256xf32>
    %242 = vector.extract_strided_slice %114 {offsets = [21, 0], sizes = [1, 36], strides = [1, 1]} : vector<32x36xf32> to vector<1x36xf32>
    %c21 = arith.constant 21 : index
    %c0_143 = arith.constant 0 : index
    %c0_144 = arith.constant 0 : index
    %243 = vector.load %arg7[%c21, %c0_143, %c0_144] : memref<32x36x256xbf16, #tpu.memory_space<vmem>>, vector<1x36x256xbf16>
    %244 = vector.shape_cast %243 : vector<1x36x256xbf16> to vector<36x256xbf16>
    %245 = arith.truncf %242 : vector<1x36xf32> to vector<1x36xbf16>
    %cst_145 = arith.constant dense<0.000000e+00> : vector<1x256xf32>
    %246 = tpu.matmul %245, %244, %cst_145 {dimension_numbers = #tpu.dot_dimension_numbers<[1], [0], [0], [1], [0, 0, 1, 1], [], []>} : vector<1x36xbf16>, vector<36x256xbf16>, vector<1x256xf32> -> vector<1x256xf32>
    %247 = arith.addf %241, %246 : vector<1x256xf32>
    %248 = vector.extract_strided_slice %114 {offsets = [22, 0], sizes = [1, 36], strides = [1, 1]} : vector<32x36xf32> to vector<1x36xf32>
    %c22 = arith.constant 22 : index
    %c0_146 = arith.constant 0 : index
    %c0_147 = arith.constant 0 : index
    %249 = vector.load %arg7[%c22, %c0_146, %c0_147] : memref<32x36x256xbf16, #tpu.memory_space<vmem>>, vector<1x36x256xbf16>
    %250 = vector.shape_cast %249 : vector<1x36x256xbf16> to vector<36x256xbf16>
    %251 = arith.truncf %248 : vector<1x36xf32> to vector<1x36xbf16>
    %cst_148 = arith.constant dense<0.000000e+00> : vector<1x256xf32>
    %252 = tpu.matmul %251, %250, %cst_148 {dimension_numbers = #tpu.dot_dimension_numbers<[1], [0], [0], [1], [0, 0, 1, 1], [], []>} : vector<1x36xbf16>, vector<36x256xbf16>, vector<1x256xf32> -> vector<1x256xf32>
    %253 = arith.addf %247, %252 : vector<1x256xf32>
    %254 = vector.extract_strided_slice %114 {offsets = [23, 0], sizes = [1, 36], strides = [1, 1]} : vector<32x36xf32> to vector<1x36xf32>
    %c23 = arith.constant 23 : index
    %c0_149 = arith.constant 0 : index
    %c0_150 = arith.constant 0 : index
    %255 = vector.load %arg7[%c23, %c0_149, %c0_150] : memref<32x36x256xbf16, #tpu.memory_space<vmem>>, vector<1x36x256xbf16>
    %256 = vector.shape_cast %255 : vector<1x36x256xbf16> to vector<36x256xbf16>
    %257 = arith.truncf %254 : vector<1x36xf32> to vector<1x36xbf16>
    %cst_151 = arith.constant dense<0.000000e+00> : vector<1x256xf32>
    %258 = tpu.matmul %257, %256, %cst_151 {dimension_numbers = #tpu.dot_dimension_numbers<[1], [0], [0], [1], [0, 0, 1, 1], [], []>} : vector<1x36xbf16>, vector<36x256xbf16>, vector<1x256xf32> -> vector<1x256xf32>
    %259 = arith.addf %253, %258 : vector<1x256xf32>
    %260 = vector.extract_strided_slice %114 {offsets = [24, 0], sizes = [1, 36], strides = [1, 1]} : vector<32x36xf32> to vector<1x36xf32>
    %c24 = arith.constant 24 : index
    %c0_152 = arith.constant 0 : index
    %c0_153 = arith.constant 0 : index
    %261 = vector.load %arg7[%c24, %c0_152, %c0_153] : memref<32x36x256xbf16, #tpu.memory_space<vmem>>, vector<1x36x256xbf16>
    %262 = vector.shape_cast %261 : vector<1x36x256xbf16> to vector<36x256xbf16>
    %263 = arith.truncf %260 : vector<1x36xf32> to vector<1x36xbf16>
    %cst_154 = arith.constant dense<0.000000e+00> : vector<1x256xf32>
    %264 = tpu.matmul %263, %262, %cst_154 {dimension_numbers = #tpu.dot_dimension_numbers<[1], [0], [0], [1], [0, 0, 1, 1], [], []>} : vector<1x36xbf16>, vector<36x256xbf16>, vector<1x256xf32> -> vector<1x256xf32>
    %265 = arith.addf %259, %264 : vector<1x256xf32>
    %266 = vector.extract_strided_slice %114 {offsets = [25, 0], sizes = [1, 36], strides = [1, 1]} : vector<32x36xf32> to vector<1x36xf32>
    %c25 = arith.constant 25 : index
    %c0_155 = arith.constant 0 : index
    %c0_156 = arith.constant 0 : index
    %267 = vector.load %arg7[%c25, %c0_155, %c0_156] : memref<32x36x256xbf16, #tpu.memory_space<vmem>>, vector<1x36x256xbf16>
    %268 = vector.shape_cast %267 : vector<1x36x256xbf16> to vector<36x256xbf16>
    %269 = arith.truncf %266 : vector<1x36xf32> to vector<1x36xbf16>
    %cst_157 = arith.constant dense<0.000000e+00> : vector<1x256xf32>
    %270 = tpu.matmul %269, %268, %cst_157 {dimension_numbers = #tpu.dot_dimension_numbers<[1], [0], [0], [1], [0, 0, 1, 1], [], []>} : vector<1x36xbf16>, vector<36x256xbf16>, vector<1x256xf32> -> vector<1x256xf32>
    %271 = arith.addf %265, %270 : vector<1x256xf32>
    %272 = vector.extract_strided_slice %114 {offsets = [26, 0], sizes = [1, 36], strides = [1, 1]} : vector<32x36xf32> to vector<1x36xf32>
    %c26 = arith.constant 26 : index
    %c0_158 = arith.constant 0 : index
    %c0_159 = arith.constant 0 : index
    %273 = vector.load %arg7[%c26, %c0_158, %c0_159] : memref<32x36x256xbf16, #tpu.memory_space<vmem>>, vector<1x36x256xbf16>
    %274 = vector.shape_cast %273 : vector<1x36x256xbf16> to vector<36x256xbf16>
    %275 = arith.truncf %272 : vector<1x36xf32> to vector<1x36xbf16>
    %cst_160 = arith.constant dense<0.000000e+00> : vector<1x256xf32>
    %276 = tpu.matmul %275, %274, %cst_160 {dimension_numbers = #tpu.dot_dimension_numbers<[1], [0], [0], [1], [0, 0, 1, 1], [], []>} : vector<1x36xbf16>, vector<36x256xbf16>, vector<1x256xf32> -> vector<1x256xf32>
    %277 = arith.addf %271, %276 : vector<1x256xf32>
    %278 = vector.extract_strided_slice %114 {offsets = [27, 0], sizes = [1, 36], strides = [1, 1]} : vector<32x36xf32> to vector<1x36xf32>
    %c27 = arith.constant 27 : index
    %c0_161 = arith.constant 0 : index
    %c0_162 = arith.constant 0 : index
    %279 = vector.load %arg7[%c27, %c0_161, %c0_162] : memref<32x36x256xbf16, #tpu.memory_space<vmem>>, vector<1x36x256xbf16>
    %280 = vector.shape_cast %279 : vector<1x36x256xbf16> to vector<36x256xbf16>
    %281 = arith.truncf %278 : vector<1x36xf32> to vector<1x36xbf16>
    %cst_163 = arith.constant dense<0.000000e+00> : vector<1x256xf32>
    %282 = tpu.matmul %281, %280, %cst_163 {dimension_numbers = #tpu.dot_dimension_numbers<[1], [0], [0], [1], [0, 0, 1, 1], [], []>} : vector<1x36xbf16>, vector<36x256xbf16>, vector<1x256xf32> -> vector<1x256xf32>
    %283 = arith.addf %277, %282 : vector<1x256xf32>
    %284 = vector.extract_strided_slice %114 {offsets = [28, 0], sizes = [1, 36], strides = [1, 1]} : vector<32x36xf32> to vector<1x36xf32>
    %c28 = arith.constant 28 : index
    %c0_164 = arith.constant 0 : index
    %c0_165 = arith.constant 0 : index
    %285 = vector.load %arg7[%c28, %c0_164, %c0_165] : memref<32x36x256xbf16, #tpu.memory_space<vmem>>, vector<1x36x256xbf16>
    %286 = vector.shape_cast %285 : vector<1x36x256xbf16> to vector<36x256xbf16>
    %287 = arith.truncf %284 : vector<1x36xf32> to vector<1x36xbf16>
    %cst_166 = arith.constant dense<0.000000e+00> : vector<1x256xf32>
    %288 = tpu.matmul %287, %286, %cst_166 {dimension_numbers = #tpu.dot_dimension_numbers<[1], [0], [0], [1], [0, 0, 1, 1], [], []>} : vector<1x36xbf16>, vector<36x256xbf16>, vector<1x256xf32> -> vector<1x256xf32>
    %289 = arith.addf %283, %288 : vector<1x256xf32>
    %290 = vector.extract_strided_slice %114 {offsets = [29, 0], sizes = [1, 36], strides = [1, 1]} : vector<32x36xf32> to vector<1x36xf32>
    %c29 = arith.constant 29 : index
    %c0_167 = arith.constant 0 : index
    %c0_168 = arith.constant 0 : index
    %291 = vector.load %arg7[%c29, %c0_167, %c0_168] : memref<32x36x256xbf16, #tpu.memory_space<vmem>>, vector<1x36x256xbf16>
    %292 = vector.shape_cast %291 : vector<1x36x256xbf16> to vector<36x256xbf16>
    %293 = arith.truncf %290 : vector<1x36xf32> to vector<1x36xbf16>
    %cst_169 = arith.constant dense<0.000000e+00> : vector<1x256xf32>
    %294 = tpu.matmul %293, %292, %cst_169 {dimension_numbers = #tpu.dot_dimension_numbers<[1], [0], [0], [1], [0, 0, 1, 1], [], []>} : vector<1x36xbf16>, vector<36x256xbf16>, vector<1x256xf32> -> vector<1x256xf32>
    %295 = arith.addf %289, %294 : vector<1x256xf32>
    %296 = vector.extract_strided_slice %114 {offsets = [30, 0], sizes = [1, 36], strides = [1, 1]} : vector<32x36xf32> to vector<1x36xf32>
    %c30 = arith.constant 30 : index
    %c0_170 = arith.constant 0 : index
    %c0_171 = arith.constant 0 : index
    %297 = vector.load %arg7[%c30, %c0_170, %c0_171] : memref<32x36x256xbf16, #tpu.memory_space<vmem>>, vector<1x36x256xbf16>
    %298 = vector.shape_cast %297 : vector<1x36x256xbf16> to vector<36x256xbf16>
    %299 = arith.truncf %296 : vector<1x36xf32> to vector<1x36xbf16>
    %cst_172 = arith.constant dense<0.000000e+00> : vector<1x256xf32>
    %300 = tpu.matmul %299, %298, %cst_172 {dimension_numbers = #tpu.dot_dimension_numbers<[1], [0], [0], [1], [0, 0, 1, 1], [], []>} : vector<1x36xbf16>, vector<36x256xbf16>, vector<1x256xf32> -> vector<1x256xf32>
    %301 = arith.addf %295, %300 : vector<1x256xf32>
    %302 = vector.extract_strided_slice %114 {offsets = [31, 0], sizes = [1, 36], strides = [1, 1]} : vector<32x36xf32> to vector<1x36xf32>
    %c31 = arith.constant 31 : index
    %c0_173 = arith.constant 0 : index
    %c0_174 = arith.constant 0 : index
    %303 = vector.load %arg7[%c31, %c0_173, %c0_174] : memref<32x36x256xbf16, #tpu.memory_space<vmem>>, vector<1x36x256xbf16>
    %304 = vector.shape_cast %303 : vector<1x36x256xbf16> to vector<36x256xbf16>
    %305 = arith.truncf %302 : vector<1x36xf32> to vector<1x36xbf16>
    %cst_175 = arith.constant dense<0.000000e+00> : vector<1x256xf32>
    %306 = tpu.matmul %305, %304, %cst_175 {dimension_numbers = #tpu.dot_dimension_numbers<[1], [0], [0], [1], [0, 0, 1, 1], [], []>} : vector<1x36xbf16>, vector<36x256xbf16>, vector<1x256xf32> -> vector<1x256xf32>
    %307 = arith.addf %301, %306 : vector<1x256xf32>
    %c0_176 = arith.constant 0 : index
    %c0_177 = arith.constant 0 : index
    %308 = vector.load %arg8[%c0_176, %c0_177] : memref<1x256xf32, #tpu.memory_space<vmem>>, vector<1x256xf32>
    %309 = arith.addf %307, %308 : vector<1x256xf32>
    %cst_178 = arith.constant 0.000000e+00 : f32
    %310 = vector.broadcast %cst_178 : f32 to vector<1x256xf32>
    %311 = arith.maximumf %309, %310 : vector<1x256xf32>
    %c0_179 = arith.constant 0 : index
    %c0_180 = arith.constant 0 : index
    %312 = vector.load %arg9[%c0_179, %c0_180] : memref<256x100xbf16, #tpu.memory_space<vmem>>, vector<256x100xbf16>
    %313 = arith.truncf %311 : vector<1x256xf32> to vector<1x256xbf16>
    %cst_181 = arith.constant dense<0.000000e+00> : vector<1x100xf32>
    %314 = tpu.matmul %313, %312, %cst_181 {dimension_numbers = #tpu.dot_dimension_numbers<[1], [0], [0], [1], [0, 0, 1, 1], [], []>} : vector<1x256xbf16>, vector<256x100xbf16>, vector<1x100xf32> -> vector<1x100xf32>
    %c0_182 = arith.constant 0 : index
    %c0_183 = arith.constant 0 : index
    %315 = vector.load %arg10[%c0_182, %c0_183] : memref<1x100xf32, #tpu.memory_space<vmem>>, vector<1x100xf32>
    %316 = arith.addf %314, %315 : vector<1x100xf32>
    %cst_184 = arith.constant 0.000000e+00 : f32
    %317 = vector.broadcast %cst_184 : f32 to vector<1x100xf32>
    %318 = arith.maximumf %316, %317 : vector<1x100xf32>
    %c0_185 = arith.constant 0 : index
    %c0_186 = arith.constant 0 : index
    %319 = vector.load %arg11[%c0_185, %c0_186] : memref<100x2352xbf16, #tpu.memory_space<vmem>>, vector<100x2352xbf16>
    %320 = arith.truncf %318 : vector<1x100xf32> to vector<1x100xbf16>
    %cst_187 = arith.constant dense<0.000000e+00> : vector<1x2352xf32>
    %321 = tpu.matmul %320, %319, %cst_187 {dimension_numbers = #tpu.dot_dimension_numbers<[1], [0], [0], [1], [0, 0, 1, 1], [], []>} : vector<1x100xbf16>, vector<100x2352xbf16>, vector<1x2352xf32> -> vector<1x2352xf32>
    %c0_188 = arith.constant 0 : index
    %c0_189 = arith.constant 0 : index
    %322 = vector.load %arg12[%c0_188, %c0_189] : memref<1x2352xf32, #tpu.memory_space<vmem>>, vector<1x2352xf32>
    %323 = arith.addf %321, %322 : vector<1x2352xf32>
    %cst_190 = arith.constant 0.000000e+00 : f32
    %324 = vector.broadcast %cst_190 : f32 to vector<1x2352xf32>
    %325 = arith.subf %324, %323 : vector<1x2352xf32>
    %326 = math.exp %325 : vector<1x2352xf32>
    %cst_191 = arith.constant 1.000000e+00 : f32
    %327 = vector.broadcast %cst_191 : f32 to vector<1x2352xf32>
    %328 = arith.addf %327, %326 : vector<1x2352xf32>
    %cst_192 = arith.constant 1.000000e+00 : f32
    %329 = vector.broadcast %cst_192 : f32 to vector<1x2352xf32>
    %330 = arith.divf %329, %328 : vector<1x2352xf32>
    %c0_193 = arith.constant 0 : index
    %c0_194 = arith.constant 0 : index
    %c0_195 = arith.constant 0 : index
    %331 = vector.load %arg13[%c0_193, %c0_194, %c0_195] : memref<1x1x2352xf32, #tpu.memory_space<vmem>>, vector<1x1x2352xf32>
    %332 = vector.shape_cast %331 : vector<1x1x2352xf32> to vector<1x2352xf32>
    %333 = vector.shape_cast %330 : vector<1x2352xf32> to vector<1x1x2352xf32>
    tpu.vector_store %arg13[%c0_193, %c0_194, %c0_195], %333 {strides = array<i32>} : memref<1x1x2352xf32, #tpu.memory_space<vmem>>, vector<1x1x2352xf32>,
    return
  }
  func.func @transform_0(%arg0: i32) -> (i32, i32, i32) {
    %c0_i32 = arith.constant 0 : i32
    %c0_i32_0 = arith.constant 0 : i32
    %c0_i32_1 = arith.constant 0 : i32
    return %arg0, %c0_i32, %c0_i32_0 : i32, i32, i32
  }
  func.func @transform_1(%arg0: i32) -> (i32, i32) {
    %c0_i32 = arith.constant 0 : i32
    %c0_i32_0 = arith.constant 0 : i32
    %c0_i32_1 = arith.constant 0 : i32
    return %c0_i32, %c0_i32_0 : i32, i32
  }
  func.func @transform_2(%arg0: i32) -> (i32, i32) {
    %c0_i32 = arith.constant 0 : i32
    %c0_i32_0 = arith.constant 0 : i32
    %c0_i32_1 = arith.constant 0 : i32
    return %c0_i32, %c0_i32_0 : i32, i32
  }
  func.func @transform_3(%arg0: i32) -> (i32, i32) {
    %c0_i32 = arith.constant 0 : i32
    %c0_i32_0 = arith.constant 0 : i32
    %c0_i32_1 = arith.constant 0 : i32
    return %c0_i32, %c0_i32_0 : i32, i32
  }
  func.func @transform_4(%arg0: i32) -> (i32, i32, i32) {
    %c0_i32 = arith.constant 0 : i32
    %c0_i32_0 = arith.constant 0 : i32
    %c0_i32_1 = arith.constant 0 : i32
    %c0_i32_2 = arith.constant 0 : i32
    return %c0_i32, %c0_i32_0, %c0_i32_1 : i32, i32, i32
  }
  func.func @transform_5(%arg0: i32) -> (i32, i32) {
    %c0_i32 = arith.constant 0 : i32
    %c0_i32_0 = arith.constant 0 : i32
    %c0_i32_1 = arith.constant 0 : i32
    return %c0_i32, %c0_i32_0 : i32, i32
  }
  func.func @transform_6(%arg0: i32) -> (i32, i32, i32) {
    %c0_i32 = arith.constant 0 : i32
    %c0_i32_0 = arith.constant 0 : i32
    %c0_i32_1 = arith.constant 0 : i32
    %c0_i32_2 = arith.constant 0 : i32
    return %c0_i32, %c0_i32_0, %c0_i32_1 : i32, i32, i32
  }
  func.func @transform_7(%arg0: i32) -> (i32, i32) {
    %c0_i32 = arith.constant 0 : i32
    %c0_i32_0 = arith.constant 0 : i32
    %c0_i32_1 = arith.constant 0 : i32
    return %c0_i32, %c0_i32_0 : i32, i32
  }
  func.func @transform_8(%arg0: i32) -> (i32, i32) {
    %c0_i32 = arith.constant 0 : i32
    %c0_i32_0 = arith.constant 0 : i32
    %c0_i32_1 = arith.constant 0 : i32
    return %c0_i32, %c0_i32_0 : i32, i32
  }
  func.func @transform_9(%arg0: i32) -> (i32, i32) {
    %c0_i32 = arith.constant 0 : i32
    %c0_i32_0 = arith.constant 0 : i32
    %c0_i32_1 = arith.constant 0 : i32
    return %c0_i32, %c0_i32_0 : i32, i32
  }
  func.func @transform_10(%arg0: i32) -> (i32, i32) {
    %c0_i32 = arith.constant 0 : i32
    %c0_i32_0 = arith.constant 0 : i32
    %c0_i32_1 = arith.constant 0 : i32
    return %c0_i32, %c0_i32_0 : i32, i32
  }
  func.func @transform_11(%arg0: i32) -> (i32, i32) {
    %c0_i32 = arith.constant 0 : i32
    %c0_i32_0 = arith.constant 0 : i32
    %c0_i32_1 = arith.constant 0 : i32
    return %c0_i32, %c0_i32_0 : i32, i32
  }
  func.func @transform_12(%arg0: i32) -> (i32, i32, i32) {
    %c0_i32 = arith.constant 0 : i32
    %c0_i32_0 = arith.constant 0 : i32
    %c0_i32_1 = arith.constant 0 : i32
    return %arg0, %c0_i32, %c0_i32_0 : i32, i32, i32
  }
}

</mosaic_0001>

<llo_original>
// kernel: conv_autoencoder_forward.1
$region0: #{conv_autoencoder_forward.1}
  #allocation0 [shape = 'u32[]', space=smem, size = 0x4, offset = 0x4, fixed_abs, tag = 'smem constant byte address 0x4 - core index']
  #allocation1 [shape = 'u32[72,128]{1,0:T(1,128)}', space=vmem, size = 0x9000, scoped, tag = 'internal scratch']
  %s0 = inlined_call_operand.vmem [shape: bf16[2,48,196], index: 0, kind: input, shape index: {}]
  %s1 = inlined_call_operand.vmem [shape: bf16[16,48], index: 1, kind: input, shape index: {}]
  %s2 = inlined_call_operand.vmem [shape: f32[16,1], index: 2, kind: input, shape index: {}]
  %s3 = inlined_call_operand.vmem [shape: bf16[196,2048], index: 3, kind: input, shape index: {}]
  %s4 = inlined_call_operand.vmem [shape: bf16[16,32,16], index: 4, kind: input, shape index: {}]
  %s5 = inlined_call_operand.vmem [shape: f32[32,1], index: 5, kind: input, shape index: {}]
  %s6 = inlined_call_operand.vmem [shape: bf16[32,36,256], index: 6, kind: input, shape index: {}]
  %s7 = inlined_call_operand.vmem [shape: f32[1,256], index: 7, kind: input, shape index: {}]
  %s8 = inlined_call_operand.vmem [shape: bf16[256,100], index: 8, kind: input, shape index: {}]
  %s9 = inlined_call_operand.vmem [shape: f32[1,100], index: 9, kind: input, shape index: {}]
  %s10 = inlined_call_operand.vmem [shape: bf16[100,2352], index: 10, kind: input, shape index: {}]
  %s11 = inlined_call_operand.vmem [shape: f32[1,2352], index: 11, kind: input, shape index: {}]
  %s12 = inlined_call_operand.vmem [shape: f32[2,1,2352], index: 12, kind: output, shape index: {}]
  %s13 = sld [smem:[#allocation0]]
  $region81: #{conv_autoencoder_forward.1} parent=0
    _
  %s15 = ssub.s32 1, %s13
  %s16 = scalar_select 0, %s15, %s13
  loop: start=0, step=1, limit=4
  $region2: #{conv_autoencoder_forward.1} parent=0 // loop_pre_header
    _
  $region3: #{conv_autoencoder_forward.1} parent=0 // loop_header
    %s18 = sphi 0, %s22
    %p19 = scmp.ge.s32.totalorder %s18, 4
    %s28 = sphi 0, %s30
    %s31 = sphi 0, %s28
    %s32 = sphi 0, %s31
    %s48 = sphi 0, %s32
    %s52 = sphi 0, %s52
    %s54 = sphi 0, %s52
    %s55 = sphi 0, %s54
    %s69 = sphi 0, %s55
    %s73 = sphi 0, %s73
    %s75 = sphi 0, %s73
    %s76 = sphi 0, %s75
    %s90 = sphi 0, %s76
    %s94 = sphi 0, %s94
    %s96 = sphi 0, %s94
    %s97 = sphi 0, %s96
    %s111 = sphi 0, %s97
    %s115 = sphi 0, %s115
    %s117 = sphi 0, %s115
    %s118 = sphi 0, %s117
    %s132 = sphi 0, %s118
    %s136 = sphi 0, %s136
    %s138 = sphi 0, %s136
    %s139 = sphi 0, %s138
    %s153 = sphi 0, %s139
    %s157 = sphi 0, %s157
    %s159 = sphi 0, %s157
    %s160 = sphi 0, %s159
    %s174 = sphi 0, %s160
    %s178 = sphi 0, %s178
    %s180 = sphi 0, %s178
    %s181 = sphi 0, %s180
    %s195 = sphi 0, %s181
    %s199 = sphi 0, %s199
    %s201 = sphi 0, %s199
    %s202 = sphi 0, %s201
    %s216 = sphi 0, %s202
    %s220 = sphi 0, %s220
    %s222 = sphi 0, %s220
    %s223 = sphi 0, %s222
    %s237 = sphi 0, %s223
    %s241 = sphi 0, %s241
    %s243 = sphi 0, %s241
    %s244 = sphi 0, %s243
    %s258 = sphi 0, %s244
    %s262 = sphi 0, %s262
    %s264 = sphi 0, %s262
    %s265 = sphi 0, %s264
    %s279 = sphi 0, %s265
    %s285 = sphi 0, %s287
    %s288 = sphi 0, %s285
    %s289 = sphi 0, %s288
    %s305 = sphi 0, %s289
  $region4: #{conv_autoencoder_forward.1} parent=0 // loop_header_branch
    %21 = sbr.rel (%p19) target = $region8
  $region5: #{conv_autoencoder_forward.1} parent=0 // loop_body
    %s23 = ssub.s32 %s18, 1
    %s24 = ssub.s32 %s18, 2
    %s25 = sadd.s32 %s18, 1
    %s26 = ssub.s32 %s18, %s25
    %p27 = scmp.eq.s32.totalorder %s26, 0
    %s29 = sadd.s32 %s28, 1
    %s30 = scalar_select %p27, %s28, %s29
    %p33 = pneg %p27
    %p34 = scmp.eq.s32.totalorder %s18, 1
    %p35 = por %p33, %p34
    %p36 = scmp.ne.s32.totalorder %s28, %s31
    %p37 = scmp.eq.s32.totalorder %s18, 0
    %p38 = por %p36, %p37
    %p39 = scmp.ne.s32.totalorder %s28, %s31
    %p40 = scmp.eq.s32.totalorder %s23, 1
    %p41 = por %p39, %p40
    %p42 = scmp.ne.s32.totalorder %s31, %s32
    %p43 = scmp.eq.s32.totalorder %s23, 0
    %p44 = por %p42, %p43
    %p45 = scmp.ne.s32.totalorder %s31, %s32
    %p46 = scmp.eq.s32.totalorder %s24, 1
    %p47 = por %p45, %p46
    %p49 = scmp.ne.s32.totalorder %s32, %s48
    %p50 = scmp.eq.s32.totalorder %s24, 0
    %p51 = por %p49, %p50
    %s53 = sadd.s32 %s52, 1
    %p56 = scmp.eq.s32.totalorder %s18, 1
    %p57 = scmp.ne.s32.totalorder %s52, %s54
    %p58 = scmp.eq.s32.totalorder %s18, 0
    %p59 = por %p57, %p58
    %p60 = scmp.ne.s32.totalorder %s52, %s54
    %p61 = scmp.eq.s32.totalorder %s23, 1
    %p62 = por %p60, %p61
    %p63 = scmp.ne.s32.totalorder %s54, %s55
    %p64 = scmp.eq.s32.totalorder %s23, 0
    %p65 = por %p63, %p64
    %p66 = scmp.ne.s32.totalorder %s54, %s55
    %p67 = scmp.eq.s32.totalorder %s24, 1
    %p68 = por %p66, %p67
    %p70 = scmp.ne.s32.totalorder %s55, %s69
    %p71 = scmp.eq.s32.totalorder %s24, 0
    %p72 = por %p70, %p71
    %s74 = sadd.s32 %s73, 1
    %p77 = scmp.eq.s32.totalorder %s18, 1
    %p78 = scmp.ne.s32.totalorder %s73, %s75
    %p79 = scmp.eq.s32.totalorder %s18, 0
    %p80 = por %p78, %p79
    %p81 = scmp.ne.s32.totalorder %s73, %s75
    %p82 = scmp.eq.s32.totalorder %s23, 1
    %p83 = por %p81, %p82
    %p84 = scmp.ne.s32.totalorder %s75, %s76
    %p85 = scmp.eq.s32.totalorder %s23, 0
    %p86 = por %p84, %p85
    %p87 = scmp.ne.s32.totalorder %s75, %s76
    %p88 = scmp.eq.s32.totalorder %s24, 1
    %p89 = por %p87, %p88
    %p91 = scmp.ne.s32.totalorder %s76, %s90
    %p92 = scmp.eq.s32.totalorder %s24, 0
    %p93 = por %p91, %p92
    %s95 = sadd.s32 %s94, 1
    %p98 = scmp.eq.s32.totalorder %s18, 1
    %p99 = scmp.ne.s32.totalorder %s94, %s96
    %p100 = scmp.eq.s32.totalorder %s18, 0
    %p101 = por %p99, %p100
    %p102 = scmp.ne.s32.totalorder %s94, %s96
    %p103 = scmp.eq.s32.totalorder %s23, 1
    %p104 = por %p102, %p103
    %p105 = scmp.ne.s32.totalorder %s96, %s97
    %p106 = scmp.eq.s32.totalorder %s23, 0
    %p107 = por %p105, %p106
    %p108 = scmp.ne.s32.totalorder %s96, %s97
    %p109 = scmp.eq.s32.totalorder %s24, 1
    %p110 = por %p108, %p109
    %p112 = scmp.ne.s32.totalorder %s97, %s111
    %p113 = scmp.eq.s32.totalorder %s24, 0
    %p114 = por %p112, %p113
    %s116 = sadd.s32 %s115, 1
    %p119 = scmp.eq.s32.totalorder %s18, 1
    %p120 = scmp.ne.s32.totalorder %s115, %s117
    %p121 = scmp.eq.s32.totalorder %s18, 0
    %p122 = por %p120, %p121
    %p123 = scmp.ne.s32.totalorder %s115, %s117
    %p124 = scmp.eq.s32.totalorder %s23, 1
    %p125 = por %p123, %p124
    %p126 = scmp.ne.s32.totalorder %s117, %s118
    %p127 = scmp.eq.s32.totalorder %s23, 0
    %p128 = por %p126, %p127
    %p129 = scmp.ne.s32.totalorder %s117, %s118
    %p130 = scmp.eq.s32.totalorder %s24, 1
    %p131 = por %p129, %p130
    %p133 = scmp.ne.s32.totalorder %s118, %s132
    %p134 = scmp.eq.s32.totalorder %s24, 0
    %p135 = por %p133, %p134
    %s137 = sadd.s32 %s136, 1
    %p140 = scmp.eq.s32.totalorder %s18, 1
    %p141 = scmp.ne.s32.totalorder %s136, %s138
    %p142 = scmp.eq.s32.totalorder %s18, 0
    %p143 = por %p141, %p142
    %p144 = scmp.ne.s32.totalorder %s136, %s138
    %p145 = scmp.eq.s32.totalorder %s23, 1
    %p146 = por %p144, %p145
    %p147 = scmp.ne.s32.totalorder %s138, %s139
    %p148 = scmp.eq.s32.totalorder %s23, 0
    %p149 = por %p147, %p148
    %p150 = scmp.ne.s32.totalorder %s138, %s139
    %p151 = scmp.eq.s32.totalorder %s24, 1
    %p152 = por %p150, %p151
    %p154 = scmp.ne.s32.totalorder %s139, %s153
    %p155 = scmp.eq.s32.totalorder %s24, 0
    %p156 = por %p154, %p155
    %s158 = sadd.s32 %s157, 1
    %p161 = scmp.eq.s32.totalorder %s18, 1
    %p162 = scmp.ne.s32.totalorder %s157, %s159
    %p163 = scmp.eq.s32.totalorder %s18, 0
    %p164 = por %p162, %p163
    %p165 = scmp.ne.s32.totalorder %s157, %s159
    %p166 = scmp.eq.s32.totalorder %s23, 1
    %p167 = por %p165, %p166
    %p168 = scmp.ne.s32.totalorder %s159, %s160
    %p169 = scmp.eq.s32.totalorder %s23, 0
    %p170 = por %p168, %p169
    %p171 = scmp.ne.s32.totalorder %s159, %s160
    %p172 = scmp.eq.s32.totalorder %s24, 1
    %p173 = por %p171, %p172
    %p175 = scmp.ne.s32.totalorder %s160, %s174
    %p176 = scmp.eq.s32.totalorder %s24, 0
    %p177 = por %p175, %p176
    %s179 = sadd.s32 %s178, 1
    %p182 = scmp.eq.s32.totalorder %s18, 1
    %p183 = scmp.ne.s32.totalorder %s178, %s180
    %p184 = scmp.eq.s32.totalorder %s18, 0
    %p185 = por %p183, %p184
    %p186 = scmp.ne.s32.totalorder %s178, %s180
    %p187 = scmp.eq.s32.totalorder %s23, 1
    %p188 = por %p186, %p187
    %p189 = scmp.ne.s32.totalorder %s180, %s181
    %p190 = scmp.eq.s32.totalorder %s23, 0
    %p191 = por %p189, %p190
    %p192 = scmp.ne.s32.totalorder %s180, %s181
    %p193 = scmp.eq.s32.totalorder %s24, 1
    %p194 = por %p192, %p193
    %p196 = scmp.ne.s32.totalorder %s181, %s195
    %p197 = scmp.eq.s32.totalorder %s24, 0
    %p198 = por %p196, %p197
    %s200 = sadd.s32 %s199, 1
    %p203 = scmp.eq.s32.totalorder %s18, 1
    %p204 = scmp.ne.s32.totalorder %s199, %s201
    %p205 = scmp.eq.s32.totalorder %s18, 0
    %p206 = por %p204, %p205
    %p207 = scmp.ne.s32.totalorder %s199, %s201
    %p208 = scmp.eq.s32.totalorder %s23, 1
    %p209 = por %p207, %p208
    %p210 = scmp.ne.s32.totalorder %s201, %s202
    %p211 = scmp.eq.s32.totalorder %s23, 0
    %p212 = por %p210, %p211
    %p213 = scmp.ne.s32.totalorder %s201, %s202
    %p214 = scmp.eq.s32.totalorder %s24, 1
    %p215 = por %p213, %p214
    %p217 = scmp.ne.s32.totalorder %s202, %s216
    %p218 = scmp.eq.s32.totalorder %s24, 0
    %p219 = por %p217, %p218
    %s221 = sadd.s32 %s220, 1
    %p224 = scmp.eq.s32.totalorder %s18, 1
    %p225 = scmp.ne.s32.totalorder %s220, %s222
    %p226 = scmp.eq.s32.totalorder %s18, 0
    %p227 = por %p225, %p226
    %p228 = scmp.ne.s32.totalorder %s220, %s222
    %p229 = scmp.eq.s32.totalorder %s23, 1
    %p230 = por %p228, %p229
    %p231 = scmp.ne.s32.totalorder %s222, %s223
    %p232 = scmp.eq.s32.totalorder %s23, 0
    %p233 = por %p231, %p232
    %p234 = scmp.ne.s32.totalorder %s222, %s223
    %p235 = scmp.eq.s32.totalorder %s24, 1
    %p236 = por %p234, %p235
    %p238 = scmp.ne.s32.totalorder %s223, %s237
    %p239 = scmp.eq.s32.totalorder %s24, 0
    %p240 = por %p238, %p239
    %s242 = sadd.s32 %s241, 1
    %p245 = scmp.eq.s32.totalorder %s18, 1
    %p246 = scmp.ne.s32.totalorder %s241, %s243
    %p247 = scmp.eq.s32.totalorder %s18, 0
    %p248 = por %p246, %p247
    %p249 = scmp.ne.s32.totalorder %s241, %s243
    %p250 = scmp.eq.s32.totalorder %s23, 1
    %p251 = por %p249, %p250
    %p252 = scmp.ne.s32.totalorder %s243, %s244
    %p253 = scmp.eq.s32.totalorder %s23, 0
    %p254 = por %p252, %p253
    %p255 = scmp.ne.s32.totalorder %s243, %s244
    %p256 = scmp.eq.s32.totalorder %s24, 1
    %p257 = por %p255, %p256
    %p259 = scmp.ne.s32.totalorder %s244, %s258
    %p260 = scmp.eq.s32.totalorder %s24, 0
    %p261 = por %p259, %p260
    %s263 = sadd.s32 %s262, 1
    %p266 = scmp.eq.s32.totalorder %s18, 1
    %p267 = scmp.ne.s32.totalorder %s262, %s264
    %p268 = scmp.eq.s32.totalorder %s18, 0
    %p269 = por %p267, %p268
    %p270 = scmp.ne.s32.totalorder %s262, %s264
    %p271 = scmp.eq.s32.totalorder %s23, 1
    %p272 = por %p270, %p271
    %p273 = scmp.ne.s32.totalorder %s264, %s265
    %p274 = scmp.eq.s32.totalorder %s23, 0
    %p275 = por %p273, %p274
    %p276 = scmp.ne.s32.totalorder %s264, %s265
    %p277 = scmp.eq.s32.totalorder %s24, 1
    %p278 = por %p276, %p277
    %p280 = scmp.ne.s32.totalorder %s265, %s279
    %p281 = scmp.eq.s32.totalorder %s24, 0
    %p282 = por %p280, %p281
    %s283 = ssub.s32 %s18, %s25
    %p284 = scmp.eq.s32.totalorder %s283, 0
    %s286 = sadd.s32 %s285, 1
    %s287 = scalar_select %p284, %s285, %s286
    %p290 = pneg %p284
    %p291 = scmp.eq.s32.totalorder %s18, 1
    %p292 = por %p290, %p291
    %p293 = scmp.ne.s32.totalorder %s285, %s288
    %p294 = scmp.eq.s32.totalorder %s18, 0
    %p295 = por %p293, %p294
    %p296 = scmp.ne.s32.totalorder %s285, %s288
    %p297 = scmp.eq.s32.totalorder %s23, 1
    %p298 = por %p296, %p297
    %p299 = scmp.ne.s32.totalorder %s288, %s289
    %p300 = scmp.eq.s32.totalorder %s23, 0
    %p301 = por %p299, %p300
    %p302 = scmp.ne.s32.totalorder %s288, %s289
    %p303 = scmp.eq.s32.totalorder %s24, 1
    %p304 = por %p302, %p303
    %p306 = scmp.ne.s32.totalorder %s289, %s305
    %p307 = scmp.eq.s32.totalorder %s24, 0
    %p308 = por %p306, %p307
    %p309 = scmp.le.s32.totalorder 1, %s18
    %p310 = scmp.lt.s32.totalorder %s18, 3
    %p311 = pnand %p309, %p310
    %p312 = pneg %p311
    // Predicated region
    $region9: #{conv_autoencoder_forward.1} parent=5 // pred_check
      _
    $region10: #{conv_autoencoder_forward.1} parent=5 // pred_check_branch
      %314 = sbr.rel (%p311) target = $region12
    $region11: #{conv_autoencoder_forward.1} parent=5 // pred_region
      %s315 = ssub.s32 %s18, 1
      // Predicated region
      $region13: #{conv_autoencoder_forward.1} parent=11 // pred_check
        %p316 = pneg %p65
      $region14: #{conv_autoencoder_forward.1} parent=11 // pred_check_branch
        %318 = sbr.rel (%p316) target = $region16
      $region15: #{conv_autoencoder_forward.1} parent=11 // pred_region
        _
      $region16: #{conv_autoencoder_forward.1} parent=11 // pred_fallthru
        _
      // Predicated region
      $region17: #{conv_autoencoder_forward.1} parent=11 // pred_check
        %p319 = pneg %p86
      $region18: #{conv_autoencoder_forward.1} parent=11 // pred_check_branch
        %321 = sbr.rel (%p319) target = $region20
      $region19: #{conv_autoencoder_forward.1} parent=11 // pred_region
        _
      $region20: #{conv_autoencoder_forward.1} parent=11 // pred_fallthru
        _
      // Predicated region
      $region21: #{conv_autoencoder_forward.1} parent=11 // pred_check
        %p322 = pneg %p107
      $region22: #{conv_autoencoder_forward.1} parent=11 // pred_check_branch
        %324 = sbr.rel (%p322) target = $region24
      $region23: #{conv_autoencoder_forward.1} parent=11 // pred_region
        _
      $region24: #{conv_autoencoder_forward.1} parent=11 // pred_fallthru
        _
      // Predicated region
      $region25: #{conv_autoencoder_forward.1} parent=11 // pred_check
        %p325 = pneg %p128
      $region26: #{conv_autoencoder_forward.1} parent=11 // pred_check_branch
        %327 = sbr.rel (%p325) target = $region28
      $region27: #{conv_autoencoder_forward.1} parent=11 // pred_region
        _
      $region28: #{conv_autoencoder_forward.1} parent=11 // pred_fallthru
        _
      // Predicated region
      $region29: #{conv_autoencoder_forward.1} parent=11 // pred_check
        %p328 = pneg %p149
      $region30: #{conv_autoencoder_forward.1} parent=11 // pred_check_branch
        %330 = sbr.rel (%p328) target = $region32
      $region31: #{conv_autoencoder_forward.1} parent=11 // pred_region
        _
      $region32: #{conv_autoencoder_forward.1} parent=11 // pred_fallthru
        _
      // Predicated region
      $region33: #{conv_autoencoder_forward.1} parent=11 // pred_check
        %p331 = pneg %p170
      $region34: #{conv_autoencoder_forward.1} parent=11 // pred_check_branch
        %333 = sbr.rel (%p331) target = $region36
      $region35: #{conv_autoencoder_forward.1} parent=11 // pred_region
        _
      $region36: #{conv_autoencoder_forward.1} parent=11 // pred_fallthru
        _
      // Predicated region
      $region37: #{conv_autoencoder_forward.1} parent=11 // pred_check
        %p334 = pneg %p191
      $region38: #{conv_autoencoder_forward.1} parent=11 // pred_check_branch
        %336 = sbr.rel (%p334) target = $region40
      $region39: #{conv_autoencoder_forward.1} parent=11 // pred_region
        _
      $region40: #{conv_autoencoder_forward.1} parent=11 // pred_fallthru
        _
      // Predicated region
      $region41: #{conv_autoencoder_forward.1} parent=11 // pred_check
        %p337 = pneg %p212
      $region42: #{conv_autoencoder_forward.1} parent=11 // pred_check_branch
        %339 = sbr.rel (%p337) target = $region44
      $region43: #{conv_autoencoder_forward.1} parent=11 // pred_region
        _
      $region44: #{conv_autoencoder_forward.1} parent=11 // pred_fallthru
        _
      // Predicated region
      $region45: #{conv_autoencoder_forward.1} parent=11 // pred_check
        %p340 = pneg %p233
      $region46: #{conv_autoencoder_forward.1} parent=11 // pred_check_branch
        %342 = sbr.rel (%p340) target = $region48
      $region47: #{conv_autoencoder_forward.1} parent=11 // pred_region
        _
      $region48: #{conv_autoencoder_forward.1} parent=11 // pred_fallthru
        _
      // Predicated region
      $region49: #{conv_autoencoder_forward.1} parent=11 // pred_check
        %p343 = pneg %p254
      $region50: #{conv_autoencoder_forward.1} parent=11 // pred_check_branch
        %345 = sbr.rel (%p343) target = $region52
      $region51: #{conv_autoencoder_forward.1} parent=11 // pred_region
        _
      $region52: #{conv_autoencoder_forward.1} parent=11 // pred_fallthru
        _
      // Predicated region
      $region53: #{conv_autoencoder_forward.1} parent=11 // pred_check
        %p346 = pneg %p275
      $region54: #{conv_autoencoder_forward.1} parent=11 // pred_check_branch
        %348 = sbr.rel (%p346) target = $region56
      $region55: #{conv_autoencoder_forward.1} parent=11 // pred_region
        _
      $region56: #{conv_autoencoder_forward.1} parent=11 // pred_fallthru
        _
    $region12: #{conv_autoencoder_forward.1} parent=5 // pred_fallthru
      _
    %p349 = scmp.lt.s32.totalorder %s18, 2
    // Predicated region
    $region57: #{conv_autoencoder_forward.1} parent=5 // pred_check
      %p350 = pneg %p349
    $region58: #{conv_autoencoder_forward.1} parent=5 // pred_check_branch
      %352 = sbr.rel (%p350) target = $region60
    $region59: #{conv_autoencoder_forward.1} parent=5 // pred_region
      // Predicated region
      $region61: #{conv_autoencoder_forward.1} parent=59 // pred_check
        %p353 = pneg %p38
      $region62: #{conv_autoencoder_forward.1} parent=59 // pred_check_branch
        %355 = sbr.rel (%p353) target = $region64
      $region63: #{conv_autoencoder_forward.1} parent=59 // pred_region
        %p356 = scmp.lt.s32.totalorder %s18, 1
        %s357 = scalar_select %p356, %s18, 1
        %s358 = smul.addr %s357, 12
        %s359 = smul.addr %s358, 4
        %s360 = scalar_lea.vmem %s0, %s359
      $region64: #{conv_autoencoder_forward.1} parent=59 // pred_fallthru
        _
    $region60: #{conv_autoencoder_forward.1} parent=5 // pred_fallthru
      _
    %p361 = scmp.le.s32.totalorder 1, %s18
    %p362 = scmp.lt.s32.totalorder %s18, 3
    %p363 = pnand %p361, %p362
    %p364 = pneg %p363
    // Predicated region
    $region65: #{conv_autoencoder_forward.1} parent=5 // pred_check
      _
    $region66: #{conv_autoencoder_forward.1} parent=5 // pred_check_branch
      %366 = sbr.rel (%p363) target = $region68
    $region67: #{conv_autoencoder_forward.1} parent=5 // pred_region
      %s367 = ssub.s32 %s18, 1
      %p368 = scmp.lt.s32.totalorder %s23, 1
      %s369 = scalar_select %p368, %s23, 1
      %s370 = smul.addr %s369, 12
      %s371 = smul.addr %s370, 4
      %s372 = scalar_lea.vmem %s0, %s371
      %p373 = pneg %p44
      %p374 = pneg %p41
      %p375 = pneg %p65
      %p376 = pneg %p62
      %p377 = pneg %p86
      %p378 = pneg %p83
      %p379 = pneg %p107
      %p380 = pneg %p104
      %p381 = pneg %p128
      %p382 = pneg %p125
      %p383 = pneg %p149
      %p384 = pneg %p146
      %p385 = pneg %p170
      %p386 = pneg %p167
      %p387 = pneg %p191
      %p388 = pneg %p188
      %p389 = pneg %p212
      %p390 = pneg %p209
      %p391 = pneg %p233
      %p392 = pneg %p230
      %p393 = pneg %p254
      %p394 = pneg %p251
      %p395 = pneg %p275
      %p396 = pneg %p272
      %p397 = pneg %p301
      %p398 = pneg %p298
      %p399 = scmp.lt.s32.totalorder %s23, 1
      %s400 = scalar_select %p399, %s23, 1
      %s401 = smul.addr %s400, 19
      %s402 = scalar_lea.vmem %s12, %s401
      %p403 = scmp.lt.s32.totalorder %s23, 1
      %s404 = scalar_select %p403, %s23, 1
      %s405 = smul.addr %s404, 12
      %s406 = smul.addr %s405, 4
      %s407 = scalar_lea.vmem %s0, %s406
      %p408 = scmp.lt.s32.totalorder %s23, 1
      %s409 = scalar_select %p408, %s23, 1
      %s410 = smul.addr %s409, 19
      %s411 = scalar_lea.vmem %s12, %s410
      %v413 = vld [vmem:[%s1] sm:$0xf]
      %v414 = vld [vmem:[%s1 + $0x4] sm:$0xf]
      %v415 = vld [vmem:[%s407] sm:$0xff]
      %v416 = vld [vmem:[%s407 + $0x8] sm:$0xff]
      %v417 = vld [vmem:[%s407 + $0x10] sm:$0xff]
      %v418 = vld [vmem:[%s407 + $0x18] sm:$0xff]
      %v419 = vld [vmem:[%s407 + $0x20] sm:$0xff]
      %v420 = vld [vmem:[%s407 + $0x28] sm:$0xff]
      %v421 = vld [vmem:[%s2] sm:$0xff]
      %v422 = vld [vmem:[%s2 + $0x8] sm:$0xff]
      %424 = vset.pattern.permute.xlu0 0
      %425 = vperm.xlu0 %424, %v421
      %v426 = vpop.permute.xlu0 %425
      %429 = vset.pattern.permute.xlu0 0
      %430 = vperm.xlu0 %429, %v422
      %v431 = vpop.permute.xlu0 %430
      %v435 = vunpack.c.l.b16 %v413
      %v436 = vunpack.c.l.b16 %v414
      %v437 = vpack.c.b16 %v436, %v435
      %v444 = vunpack.c.l.b16 %v415
      %v445 = vunpack.c.h.b16 %v415
      %v446 = vunpack.c.l.b16 %v416
      %v447 = vunpack.c.h.b16 %v416
      %v448 = vunpack.c.l.b16 %v417
      %v449 = vunpack.c.h.b16 %v417
      %v450 = vunpack.c.l.b16 %v418
      %v451 = vunpack.c.h.b16 %v418
      %v452 = vunpack.c.l.b16 %v419
      %v453 = vunpack.c.h.b16 %v419
      %v454 = vunpack.c.l.b16 %v420
      %v455 = vunpack.c.h.b16 %v420
      %v456 = vpack.c.b16 %v446, %v444
      %v457 = vpack.c.b16 %v447, %v445
      %v458 = vpack.c.b16 %v450, %v448
      %v459 = vpack.c.b16 %v451, %v449
      %v460 = vpack.c.b16 %v454, %v452
      %v461 = vpack.c.b16 %v455, %v453
      %vm468 = vcmask 392192
      %v470 = vsel %vm468, %v437, 0
      %472 = vmatpush.bf16.msra.mxu0 0
      %473 = vmatpush.bf16.msra.mxu0 0
      %474 = vmatpush.bf16.msra.mxu0 0
      %475 = vmatpush.bf16.msra.mxu0 0
      %476 = vmatpush.bf16.msra.mxu0 0
      %477 = vmatpush.bf16.msra.mxu0 %v460
      %478 = vmatpush.bf16.msra.mxu0 %v458
      %479 = vmatpush.bf16.msra.mxu0 %v456
      %480 = vmatmul.bf16.gmra.mxu0 %v470
      %v481 = vpop.f32.mrf.mxu0
      %v482 = vadd.f32 %v426, %v481
      %v483 = vpop.f32.mrf.mxu0
      %v484 = vadd.f32 %v431, %v483
      %485 = vdwg.mxu0
      %486 = vmatpush.bf16.msra.mxu0 0
      %487 = vmatpush.bf16.msra.mxu0 0
      %488 = vmatpush.bf16.msra.mxu0 0
      %489 = vmatpush.bf16.msra.mxu0 0
      %490 = vmatpush.bf16.msra.mxu0 0
      %491 = vmatpush.bf16.msra.mxu0 %v461
      %492 = vmatpush.bf16.msra.mxu0 %v459
      %493 = vmatpush.bf16.msra.mxu0 %v457
      %494 = vmatmul.bf16.gmra.mxu0 %v470
      %v495 = vpop.f32.mrf.mxu0
      %v496 = vadd.f32 %v426, %v495
      %v497 = vpop.f32.mrf.mxu0
      %v498 = vadd.f32 %v431, %v497
      %499 = vdwg.mxu0
      %v500 = vmax.f32 %v482, 0.0
      %v501 = vmax.f32 %v496, 0.0
      %v502 = vmax.f32 %v484, 0.0
      %v503 = vmax.f32 %v498, 0.0
      %v504 = vld [vmem:[%s3] sm:$0xff]
      %v505 = vld [vmem:[%s3 + $0x8] sm:$0xff]
      %v506 = vld [vmem:[%s3 + $0x10] sm:$0xff]
      %v507 = vld [vmem:[%s3 + $0x18] sm:$0xff]
      %v508 = vld [vmem:[%s3 + $0x20] sm:$0xff]
      %v509 = vld [vmem:[%s3 + $0x28] sm:$0xff]
      %v510 = vld [vmem:[%s3 + $0x30] sm:$0xff]
      %v511 = vld [vmem:[%s3 + $0x38] sm:$0xff]
      %v512 = vld [vmem:[%s3 + $0x40] sm:$0xff]
      %v513 = vld [vmem:[%s3 + $0x48] sm:$0xff]
      %v514 = vld [vmem:[%s3 + $0x50] sm:$0xff]
      %v515 = vld [vmem:[%s3 + $0x58] sm:$0xff]
      %v516 = vld [vmem:[%s3 + $0x60] sm:$0xff]
      %v517 = vld [vmem:[%s3 + $0x68] sm:$0xff]
      %v518 = vld [vmem:[%s3 + $0x70] sm:$0xff]
      %v519 = vld [vmem:[%s3 + $0x78] sm:$0xff]
      %v520 = vld [vmem:[%s3 + $0x80] sm:$0xff]
      %v521 = vld [vmem:[%s3 + $0x88] sm:$0xff]
      %v522 = vld [vmem:[%s3 + $0x90] sm:$0xff]
      %v523 = vld [vmem:[%s3 + $0x98] sm:$0xff]
      %v524 = vld [vmem:[%s3 + $0xa0] sm:$0xff]
      %v525 = vld [vmem:[%s3 + $0xa8] sm:$0xff]
      %v526 = vld [vmem:[%s3 + $0xb0] sm:$0xff]
      %v527 = vld [vmem:[%s3 + $0xb8] sm:$0xff]
      %v528 = vld [vmem:[%s3 + $0xc0] sm:$0xff]
      %v529 = vld [vmem:[%s3 + $0xc8] sm:$0xff]
      %v530 = vld [vmem:[%s3 + $0xd0] sm:$0xff]
      %v531 = vld [vmem:[%s3 + $0xd8] sm:$0xff]
      %v532 = vld [vmem:[%s3 + $0xe0] sm:$0xff]
      %v533 = vld [vmem:[%s3 + $0xe8] sm:$0xff]
      %v534 = vld [vmem:[%s3 + $0xf0] sm:$0xff]
      %v535 = vld [vmem:[%s3 + $0xf8] sm:$0xff]
      %v536 = vld [vmem:[%s3 + $0x100] sm:$0xff]
      %v537 = vld [vmem:[%s3 + $0x108] sm:$0xff]
      %v538 = vld [vmem:[%s3 + $0x110] sm:$0xff]
      %v539 = vld [vmem:[%s3 + $0x118] sm:$0xff]
      %v540 = vld [vmem:[%s3 + $0x120] sm:$0xff]
      %v541 = vld [vmem:[%s3 + $0x128] sm:$0xff]
      %v542 = vld [vmem:[%s3 + $0x130] sm:$0xff]
      %v543 = vld [vmem:[%s3 + $0x138] sm:$0xff]
      %v544 = vld [vmem:[%s3 + $0x140] sm:$0xff]
      %v545 = vld [vmem:[%s3 + $0x148] sm:$0xff]
      %v546 = vld [vmem:[%s3 + $0x150] sm:$0xff]
      %v547 = vld [vmem:[%s3 + $0x158] sm:$0xff]
      %v548 = vld [vmem:[%s3 + $0x160] sm:$0xff]
      %v549 = vld [vmem:[%s3 + $0x168] sm:$0xff]
      %v550 = vld [vmem:[%s3 + $0x170] sm:$0xff]
      %v551 = vld [vmem:[%s3 + $0x178] sm:$0xff]
      %v552 = vld [vmem:[%s3 + $0x180] sm:$0xff]
      %v553 = vld [vmem:[%s3 + $0x188] sm:$0xff]
      %v554 = vld [vmem:[%s3 + $0x190] sm:$0xff]
      %v555 = vld [vmem:[%s3 + $0x198] sm:$0xff]
      %v556 = vld [vmem:[%s3 + $0x1a0] sm:$0xff]
      %v557 = vld [vmem:[%s3 + $0x1a8] sm:$0xff]
      %v558 = vld [vmem:[%s3 + $0x1b0] sm:$0xff]
      %v559 = vld [vmem:[%s3 + $0x1b8] sm:$0xff]
      %v560 = vld [vmem:[%s3 + $0x1c0] sm:$0xff]
      %v561 = vld [vmem:[%s3 + $0x1c8] sm:$0xff]
      %v562 = vld [vmem:[%s3 + $0x1d0] sm:$0xff]
      %v563 = vld [vmem:[%s3 + $0x1d8] sm:$0xff]
      %v564 = vld [vmem:[%s3 + $0x1e0] sm:$0xff]
      %v565 = vld [vmem:[%s3 + $0x1e8] sm:$0xff]
      %v566 = vld [vmem:[%s3 + $0x1f0] sm:$0xff]
      %v567 = vld [vmem:[%s3 + $0x1f8] sm:$0xff]
      %v568 = vld [vmem:[%s3 + $0x200] sm:$0xff]
      %v569 = vld [vmem:[%s3 + $0x208] sm:$0xff]
      %v570 = vld [vmem:[%s3 + $0x210] sm:$0xff]
      %v571 = vld [vmem:[%s3 + $0x218] sm:$0xff]
      %v572 = vld [vmem:[%s3 + $0x220] sm:$0xff]
      %v573 = vld [vmem:[%s3 + $0x228] sm:$0xff]
      %v574 = vld [vmem:[%s3 + $0x230] sm:$0xff]
      %v575 = vld [vmem:[%s3 + $0x238] sm:$0xff]
      %v576 = vld [vmem:[%s3 + $0x240] sm:$0xff]
      %v577 = vld [vmem:[%s3 + $0x248] sm:$0xff]
      %v578 = vld [vmem:[%s3 + $0x250] sm:$0xff]
      %v579 = vld [vmem:[%s3 + $0x258] sm:$0xff]
      %v580 = vld [vmem:[%s3 + $0x260] sm:$0xff]
      %v581 = vld [vmem:[%s3 + $0x268] sm:$0xff]
      %v582 = vld [vmem:[%s3 + $0x270] sm:$0xff]
      %v583 = vld [vmem:[%s3 + $0x278] sm:$0xff]
      %v584 = vld [vmem:[%s3 + $0x280] sm:$0xff]
      %v585 = vld [vmem:[%s3 + $0x288] sm:$0xff]
      %v586 = vld [vmem:[%s3 + $0x290] sm:$0xff]
      %v587 = vld [vmem:[%s3 + $0x298] sm:$0xff]
      %v588 = vld [vmem:[%s3 + $0x2a0] sm:$0xff]
      %v589 = vld [vmem:[%s3 + $0x2a8] sm:$0xff]
      %v590 = vld [vmem:[%s3 + $0x2b0] sm:$0xff]
      %v591 = vld [vmem:[%s3 + $0x2b8] sm:$0xff]
      %v592 = vld [vmem:[%s3 + $0x2c0] sm:$0xff]
      %v593 = vld [vmem:[%s3 + $0x2c8] sm:$0xff]
      %v594 = vld [vmem:[%s3 + $0x2d0] sm:$0xff]
      %v595 = vld [vmem:[%s3 + $0x2d8] sm:$0xff]
      %v596 = vld [vmem:[%s3 + $0x2e0] sm:$0xff]
      %v597 = vld [vmem:[%s3 + $0x2e8] sm:$0xff]
      %v598 = vld [vmem:[%s3 + $0x2f0] sm:$0xff]
      %v599 = vld [vmem:[%s3 + $0x2f8] sm:$0xff]
      %v600 = vld [vmem:[%s3 + $0x300] sm:$0xff]
      %v601 = vld [vmem:[%s3 + $0x308] sm:$0xff]
      %v602 = vld [vmem:[%s3 + $0x310] sm:$0xff]
      %v603 = vld [vmem:[%s3 + $0x318] sm:$0xff]
      %v604 = vld [vmem:[%s3 + $0x320] sm:$0xff]
      %v605 = vld [vmem:[%s3 + $0x328] sm:$0xff]
      %v606 = vld [vmem:[%s3 + $0x330] sm:$0xff]
      %v607 = vld [vmem:[%s3 + $0x338] sm:$0xff]
      %v608 = vld [vmem:[%s3 + $0x340] sm:$0xff]
      %v609 = vld [vmem:[%s3 + $0x348] sm:$0xff]
      %v610 = vld [vmem:[%s3 + $0x350] sm:$0xff]
      %v611 = vld [vmem:[%s3 + $0x358] sm:$0xff]
      %v612 = vld [vmem:[%s3 + $0x360] sm:$0xff]
      %v613 = vld [vmem:[%s3 + $0x368] sm:$0xff]
      %v614 = vld [vmem:[%s3 + $0x370] sm:$0xff]
      %v615 = vld [vmem:[%s3 + $0x378] sm:$0xff]
      %v616 = vld [vmem:[%s3 + $0x380] sm:$0xff]
      %v617 = vld [vmem:[%s3 + $0x388] sm:$0xff]
      %v618 = vld [vmem:[%s3 + $0x390] sm:$0xff]
      %v619 = vld [vmem:[%s3 + $0x398] sm:$0xff]
      %v620 = vld [vmem:[%s3 + $0x3a0] sm:$0xff]
      %v621 = vld [vmem:[%s3 + $0x3a8] sm:$0xff]
      %v622 = vld [vmem:[%s3 + $0x3b0] sm:$0xff]
      %v623 = vld [vmem:[%s3 + $0x3b8] sm:$0xff]
      %v624 = vld [vmem:[%s3 + $0x3c0] sm:$0xff]
      %v625 = vld [vmem:[%s3 + $0x3c8] sm:$0xff]
      %v626 = vld [vmem:[%s3 + $0x3d0] sm:$0xff]
      %v627 = vld [vmem:[%s3 + $0x3d8] sm:$0xff]
      %v628 = vld [vmem:[%s3 + $0x3e0] sm:$0xff]
      %v629 = vld [vmem:[%s3 + $0x3e8] sm:$0xff]
      %v630 = vld [vmem:[%s3 + $0x3f0] sm:$0xff]
      %v631 = vld [vmem:[%s3 + $0x3f8] sm:$0xff]
      %v632 = vld [vmem:[%s3 + $0x400] sm:$0xff]
      %v633 = vld [vmem:[%s3 + $0x408] sm:$0xff]
      %v634 = vld [vmem:[%s3 + $0x410] sm:$0xff]
      %v635 = vld [vmem:[%s3 + $0x418] sm:$0xff]
      %v636 = vld [vmem:[%s3 + $0x420] sm:$0xff]
      %v637 = vld [vmem:[%s3 + $0x428] sm:$0xff]
      %v638 = vld [vmem:[%s3 + $0x430] sm:$0xff]
      %v639 = vld [vmem:[%s3 + $0x438] sm:$0xff]
      %v640 = vld [vmem:[%s3 + $0x440] sm:$0xff]
      %v641 = vld [vmem:[%s3 + $0x448] sm:$0xff]
      %v642 = vld [vmem:[%s3 + $0x450] sm:$0xff]
      %v643 = vld [vmem:[%s3 + $0x458] sm:$0xff]
      %v644 = vld [vmem:[%s3 + $0x460] sm:$0xff]
      %v645 = vld [vmem:[%s3 + $0x468] sm:$0xff]
      %v646 = vld [vmem:[%s3 + $0x470] sm:$0xff]
      %v647 = vld [vmem:[%s3 + $0x478] sm:$0xff]
      %v648 = vld [vmem:[%s3 + $0x480] sm:$0xff]
      %v649 = vld [vmem:[%s3 + $0x488] sm:$0xff]
      %v650 = vld [vmem:[%s3 + $0x490] sm:$0xff]
      %v651 = vld [vmem:[%s3 + $0x498] sm:$0xff]
      %v652 = vld [vmem:[%s3 + $0x4a0] sm:$0xff]
      %v653 = vld [vmem:[%s3 + $0x4a8] sm:$0xff]
      %v654 = vld [vmem:[%s3 + $0x4b0] sm:$0xff]
      %v655 = vld [vmem:[%s3 + $0x4b8] sm:$0xff]
      %v656 = vld [vmem:[%s3 + $0x4c0] sm:$0xff]
      %v657 = vld [vmem:[%s3 + $0x4c8] sm:$0xff]
      %v658 = vld [vmem:[%s3 + $0x4d0] sm:$0xff]
      %v659 = vld [vmem:[%s3 + $0x4d8] sm:$0xff]
      %v660 = vld [vmem:[%s3 + $0x4e0] sm:$0xff]
      %v661 = vld [vmem:[%s3 + $0x4e8] sm:$0xff]
      %v662 = vld [vmem:[%s3 + $0x4f0] sm:$0xff]
      %v663 = vld [vmem:[%s3 + $0x4f8] sm:$0xff]
      %v664 = vld [vmem:[%s3 + $0x500] sm:$0xff]
      %v665 = vld [vmem:[%s3 + $0x508] sm:$0xff]
      %v666 = vld [vmem:[%s3 + $0x510] sm:$0xff]
      %v667 = vld [vmem:[%s3 + $0x518] sm:$0xff]
      %v668 = vld [vmem:[%s3 + $0x520] sm:$0xff]
      %v669 = vld [vmem:[%s3 + $0x528] sm:$0xff]
      %v670 = vld [vmem:[%s3 + $0x530] sm:$0xff]
      %v671 = vld [vmem:[%s3 + $0x538] sm:$0xff]
      %v672 = vld [vmem:[%s3 + $0x540] sm:$0xff]
      %v673 = vld [vmem:[%s3 + $0x548] sm:$0xff]
      %v674 = vld [vmem:[%s3 + $0x550] sm:$0xff]
      %v675 = vld [vmem:[%s3 + $0x558] sm:$0xff]
      %v676 = vld [vmem:[%s3 + $0x560] sm:$0xff]
      %v677 = vld [vmem:[%s3 + $0x568] sm:$0xff]
      %v678 = vld [vmem:[%s3 + $0x570] sm:$0xff]
      %v679 = vld [vmem:[%s3 + $0x578] sm:$0xff]
      %v680 = vld [vmem:[%s3 + $0x580] sm:$0xff]
      %v681 = vld [vmem:[%s3 + $0x588] sm:$0xff]
      %v682 = vld [vmem:[%s3 + $0x590] sm:$0xff]
      %v683 = vld [vmem:[%s3 + $0x598] sm:$0xff]
      %v684 = vld [vmem:[%s3 + $0x5a0] sm:$0xff]
      %v685 = vld [vmem:[%s3 + $0x5a8] sm:$0xff]
      %v686 = vld [vmem:[%s3 + $0x5b0] sm:$0xff]
      %v687 = vld [vmem:[%s3 + $0x5b8] sm:$0xff]
      %v688 = vld [vmem:[%s3 + $0x5c0] sm:$0xff]
      %v689 = vld [vmem:[%s3 + $0x5c8] sm:$0xff]
      %v690 = vld [vmem:[%s3 + $0x5d0] sm:$0xff]
      %v691 = vld [vmem:[%s3 + $0x5d8] sm:$0xff]
      %v692 = vld [vmem:[%s3 + $0x5e0] sm:$0xff]
      %v693 = vld [vmem:[%s3 + $0x5e8] sm:$0xff]
      %v694 = vld [vmem:[%s3 + $0x5f0] sm:$0xff]
      %v695 = vld [vmem:[%s3 + $0x5f8] sm:$0xff]
      %v696 = vld [vmem:[%s3 + $0x600] sm:$0x33]
      %v697 = vld [vmem:[%s3 + $0x608] sm:$0x33]
      %v698 = vld [vmem:[%s3 + $0x610] sm:$0x33]
      %v699 = vld [vmem:[%s3 + $0x618] sm:$0x33]
      %v700 = vld [vmem:[%s3 + $0x620] sm:$0x33]
      %v701 = vld [vmem:[%s3 + $0x628] sm:$0x33]
      %v702 = vld [vmem:[%s3 + $0x630] sm:$0x33]
      %v703 = vld [vmem:[%s3 + $0x638] sm:$0x33]
      %v704 = vpack.c.bf16 %v502, %v500
      %v705 = vpack.c.bf16 %v503, %v501
      %v906 = vunpack.c.l.b16 %v504
      %v907 = vunpack.c.h.b16 %v504
      %v908 = vunpack.c.l.b16 %v505
      %v909 = vunpack.c.h.b16 %v505
      %v910 = vunpack.c.l.b16 %v506
      %v911 = vunpack.c.h.b16 %v506
      %v912 = vunpack.c.l.b16 %v507
      %v913 = vunpack.c.h.b16 %v507
      %v914 = vunpack.c.l.b16 %v508
      %v915 = vunpack.c.h.b16 %v508
      %v916 = vunpack.c.l.b16 %v509
      %v917 = vunpack.c.h.b16 %v509
      %v918 = vunpack.c.l.b16 %v510
      %v919 = vunpack.c.h.b16 %v510
      %v920 = vunpack.c.l.b16 %v511
      %v921 = vunpack.c.h.b16 %v511
      %v922 = vunpack.c.l.b16 %v512
      %v923 = vunpack.c.h.b16 %v512
      %v924 = vunpack.c.l.b16 %v513
      %v925 = vunpack.c.h.b16 %v513
      %v926 = vunpack.c.l.b16 %v514
      %v927 = vunpack.c.h.b16 %v514
      %v928 = vunpack.c.l.b16 %v515
      %v929 = vunpack.c.h.b16 %v515
      %v930 = vunpack.c.l.b16 %v516
      %v931 = vunpack.c.h.b16 %v516
      %v932 = vunpack.c.l.b16 %v517
      %v933 = vunpack.c.h.b16 %v517
      %v934 = vunpack.c.l.b16 %v518
      %v935 = vunpack.c.h.b16 %v518
      %v936 = vunpack.c.l.b16 %v519
      %v937 = vunpack.c.h.b16 %v519
      %v938 = vunpack.c.l.b16 %v520
      %v939 = vunpack.c.h.b16 %v520
      %v940 = vunpack.c.l.b16 %v521
      %v941 = vunpack.c.h.b16 %v521
      %v942 = vunpack.c.l.b16 %v522
      %v943 = vunpack.c.h.b16 %v522
      %v944 = vunpack.c.l.b16 %v523
      %v945 = vunpack.c.h.b16 %v523
      %v946 = vunpack.c.l.b16 %v524
      %v947 = vunpack.c.h.b16 %v524
      %v948 = vunpack.c.l.b16 %v525
      %v949 = vunpack.c.h.b16 %v525
      %v950 = vunpack.c.l.b16 %v526
      %v951 = vunpack.c.h.b16 %v526
      %v952 = vunpack.c.l.b16 %v527
      %v953 = vunpack.c.h.b16 %v527
      %v954 = vunpack.c.l.b16 %v528
      %v955 = vunpack.c.h.b16 %v528
      %v956 = vunpack.c.l.b16 %v529
      %v957 = vunpack.c.h.b16 %v529
      %v958 = vunpack.c.l.b16 %v530
      %v959 = vunpack.c.h.b16 %v530
      %v960 = vunpack.c.l.b16 %v531
      %v961 = vunpack.c.h.b16 %v531
      %v962 = vunpack.c.l.b16 %v532
      %v963 = vunpack.c.h.b16 %v532
      %v964 = vunpack.c.l.b16 %v533
      %v965 = vunpack.c.h.b16 %v533
      %v966 = vunpack.c.l.b16 %v534
      %v967 = vunpack.c.h.b16 %v534
      %v968 = vunpack.c.l.b16 %v535
      %v969 = vunpack.c.h.b16 %v535
      %v970 = vunpack.c.l.b16 %v536
      %v971 = vunpack.c.h.b16 %v536
      %v972 = vunpack.c.l.b16 %v537
      %v973 = vunpack.c.h.b16 %v537
      %v974 = vunpack.c.l.b16 %v538
      %v975 = vunpack.c.h.b16 %v538
      %v976 = vunpack.c.l.b16 %v539
      %v977 = vunpack.c.h.b16 %v539
      %v978 = vunpack.c.l.b16 %v540
      %v979 = vunpack.c.h.b16 %v540
      %v980 = vunpack.c.l.b16 %v541
      %v981 = vunpack.c.h.b16 %v541
      %v982 = vunpack.c.l.b16 %v542
      %v983 = vunpack.c.h.b16 %v542
      %v984 = vunpack.c.l.b16 %v543
      %v985 = vunpack.c.h.b16 %v543
      %v986 = vunpack.c.l.b16 %v544
      %v987 = vunpack.c.h.b16 %v544
      %v988 = vunpack.c.l.b16 %v545
      %v989 = vunpack.c.h.b16 %v545
      %v990 = vunpack.c.l.b16 %v546
      %v991 = vunpack.c.h.b16 %v546
      %v992 = vunpack.c.l.b16 %v547
      %v993 = vunpack.c.h.b16 %v547
      %v994 = vunpack.c.l.b16 %v548
      %v995 = vunpack.c.h.b16 %v548
      %v996 = vunpack.c.l.b16 %v549
      %v997 = vunpack.c.h.b16 %v549
      %v998 = vunpack.c.l.b16 %v550
      %v999 = vunpack.c.h.b16 %v550
      %v1000 = vunpack.c.l.b16 %v551
      %v1001 = vunpack.c.h.b16 %v551
      %v1002 = vunpack.c.l.b16 %v552
      %v1003 = vunpack.c.h.b16 %v552
      %v1004 = vunpack.c.l.b16 %v553
      %v1005 = vunpack.c.h.b16 %v553
      %v1006 = vunpack.c.l.b16 %v554
      %v1007 = vunpack.c.h.b16 %v554
      %v1008 = vunpack.c.l.b16 %v555
      %v1009 = vunpack.c.h.b16 %v555
      %v1010 = vunpack.c.l.b16 %v556
      %v1011 = vunpack.c.h.b16 %v556
      %v1012 = vunpack.c.l.b16 %v557
      %v1013 = vunpack.c.h.b16 %v557
      %v1014 = vunpack.c.l.b16 %v558
      %v1015 = vunpack.c.h.b16 %v558
      %v1016 = vunpack.c.l.b16 %v559
      %v1017 = vunpack.c.h.b16 %v559
      %v1018 = vunpack.c.l.b16 %v560
      %v1019 = vunpack.c.h.b16 %v560
      %v1020 = vunpack.c.l.b16 %v561
      %v1021 = vunpack.c.h.b16 %v561
      %v1022 = vunpack.c.l.b16 %v562
      %v1023 = vunpack.c.h.b16 %v562
      %v1024 = vunpack.c.l.b16 %v563
      %v1025 = vunpack.c.h.b16 %v563
      %v1026 = vunpack.c.l.b16 %v564
      %v1027 = vunpack.c.h.b16 %v564
      %v1028 = vunpack.c.l.b16 %v565
      %v1029 = vunpack.c.h.b16 %v565
      %v1030 = vunpack.c.l.b16 %v566
      %v1031 = vunpack.c.h.b16 %v566
      %v1032 = vunpack.c.l.b16 %v567
      %v1033 = vunpack.c.h.b16 %v567
      %v1034 = vunpack.c.l.b16 %v568
      %v1035 = vunpack.c.h.b16 %v568
      %v1036 = vunpack.c.l.b16 %v569
      %v1037 = vunpack.c.h.b16 %v569
      %v1038 = vunpack.c.l.b16 %v570
      %v1039 = vunpack.c.h.b16 %v570
      %v1040 = vunpack.c.l.b16 %v571
      %v1041 = vunpack.c.h.b16 %v571
      %v1042 = vunpack.c.l.b16 %v572
      %v1043 = vunpack.c.h.b16 %v572
      %v1044 = vunpack.c.l.b16 %v573
      %v1045 = vunpack.c.h.b16 %v573
      %v1046 = vunpack.c.l.b16 %v574
      %v1047 = vunpack.c.h.b16 %v574
      %v1048 = vunpack.c.l.b16 %v575
      %v1049 = vunpack.c.h.b16 %v575
      %v1050 = vunpack.c.l.b16 %v576
      %v1051 = vunpack.c.h.b16 %v576
      %v1052 = vunpack.c.l.b16 %v577
      %v1053 = vunpack.c.h.b16 %v577
      %v1054 = vunpack.c.l.b16 %v578
      %v1055 = vunpack.c.h.b16 %v578
      %v1056 = vunpack.c.l.b16 %v579
      %v1057 = vunpack.c.h.b16 %v579
      %v1058 = vunpack.c.l.b16 %v580
      %v1059 = vunpack.c.h.b16 %v580
      %v1060 = vunpack.c.l.b16 %v581
      %v1061 = vunpack.c.h.b16 %v581
      %v1062 = vunpack.c.l.b16 %v582
      %v1063 = vunpack.c.h.b16 %v582
      %v1064 = vunpack.c.l.b16 %v583
      %v1065 = vunpack.c.h.b16 %v583
      %v1066 = vunpack.c.l.b16 %v584
      %v1067 = vunpack.c.h.b16 %v584
      %v1068 = vunpack.c.l.b16 %v585
      %v1069 = vunpack.c.h.b16 %v585
      %v1070 = vunpack.c.l.b16 %v586
      %v1071 = vunpack.c.h.b16 %v586
      %v1072 = vunpack.c.l.b16 %v587
      %v1073 = vunpack.c.h.b16 %v587
      %v1074 = vunpack.c.l.b16 %v588
      %v1075 = vunpack.c.h.b16 %v588
      %v1076 = vunpack.c.l.b16 %v589
      %v1077 = vunpack.c.h.b16 %v589
      %v1078 = vunpack.c.l.b16 %v590
      %v1079 = vunpack.c.h.b16 %v590
      %v1080 = vunpack.c.l.b16 %v591
      %v1081 = vunpack.c.h.b16 %v591
      %v1082 = vunpack.c.l.b16 %v592
      %v1083 = vunpack.c.h.b16 %v592
      %v1084 = vunpack.c.l.b16 %v593
      %v1085 = vunpack.c.h.b16 %v593
      %v1086 = vunpack.c.l.b16 %v594
      %v1087 = vunpack.c.h.b16 %v594
      %v1088 = vunpack.c.l.b16 %v595
      %v1089 = vunpack.c.h.b16 %v595
      %v1090 = vunpack.c.l.b16 %v596
      %v1091 = vunpack.c.h.b16 %v596
      %v1092 = vunpack.c.l.b16 %v597
      %v1093 = vunpack.c.h.b16 %v597
      %v1094 = vunpack.c.l.b16 %v598
      %v1095 = vunpack.c.h.b16 %v598
      %v1096 = vunpack.c.l.b16 %v599
      %v1097 = vunpack.c.h.b16 %v599
      %v1098 = vunpack.c.l.b16 %v600
      %v1099 = vunpack.c.h.b16 %v600
      %v1100 = vunpack.c.l.b16 %v601
      %v1101 = vunpack.c.h.b16 %v601
      %v1102 = vunpack.c.l.b16 %v602
      %v1103 = vunpack.c.h.b16 %v602
      %v1104 = vunpack.c.l.b16 %v603
      %v1105 = vunpack.c.h.b16 %v603
      %v1106 = vunpack.c.l.b16 %v604
      %v1107 = vunpack.c.h.b16 %v604
      %v1108 = vunpack.c.l.b16 %v605
      %v1109 = vunpack.c.h.b16 %v605
      %v1110 = vunpack.c.l.b16 %v606
      %v1111 = vunpack.c.h.b16 %v606
      %v1112 = vunpack.c.l.b16 %v607
      %v1113 = vunpack.c.h.b16 %v607
      %v1114 = vunpack.c.l.b16 %v608
      %v1115 = vunpack.c.h.b16 %v608
      %v1116 = vunpack.c.l.b16 %v609
      %v1117 = vunpack.c.h.b16 %v609
      %v1118 = vunpack.c.l.b16 %v610
      %v1119 = vunpack.c.h.b16 %v610
      %v1120 = vunpack.c.l.b16 %v611
      %v1121 = vunpack.c.h.b16 %v611
      %v1122 = vunpack.c.l.b16 %v612
      %v1123 = vunpack.c.h.b16 %v612
      %v1124 = vunpack.c.l.b16 %v613
      %v1125 = vunpack.c.h.b16 %v613
      %v1126 = vunpack.c.l.b16 %v614
      %v1127 = vunpack.c.h.b16 %v614
      %v1128 = vunpack.c.l.b16 %v615
      %v1129 = vunpack.c.h.b16 %v615
      %v1130 = vunpack.c.l.b16 %v616
      %v1131 = vunpack.c.h.b16 %v616
      %v1132 = vunpack.c.l.b16 %v617
      %v1133 = vunpack.c.h.b16 %v617
      %v1134 = vunpack.c.l.b16 %v618
      %v1135 = vunpack.c.h.b16 %v618
      %v1136 = vunpack.c.l.b16 %v619
      %v1137 = vunpack.c.h.b16 %v619
      %v1138 = vunpack.c.l.b16 %v620
      %v1139 = vunpack.c.h.b16 %v620
      %v1140 = vunpack.c.l.b16 %v621
      %v1141 = vunpack.c.h.b16 %v621
      %v1142 = vunpack.c.l.b16 %v622
      %v1143 = vunpack.c.h.b16 %v622
      %v1144 = vunpack.c.l.b16 %v623
      %v1145 = vunpack.c.h.b16 %v623
      %v1146 = vunpack.c.l.b16 %v624
      %v1147 = vunpack.c.h.b16 %v624
      %v1148 = vunpack.c.l.b16 %v625
      %v1149 = vunpack.c.h.b16 %v625
      %v1150 = vunpack.c.l.b16 %v626
      %v1151 = vunpack.c.h.b16 %v626
      %v1152 = vunpack.c.l.b16 %v627
      %v1153 = vunpack.c.h.b16 %v627
      %v1154 = vunpack.c.l.b16 %v628
      %v1155 = vunpack.c.h.b16 %v628
      %v1156 = vunpack.c.l.b16 %v629
      %v1157 = vunpack.c.h.b16 %v629
      %v1158 = vunpack.c.l.b16 %v630
      %v1159 = vunpack.c.h.b16 %v630
      %v1160 = vunpack.c.l.b16 %v631
      %v1161 = vunpack.c.h.b16 %v631
      %v1162 = vunpack.c.l.b16 %v632
      %v1163 = vunpack.c.h.b16 %v632
      %v1164 = vunpack.c.l.b16 %v633
      %v1165 = vunpack.c.h.b16 %v633
      %v1166 = vunpack.c.l.b16 %v634
      %v1167 = vunpack.c.h.b16 %v634
      %v1168 = vunpack.c.l.b16 %v635
      %v1169 = vunpack.c.h.b16 %v635
      %v1170 = vunpack.c.l.b16 %v636
      %v1171 = vunpack.c.h.b16 %v636
      %v1172 = vunpack.c.l.b16 %v637
      %v1173 = vunpack.c.h.b16 %v637
      %v1174 = vunpack.c.l.b16 %v638
      %v1175 = vunpack.c.h.b16 %v638
      %v1176 = vunpack.c.l.b16 %v639
      %v1177 = vunpack.c.h.b16 %v639
      %v1178 = vunpack.c.l.b16 %v640
      %v1179 = vunpack.c.h.b16 %v640
      %v1180 = vunpack.c.l.b16 %v641
      %v1181 = vunpack.c.h.b16 %v641
      %v1182 = vunpack.c.l.b16 %v642
      %v1183 = vunpack.c.h.b16 %v642
      %v1184 = vunpack.c.l.b16 %v643
      %v1185 = vunpack.c.h.b16 %v643
      %v1186 = vunpack.c.l.b16 %v644
      %v1187 = vunpack.c.h.b16 %v644
      %v1188 = vunpack.c.l.b16 %v645
      %v1189 = vunpack.c.h.b16 %v645
      %v1190 = vunpack.c.l.b16 %v646
      %v1191 = vunpack.c.h.b16 %v646
      %v1192 = vunpack.c.l.b16 %v647
      %v1193 = vunpack.c.h.b16 %v647
      %v1194 = vunpack.c.l.b16 %v648
      %v1195 = vunpack.c.h.b16 %v648
      %v1196 = vunpack.c.l.b16 %v649
      %v1197 = vunpack.c.h.b16 %v649
      %v1198 = vunpack.c.l.b16 %v650
      %v1199 = vunpack.c.h.b16 %v650
      %v1200 = vunpack.c.l.b16 %v651
      %v1201 = vunpack.c.h.b16 %v651
      %v1202 = vunpack.c.l.b16 %v652
      %v1203 = vunpack.c.h.b16 %v652
      %v1204 = vunpack.c.l.b16 %v653
      %v1205 = vunpack.c.h.b16 %v653
      %v1206 = vunpack.c.l.b16 %v654
      %v1207 = vunpack.c.h.b16 %v654
      %v1208 = vunpack.c.l.b16 %v655
      %v1209 = vunpack.c.h.b16 %v655
      %v1210 = vunpack.c.l.b16 %v656
      %v1211 = vunpack.c.h.b16 %v656
      %v1212 = vunpack.c.l.b16 %v657
      %v1213 = vunpack.c.h.b16 %v657
      %v1214 = vunpack.c.l.b16 %v658
      %v1215 = vunpack.c.h.b16 %v658
      %v1216 = vunpack.c.l.b16 %v659
      %v1217 = vunpack.c.h.b16 %v659
      %v1218 = vunpack.c.l.b16 %v660
      %v1219 = vunpack.c.h.b16 %v660
      %v1220 = vunpack.c.l.b16 %v661
      %v1221 = vunpack.c.h.b16 %v661
      %v1222 = vunpack.c.l.b16 %v662
      %v1223 = vunpack.c.h.b16 %v662
      %v1224 = vunpack.c.l.b16 %v663
      %v1225 = vunpack.c.h.b16 %v663
      %v1226 = vunpack.c.l.b16 %v664
      %v1227 = vunpack.c.h.b16 %v664
      %v1228 = vunpack.c.l.b16 %v665
      %v1229 = vunpack.c.h.b16 %v665
      %v1230 = vunpack.c.l.b16 %v666
      %v1231 = vunpack.c.h.b16 %v666
      %v1232 = vunpack.c.l.b16 %v667
      %v1233 = vunpack.c.h.b16 %v667
      %v1234 = vunpack.c.l.b16 %v668
      %v1235 = vunpack.c.h.b16 %v668
      %v1236 = vunpack.c.l.b16 %v669
      %v1237 = vunpack.c.h.b16 %v669
      %v1238 = vunpack.c.l.b16 %v670
      %v1239 = vunpack.c.h.b16 %v670
      %v1240 = vunpack.c.l.b16 %v671
      %v1241 = vunpack.c.h.b16 %v671
      %v1242 = vunpack.c.l.b16 %v672
      %v1243 = vunpack.c.h.b16 %v672
      %v1244 = vunpack.c.l.b16 %v673
      %v1245 = vunpack.c.h.b16 %v673
      %v1246 = vunpack.c.l.b16 %v674
      %v1247 = vunpack.c.h.b16 %v674
      %v1248 = vunpack.c.l.b16 %v675
      %v1249 = vunpack.c.h.b16 %v675
      %v1250 = vunpack.c.l.b16 %v676
      %v1251 = vunpack.c.h.b16 %v676
      %v1252 = vunpack.c.l.b16 %v677
      %v1253 = vunpack.c.h.b16 %v677
      %v1254 = vunpack.c.l.b16 %v678
      %v1255 = vunpack.c.h.b16 %v678
      %v1256 = vunpack.c.l.b16 %v679
      %v1257 = vunpack.c.h.b16 %v679
      %v1258 = vunpack.c.l.b16 %v680
      %v1259 = vunpack.c.h.b16 %v680
      %v1260 = vunpack.c.l.b16 %v681
      %v1261 = vunpack.c.h.b16 %v681
      %v1262 = vunpack.c.l.b16 %v682
      %v1263 = vunpack.c.h.b16 %v682
      %v1264 = vunpack.c.l.b16 %v683
      %v1265 = vunpack.c.h.b16 %v683
      %v1266 = vunpack.c.l.b16 %v684
      %v1267 = vunpack.c.h.b16 %v684
      %v1268 = vunpack.c.l.b16 %v685
      %v1269 = vunpack.c.h.b16 %v685
      %v1270 = vunpack.c.l.b16 %v686
      %v1271 = vunpack.c.h.b16 %v686
      %v1272 = vunpack.c.l.b16 %v687
      %v1273 = vunpack.c.h.b16 %v687
      %v1274 = vunpack.c.l.b16 %v688
      %v1275 = vunpack.c.h.b16 %v688
      %v1276 = vunpack.c.l.b16 %v689
      %v1277 = vunpack.c.h.b16 %v689
      %v1278 = vunpack.c.l.b16 %v690
      %v1279 = vunpack.c.h.b16 %v690
      %v1280 = vunpack.c.l.b16 %v691
      %v1281 = vunpack.c.h.b16 %v691
      %v1282 = vunpack.c.l.b16 %v692
      %v1283 = vunpack.c.h.b16 %v692
      %v1284 = vunpack.c.l.b16 %v693
      %v1285 = vunpack.c.h.b16 %v693
      %v1286 = vunpack.c.l.b16 %v694
      %v1287 = vunpack.c.h.b16 %v694
      %v1288 = vunpack.c.l.b16 %v695
      %v1289 = vunpack.c.h.b16 %v695
      %v1290 = vunpack.c.l.b16 %v696
      %v1291 = vunpack.c.h.b16 %v696
      %v1292 = vunpack.c.l.b16 %v697
      %v1293 = vunpack.c.h.b16 %v697
      %v1294 = vunpack.c.l.b16 %v698
      %v1295 = vunpack.c.h.b16 %v698
      %v1296 = vunpack.c.l.b16 %v699
      %v1297 = vunpack.c.h.b16 %v699
      %v1298 = vunpack.c.l.b16 %v700
      %v1299 = vunpack.c.h.b16 %v700
      %v1300 = vunpack.c.l.b16 %v701
      %v1301 = vunpack.c.h.b16 %v701
      %v1302 = vunpack.c.l.b16 %v702
      %v1303 = vunpack.c.h.b16 %v702
      %v1304 = vunpack.c.l.b16 %v703
      %v1305 = vunpack.c.h.b16 %v703
      %v1306 = vpack.c.b16 %v922, %v906
      %v1307 = vpack.c.b16 %v923, %v907
      %v1308 = vpack.c.b16 %v924, %v908
      %v1309 = vpack.c.b16 %v925, %v909
      %v1310 = vpack.c.b16 %v926, %v910
      %v1311 = vpack.c.b16 %v927, %v911
      %v1312 = vpack.c.b16 %v928, %v912
      %v1313 = vpack.c.b16 %v929, %v913
      %v1314 = vpack.c.b16 %v930, %v914
      %v1315 = vpack.c.b16 %v931, %v915
      %v1316 = vpack.c.b16 %v932, %v916
      %v1317 = vpack.c.b16 %v933, %v917
      %v1318 = vpack.c.b16 %v934, %v918
      %v1319 = vpack.c.b16 %v935, %v919
      %v1320 = vpack.c.b16 %v936, %v920
      %v1321 = vpack.c.b16 %v937, %v921
      %v1322 = vpack.c.b16 %v954, %v938
      %v1323 = vpack.c.b16 %v955, %v939
      %v1324 = vpack.c.b16 %v956, %v940
      %v1325 = vpack.c.b16 %v957, %v941
      %v1326 = vpack.c.b16 %v958, %v942
      %v1327 = vpack.c.b16 %v959, %v943
      %v1328 = vpack.c.b16 %v960, %v944
      %v1329 = vpack.c.b16 %v961, %v945
      %v1330 = vpack.c.b16 %v962, %v946
      %v1331 = vpack.c.b16 %v963, %v947
      %v1332 = vpack.c.b16 %v964, %v948
      %v1333 = vpack.c.b16 %v965, %v949
      %v1334 = vpack.c.b16 %v966, %v950
      %v1335 = vpack.c.b16 %v967, %v951
      %v1336 = vpack.c.b16 %v968, %v952
      %v1337 = vpack.c.b16 %v969, %v953
      %v1338 = vpack.c.b16 %v986, %v970
      %v1339 = vpack.c.b16 %v987, %v971
      %v1340 = vpack.c.b16 %v988, %v972
      %v1341 = vpack.c.b16 %v989, %v973
      %v1342 = vpack.c.b16 %v990, %v974
      %v1343 = vpack.c.b16 %v991, %v975
      %v1344 = vpack.c.b16 %v992, %v976
      %v1345 = vpack.c.b16 %v993, %v977
      %v1346 = vpack.c.b16 %v994, %v978
      %v1347 = vpack.c.b16 %v995, %v979
      %v1348 = vpack.c.b16 %v996, %v980
      %v1349 = vpack.c.b16 %v997, %v981
      %v1350 = vpack.c.b16 %v998, %v982
      %v1351 = vpack.c.b16 %v999, %v983
      %v1352 = vpack.c.b16 %v1000, %v984
      %v1353 = vpack.c.b16 %v1001, %v985
      %v1354 = vpack.c.b16 %v1018, %v1002
      %v1355 = vpack.c.b16 %v1019, %v1003
      %v1356 = vpack.c.b16 %v1020, %v1004
      %v1357 = vpack.c.b16 %v1021, %v1005
      %v1358 = vpack.c.b16 %v1022, %v1006
      %v1359 = vpack.c.b16 %v1023, %v1007
      %v1360 = vpack.c.b16 %v1024, %v1008
      %v1361 = vpack.c.b16 %v1025, %v1009
      %v1362 = vpack.c.b16 %v1026, %v1010
      %v1363 = vpack.c.b16 %v1027, %v1011
      %v1364 = vpack.c.b16 %v1028, %v1012
      %v1365 = vpack.c.b16 %v1029, %v1013
      %v1366 = vpack.c.b16 %v1030, %v1014
      %v1367 = vpack.c.b16 %v1031, %v1015
      %v1368 = vpack.c.b16 %v1032, %v1016
      %v1369 = vpack.c.b16 %v1033, %v1017
      %v1370 = vpack.c.b16 %v1050, %v1034
      %v1371 = vpack.c.b16 %v1051, %v1035
      %v1372 = vpack.c.b16 %v1052, %v1036
      %v1373 = vpack.c.b16 %v1053, %v1037
      %v1374 = vpack.c.b16 %v1054, %v1038
      %v1375 = vpack.c.b16 %v1055, %v1039
      %v1376 = vpack.c.b16 %v1056, %v1040
      %v1377 = vpack.c.b16 %v1057, %v1041
      %v1378 = vpack.c.b16 %v1058, %v1042
      %v1379 = vpack.c.b16 %v1059, %v1043
      %v1380 = vpack.c.b16 %v1060, %v1044
      %v1381 = vpack.c.b16 %v1061, %v1045
      %v1382 = vpack.c.b16 %v1062, %v1046
      %v1383 = vpack.c.b16 %v1063, %v1047
      %v1384 = vpack.c.b16 %v1064, %v1048
      %v1385 = vpack.c.b16 %v1065, %v1049
      %v1386 = vpack.c.b16 %v1082, %v1066
      %v1387 = vpack.c.b16 %v1083, %v1067
      %v1388 = vpack.c.b16 %v1084, %v1068
      %v1389 = vpack.c.b16 %v1085, %v1069
      %v1390 = vpack.c.b16 %v1086, %v1070
      %v1391 = vpack.c.b16 %v1087, %v1071
      %v1392 = vpack.c.b16 %v1088, %v1072
      %v1393 = vpack.c.b16 %v1089, %v1073
      %v1394 = vpack.c.b16 %v1090, %v1074
      %v1395 = vpack.c.b16 %v1091, %v1075
      %v1396 = vpack.c.b16 %v1092, %v1076
      %v1397 = vpack.c.b16 %v1093, %v1077
      %v1398 = vpack.c.b16 %v1094, %v1078
      %v1399 = vpack.c.b16 %v1095, %v1079
      %v1400 = vpack.c.b16 %v1096, %v1080
      %v1401 = vpack.c.b16 %v1097, %v1081
      %v1402 = vpack.c.b16 %v1114, %v1098
      %v1403 = vpack.c.b16 %v1115, %v1099
      %v1404 = vpack.c.b16 %v1116, %v1100
      %v1405 = vpack.c.b16 %v1117, %v1101
      %v1406 = vpack.c.b16 %v1118, %v1102
      %v1407 = vpack.c.b16 %v1119, %v1103
      %v1408 = vpack.c.b16 %v1120, %v1104
      %v1409 = vpack.c.b16 %v1121, %v1105
      %v1410 = vpack.c.b16 %v1122, %v1106
      %v1411 = vpack.c.b16 %v1123, %v1107
      %v1412 = vpack.c.b16 %v1124, %v1108
      %v1413 = vpack.c.b16 %v1125, %v1109
      %v1414 = vpack.c.b16 %v1126, %v1110
      %v1415 = vpack.c.b16 %v1127, %v1111
      %v1416 = vpack.c.b16 %v1128, %v1112
      %v1417 = vpack.c.b16 %v1129, %v1113
      %v1418 = vpack.c.b16 %v1146, %v1130
      %v1419 = vpack.c.b16 %v1147, %v1131
      %v1420 = vpack.c.b16 %v1148, %v1132
      %v1421 = vpack.c.b16 %v1149, %v1133
      %v1422 = vpack.c.b16 %v1150, %v1134
      %v1423 = vpack.c.b16 %v1151, %v1135
      %v1424 = vpack.c.b16 %v1152, %v1136
      %v1425 = vpack.c.b16 %v1153, %v1137
      %v1426 = vpack.c.b16 %v1154, %v1138
      %v1427 = vpack.c.b16 %v1155, %v1139
      %v1428 = vpack.c.b16 %v1156, %v1140
      %v1429 = vpack.c.b16 %v1157, %v1141
      %v1430 = vpack.c.b16 %v1158, %v1142
      %v1431 = vpack.c.b16 %v1159, %v1143
      %v1432 = vpack.c.b16 %v1160, %v1144
      %v1433 = vpack.c.b16 %v1161, %v1145
      %v1434 = vpack.c.b16 %v1178, %v1162
      %v1435 = vpack.c.b16 %v1179, %v1163
      %v1436 = vpack.c.b16 %v1180, %v1164
      %v1437 = vpack.c.b16 %v1181, %v1165
      %v1438 = vpack.c.b16 %v1182, %v1166
      %v1439 = vpack.c.b16 %v1183, %v1167
      %v1440 = vpack.c.b16 %v1184, %v1168
      %v1441 = vpack.c.b16 %v1185, %v1169
      %v1442 = vpack.c.b16 %v1186, %v1170
      %v1443 = vpack.c.b16 %v1187, %v1171
      %v1444 = vpack.c.b16 %v1188, %v1172
      %v1445 = vpack.c.b16 %v1189, %v1173
      %v1446 = vpack.c.b16 %v1190, %v1174
      %v1447 = vpack.c.b16 %v1191, %v1175
      %v1448 = vpack.c.b16 %v1192, %v1176
      %v1449 = vpack.c.b16 %v1193, %v1177
      %v1450 = vpack.c.b16 %v1210, %v1194
      %v1451 = vpack.c.b16 %v1211, %v1195
      %v1452 = vpack.c.b16 %v1212, %v1196
      %v1453 = vpack.c.b16 %v1213, %v1197
      %v1454 = vpack.c.b16 %v1214, %v1198
      %v1455 = vpack.c.b16 %v1215, %v1199
      %v1456 = vpack.c.b16 %v1216, %v1200
      %v1457 = vpack.c.b16 %v1217, %v1201
      %v1458 = vpack.c.b16 %v1218, %v1202
      %v1459 = vpack.c.b16 %v1219, %v1203
      %v1460 = vpack.c.b16 %v1220, %v1204
      %v1461 = vpack.c.b16 %v1221, %v1205
      %v1462 = vpack.c.b16 %v1222, %v1206
      %v1463 = vpack.c.b16 %v1223, %v1207
      %v1464 = vpack.c.b16 %v1224, %v1208
      %v1465 = vpack.c.b16 %v1225, %v1209
      %v1466 = vpack.c.b16 %v1242, %v1226
      %v1467 = vpack.c.b16 %v1243, %v1227
      %v1468 = vpack.c.b16 %v1244, %v1228
      %v1469 = vpack.c.b16 %v1245, %v1229
      %v1470 = vpack.c.b16 %v1246, %v1230
      %v1471 = vpack.c.b16 %v1247, %v1231
      %v1472 = vpack.c.b16 %v1248, %v1232
      %v1473 = vpack.c.b16 %v1249, %v1233
      %v1474 = vpack.c.b16 %v1250, %v1234
      %v1475 = vpack.c.b16 %v1251, %v1235
      %v1476 = vpack.c.b16 %v1252, %v1236
      %v1477 = vpack.c.b16 %v1253, %v1237
      %v1478 = vpack.c.b16 %v1254, %v1238
      %v1479 = vpack.c.b16 %v1255, %v1239
      %v1480 = vpack.c.b16 %v1256, %v1240
      %v1481 = vpack.c.b16 %v1257, %v1241
      %v1482 = vpack.c.b16 %v1274, %v1258
      %v1483 = vpack.c.b16 %v1275, %v1259
      %v1484 = vpack.c.b16 %v1276, %v1260
      %v1485 = vpack.c.b16 %v1277, %v1261
      %v1486 = vpack.c.b16 %v1278, %v1262
      %v1487 = vpack.c.b16 %v1279, %v1263
      %v1488 = vpack.c.b16 %v1280, %v1264
      %v1489 = vpack.c.b16 %v1281, %v1265
      %v1490 = vpack.c.b16 %v1282, %v1266
      %v1491 = vpack.c.b16 %v1283, %v1267
      %v1492 = vpack.c.b16 %v1284, %v1268
      %v1493 = vpack.c.b16 %v1285, %v1269
      %v1494 = vpack.c.b16 %v1286, %v1270
      %v1495 = vpack.c.b16 %v1287, %v1271
      %v1496 = vpack.c.b16 %v1288, %v1272
      %v1497 = vpack.c.b16 %v1289, %v1273
      %v1498 = vpack.c.b16 %v1290, %v1290
      %v1499 = vpack.c.b16 %v1291, %v1291
      %v1500 = vpack.c.b16 %v1292, %v1292
      %v1501 = vpack.c.b16 %v1293, %v1293
      %v1502 = vpack.c.b16 %v1294, %v1294
      %v1503 = vpack.c.b16 %v1295, %v1295
      %v1504 = vpack.c.b16 %v1296, %v1296
      %v1505 = vpack.c.b16 %v1297, %v1297
      %v1506 = vpack.c.b16 %v1298, %v1298
      %v1507 = vpack.c.b16 %v1299, %v1299
      %v1508 = vpack.c.b16 %v1300, %v1300
      %v1509 = vpack.c.b16 %v1301, %v1301
      %v1510 = vpack.c.b16 %v1302, %v1302
      %v1511 = vpack.c.b16 %v1303, %v1303
      %v1512 = vpack.c.b16 %v1304, %v1304
      %v1513 = vpack.c.b16 %v1305, %v1305
      %vm1706 = vcmask 556032
      %v1708 = vsel %vm1706, %v705, 0
      %vm1710 = vcmask 1041408
      %v1712 = vsel %vm1710, %v1498, 0
      %v1715 = vsel %vm1710, %v1499, 0
      %v1718 = vsel %vm1710, %v1500, 0
      %v1721 = vsel %vm1710, %v1501, 0
      %v1724 = vsel %vm1710, %v1502, 0
      %v1727 = vsel %vm1710, %v1503, 0
      %v1730 = vsel %vm1710, %v1504, 0
      %v1733 = vsel %vm1710, %v1505, 0
      %v1736 = vsel %vm1710, %v1506, 0
      %v1739 = vsel %vm1710, %v1507, 0
      %v1742 = vsel %vm1710, %v1508, 0
      %v1745 = vsel %vm1710, %v1509, 0
      %v1748 = vsel %vm1710, %v1510, 0
      %v1751 = vsel %vm1710, %v1511, 0
      %v1754 = vsel %vm1710, %v1512, 0
      %v1757 = vsel %vm1710, %v1513, 0
      %1759 = vmatpush.bf16.msra.mxu0 %v1418
      %1760 = vmatpush.bf16.msra.mxu0 %v1402
      %1761 = vmatpush.bf16.msra.mxu0 %v1386
      %1762 = vmatpush.bf16.msra.mxu0 %v1370
      %1763 = vmatpush.bf16.msra.mxu0 %v1354
      %1764 = vmatpush.bf16.msra.mxu0 %v1338
      %1765 = vmatpush.bf16.msra.mxu0 %v1322
      %1766 = vmatpush.bf16.msra.mxu0 %v1306
      %1767 = vmatmul.bf16.gmra.mxu0 %v704
      %v1768 = vpop.f32.mrf.mxu0
      %v1769 = vadd.f32 0.0, %v1768
      %v1770 = vpop.f32.mrf.mxu0
      %v1771 = vadd.f32 0.0, %v1770
      %1772 = vdwg.mxu0
      %1773 = vmatpush.bf16.msra.mxu0 0
      %1774 = vmatpush.bf16.msra.mxu0 0
      %1775 = vmatpush.bf16.msra.mxu0 0
      %1776 = vmatpush.bf16.msra.mxu0 %v1712
      %1777 = vmatpush.bf16.msra.mxu0 %v1482
      %1778 = vmatpush.bf16.msra.mxu0 %v1466
      %1779 = vmatpush.bf16.msra.mxu0 %v1450
      %1780 = vmatpush.bf16.msra.mxu0 %v1434
      %1781 = vmatmul.bf16.gmra.mxu0 %v1708
      %v1782 = vpop.f32.mrf.mxu0
      %v1783 = vadd.f32 %v1769, %v1782
      %v1784 = vpop.f32.mrf.mxu0
      %v1785 = vadd.f32 %v1771, %v1784
      %1786 = vdwg.mxu0
      %1787 = vmatpush.bf16.msra.mxu0 %v1419
      %1788 = vmatpush.bf16.msra.mxu0 %v1403
      %1789 = vmatpush.bf16.msra.mxu0 %v1387
      %1790 = vmatpush.bf16.msra.mxu0 %v1371
      %1791 = vmatpush.bf16.msra.mxu0 %v1355
      %1792 = vmatpush.bf16.msra.mxu0 %v1339
      %1793 = vmatpush.bf16.msra.mxu0 %v1323
      %1794 = vmatpush.bf16.msra.mxu0 %v1307
      %1795 = vmatmul.bf16.gmra.mxu0 %v704
      %v1796 = vpop.f32.mrf.mxu0
      %v1797 = vadd.f32 0.0, %v1796
      %v1798 = vpop.f32.mrf.mxu0
      %v1799 = vadd.f32 0.0, %v1798
      %1800 = vdwg.mxu0
      %1801 = vmatpush.bf16.msra.mxu0 0
      %1802 = vmatpush.bf16.msra.mxu0 0
      %1803 = vmatpush.bf16.msra.mxu0 0
      %1804 = vmatpush.bf16.msra.mxu0 %v1715
      %1805 = vmatpush.bf16.msra.mxu0 %v1483
      %1806 = vmatpush.bf16.msra.mxu0 %v1467
      %1807 = vmatpush.bf16.msra.mxu0 %v1451
      %1808 = vmatpush.bf16.msra.mxu0 %v1435
      %1809 = vmatmul.bf16.gmra.mxu0 %v1708
      %v1810 = vpop.f32.mrf.mxu0
      %v1811 = vadd.f32 %v1797, %v1810
      %v1812 = vpop.f32.mrf.mxu0
      %v1813 = vadd.f32 %v1799, %v1812
      %1814 = vdwg.mxu0
      %1815 = vmatpush.bf16.msra.mxu0 %v1420
      %1816 = vmatpush.bf16.msra.mxu0 %v1404
      %1817 = vmatpush.bf16.msra.mxu0 %v1388
      %1818 = vmatpush.bf16.msra.mxu0 %v1372
      %1819 = vmatpush.bf16.msra.mxu0 %v1356
      %1820 = vmatpush.bf16.msra.mxu0 %v1340
      %1821 = vmatpush.bf16.msra.mxu0 %v1324
      %1822 = vmatpush.bf16.msra.mxu0 %v1308
      %1823 = vmatmul.bf16.gmra.mxu0 %v704
      %v1824 = vpop.f32.mrf.mxu0
      %v1825 = vadd.f32 0.0, %v1824
      %v1826 = vpop.f32.mrf.mxu0
      %v1827 = vadd.f32 0.0, %v1826
      %1828 = vdwg.mxu0
      %1829 = vmatpush.bf16.msra.mxu0 0
      %1830 = vmatpush.bf16.msra.mxu0 0
      %1831 = vmatpush.bf16.msra.mxu0 0
      %1832 = vmatpush.bf16.msra.mxu0 %v1718
      %1833 = vmatpush.bf16.msra.mxu0 %v1484
      %1834 = vmatpush.bf16.msra.mxu0 %v1468
      %1835 = vmatpush.bf16.msra.mxu0 %v1452
      %1836 = vmatpush.bf16.msra.mxu0 %v1436
      %1837 = vmatmul.bf16.gmra.mxu0 %v1708
      %v1838 = vpop.f32.mrf.mxu0
      %v1839 = vadd.f32 %v1825, %v1838
      %v1840 = vpop.f32.mrf.mxu0
      %v1841 = vadd.f32 %v1827, %v1840
      %1842 = vdwg.mxu0
      %1843 = vmatpush.bf16.msra.mxu0 %v1421
      %1844 = vmatpush.bf16.msra.mxu0 %v1405
      %1845 = vmatpush.bf16.msra.mxu0 %v1389
      %1846 = vmatpush.bf16.msra.mxu0 %v1373
      %1847 = vmatpush.bf16.msra.mxu0 %v1357
      %1848 = vmatpush.bf16.msra.mxu0 %v1341
      %1849 = vmatpush.bf16.msra.mxu0 %v1325
      %1850 = vmatpush.bf16.msra.mxu0 %v1309
      %1851 = vmatmul.bf16.gmra.mxu0 %v704
      %v1852 = vpop.f32.mrf.mxu0
      %v1853 = vadd.f32 0.0, %v1852
      %v1854 = vpop.f32.mrf.mxu0
      %v1855 = vadd.f32 0.0, %v1854
      %1856 = vdwg.mxu0
      %1857 = vmatpush.bf16.msra.mxu0 0
      %1858 = vmatpush.bf16.msra.mxu0 0
      %1859 = vmatpush.bf16.msra.mxu0 0
      %1860 = vmatpush.bf16.msra.mxu0 %v1721
      %1861 = vmatpush.bf16.msra.mxu0 %v1485
      %1862 = vmatpush.bf16.msra.mxu0 %v1469
      %1863 = vmatpush.bf16.msra.mxu0 %v1453
      %1864 = vmatpush.bf16.msra.mxu0 %v1437
      %1865 = vmatmul.bf16.gmra.mxu0 %v1708
      %v1866 = vpop.f32.mrf.mxu0
      %v1867 = vadd.f32 %v1853, %v1866
      %v1868 = vpop.f32.mrf.mxu0
      %v1869 = vadd.f32 %v1855, %v1868
      %1870 = vdwg.mxu0
      %1871 = vmatpush.bf16.msra.mxu0 %v1422
      %1872 = vmatpush.bf16.msra.mxu0 %v1406
      %1873 = vmatpush.bf16.msra.mxu0 %v1390
      %1874 = vmatpush.bf16.msra.mxu0 %v1374
      %1875 = vmatpush.bf16.msra.mxu0 %v1358
      %1876 = vmatpush.bf16.msra.mxu0 %v1342
      %1877 = vmatpush.bf16.msra.mxu0 %v1326
      %1878 = vmatpush.bf16.msra.mxu0 %v1310
      %1879 = vmatmul.bf16.gmra.mxu0 %v704
      %v1880 = vpop.f32.mrf.mxu0
      %v1881 = vadd.f32 0.0, %v1880
      %v1882 = vpop.f32.mrf.mxu0
      %v1883 = vadd.f32 0.0, %v1882
      %1884 = vdwg.mxu0
      %1885 = vmatpush.bf16.msra.mxu0 0
      %1886 = vmatpush.bf16.msra.mxu0 0
      %1887 = vmatpush.bf16.msra.mxu0 0
      %1888 = vmatpush.bf16.msra.mxu0 %v1724
      %1889 = vmatpush.bf16.msra.mxu0 %v1486
      %1890 = vmatpush.bf16.msra.mxu0 %v1470
      %1891 = vmatpush.bf16.msra.mxu0 %v1454
      %1892 = vmatpush.bf16.msra.mxu0 %v1438
      %1893 = vmatmul.bf16.gmra.mxu0 %v1708
      %v1894 = vpop.f32.mrf.mxu0
      %v1895 = vadd.f32 %v1881, %v1894
      %v1896 = vpop.f32.mrf.mxu0
      %v1897 = vadd.f32 %v1883, %v1896
      %1898 = vdwg.mxu0
      %1899 = vmatpush.bf16.msra.mxu0 %v1423
      %1900 = vmatpush.bf16.msra.mxu0 %v1407
      %1901 = vmatpush.bf16.msra.mxu0 %v1391
      %1902 = vmatpush.bf16.msra.mxu0 %v1375
      %1903 = vmatpush.bf16.msra.mxu0 %v1359
      %1904 = vmatpush.bf16.msra.mxu0 %v1343
      %1905 = vmatpush.bf16.msra.mxu0 %v1327
      %1906 = vmatpush.bf16.msra.mxu0 %v1311
      %1907 = vmatmul.bf16.gmra.mxu0 %v704
      %v1908 = vpop.f32.mrf.mxu0
      %v1909 = vadd.f32 0.0, %v1908
      %v1910 = vpop.f32.mrf.mxu0
      %v1911 = vadd.f32 0.0, %v1910
      %1912 = vdwg.mxu0
      %1913 = vmatpush.bf16.msra.mxu0 0
      %1914 = vmatpush.bf16.msra.mxu0 0
      %1915 = vmatpush.bf16.msra.mxu0 0
      %1916 = vmatpush.bf16.msra.mxu0 %v1727
      %1917 = vmatpush.bf16.msra.mxu0 %v1487
      %1918 = vmatpush.bf16.msra.mxu0 %v1471
      %1919 = vmatpush.bf16.msra.mxu0 %v1455
      %1920 = vmatpush.bf16.msra.mxu0 %v1439
      %1921 = vmatmul.bf16.gmra.mxu0 %v1708
      %v1922 = vpop.f32.mrf.mxu0
      %v1923 = vadd.f32 %v1909, %v1922
      %v1924 = vpop.f32.mrf.mxu0
      %v1925 = vadd.f32 %v1911, %v1924
      %1926 = vdwg.mxu0
      %1927 = vmatpush.bf16.msra.mxu0 %v1424
      %1928 = vmatpush.bf16.msra.mxu0 %v1408
      %1929 = vmatpush.bf16.msra.mxu0 %v1392
      %1930 = vmatpush.bf16.msra.mxu0 %v1376
      %1931 = vmatpush.bf16.msra.mxu0 %v1360
      %1932 = vmatpush.bf16.msra.mxu0 %v1344
      %1933 = vmatpush.bf16.msra.mxu0 %v1328
      %1934 = vmatpush.bf16.msra.mxu0 %v1312
      %1935 = vmatmul.bf16.gmra.mxu0 %v704
      %v1936 = vpop.f32.mrf.mxu0
      %v1937 = vadd.f32 0.0, %v1936
      %v1938 = vpop.f32.mrf.mxu0
      %v1939 = vadd.f32 0.0, %v1938
      %1940 = vdwg.mxu0
      %1941 = vmatpush.bf16.msra.mxu0 0
      %1942 = vmatpush.bf16.msra.mxu0 0
      %1943 = vmatpush.bf16.msra.mxu0 0
      %1944 = vmatpush.bf16.msra.mxu0 %v1730
      %1945 = vmatpush.bf16.msra.mxu0 %v1488
      %1946 = vmatpush.bf16.msra.mxu0 %v1472
      %1947 = vmatpush.bf16.msra.mxu0 %v1456
      %1948 = vmatpush.bf16.msra.mxu0 %v1440
      %1949 = vmatmul.bf16.gmra.mxu0 %v1708
      %v1950 = vpop.f32.mrf.mxu0
      %v1951 = vadd.f32 %v1937, %v1950
      %v1952 = vpop.f32.mrf.mxu0
      %v1953 = vadd.f32 %v1939, %v1952
      %1954 = vdwg.mxu0
      %1955 = vmatpush.bf16.msra.mxu0 %v1425
      %1956 = vmatpush.bf16.msra.mxu0 %v1409
      %1957 = vmatpush.bf16.msra.mxu0 %v1393
      %1958 = vmatpush.bf16.msra.mxu0 %v1377
      %1959 = vmatpush.bf16.msra.mxu0 %v1361
      %1960 = vmatpush.bf16.msra.mxu0 %v1345
      %1961 = vmatpush.bf16.msra.mxu0 %v1329
      %1962 = vmatpush.bf16.msra.mxu0 %v1313
      %1963 = vmatmul.bf16.gmra.mxu0 %v704
      %v1964 = vpop.f32.mrf.mxu0
      %v1965 = vadd.f32 0.0, %v1964
      %v1966 = vpop.f32.mrf.mxu0
      %v1967 = vadd.f32 0.0, %v1966
      %1968 = vdwg.mxu0
      %1969 = vmatpush.bf16.msra.mxu0 0
      %1970 = vmatpush.bf16.msra.mxu0 0
      %1971 = vmatpush.bf16.msra.mxu0 0
      %1972 = vmatpush.bf16.msra.mxu0 %v1733
      %1973 = vmatpush.bf16.msra.mxu0 %v1489
      %1974 = vmatpush.bf16.msra.mxu0 %v1473
      %1975 = vmatpush.bf16.msra.mxu0 %v1457
      %1976 = vmatpush.bf16.msra.mxu0 %v1441
      %1977 = vmatmul.bf16.gmra.mxu0 %v1708
      %v1978 = vpop.f32.mrf.mxu0
      %v1979 = vadd.f32 %v1965, %v1978
      %v1980 = vpop.f32.mrf.mxu0
      %v1981 = vadd.f32 %v1967, %v1980
      %1982 = vdwg.mxu0
      %1983 = vmatpush.bf16.msra.mxu0 %v1426
      %1984 = vmatpush.bf16.msra.mxu0 %v1410
      %1985 = vmatpush.bf16.msra.mxu0 %v1394
      %1986 = vmatpush.bf16.msra.mxu0 %v1378
      %1987 = vmatpush.bf16.msra.mxu0 %v1362
      %1988 = vmatpush.bf16.msra.mxu0 %v1346
      %1989 = vmatpush.bf16.msra.mxu0 %v1330
      %1990 = vmatpush.bf16.msra.mxu0 %v1314
      %1991 = vmatmul.bf16.gmra.mxu0 %v704
      %v1992 = vpop.f32.mrf.mxu0
      %v1993 = vadd.f32 0.0, %v1992
      %v1994 = vpop.f32.mrf.mxu0
      %v1995 = vadd.f32 0.0, %v1994
      %1996 = vdwg.mxu0
      %1997 = vmatpush.bf16.msra.mxu0 0
      %1998 = vmatpush.bf16.msra.mxu0 0
      %1999 = vmatpush.bf16.msra.mxu0 0
      %2000 = vmatpush.bf16.msra.mxu0 %v1736
      %2001 = vmatpush.bf16.msra.mxu0 %v1490
      %2002 = vmatpush.bf16.msra.mxu0 %v1474
      %2003 = vmatpush.bf16.msra.mxu0 %v1458
      %2004 = vmatpush.bf16.msra.mxu0 %v1442
      %2005 = vmatmul.bf16.gmra.mxu0 %v1708
      %v2006 = vpop.f32.mrf.mxu0
      %v2007 = vadd.f32 %v1993, %v2006
      %v2008 = vpop.f32.mrf.mxu0
      %v2009 = vadd.f32 %v1995, %v2008
      %2010 = vdwg.mxu0
      %2011 = vmatpush.bf16.msra.mxu0 %v1427
      %2012 = vmatpush.bf16.msra.mxu0 %v1411
      %2013 = vmatpush.bf16.msra.mxu0 %v1395
      %2014 = vmatpush.bf16.msra.mxu0 %v1379
      %2015 = vmatpush.bf16.msra.mxu0 %v1363
      %2016 = vmatpush.bf16.msra.mxu0 %v1347
      %2017 = vmatpush.bf16.msra.mxu0 %v1331
      %2018 = vmatpush.bf16.msra.mxu0 %v1315
      %2019 = vmatmul.bf16.gmra.mxu0 %v704
      %v2020 = vpop.f32.mrf.mxu0
      %v2021 = vadd.f32 0.0, %v2020
      %v2022 = vpop.f32.mrf.mxu0
      %v2023 = vadd.f32 0.0, %v2022
      %2024 = vdwg.mxu0
      %2025 = vmatpush.bf16.msra.mxu0 0
      %2026 = vmatpush.bf16.msra.mxu0 0
      %2027 = vmatpush.bf16.msra.mxu0 0
      %2028 = vmatpush.bf16.msra.mxu0 %v1739
      %2029 = vmatpush.bf16.msra.mxu0 %v1491
      %2030 = vmatpush.bf16.msra.mxu0 %v1475
      %2031 = vmatpush.bf16.msra.mxu0 %v1459
      %2032 = vmatpush.bf16.msra.mxu0 %v1443
      %2033 = vmatmul.bf16.gmra.mxu0 %v1708
      %v2034 = vpop.f32.mrf.mxu0
      %v2035 = vadd.f32 %v2021, %v2034
      %v2036 = vpop.f32.mrf.mxu0
      %v2037 = vadd.f32 %v2023, %v2036
      %2038 = vdwg.mxu0
      %2039 = vmatpush.bf16.msra.mxu0 %v1428
      %2040 = vmatpush.bf16.msra.mxu0 %v1412
      %2041 = vmatpush.bf16.msra.mxu0 %v1396
      %2042 = vmatpush.bf16.msra.mxu0 %v1380
      %2043 = vmatpush.bf16.msra.mxu0 %v1364
      %2044 = vmatpush.bf16.msra.mxu0 %v1348
      %2045 = vmatpush.bf16.msra.mxu0 %v1332
      %2046 = vmatpush.bf16.msra.mxu0 %v1316
      %2047 = vmatmul.bf16.gmra.mxu0 %v704
      %v2048 = vpop.f32.mrf.mxu0
      %v2049 = vadd.f32 0.0, %v2048
      %v2050 = vpop.f32.mrf.mxu0
      %v2051 = vadd.f32 0.0, %v2050
      %2052 = vdwg.mxu0
      %2053 = vmatpush.bf16.msra.mxu0 0
      %2054 = vmatpush.bf16.msra.mxu0 0
      %2055 = vmatpush.bf16.msra.mxu0 0
      %2056 = vmatpush.bf16.msra.mxu0 %v1742
      %2057 = vmatpush.bf16.msra.mxu0 %v1492
      %2058 = vmatpush.bf16.msra.mxu0 %v1476
      %2059 = vmatpush.bf16.msra.mxu0 %v1460
      %2060 = vmatpush.bf16.msra.mxu0 %v1444
      %2061 = vmatmul.bf16.gmra.mxu0 %v1708
      %v2062 = vpop.f32.mrf.mxu0
      %v2063 = vadd.f32 %v2049, %v2062
      %v2064 = vpop.f32.mrf.mxu0
      %v2065 = vadd.f32 %v2051, %v2064
      %2066 = vdwg.mxu0
      %2067 = vmatpush.bf16.msra.mxu0 %v1429
      %2068 = vmatpush.bf16.msra.mxu0 %v1413
      %2069 = vmatpush.bf16.msra.mxu0 %v1397
      %2070 = vmatpush.bf16.msra.mxu0 %v1381
      %2071 = vmatpush.bf16.msra.mxu0 %v1365
      %2072 = vmatpush.bf16.msra.mxu0 %v1349
      %2073 = vmatpush.bf16.msra.mxu0 %v1333
      %2074 = vmatpush.bf16.msra.mxu0 %v1317
      %2075 = vmatmul.bf16.gmra.mxu0 %v704
      %v2076 = vpop.f32.mrf.mxu0
      %v2077 = vadd.f32 0.0, %v2076
      %v2078 = vpop.f32.mrf.mxu0
      %v2079 = vadd.f32 0.0, %v2078
      %2080 = vdwg.mxu0
      %2081 = vmatpush.bf16.msra.mxu0 0
      %2082 = vmatpush.bf16.msra.mxu0 0
      %2083 = vmatpush.bf16.msra.mxu0 0
      %2084 = vmatpush.bf16.msra.mxu0 %v1745
      %2085 = vmatpush.bf16.msra.mxu0 %v1493
      %2086 = vmatpush.bf16.msra.mxu0 %v1477
      %2087 = vmatpush.bf16.msra.mxu0 %v1461
      %2088 = vmatpush.bf16.msra.mxu0 %v1445
      %2089 = vmatmul.bf16.gmra.mxu0 %v1708
      %v2090 = vpop.f32.mrf.mxu0
      %v2091 = vadd.f32 %v2077, %v2090
      %v2092 = vpop.f32.mrf.mxu0
      %v2093 = vadd.f32 %v2079, %v2092
      %2094 = vdwg.mxu0
      %2095 = vmatpush.bf16.msra.mxu0 %v1430
      %2096 = vmatpush.bf16.msra.mxu0 %v1414
      %2097 = vmatpush.bf16.msra.mxu0 %v1398
      %2098 = vmatpush.bf16.msra.mxu0 %v1382
      %2099 = vmatpush.bf16.msra.mxu0 %v1366
      %2100 = vmatpush.bf16.msra.mxu0 %v1350
      %2101 = vmatpush.bf16.msra.mxu0 %v1334
      %2102 = vmatpush.bf16.msra.mxu0 %v1318
      %2103 = vmatmul.bf16.gmra.mxu0 %v704
      %v2104 = vpop.f32.mrf.mxu0
      %v2105 = vadd.f32 0.0, %v2104
      %v2106 = vpop.f32.mrf.mxu0
      %v2107 = vadd.f32 0.0, %v2106
      %2108 = vdwg.mxu0
      %2109 = vmatpush.bf16.msra.mxu0 0
      %2110 = vmatpush.bf16.msra.mxu0 0
      %2111 = vmatpush.bf16.msra.mxu0 0
      %2112 = vmatpush.bf16.msra.mxu0 %v1748
      %2113 = vmatpush.bf16.msra.mxu0 %v1494
      %2114 = vmatpush.bf16.msra.mxu0 %v1478
      %2115 = vmatpush.bf16.msra.mxu0 %v1462
      %2116 = vmatpush.bf16.msra.mxu0 %v1446
      %2117 = vmatmul.bf16.gmra.mxu0 %v1708
      %v2118 = vpop.f32.mrf.mxu0
      %v2119 = vadd.f32 %v2105, %v2118
      %v2120 = vpop.f32.mrf.mxu0
      %v2121 = vadd.f32 %v2107, %v2120
      %2122 = vdwg.mxu0
      %2123 = vmatpush.bf16.msra.mxu0 %v1431
      %2124 = vmatpush.bf16.msra.mxu0 %v1415
      %2125 = vmatpush.bf16.msra.mxu0 %v1399
      %2126 = vmatpush.bf16.msra.mxu0 %v1383
      %2127 = vmatpush.bf16.msra.mxu0 %v1367
      %2128 = vmatpush.bf16.msra.mxu0 %v1351
      %2129 = vmatpush.bf16.msra.mxu0 %v1335
      %2130 = vmatpush.bf16.msra.mxu0 %v1319
      %2131 = vmatmul.bf16.gmra.mxu0 %v704
      %v2132 = vpop.f32.mrf.mxu0
      %v2133 = vadd.f32 0.0, %v2132
      %v2134 = vpop.f32.mrf.mxu0
      %v2135 = vadd.f32 0.0, %v2134
      %2136 = vdwg.mxu0
      %2137 = vmatpush.bf16.msra.mxu0 0
      %2138 = vmatpush.bf16.msra.mxu0 0
      %2139 = vmatpush.bf16.msra.mxu0 0
      %2140 = vmatpush.bf16.msra.mxu0 %v1751
      %2141 = vmatpush.bf16.msra.mxu0 %v1495
      %2142 = vmatpush.bf16.msra.mxu0 %v1479
      %2143 = vmatpush.bf16.msra.mxu0 %v1463
      %2144 = vmatpush.bf16.msra.mxu0 %v1447
      %2145 = vmatmul.bf16.gmra.mxu0 %v1708
      %v2146 = vpop.f32.mrf.mxu0
      %v2147 = vadd.f32 %v2133, %v2146
      %v2148 = vpop.f32.mrf.mxu0
      %v2149 = vadd.f32 %v2135, %v2148
      %2150 = vdwg.mxu0
      %2151 = vmatpush.bf16.msra.mxu0 %v1432
      %2152 = vmatpush.bf16.msra.mxu0 %v1416
      %2153 = vmatpush.bf16.msra.mxu0 %v1400
      %2154 = vmatpush.bf16.msra.mxu0 %v1384
      %2155 = vmatpush.bf16.msra.mxu0 %v1368
      %2156 = vmatpush.bf16.msra.mxu0 %v1352
      %2157 = vmatpush.bf16.msra.mxu0 %v1336
      %2158 = vmatpush.bf16.msra.mxu0 %v1320
      %2159 = vmatmul.bf16.gmra.mxu0 %v704
      %v2160 = vpop.f32.mrf.mxu0
      %v2161 = vadd.f32 0.0, %v2160
      %v2162 = vpop.f32.mrf.mxu0
      %v2163 = vadd.f32 0.0, %v2162
      %2164 = vdwg.mxu0
      %2165 = vmatpush.bf16.msra.mxu0 0
      %2166 = vmatpush.bf16.msra.mxu0 0
      %2167 = vmatpush.bf16.msra.mxu0 0
      %2168 = vmatpush.bf16.msra.mxu0 %v1754
      %2169 = vmatpush.bf16.msra.mxu0 %v1496
      %2170 = vmatpush.bf16.msra.mxu0 %v1480
      %2171 = vmatpush.bf16.msra.mxu0 %v1464
      %2172 = vmatpush.bf16.msra.mxu0 %v1448
      %2173 = vmatmul.bf16.gmra.mxu0 %v1708
      %v2174 = vpop.f32.mrf.mxu0
      %v2175 = vadd.f32 %v2161, %v2174
      %v2176 = vpop.f32.mrf.mxu0
      %v2177 = vadd.f32 %v2163, %v2176
      %2178 = vdwg.mxu0
      %2179 = vmatpush.bf16.msra.mxu0 %v1433
      %2180 = vmatpush.bf16.msra.mxu0 %v1417
      %2181 = vmatpush.bf16.msra.mxu0 %v1401
      %2182 = vmatpush.bf16.msra.mxu0 %v1385
      %2183 = vmatpush.bf16.msra.mxu0 %v1369
      %2184 = vmatpush.bf16.msra.mxu0 %v1353
      %2185 = vmatpush.bf16.msra.mxu0 %v1337
      %2186 = vmatpush.bf16.msra.mxu0 %v1321
      %2187 = vmatmul.bf16.gmra.mxu0 %v704
      %v2188 = vpop.f32.mrf.mxu0
      %v2189 = vadd.f32 0.0, %v2188
      %v2190 = vpop.f32.mrf.mxu0
      %v2191 = vadd.f32 0.0, %v2190
      %2192 = vdwg.mxu0
      %2193 = vmatpush.bf16.msra.mxu0 0
      %2194 = vmatpush.bf16.msra.mxu0 0
      %2195 = vmatpush.bf16.msra.mxu0 0
      %2196 = vmatpush.bf16.msra.mxu0 %v1757
      %2197 = vmatpush.bf16.msra.mxu0 %v1497
      %2198 = vmatpush.bf16.msra.mxu0 %v1481
      %2199 = vmatpush.bf16.msra.mxu0 %v1465
      %2200 = vmatpush.bf16.msra.mxu0 %v1449
      %2201 = vmatmul.bf16.gmra.mxu0 %v1708
      %v2202 = vpop.f32.mrf.mxu0
      %v2203 = vadd.f32 %v2189, %v2202
      %v2204 = vpop.f32.mrf.mxu0
      %v2205 = vadd.f32 %v2191, %v2204
      %2206 = vdwg.mxu0
      %v2207 = vld [vmem:[%s4] sm:$0xf]
      %v2208 = vld [vmem:[%s4 + $0x4] sm:$0xf]
      %v2209 = vld [vmem:[%s4 + $0x8] sm:$0xf]
      %v2210 = vld [vmem:[%s4 + $0xc] sm:$0xf]
      %v2211 = vpack.c.bf16 %v1785, %v1783
      %s2212 = scalar_lea.vmem %s4, 16
      %v2213 = vld [vmem:[%s2212] sm:$0xf]
      %v2214 = vld [vmem:[%s2212 + $0x4] sm:$0xf]
      %v2215 = vld [vmem:[%s2212 + $0x8] sm:$0xf]
      %v2216 = vld [vmem:[%s2212 + $0xc] sm:$0xf]
      %v2217 = vpack.c.bf16 %v1813, %v1811
      %v2222 = vunpack.c.l.b16 %v2213
      %v2223 = vunpack.c.l.b16 %v2214
      %v2224 = vunpack.c.l.b16 %v2215
      %v2225 = vunpack.c.l.b16 %v2216
      %v2226 = vpack.c.b16 %v2223, %v2222
      %v2227 = vpack.c.b16 %v2225, %v2224
      %vm2228 = vcmask 130048
      %v2230 = vsel %vm2228, %v2226, 0
      %v2233 = vsel %vm2228, %v2227, 0
      %2235 = vmatpush.bf16.msra.mxu0 0
      %2236 = vmatpush.bf16.msra.mxu0 0
      %2237 = vmatpush.bf16.msra.mxu0 0
      %2238 = vmatpush.bf16.msra.mxu0 0
      %2239 = vmatpush.bf16.msra.mxu0 0
      %2240 = vmatpush.bf16.msra.mxu0 0
      %2241 = vmatpush.bf16.msra.mxu0 0
      %2242 = vmatpush.bf16.msra.mxu0 %v2217
      %2243 = vmatmul.bf16.gmra.mxu0 %v2230
      %v2244 = vpop.f32.mrf.mxu0
      %v2245 = vadd.f32 0.0, %v2244
      %v2246 = vpop.f32.mrf.mxu0
      %v2247 = vadd.f32 0.0, %v2246
      %2248 = vmatmul.bf16.gmra.mxu0 %v2233
      %v2249 = vpop.f32.mrf.mxu0
      %v2250 = vadd.f32 0.0, %v2249
      %v2251 = vpop.f32.mrf.mxu0
      %v2252 = vadd.f32 0.0, %v2251
      %2253 = vdwg.mxu0
      %v2258 = vunpack.c.l.b16 %v2207
      %v2259 = vunpack.c.l.b16 %v2208
      %v2260 = vunpack.c.l.b16 %v2209
      %v2261 = vunpack.c.l.b16 %v2210
      %v2262 = vpack.c.b16 %v2259, %v2258
      %v2263 = vpack.c.b16 %v2261, %v2260
      %v2265 = vsel %vm2228, %v2262, 0
      %v2268 = vsel %vm2228, %v2263, 0
      %2270 = vmatpush.bf16.msra.mxu0 0
      %2271 = vmatpush.bf16.msra.mxu0 0
      %2272 = vmatpush.bf16.msra.mxu0 0
      %2273 = vmatpush.bf16.msra.mxu0 0
      %2274 = vmatpush.bf16.msra.mxu0 0
      %2275 = vmatpush.bf16.msra.mxu0 0
      %2276 = vmatpush.bf16.msra.mxu0 0
      %2277 = vmatpush.bf16.msra.mxu0 %v2211
      %2278 = vmatmul.bf16.gmra.mxu0 %v2265
      %v2279 = vpop.f32.mrf.mxu0
      %v2280 = vadd.f32 %v2245, %v2279
      %v2281 = vpop.f32.mrf.mxu0
      %v2282 = vadd.f32 %v2247, %v2281
      %2283 = vmatmul.bf16.gmra.mxu0 %v2268
      %v2284 = vpop.f32.mrf.mxu0
      %v2285 = vadd.f32 %v2250, %v2284
      %v2286 = vpop.f32.mrf.mxu0
      %v2287 = vadd.f32 %v2252, %v2286
      %2288 = vdwg.mxu0
      %s2289 = scalar_lea.vmem %s4, 32
      %v2290 = vld [vmem:[%s2289] sm:$0xf]
      %v2291 = vld [vmem:[%s2289 + $0x4] sm:$0xf]
      %v2292 = vld [vmem:[%s2289 + $0x8] sm:$0xf]
      %v2293 = vld [vmem:[%s2289 + $0xc] sm:$0xf]
      %v2294 = vpack.c.bf16 %v1841, %v1839
      %v2299 = vunpack.c.l.b16 %v2290
      %v2300 = vunpack.c.l.b16 %v2291
      %v2301 = vunpack.c.l.b16 %v2292
      %v2302 = vunpack.c.l.b16 %v2293
      %v2303 = vpack.c.b16 %v2300, %v2299
      %v2304 = vpack.c.b16 %v2302, %v2301
      %v2306 = vsel %vm2228, %v2303, 0
      %v2309 = vsel %vm2228, %v2304, 0
      %2311 = vmatpush.bf16.msra.mxu0 0
      %2312 = vmatpush.bf16.msra.mxu0 0
      %2313 = vmatpush.bf16.msra.mxu0 0
      %2314 = vmatpush.bf16.msra.mxu0 0
      %2315 = vmatpush.bf16.msra.mxu0 0
      %2316 = vmatpush.bf16.msra.mxu0 0
      %2317 = vmatpush.bf16.msra.mxu0 0
      %2318 = vmatpush.bf16.msra.mxu0 %v2294
      %2319 = vmatmul.bf16.gmra.mxu0 %v2306
      %v2320 = vpop.f32.mrf.mxu0
      %v2321 = vadd.f32 0.0, %v2320
      %v2322 = vpop.f32.mrf.mxu0
      %v2323 = vadd.f32 0.0, %v2322
      %2324 = vmatmul.bf16.gmra.mxu0 %v2309
      %v2325 = vpop.f32.mrf.mxu0
      %v2326 = vadd.f32 0.0, %v2325
      %v2327 = vpop.f32.mrf.mxu0
      %v2328 = vadd.f32 0.0, %v2327
      %2329 = vdwg.mxu0
      %v2330 = vadd.f32 %v2280, %v2321
      %v2331 = vadd.f32 %v2282, %v2323
      %v2332 = vadd.f32 %v2285, %v2326
      %v2333 = vadd.f32 %v2287, %v2328
      %s2334 = scalar_lea.vmem %s4, 48
      %v2335 = vld [vmem:[%s2334] sm:$0xf]
      %v2336 = vld [vmem:[%s2334 + $0x4] sm:$0xf]
      %v2337 = vld [vmem:[%s2334 + $0x8] sm:$0xf]
      %v2338 = vld [vmem:[%s2334 + $0xc] sm:$0xf]
      %v2339 = vpack.c.bf16 %v1869, %v1867
      %v2344 = vunpack.c.l.b16 %v2335
      %v2345 = vunpack.c.l.b16 %v2336
      %v2346 = vunpack.c.l.b16 %v2337
      %v2347 = vunpack.c.l.b16 %v2338
      %v2348 = vpack.c.b16 %v2345, %v2344
      %v2349 = vpack.c.b16 %v2347, %v2346
      %v2351 = vsel %vm2228, %v2348, 0
      %v2354 = vsel %vm2228, %v2349, 0
      %2356 = vmatpush.bf16.msra.mxu0 0
      %2357 = vmatpush.bf16.msra.mxu0 0
      %2358 = vmatpush.bf16.msra.mxu0 0
      %2359 = vmatpush.bf16.msra.mxu0 0
      %2360 = vmatpush.bf16.msra.mxu0 0
      %2361 = vmatpush.bf16.msra.mxu0 0
      %2362 = vmatpush.bf16.msra.mxu0 0
      %2363 = vmatpush.bf16.msra.mxu0 %v2339
      %2364 = vmatmul.bf16.gmra.mxu0 %v2351
      %v2365 = vpop.f32.mrf.mxu0
      %v2366 = vadd.f32 0.0, %v2365
      %v2367 = vpop.f32.mrf.mxu0
      %v2368 = vadd.f32 0.0, %v2367
      %2369 = vmatmul.bf16.gmra.mxu0 %v2354
      %v2370 = vpop.f32.mrf.mxu0
      %v2371 = vadd.f32 0.0, %v2370
      %v2372 = vpop.f32.mrf.mxu0
      %v2373 = vadd.f32 0.0, %v2372
      %2374 = vdwg.mxu0
      %v2375 = vadd.f32 %v2330, %v2366
      %v2376 = vadd.f32 %v2331, %v2368
      %v2377 = vadd.f32 %v2332, %v2371
      %v2378 = vadd.f32 %v2333, %v2373
      %s2379 = scalar_lea.vmem %s4, 64
      %v2380 = vld [vmem:[%s2379] sm:$0xf]
      %v2381 = vld [vmem:[%s2379 + $0x4] sm:$0xf]
      %v2382 = vld [vmem:[%s2379 + $0x8] sm:$0xf]
      %v2383 = vld [vmem:[%s2379 + $0xc] sm:$0xf]
      %v2384 = vpack.c.bf16 %v1897, %v1895
      %v2389 = vunpack.c.l.b16 %v2380
      %v2390 = vunpack.c.l.b16 %v2381
      %v2391 = vunpack.c.l.b16 %v2382
      %v2392 = vunpack.c.l.b16 %v2383
      %v2393 = vpack.c.b16 %v2390, %v2389
      %v2394 = vpack.c.b16 %v2392, %v2391
      %v2396 = vsel %vm2228, %v2393, 0
      %v2399 = vsel %vm2228, %v2394, 0
      %2401 = vmatpush.bf16.msra.mxu0 0
      %2402 = vmatpush.bf16.msra.mxu0 0
      %2403 = vmatpush.bf16.msra.mxu0 0
      %2404 = vmatpush.bf16.msra.mxu0 0
      %2405 = vmatpush.bf16.msra.mxu0 0
      %2406 = vmatpush.bf16.msra.mxu0 0
      %2407 = vmatpush.bf16.msra.mxu0 0
      %2408 = vmatpush.bf16.msra.mxu0 %v2384
      %2409 = vmatmul.bf16.gmra.mxu0 %v2396
      %v2410 = vpop.f32.mrf.mxu0
      %v2411 = vadd.f32 0.0, %v2410
      %v2412 = vpop.f32.mrf.mxu0
      %v2413 = vadd.f32 0.0, %v2412
      %2414 = vmatmul.bf16.gmra.mxu0 %v2399
      %v2415 = vpop.f32.mrf.mxu0
      %v2416 = vadd.f32 0.0, %v2415
      %v2417 = vpop.f32.mrf.mxu0
      %v2418 = vadd.f32 0.0, %v2417
      %2419 = vdwg.mxu0
      %v2420 = vadd.f32 %v2375, %v2411
      %v2421 = vadd.f32 %v2376, %v2413
      %v2422 = vadd.f32 %v2377, %v2416
      %v2423 = vadd.f32 %v2378, %v2418
      %s2424 = scalar_lea.vmem %s4, 80
      %v2425 = vld [vmem:[%s2424] sm:$0xf]
      %v2426 = vld [vmem:[%s2424 + $0x4] sm:$0xf]
      %v2427 = vld [vmem:[%s2424 + $0x8] sm:$0xf]
      %v2428 = vld [vmem:[%s2424 + $0xc] sm:$0xf]
      %v2429 = vpack.c.bf16 %v1925, %v1923
      %v2434 = vunpack.c.l.b16 %v2425
      %v2435 = vunpack.c.l.b16 %v2426
      %v2436 = vunpack.c.l.b16 %v2427
      %v2437 = vunpack.c.l.b16 %v2428
      %v2438 = vpack.c.b16 %v2435, %v2434
      %v2439 = vpack.c.b16 %v2437, %v2436
      %v2441 = vsel %vm2228, %v2438, 0
      %v2444 = vsel %vm2228, %v2439, 0
      %2446 = vmatpush.bf16.msra.mxu0 0
      %2447 = vmatpush.bf16.msra.mxu0 0
      %2448 = vmatpush.bf16.msra.mxu0 0
      %2449 = vmatpush.bf16.msra.mxu0 0
      %2450 = vmatpush.bf16.msra.mxu0 0
      %2451 = vmatpush.bf16.msra.mxu0 0
      %2452 = vmatpush.bf16.msra.mxu0 0
      %2453 = vmatpush.bf16.msra.mxu0 %v2429
      %2454 = vmatmul.bf16.gmra.mxu0 %v2441
      %v2455 = vpop.f32.mrf.mxu0
      %v2456 = vadd.f32 0.0, %v2455
      %v2457 = vpop.f32.mrf.mxu0
      %v2458 = vadd.f32 0.0, %v2457
      %2459 = vmatmul.bf16.gmra.mxu0 %v2444
      %v2460 = vpop.f32.mrf.mxu0
      %v2461 = vadd.f32 0.0, %v2460
      %v2462 = vpop.f32.mrf.mxu0
      %v2463 = vadd.f32 0.0, %v2462
      %2464 = vdwg.mxu0
      %v2465 = vadd.f32 %v2420, %v2456
      %v2466 = vadd.f32 %v2421, %v2458
      %v2467 = vadd.f32 %v2422, %v2461
      %v2468 = vadd.f32 %v2423, %v2463
      %s2469 = scalar_lea.vmem %s4, 96
      %v2470 = vld [vmem:[%s2469] sm:$0xf]
      %v2471 = vld [vmem:[%s2469 + $0x4] sm:$0xf]
      %v2472 = vld [vmem:[%s2469 + $0x8] sm:$0xf]
      %v2473 = vld [vmem:[%s2469 + $0xc] sm:$0xf]
      %v2474 = vpack.c.bf16 %v1953, %v1951
      %v2479 = vunpack.c.l.b16 %v2470
      %v2480 = vunpack.c.l.b16 %v2471
      %v2481 = vunpack.c.l.b16 %v2472
      %v2482 = vunpack.c.l.b16 %v2473
      %v2483 = vpack.c.b16 %v2480, %v2479
      %v2484 = vpack.c.b16 %v2482, %v2481
      %v2486 = vsel %vm2228, %v2483, 0
      %v2489 = vsel %vm2228, %v2484, 0
      %2491 = vmatpush.bf16.msra.mxu0 0
      %2492 = vmatpush.bf16.msra.mxu0 0
      %2493 = vmatpush.bf16.msra.mxu0 0
      %2494 = vmatpush.bf16.msra.mxu0 0
      %2495 = vmatpush.bf16.msra.mxu0 0
      %2496 = vmatpush.bf16.msra.mxu0 0
      %2497 = vmatpush.bf16.msra.mxu0 0
      %2498 = vmatpush.bf16.msra.mxu0 %v2474
      %2499 = vmatmul.bf16.gmra.mxu0 %v2486
      %v2500 = vpop.f32.mrf.mxu0
      %v2501 = vadd.f32 0.0, %v2500
      %v2502 = vpop.f32.mrf.mxu0
      %v2503 = vadd.f32 0.0, %v2502
      %2504 = vmatmul.bf16.gmra.mxu0 %v2489
      %v2505 = vpop.f32.mrf.mxu0
      %v2506 = vadd.f32 0.0, %v2505
      %v2507 = vpop.f32.mrf.mxu0
      %v2508 = vadd.f32 0.0, %v2507
      %2509 = vdwg.mxu0
      %v2510 = vadd.f32 %v2465, %v2501
      %v2511 = vadd.f32 %v2466, %v2503
      %v2512 = vadd.f32 %v2467, %v2506
      %v2513 = vadd.f32 %v2468, %v2508
      %s2514 = scalar_lea.vmem %s4, 112
      %v2515 = vld [vmem:[%s2514] sm:$0xf]
      %v2516 = vld [vmem:[%s2514 + $0x4] sm:$0xf]
      %v2517 = vld [vmem:[%s2514 + $0x8] sm:$0xf]
      %v2518 = vld [vmem:[%s2514 + $0xc] sm:$0xf]
      %v2519 = vpack.c.bf16 %v1981, %v1979
      %v2524 = vunpack.c.l.b16 %v2515
      %v2525 = vunpack.c.l.b16 %v2516
      %v2526 = vunpack.c.l.b16 %v2517
      %v2527 = vunpack.c.l.b16 %v2518
      %v2528 = vpack.c.b16 %v2525, %v2524
      %v2529 = vpack.c.b16 %v2527, %v2526
      %v2531 = vsel %vm2228, %v2528, 0
      %v2534 = vsel %vm2228, %v2529, 0
      %2536 = vmatpush.bf16.msra.mxu0 0
      %2537 = vmatpush.bf16.msra.mxu0 0
      %2538 = vmatpush.bf16.msra.mxu0 0
      %2539 = vmatpush.bf16.msra.mxu0 0
      %2540 = vmatpush.bf16.msra.mxu0 0
      %2541 = vmatpush.bf16.msra.mxu0 0
      %2542 = vmatpush.bf16.msra.mxu0 0
      %2543 = vmatpush.bf16.msra.mxu0 %v2519
      %2544 = vmatmul.bf16.gmra.mxu0 %v2531
      %v2545 = vpop.f32.mrf.mxu0
      %v2546 = vadd.f32 0.0, %v2545
      %v2547 = vpop.f32.mrf.mxu0
      %v2548 = vadd.f32 0.0, %v2547
      %2549 = vmatmul.bf16.gmra.mxu0 %v2534
      %v2550 = vpop.f32.mrf.mxu0
      %v2551 = vadd.f32 0.0, %v2550
      %v2552 = vpop.f32.mrf.mxu0
      %v2553 = vadd.f32 0.0, %v2552
      %2554 = vdwg.mxu0
      %v2555 = vadd.f32 %v2510, %v2546
      %v2556 = vadd.f32 %v2511, %v2548
      %v2557 = vadd.f32 %v2512, %v2551
      %v2558 = vadd.f32 %v2513, %v2553
      %s2559 = scalar_lea.vmem %s4, 128
      %v2560 = vld [vmem:[%s2559] sm:$0xf]
      %v2561 = vld [vmem:[%s2559 + $0x4] sm:$0xf]
      %v2562 = vld [vmem:[%s2559 + $0x8] sm:$0xf]
      %v2563 = vld [vmem:[%s2559 + $0xc] sm:$0xf]
      %v2564 = vpack.c.bf16 %v2009, %v2007
      %v2569 = vunpack.c.l.b16 %v2560
      %v2570 = vunpack.c.l.b16 %v2561
      %v2571 = vunpack.c.l.b16 %v2562
      %v2572 = vunpack.c.l.b16 %v2563
      %v2573 = vpack.c.b16 %v2570, %v2569
      %v2574 = vpack.c.b16 %v2572, %v2571
      %v2576 = vsel %vm2228, %v2573, 0
      %v2579 = vsel %vm2228, %v2574, 0
      %2581 = vmatpush.bf16.msra.mxu0 0
      %2582 = vmatpush.bf16.msra.mxu0 0
      %2583 = vmatpush.bf16.msra.mxu0 0
      %2584 = vmatpush.bf16.msra.mxu0 0
      %2585 = vmatpush.bf16.msra.mxu0 0
      %2586 = vmatpush.bf16.msra.mxu0 0
      %2587 = vmatpush.bf16.msra.mxu0 0
      %2588 = vmatpush.bf16.msra.mxu0 %v2564
      %2589 = vmatmul.bf16.gmra.mxu0 %v2576
      %v2590 = vpop.f32.mrf.mxu0
      %v2591 = vadd.f32 0.0, %v2590
      %v2592 = vpop.f32.mrf.mxu0
      %v2593 = vadd.f32 0.0, %v2592
      %2594 = vmatmul.bf16.gmra.mxu0 %v2579
      %v2595 = vpop.f32.mrf.mxu0
      %v2596 = vadd.f32 0.0, %v2595
      %v2597 = vpop.f32.mrf.mxu0
      %v2598 = vadd.f32 0.0, %v2597
      %2599 = vdwg.mxu0
      %v2600 = vadd.f32 %v2555, %v2591
      %v2601 = vadd.f32 %v2556, %v2593
      %v2602 = vadd.f32 %v2557, %v2596
      %v2603 = vadd.f32 %v2558, %v2598
      %s2604 = scalar_lea.vmem %s4, 144
      %v2605 = vld [vmem:[%s2604] sm:$0xf]
      %v2606 = vld [vmem:[%s2604 + $0x4] sm:$0xf]
      %v2607 = vld [vmem:[%s2604 + $0x8] sm:$0xf]
      %v2608 = vld [vmem:[%s2604 + $0xc] sm:$0xf]
      %v2609 = vpack.c.bf16 %v2037, %v2035
      %v2614 = vunpack.c.l.b16 %v2605
      %v2615 = vunpack.c.l.b16 %v2606
      %v2616 = vunpack.c.l.b16 %v2607
      %v2617 = vunpack.c.l.b16 %v2608
      %v2618 = vpack.c.b16 %v2615, %v2614
      %v2619 = vpack.c.b16 %v2617, %v2616
      %v2621 = vsel %vm2228, %v2618, 0
      %v2624 = vsel %vm2228, %v2619, 0
      %2626 = vmatpush.bf16.msra.mxu0 0
      %2627 = vmatpush.bf16.msra.mxu0 0
      %2628 = vmatpush.bf16.msra.mxu0 0
      %2629 = vmatpush.bf16.msra.mxu0 0
      %2630 = vmatpush.bf16.msra.mxu0 0
      %2631 = vmatpush.bf16.msra.mxu0 0
      %2632 = vmatpush.bf16.msra.mxu0 0
      %2633 = vmatpush.bf16.msra.mxu0 %v2609
      %2634 = vmatmul.bf16.gmra.mxu0 %v2621
      %v2635 = vpop.f32.mrf.mxu0
      %v2636 = vadd.f32 0.0, %v2635
      %v2637 = vpop.f32.mrf.mxu0
      %v2638 = vadd.f32 0.0, %v2637
      %2639 = vmatmul.bf16.gmra.mxu0 %v2624
      %v2640 = vpop.f32.mrf.mxu0
      %v2641 = vadd.f32 0.0, %v2640
      %v2642 = vpop.f32.mrf.mxu0
      %v2643 = vadd.f32 0.0, %v2642
      %2644 = vdwg.mxu0
      %v2645 = vadd.f32 %v2600, %v2636
      %v2646 = vadd.f32 %v2601, %v2638
      %v2647 = vadd.f32 %v2602, %v2641
      %v2648 = vadd.f32 %v2603, %v2643
      %s2649 = scalar_lea.vmem %s4, 160
      %v2650 = vld [vmem:[%s2649] sm:$0xf]
      %v2651 = vld [vmem:[%s2649 + $0x4] sm:$0xf]
      %v2652 = vld [vmem:[%s2649 + $0x8] sm:$0xf]
      %v2653 = vld [vmem:[%s2649 + $0xc] sm:$0xf]
      %v2654 = vpack.c.bf16 %v2065, %v2063
      %v2659 = vunpack.c.l.b16 %v2650
      %v2660 = vunpack.c.l.b16 %v2651
      %v2661 = vunpack.c.l.b16 %v2652
      %v2662 = vunpack.c.l.b16 %v2653
      %v2663 = vpack.c.b16 %v2660, %v2659
      %v2664 = vpack.c.b16 %v2662, %v2661
      %v2666 = vsel %vm2228, %v2663, 0
      %v2669 = vsel %vm2228, %v2664, 0
      %2671 = vmatpush.bf16.msra.mxu0 0
      %2672 = vmatpush.bf16.msra.mxu0 0
      %2673 = vmatpush.bf16.msra.mxu0 0
      %2674 = vmatpush.bf16.msra.mxu0 0
      %2675 = vmatpush.bf16.msra.mxu0 0
      %2676 = vmatpush.bf16.msra.mxu0 0
      %2677 = vmatpush.bf16.msra.mxu0 0
      %2678 = vmatpush.bf16.msra.mxu0 %v2654
      %2679 = vmatmul.bf16.gmra.mxu0 %v2666
      %v2680 = vpop.f32.mrf.mxu0
      %v2681 = vadd.f32 0.0, %v2680
      %v2682 = vpop.f32.mrf.mxu0
      %v2683 = vadd.f32 0.0, %v2682
      %2684 = vmatmul.bf16.gmra.mxu0 %v2669
      %v2685 = vpop.f32.mrf.mxu0
      %v2686 = vadd.f32 0.0, %v2685
      %v2687 = vpop.f32.mrf.mxu0
      %v2688 = vadd.f32 0.0, %v2687
      %2689 = vdwg.mxu0
      %v2690 = vadd.f32 %v2645, %v2681
      %v2691 = vadd.f32 %v2646, %v2683
      %v2692 = vadd.f32 %v2647, %v2686
      %v2693 = vadd.f32 %v2648, %v2688
      %s2694 = scalar_lea.vmem %s4, 176
      %v2695 = vld [vmem:[%s2694] sm:$0xf]
      %v2696 = vld [vmem:[%s2694 + $0x4] sm:$0xf]
      %v2697 = vld [vmem:[%s2694 + $0x8] sm:$0xf]
      %v2698 = vld [vmem:[%s2694 + $0xc] sm:$0xf]
      %v2699 = vpack.c.bf16 %v2093, %v2091
      %v2704 = vunpack.c.l.b16 %v2695
      %v2705 = vunpack.c.l.b16 %v2696
      %v2706 = vunpack.c.l.b16 %v2697
      %v2707 = vunpack.c.l.b16 %v2698
      %v2708 = vpack.c.b16 %v2705, %v2704
      %v2709 = vpack.c.b16 %v2707, %v2706
      %v2711 = vsel %vm2228, %v2708, 0
      %v2714 = vsel %vm2228, %v2709, 0
      %2716 = vmatpush.bf16.msra.mxu0 0
      %2717 = vmatpush.bf16.msra.mxu0 0
      %2718 = vmatpush.bf16.msra.mxu0 0
      %2719 = vmatpush.bf16.msra.mxu0 0
      %2720 = vmatpush.bf16.msra.mxu0 0
      %2721 = vmatpush.bf16.msra.mxu0 0
      %2722 = vmatpush.bf16.msra.mxu0 0
      %2723 = vmatpush.bf16.msra.mxu0 %v2699
      %2724 = vmatmul.bf16.gmra.mxu0 %v2711
      %v2725 = vpop.f32.mrf.mxu0
      %v2726 = vadd.f32 0.0, %v2725
      %v2727 = vpop.f32.mrf.mxu0
      %v2728 = vadd.f32 0.0, %v2727
      %2729 = vmatmul.bf16.gmra.mxu0 %v2714
      %v2730 = vpop.f32.mrf.mxu0
      %v2731 = vadd.f32 0.0, %v2730
      %v2732 = vpop.f32.mrf.mxu0
      %v2733 = vadd.f32 0.0, %v2732
      %2734 = vdwg.mxu0
      %v2735 = vadd.f32 %v2690, %v2726
      %v2736 = vadd.f32 %v2691, %v2728
      %v2737 = vadd.f32 %v2692, %v2731
      %v2738 = vadd.f32 %v2693, %v2733
      %s2739 = scalar_lea.vmem %s4, 192
      %v2740 = vld [vmem:[%s2739] sm:$0xf]
      %v2741 = vld [vmem:[%s2739 + $0x4] sm:$0xf]
      %v2742 = vld [vmem:[%s2739 + $0x8] sm:$0xf]
      %v2743 = vld [vmem:[%s2739 + $0xc] sm:$0xf]
      %v2744 = vpack.c.bf16 %v2121, %v2119
      %v2749 = vunpack.c.l.b16 %v2740
      %v2750 = vunpack.c.l.b16 %v2741
      %v2751 = vunpack.c.l.b16 %v2742
      %v2752 = vunpack.c.l.b16 %v2743
      %v2753 = vpack.c.b16 %v2750, %v2749
      %v2754 = vpack.c.b16 %v2752, %v2751
      %v2756 = vsel %vm2228, %v2753, 0
      %v2759 = vsel %vm2228, %v2754, 0
      %2761 = vmatpush.bf16.msra.mxu0 0
      %2762 = vmatpush.bf16.msra.mxu0 0
      %2763 = vmatpush.bf16.msra.mxu0 0
      %2764 = vmatpush.bf16.msra.mxu0 0
      %2765 = vmatpush.bf16.msra.mxu0 0
      %2766 = vmatpush.bf16.msra.mxu0 0
      %2767 = vmatpush.bf16.msra.mxu0 0
      %2768 = vmatpush.bf16.msra.mxu0 %v2744
      %2769 = vmatmul.bf16.gmra.mxu0 %v2756
      %v2770 = vpop.f32.mrf.mxu0
      %v2771 = vadd.f32 0.0, %v2770
      %v2772 = vpop.f32.mrf.mxu0
      %v2773 = vadd.f32 0.0, %v2772
      %2774 = vmatmul.bf16.gmra.mxu0 %v2759
      %v2775 = vpop.f32.mrf.mxu0
      %v2776 = vadd.f32 0.0, %v2775
      %v2777 = vpop.f32.mrf.mxu0
      %v2778 = vadd.f32 0.0, %v2777
      %2779 = vdwg.mxu0
      %v2780 = vadd.f32 %v2735, %v2771
      %v2781 = vadd.f32 %v2736, %v2773
      %v2782 = vadd.f32 %v2737, %v2776
      %v2783 = vadd.f32 %v2738, %v2778
      %s2784 = scalar_lea.vmem %s4, 208
      %v2785 = vld [vmem:[%s2784] sm:$0xf]
      %v2786 = vld [vmem:[%s2784 + $0x4] sm:$0xf]
      %v2787 = vld [vmem:[%s2784 + $0x8] sm:$0xf]
      %v2788 = vld [vmem:[%s2784 + $0xc] sm:$0xf]
      %v2789 = vpack.c.bf16 %v2149, %v2147
      %v2794 = vunpack.c.l.b16 %v2785
      %v2795 = vunpack.c.l.b16 %v2786
      %v2796 = vunpack.c.l.b16 %v2787
      %v2797 = vunpack.c.l.b16 %v2788
      %v2798 = vpack.c.b16 %v2795, %v2794
      %v2799 = vpack.c.b16 %v2797, %v2796
      %v2801 = vsel %vm2228, %v2798, 0
      %v2804 = vsel %vm2228, %v2799, 0
      %2806 = vmatpush.bf16.msra.mxu0 0
      %2807 = vmatpush.bf16.msra.mxu0 0
      %2808 = vmatpush.bf16.msra.mxu0 0
      %2809 = vmatpush.bf16.msra.mxu0 0
      %2810 = vmatpush.bf16.msra.mxu0 0
      %2811 = vmatpush.bf16.msra.mxu0 0
      %2812 = vmatpush.bf16.msra.mxu0 0
      %2813 = vmatpush.bf16.msra.mxu0 %v2789
      %2814 = vmatmul.bf16.gmra.mxu0 %v2801
      %v2815 = vpop.f32.mrf.mxu0
      %v2816 = vadd.f32 0.0, %v2815
      %v2817 = vpop.f32.mrf.mxu0
      %v2818 = vadd.f32 0.0, %v2817
      %2819 = vmatmul.bf16.gmra.mxu0 %v2804
      %v2820 = vpop.f32.mrf.mxu0
      %v2821 = vadd.f32 0.0, %v2820
      %v2822 = vpop.f32.mrf.mxu0
      %v2823 = vadd.f32 0.0, %v2822
      %2824 = vdwg.mxu0
      %v2825 = vadd.f32 %v2780, %v2816
      %v2826 = vadd.f32 %v2781, %v2818
      %v2827 = vadd.f32 %v2782, %v2821
      %v2828 = vadd.f32 %v2783, %v2823
      %s2829 = scalar_lea.vmem %s4, 224
      %v2830 = vld [vmem:[%s2829] sm:$0xf]
      %v2831 = vld [vmem:[%s2829 + $0x4] sm:$0xf]
      %v2832 = vld [vmem:[%s2829 + $0x8] sm:$0xf]
      %v2833 = vld [vmem:[%s2829 + $0xc] sm:$0xf]
      %v2834 = vpack.c.bf16 %v2177, %v2175
      %v2839 = vunpack.c.l.b16 %v2830
      %v2840 = vunpack.c.l.b16 %v2831
      %v2841 = vunpack.c.l.b16 %v2832
      %v2842 = vunpack.c.l.b16 %v2833
      %v2843 = vpack.c.b16 %v2840, %v2839
      %v2844 = vpack.c.b16 %v2842, %v2841
      %v2846 = vsel %vm2228, %v2843, 0
      %v2849 = vsel %vm2228, %v2844, 0
      %2851 = vmatpush.bf16.msra.mxu0 0
      %2852 = vmatpush.bf16.msra.mxu0 0
      %2853 = vmatpush.bf16.msra.mxu0 0
      %2854 = vmatpush.bf16.msra.mxu0 0
      %2855 = vmatpush.bf16.msra.mxu0 0
      %2856 = vmatpush.bf16.msra.mxu0 0
      %2857 = vmatpush.bf16.msra.mxu0 0
      %2858 = vmatpush.bf16.msra.mxu0 %v2834
      %2859 = vmatmul.bf16.gmra.mxu0 %v2846
      %v2860 = vpop.f32.mrf.mxu0
      %v2861 = vadd.f32 0.0, %v2860
      %v2862 = vpop.f32.mrf.mxu0
      %v2863 = vadd.f32 0.0, %v2862
      %2864 = vmatmul.bf16.gmra.mxu0 %v2849
      %v2865 = vpop.f32.mrf.mxu0
      %v2866 = vadd.f32 0.0, %v2865
      %v2867 = vpop.f32.mrf.mxu0
      %v2868 = vadd.f32 0.0, %v2867
      %2869 = vdwg.mxu0
      %v2870 = vadd.f32 %v2825, %v2861
      %v2871 = vadd.f32 %v2826, %v2863
      %v2872 = vadd.f32 %v2827, %v2866
      %v2873 = vadd.f32 %v2828, %v2868
      %s2874 = scalar_lea.vmem %s4, 240
      %v2875 = vld [vmem:[%s2874] sm:$0xf]
      %v2876 = vld [vmem:[%s2874 + $0x4] sm:$0xf]
      %v2877 = vld [vmem:[%s2874 + $0x8] sm:$0xf]
      %v2878 = vld [vmem:[%s2874 + $0xc] sm:$0xf]
      %v2879 = vpack.c.bf16 %v2205, %v2203
      %v2884 = vunpack.c.l.b16 %v2875
      %v2885 = vunpack.c.l.b16 %v2876
      %v2886 = vunpack.c.l.b16 %v2877
      %v2887 = vunpack.c.l.b16 %v2878
      %v2888 = vpack.c.b16 %v2885, %v2884
      %v2889 = vpack.c.b16 %v2887, %v2886
      %v2891 = vsel %vm2228, %v2888, 0
      %v2894 = vsel %vm2228, %v2889, 0
      %2896 = vmatpush.bf16.msra.mxu0 0
      %2897 = vmatpush.bf16.msra.mxu0 0
      %2898 = vmatpush.bf16.msra.mxu0 0
      %2899 = vmatpush.bf16.msra.mxu0 0
      %2900 = vmatpush.bf16.msra.mxu0 0
      %2901 = vmatpush.bf16.msra.mxu0 0
      %2902 = vmatpush.bf16.msra.mxu0 0
      %2903 = vmatpush.bf16.msra.mxu0 %v2879
      %2904 = vmatmul.bf16.gmra.mxu0 %v2891
      %v2905 = vpop.f32.mrf.mxu0
      %v2906 = vadd.f32 0.0, %v2905
      %v2907 = vpop.f32.mrf.mxu0
      %v2908 = vadd.f32 0.0, %v2907
      %2909 = vmatmul.bf16.gmra.mxu0 %v2894
      %v2910 = vpop.f32.mrf.mxu0
      %v2911 = vadd.f32 0.0, %v2910
      %v2912 = vpop.f32.mrf.mxu0
      %v2913 = vadd.f32 0.0, %v2912
      %2914 = vdwg.mxu0
      %v2915 = vadd.f32 %v2870, %v2906
      %v2916 = vadd.f32 %v2871, %v2908
      %v2917 = vadd.f32 %v2872, %v2911
      %v2918 = vadd.f32 %v2873, %v2913
      %v2919 = vld [vmem:[%s5] sm:$0xff]
      %v2920 = vld [vmem:[%s5 + $0x8] sm:$0xff]
      %v2921 = vld [vmem:[%s5 + $0x10] sm:$0xff]
      %v2922 = vld [vmem:[%s5 + $0x18] sm:$0xff]
      %2924 = vset.pattern.permute.xlu0 0
      %2925 = vperm.xlu0 %2924, %v2919
      %v2926 = vpop.permute.xlu0 %2925
      %2929 = vset.pattern.permute.xlu0 0
      %2930 = vperm.xlu0 %2929, %v2920
      %v2931 = vpop.permute.xlu0 %2930
      %2934 = vset.pattern.permute.xlu0 0
      %2935 = vperm.xlu0 %2934, %v2921
      %v2936 = vpop.permute.xlu0 %2935
      %2939 = vset.pattern.permute.xlu0 0
      %2940 = vperm.xlu0 %2939, %v2922
      %v2941 = vpop.permute.xlu0 %2940
      %v2943 = vadd.f32 %v2915, %v2926
      %v2944 = vadd.f32 %v2916, %v2931
      %v2945 = vadd.f32 %v2917, %v2936
      %v2946 = vadd.f32 %v2918, %v2941
      %v2947 = vmax.f32 %v2943, 0.0
      %v2948 = vmax.f32 %v2944, 0.0
      %v2949 = vmax.f32 %v2945, 0.0
      %v2950 = vmax.f32 %v2946, 0.0
      %v2951 = vld [vmem:[%s6] sm:$0xff]
      %v2952 = vld [vmem:[%s6 + $0x8] sm:$0xff]
      %v2953 = vld [vmem:[%s6 + $0x10] sm:$0xff]
      %v2954 = vld [vmem:[%s6 + $0x18] sm:$0xff]
      %v2955 = vld [vmem:[%s6 + $0x20] sm:$0x33]
      %v2956 = vpack.c.bf16 %v2947, %v2947
      %s2957 = scalar_lea.vmem %s6, 40
      %v2958 = vld [vmem:[%s2957] sm:$0xff]
      %v2959 = vld [vmem:[%s2957 + $0x8] sm:$0xff]
      %v2960 = vld [vmem:[%s2957 + $0x10] sm:$0xff]
      %v2961 = vld [vmem:[%s2957 + $0x18] sm:$0xff]
      %v2962 = vld [vmem:[%s2957 + $0x20] sm:$0x33]
      %v2964 = vshrl.u32 %v2956, 16
      %v2971 = vunpack.c.l.b16 %v2958
      %v2972 = vunpack.c.h.b16 %v2958
      %v2973 = vunpack.c.l.b16 %v2959
      %v2974 = vunpack.c.h.b16 %v2959
      %v2975 = vunpack.c.l.b16 %v2960
      %v2976 = vunpack.c.h.b16 %v2960
      %v2977 = vunpack.c.l.b16 %v2961
      %v2978 = vunpack.c.h.b16 %v2961
      %v2979 = vunpack.c.l.b16 %v2962
      %v2980 = vunpack.c.h.b16 %v2962
      %v2981 = vpack.c.b16 %v2973, %v2971
      %v2982 = vpack.c.b16 %v2974, %v2972
      %v2983 = vpack.c.b16 %v2977, %v2975
      %v2984 = vpack.c.b16 %v2978, %v2976
      %v2985 = vpack.c.b16 %v2979, %v2979
      %v2986 = vpack.c.b16 %v2980, %v2980
      %vm2991 = vcmask 293888
      %v2993 = vsel %vm2991, %v2964, 0
      %v2996 = vsel %vm1710, %v2985, 0
      %v2999 = vsel %vm1710, %v2986, 0
      %3001 = vmatpush.bf16.msra.mxu0 0
      %3002 = vmatpush.bf16.msra.mxu0 0
      %3003 = vmatpush.bf16.msra.mxu0 0
      %3004 = vmatpush.bf16.msra.mxu0 0
      %3005 = vmatpush.bf16.msra.mxu0 0
      %3006 = vmatpush.bf16.msra.mxu0 %v2996
      %3007 = vmatpush.bf16.msra.mxu0 %v2983
      %3008 = vmatpush.bf16.msra.mxu0 %v2981
      %3009 = vmatmul.bf16.gmra.mxu0 %v2993
      %v3010 = vpop.f32.mrf.mxu0
      %v3011 = vadd.f32 0.0, %v3010
      %v3012 = vpop.f32.mrf.mxu0
      %3013 = vdwg.mxu0
      %3014 = vmatpush.bf16.msra.mxu0 0
      %3015 = vmatpush.bf16.msra.mxu0 0
      %3016 = vmatpush.bf16.msra.mxu0 0
      %3017 = vmatpush.bf16.msra.mxu0 0
      %3018 = vmatpush.bf16.msra.mxu0 0
      %3019 = vmatpush.bf16.msra.mxu0 %v2999
      %3020 = vmatpush.bf16.msra.mxu0 %v2984
      %3021 = vmatpush.bf16.msra.mxu0 %v2982
      %3022 = vmatmul.bf16.gmra.mxu0 %v2993
      %v3023 = vpop.f32.mrf.mxu0
      %v3024 = vadd.f32 0.0, %v3023
      %v3025 = vpop.f32.mrf.mxu0
      %3026 = vdwg.mxu0
      %v3032 = vunpack.c.l.b16 %v2951
      %v3033 = vunpack.c.h.b16 %v2951
      %v3034 = vunpack.c.l.b16 %v2952
      %v3035 = vunpack.c.h.b16 %v2952
      %v3036 = vunpack.c.l.b16 %v2953
      %v3037 = vunpack.c.h.b16 %v2953
      %v3038 = vunpack.c.l.b16 %v2954
      %v3039 = vunpack.c.h.b16 %v2954
      %v3040 = vunpack.c.l.b16 %v2955
      %v3041 = vunpack.c.h.b16 %v2955
      %v3042 = vpack.c.b16 %v3034, %v3032
      %v3043 = vpack.c.b16 %v3035, %v3033
      %v3044 = vpack.c.b16 %v3038, %v3036
      %v3045 = vpack.c.b16 %v3039, %v3037
      %v3046 = vpack.c.b16 %v3040, %v3040
      %v3047 = vpack.c.b16 %v3041, %v3041
      %v3052 = vsel %vm2991, %v2956, 0
      %v3055 = vsel %vm1710, %v3046, 0
      %v3058 = vsel %vm1710, %v3047, 0
      %3060 = vmatpush.bf16.msra.mxu0 0
      %3061 = vmatpush.bf16.msra.mxu0 0
      %3062 = vmatpush.bf16.msra.mxu0 0
      %3063 = vmatpush.bf16.msra.mxu0 0
      %3064 = vmatpush.bf16.msra.mxu0 0
      %3065 = vmatpush.bf16.msra.mxu0 %v3055
      %3066 = vmatpush.bf16.msra.mxu0 %v3044
      %3067 = vmatpush.bf16.msra.mxu0 %v3042
      %3068 = vmatmul.bf16.gmra.mxu0 %v3052
      %v3069 = vpop.f32.mrf.mxu0
      %v3070 = vadd.f32 %v3011, %v3069
      %v3071 = vpop.f32.mrf.mxu0
      %3072 = vdwg.mxu0
      %3073 = vmatpush.bf16.msra.mxu0 0
      %3074 = vmatpush.bf16.msra.mxu0 0
      %3075 = vmatpush.bf16.msra.mxu0 0
      %3076 = vmatpush.bf16.msra.mxu0 0
      %3077 = vmatpush.bf16.msra.mxu0 0
      %3078 = vmatpush.bf16.msra.mxu0 %v3058
      %3079 = vmatpush.bf16.msra.mxu0 %v3045
      %3080 = vmatpush.bf16.msra.mxu0 %v3043
      %3081 = vmatmul.bf16.gmra.mxu0 %v3052
      %v3082 = vpop.f32.mrf.mxu0
      %v3083 = vadd.f32 %v3024, %v3082
      %v3084 = vpop.f32.mrf.mxu0
      %3085 = vdwg.mxu0
      %s3086 = scalar_lea.vmem %s6, 80
      %v3087 = vld [vmem:[%s3086] sm:$0xff]
      %v3088 = vld [vmem:[%s3086 + $0x8] sm:$0xff]
      %v3089 = vld [vmem:[%s3086 + $0x10] sm:$0xff]
      %v3090 = vld [vmem:[%s3086 + $0x18] sm:$0xff]
      %v3091 = vld [vmem:[%s3086 + $0x20] sm:$0x33]
      %v3093 = vrot.slane %v2956, 1
      %v3099 = vunpack.c.l.b16 %v3087
      %v3100 = vunpack.c.h.b16 %v3087
      %v3101 = vunpack.c.l.b16 %v3088
      %v3102 = vunpack.c.h.b16 %v3088
      %v3103 = vunpack.c.l.b16 %v3089
      %v3104 = vunpack.c.h.b16 %v3089
      %v3105 = vunpack.c.l.b16 %v3090
      %v3106 = vunpack.c.h.b16 %v3090
      %v3107 = vunpack.c.l.b16 %v3091
      %v3108 = vunpack.c.h.b16 %v3091
      %v3109 = vpack.c.b16 %v3101, %v3099
      %v3110 = vpack.c.b16 %v3102, %v3100
      %v3111 = vpack.c.b16 %v3105, %v3103
      %v3112 = vpack.c.b16 %v3106, %v3104
      %v3113 = vpack.c.b16 %v3107, %v3107
      %v3114 = vpack.c.b16 %v3108, %v3108
      %v3120 = vsel %vm2991, %v3093, 0
      %v3123 = vsel %vm1710, %v3113, 0
      %v3126 = vsel %vm1710, %v3114, 0
      %3128 = vmatpush.bf16.msra.mxu0 0
      %3129 = vmatpush.bf16.msra.mxu0 0
      %3130 = vmatpush.bf16.msra.mxu0 0
      %3131 = vmatpush.bf16.msra.mxu0 0
      %3132 = vmatpush.bf16.msra.mxu0 0
      %3133 = vmatpush.bf16.msra.mxu0 %v3123
      %3134 = vmatpush.bf16.msra.mxu0 %v3111
      %3135 = vmatpush.bf16.msra.mxu0 %v3109
      %3136 = vmatmul.bf16.gmra.mxu0 %v3120
      %v3137 = vpop.f32.mrf.mxu0
      %v3138 = vadd.f32 0.0, %v3137
      %v3139 = vpop.f32.mrf.mxu0
      %3140 = vdwg.mxu0
      %3141 = vmatpush.bf16.msra.mxu0 0
      %3142 = vmatpush.bf16.msra.mxu0 0
      %3143 = vmatpush.bf16.msra.mxu0 0
      %3144 = vmatpush.bf16.msra.mxu0 0
      %3145 = vmatpush.bf16.msra.mxu0 0
      %3146 = vmatpush.bf16.msra.mxu0 %v3126
      %3147 = vmatpush.bf16.msra.mxu0 %v3112
      %3148 = vmatpush.bf16.msra.mxu0 %v3110
      %3149 = vmatmul.bf16.gmra.mxu0 %v3120
      %v3150 = vpop.f32.mrf.mxu0
      %v3151 = vadd.f32 0.0, %v3150
      %v3152 = vpop.f32.mrf.mxu0
      %3153 = vdwg.mxu0
      %v3154 = vadd.f32 %v3070, %v3138
      %v3155 = vadd.f32 %v3083, %v3151
      %s3156 = scalar_lea.vmem %s6, 120
      %v3157 = vld [vmem:[%s3156] sm:$0xff]
      %v3158 = vld [vmem:[%s3156 + $0x8] sm:$0xff]
      %v3159 = vld [vmem:[%s3156 + $0x10] sm:$0xff]
      %v3160 = vld [vmem:[%s3156 + $0x18] sm:$0xff]
      %v3161 = vld [vmem:[%s3156 + $0x20] sm:$0x33]
      %v3162 = vrot.slane %v2964, 1
      %v3168 = vunpack.c.l.b16 %v3157
      %v3169 = vunpack.c.h.b16 %v3157
      %v3170 = vunpack.c.l.b16 %v3158
      %v3171 = vunpack.c.h.b16 %v3158
      %v3172 = vunpack.c.l.b16 %v3159
      %v3173 = vunpack.c.h.b16 %v3159
      %v3174 = vunpack.c.l.b16 %v3160
      %v3175 = vunpack.c.h.b16 %v3160
      %v3176 = vunpack.c.l.b16 %v3161
      %v3177 = vunpack.c.h.b16 %v3161
      %v3178 = vpack.c.b16 %v3170, %v3168
      %v3179 = vpack.c.b16 %v3171, %v3169
      %v3180 = vpack.c.b16 %v3174, %v3172
      %v3181 = vpack.c.b16 %v3175, %v3173
      %v3182 = vpack.c.b16 %v3176, %v3176
      %v3183 = vpack.c.b16 %v3177, %v3177
      %v3189 = vsel %vm2991, %v3162, 0
      %v3192 = vsel %vm1710, %v3182, 0
      %v3195 = vsel %vm1710, %v3183, 0
      %3197 = vmatpush.bf16.msra.mxu0 0
      %3198 = vmatpush.bf16.msra.mxu0 0
      %3199 = vmatpush.bf16.msra.mxu0 0
      %3200 = vmatpush.bf16.msra.mxu0 0
      %3201 = vmatpush.bf16.msra.mxu0 0
      %3202 = vmatpush.bf16.msra.mxu0 %v3192
      %3203 = vmatpush.bf16.msra.mxu0 %v3180
      %3204 = vmatpush.bf16.msra.mxu0 %v3178
      %3205 = vmatmul.bf16.gmra.mxu0 %v3189
      %v3206 = vpop.f32.mrf.mxu0
      %v3207 = vadd.f32 0.0, %v3206
      %v3208 = vpop.f32.mrf.mxu0
      %3209 = vdwg.mxu0
      %3210 = vmatpush.bf16.msra.mxu0 0
      %3211 = vmatpush.bf16.msra.mxu0 0
      %3212 = vmatpush.bf16.msra.mxu0 0
      %3213 = vmatpush.bf16.msra.mxu0 0
      %3214 = vmatpush.bf16.msra.mxu0 0
      %3215 = vmatpush.bf16.msra.mxu0 %v3195
      %3216 = vmatpush.bf16.msra.mxu0 %v3181
      %3217 = vmatpush.bf16.msra.mxu0 %v3179
      %3218 = vmatmul.bf16.gmra.mxu0 %v3189
      %v3219 = vpop.f32.mrf.mxu0
      %v3220 = vadd.f32 0.0, %v3219
      %v3221 = vpop.f32.mrf.mxu0
      %3222 = vdwg.mxu0
      %v3223 = vadd.f32 %v3154, %v3207
      %v3224 = vadd.f32 %v3155, %v3220
      %s3225 = scalar_lea.vmem %s6, 160
      %v3226 = vld [vmem:[%s3225] sm:$0xff]
      %v3227 = vld [vmem:[%s3225 + $0x8] sm:$0xff]
      %v3228 = vld [vmem:[%s3225 + $0x10] sm:$0xff]
      %v3229 = vld [vmem:[%s3225 + $0x18] sm:$0xff]
      %v3230 = vld [vmem:[%s3225 + $0x20] sm:$0x33]
      %v3231 = vrot.slane %v2956, 2
      %v3237 = vunpack.c.l.b16 %v3226
      %v3238 = vunpack.c.h.b16 %v3226
      %v3239 = vunpack.c.l.b16 %v3227
      %v3240 = vunpack.c.h.b16 %v3227
      %v3241 = vunpack.c.l.b16 %v3228
      %v3242 = vunpack.c.h.b16 %v3228
      %v3243 = vunpack.c.l.b16 %v3229
      %v3244 = vunpack.c.h.b16 %v3229
      %v3245 = vunpack.c.l.b16 %v3230
      %v3246 = vunpack.c.h.b16 %v3230
      %v3247 = vpack.c.b16 %v3239, %v3237
      %v3248 = vpack.c.b16 %v3240, %v3238
      %v3249 = vpack.c.b16 %v3243, %v3241
      %v3250 = vpack.c.b16 %v3244, %v3242
      %v3251 = vpack.c.b16 %v3245, %v3245
      %v3252 = vpack.c.b16 %v3246, %v3246
      %v3258 = vsel %vm2991, %v3231, 0
      %v3261 = vsel %vm1710, %v3251, 0
      %v3264 = vsel %vm1710, %v3252, 0
      %3266 = vmatpush.bf16.msra.mxu0 0
      %3267 = vmatpush.bf16.msra.mxu0 0
      %3268 = vmatpush.bf16.msra.mxu0 0
      %3269 = vmatpush.bf16.msra.mxu0 0
      %3270 = vmatpush.bf16.msra.mxu0 0
      %3271 = vmatpush.bf16.msra.mxu0 %v3261
      %3272 = vmatpush.bf16.msra.mxu0 %v3249
      %3273 = vmatpush.bf16.msra.mxu0 %v3247
      %3274 = vmatmul.bf16.gmra.mxu0 %v3258
      %v3275 = vpop.f32.mrf.mxu0
      %v3276 = vadd.f32 0.0, %v3275
      %v3277 = vpop.f32.mrf.mxu0
      %3278 = vdwg.mxu0
      %3279 = vmatpush.bf16.msra.mxu0 0
      %3280 = vmatpush.bf16.msra.mxu0 0
      %3281 = vmatpush.bf16.msra.mxu0 0
      %3282 = vmatpush.bf16.msra.mxu0 0
      %3283 = vmatpush.bf16.msra.mxu0 0
      %3284 = vmatpush.bf16.msra.mxu0 %v3264
      %3285 = vmatpush.bf16.msra.mxu0 %v3250
      %3286 = vmatpush.bf16.msra.mxu0 %v3248
      %3287 = vmatmul.bf16.gmra.mxu0 %v3258
      %v3288 = vpop.f32.mrf.mxu0
      %v3289 = vadd.f32 0.0, %v3288
      %v3290 = vpop.f32.mrf.mxu0
      %3291 = vdwg.mxu0
      %v3292 = vadd.f32 %v3223, %v3276
      %v3293 = vadd.f32 %v3224, %v3289
      %s3294 = scalar_lea.vmem %s6, 200
      %v3295 = vld [vmem:[%s3294] sm:$0xff]
      %v3296 = vld [vmem:[%s3294 + $0x8] sm:$0xff]
      %v3297 = vld [vmem:[%s3294 + $0x10] sm:$0xff]
      %v3298 = vld [vmem:[%s3294 + $0x18] sm:$0xff]
      %v3299 = vld [vmem:[%s3294 + $0x20] sm:$0x33]
      %v3300 = vrot.slane %v2964, 2
      %v3306 = vunpack.c.l.b16 %v3295
      %v3307 = vunpack.c.h.b16 %v3295
      %v3308 = vunpack.c.l.b16 %v3296
      %v3309 = vunpack.c.h.b16 %v3296
      %v3310 = vunpack.c.l.b16 %v3297
      %v3311 = vunpack.c.h.b16 %v3297
      %v3312 = vunpack.c.l.b16 %v3298
      %v3313 = vunpack.c.h.b16 %v3298
      %v3314 = vunpack.c.l.b16 %v3299
      %v3315 = vunpack.c.h.b16 %v3299
      %v3316 = vpack.c.b16 %v3308, %v3306
      %v3317 = vpack.c.b16 %v3309, %v3307
      %v3318 = vpack.c.b16 %v3312, %v3310
      %v3319 = vpack.c.b16 %v3313, %v3311
      %v3320 = vpack.c.b16 %v3314, %v3314
      %v3321 = vpack.c.b16 %v3315, %v3315
      %v3327 = vsel %vm2991, %v3300, 0
      %v3330 = vsel %vm1710, %v3320, 0
      %v3333 = vsel %vm1710, %v3321, 0
      %3335 = vmatpush.bf16.msra.mxu0 0
      %3336 = vmatpush.bf16.msra.mxu0 0
      %3337 = vmatpush.bf16.msra.mxu0 0
      %3338 = vmatpush.bf16.msra.mxu0 0
      %3339 = vmatpush.bf16.msra.mxu0 0
      %3340 = vmatpush.bf16.msra.mxu0 %v3330
      %3341 = vmatpush.bf16.msra.mxu0 %v3318
      %3342 = vmatpush.bf16.msra.mxu0 %v3316
      %3343 = vmatmul.bf16.gmra.mxu0 %v3327
      %v3344 = vpop.f32.mrf.mxu0
      %v3345 = vadd.f32 0.0, %v3344
      %v3346 = vpop.f32.mrf.mxu0
      %3347 = vdwg.mxu0
      %3348 = vmatpush.bf16.msra.mxu0 0
      %3349 = vmatpush.bf16.msra.mxu0 0
      %3350 = vmatpush.bf16.msra.mxu0 0
      %3351 = vmatpush.bf16.msra.mxu0 0
      %3352 = vmatpush.bf16.msra.mxu0 0
      %3353 = vmatpush.bf16.msra.mxu0 %v3333
      %3354 = vmatpush.bf16.msra.mxu0 %v3319
      %3355 = vmatpush.bf16.msra.mxu0 %v3317
      %3356 = vmatmul.bf16.gmra.mxu0 %v3327
      %v3357 = vpop.f32.mrf.mxu0
      %v3358 = vadd.f32 0.0, %v3357
      %v3359 = vpop.f32.mrf.mxu0
      %3360 = vdwg.mxu0
      %v3361 = vadd.f32 %v3292, %v3345
      %v3362 = vadd.f32 %v3293, %v3358
      %s3363 = scalar_lea.vmem %s6, 240
      %v3364 = vld [vmem:[%s3363] sm:$0xff]
      %v3365 = vld [vmem:[%s3363 + $0x8] sm:$0xff]
      %v3366 = vld [vmem:[%s3363 + $0x10] sm:$0xff]
      %v3367 = vld [vmem:[%s3363 + $0x18] sm:$0xff]
      %v3368 = vld [vmem:[%s3363 + $0x20] sm:$0x33]
      %v3369 = vrot.slane %v2956, 3
      %v3375 = vunpack.c.l.b16 %v3364
      %v3376 = vunpack.c.h.b16 %v3364
      %v3377 = vunpack.c.l.b16 %v3365
      %v3378 = vunpack.c.h.b16 %v3365
      %v3379 = vunpack.c.l.b16 %v3366
      %v3380 = vunpack.c.h.b16 %v3366
      %v3381 = vunpack.c.l.b16 %v3367
      %v3382 = vunpack.c.h.b16 %v3367
      %v3383 = vunpack.c.l.b16 %v3368
      %v3384 = vunpack.c.h.b16 %v3368
      %v3385 = vpack.c.b16 %v3377, %v3375
      %v3386 = vpack.c.b16 %v3378, %v3376
      %v3387 = vpack.c.b16 %v3381, %v3379
      %v3388 = vpack.c.b16 %v3382, %v3380
      %v3389 = vpack.c.b16 %v3383, %v3383
      %v3390 = vpack.c.b16 %v3384, %v3384
      %v3396 = vsel %vm2991, %v3369, 0
      %v3399 = vsel %vm1710, %v3389, 0
      %v3402 = vsel %vm1710, %v3390, 0
      %3404 = vmatpush.bf16.msra.mxu0 0
      %3405 = vmatpush.bf16.msra.mxu0 0
      %3406 = vmatpush.bf16.msra.mxu0 0
      %3407 = vmatpush.bf16.msra.mxu0 0
      %3408 = vmatpush.bf16.msra.mxu0 0
      %3409 = vmatpush.bf16.msra.mxu0 %v3399
      %3410 = vmatpush.bf16.msra.mxu0 %v3387
      %3411 = vmatpush.bf16.msra.mxu0 %v3385
      %3412 = vmatmul.bf16.gmra.mxu0 %v3396
      %v3413 = vpop.f32.mrf.mxu0
      %v3414 = vadd.f32 0.0, %v3413
      %v3415 = vpop.f32.mrf.mxu0
      %3416 = vdwg.mxu0
      %3417 = vmatpush.bf16.msra.mxu0 0
      %3418 = vmatpush.bf16.msra.mxu0 0
      %3419 = vmatpush.bf16.msra.mxu0 0
      %3420 = vmatpush.bf16.msra.mxu0 0
      %3421 = vmatpush.bf16.msra.mxu0 0
      %3422 = vmatpush.bf16.msra.mxu0 %v3402
      %3423 = vmatpush.bf16.msra.mxu0 %v3388
      %3424 = vmatpush.bf16.msra.mxu0 %v3386
      %3425 = vmatmul.bf16.gmra.mxu0 %v3396
      %v3426 = vpop.f32.mrf.mxu0
      %v3427 = vadd.f32 0.0, %v3426
      %v3428 = vpop.f32.mrf.mxu0
      %3429 = vdwg.mxu0
      %v3430 = vadd.f32 %v3361, %v3414
      %v3431 = vadd.f32 %v3362, %v3427
      %s3432 = scalar_lea.vmem %s6, 280
      %v3433 = vld [vmem:[%s3432] sm:$0xff]
      %v3434 = vld [vmem:[%s3432 + $0x8] sm:$0xff]
      %v3435 = vld [vmem:[%s3432 + $0x10] sm:$0xff]
      %v3436 = vld [vmem:[%s3432 + $0x18] sm:$0xff]
      %v3437 = vld [vmem:[%s3432 + $0x20] sm:$0x33]
      %v3438 = vrot.slane %v2964, 3
      %v3444 = vunpack.c.l.b16 %v3433
      %v3445 = vunpack.c.h.b16 %v3433
      %v3446 = vunpack.c.l.b16 %v3434
      %v3447 = vunpack.c.h.b16 %v3434
      %v3448 = vunpack.c.l.b16 %v3435
      %v3449 = vunpack.c.h.b16 %v3435
      %v3450 = vunpack.c.l.b16 %v3436
      %v3451 = vunpack.c.h.b16 %v3436
      %v3452 = vunpack.c.l.b16 %v3437
      %v3453 = vunpack.c.h.b16 %v3437
      %v3454 = vpack.c.b16 %v3446, %v3444
      %v3455 = vpack.c.b16 %v3447, %v3445
      %v3456 = vpack.c.b16 %v3450, %v3448
      %v3457 = vpack.c.b16 %v3451, %v3449
      %v3458 = vpack.c.b16 %v3452, %v3452
      %v3459 = vpack.c.b16 %v3453, %v3453
      %v3465 = vsel %vm2991, %v3438, 0
      %v3468 = vsel %vm1710, %v3458, 0
      %v3471 = vsel %vm1710, %v3459, 0
      %3473 = vmatpush.bf16.msra.mxu0 0
      %3474 = vmatpush.bf16.msra.mxu0 0
      %3475 = vmatpush.bf16.msra.mxu0 0
      %3476 = vmatpush.bf16.msra.mxu0 0
      %3477 = vmatpush.bf16.msra.mxu0 0
      %3478 = vmatpush.bf16.msra.mxu0 %v3468
      %3479 = vmatpush.bf16.msra.mxu0 %v3456
      %3480 = vmatpush.bf16.msra.mxu0 %v3454
      %3481 = vmatmul.bf16.gmra.mxu0 %v3465
      %v3482 = vpop.f32.mrf.mxu0
      %v3483 = vadd.f32 0.0, %v3482
      %v3484 = vpop.f32.mrf.mxu0
      %3485 = vdwg.mxu0
      %3486 = vmatpush.bf16.msra.mxu0 0
      %3487 = vmatpush.bf16.msra.mxu0 0
      %3488 = vmatpush.bf16.msra.mxu0 0
      %3489 = vmatpush.bf16.msra.mxu0 0
      %3490 = vmatpush.bf16.msra.mxu0 0
      %3491 = vmatpush.bf16.msra.mxu0 %v3471
      %3492 = vmatpush.bf16.msra.mxu0 %v3457
      %3493 = vmatpush.bf16.msra.mxu0 %v3455
      %3494 = vmatmul.bf16.gmra.mxu0 %v3465
      %v3495 = vpop.f32.mrf.mxu0
      %v3496 = vadd.f32 0.0, %v3495
      %v3497 = vpop.f32.mrf.mxu0
      %3498 = vdwg.mxu0
      %v3499 = vadd.f32 %v3430, %v3483
      %v3500 = vadd.f32 %v3431, %v3496
      %s3501 = scalar_lea.vmem %s6, 320
      %v3502 = vld [vmem:[%s3501] sm:$0xff]
      %v3503 = vld [vmem:[%s3501 + $0x8] sm:$0xff]
      %v3504 = vld [vmem:[%s3501 + $0x10] sm:$0xff]
      %v3505 = vld [vmem:[%s3501 + $0x18] sm:$0xff]
      %v3506 = vld [vmem:[%s3501 + $0x20] sm:$0x33]
      %v3507 = vpack.c.bf16 %v2948, %v2948
      %v3513 = vunpack.c.l.b16 %v3502
      %v3514 = vunpack.c.h.b16 %v3502
      %v3515 = vunpack.c.l.b16 %v3503
      %v3516 = vunpack.c.h.b16 %v3503
      %v3517 = vunpack.c.l.b16 %v3504
      %v3518 = vunpack.c.h.b16 %v3504
      %v3519 = vunpack.c.l.b16 %v3505
      %v3520 = vunpack.c.h.b16 %v3505
      %v3521 = vunpack.c.l.b16 %v3506
      %v3522 = vunpack.c.h.b16 %v3506
      %v3523 = vpack.c.b16 %v3515, %v3513
      %v3524 = vpack.c.b16 %v3516, %v3514
      %v3525 = vpack.c.b16 %v3519, %v3517
      %v3526 = vpack.c.b16 %v3520, %v3518
      %v3527 = vpack.c.b16 %v3521, %v3521
      %v3528 = vpack.c.b16 %v3522, %v3522
      %v3534 = vsel %vm2991, %v3507, 0
      %v3537 = vsel %vm1710, %v3527, 0
      %v3540 = vsel %vm1710, %v3528, 0
      %3542 = vmatpush.bf16.msra.mxu0 0
      %3543 = vmatpush.bf16.msra.mxu0 0
      %3544 = vmatpush.bf16.msra.mxu0 0
      %3545 = vmatpush.bf16.msra.mxu0 0
      %3546 = vmatpush.bf16.msra.mxu0 0
      %3547 = vmatpush.bf16.msra.mxu0 %v3537
      %3548 = vmatpush.bf16.msra.mxu0 %v3525
      %3549 = vmatpush.bf16.msra.mxu0 %v3523
      %3550 = vmatmul.bf16.gmra.mxu0 %v3534
      %v3551 = vpop.f32.mrf.mxu0
      %v3552 = vadd.f32 0.0, %v3551
      %v3553 = vpop.f32.mrf.mxu0
      %3554 = vdwg.mxu0
      %3555 = vmatpush.bf16.msra.mxu0 0
      %3556 = vmatpush.bf16.msra.mxu0 0
      %3557 = vmatpush.bf16.msra.mxu0 0
      %3558 = vmatpush.bf16.msra.mxu0 0
      %3559 = vmatpush.bf16.msra.mxu0 0
      %3560 = vmatpush.bf16.msra.mxu0 %v3540
      %3561 = vmatpush.bf16.msra.mxu0 %v3526
      %3562 = vmatpush.bf16.msra.mxu0 %v3524
      %3563 = vmatmul.bf16.gmra.mxu0 %v3534
      %v3564 = vpop.f32.mrf.mxu0
      %v3565 = vadd.f32 0.0, %v3564
      %v3566 = vpop.f32.mrf.mxu0
      %3567 = vdwg.mxu0
      %v3568 = vadd.f32 %v3499, %v3552
      %v3569 = vadd.f32 %v3500, %v3565
      %s3570 = scalar_lea.vmem %s6, 360
      %v3571 = vld [vmem:[%s3570] sm:$0xff]
      %v3572 = vld [vmem:[%s3570 + $0x8] sm:$0xff]
      %v3573 = vld [vmem:[%s3570 + $0x10] sm:$0xff]
      %v3574 = vld [vmem:[%s3570 + $0x18] sm:$0xff]
      %v3575 = vld [vmem:[%s3570 + $0x20] sm:$0x33]
      %v3576 = vshrl.u32 %v3507, 16
      %v3583 = vunpack.c.l.b16 %v3571
      %v3584 = vunpack.c.h.b16 %v3571
      %v3585 = vunpack.c.l.b16 %v3572
      %v3586 = vunpack.c.h.b16 %v3572
      %v3587 = vunpack.c.l.b16 %v3573
      %v3588 = vunpack.c.h.b16 %v3573
      %v3589 = vunpack.c.l.b16 %v3574
      %v3590 = vunpack.c.h.b16 %v3574
      %v3591 = vunpack.c.l.b16 %v3575
      %v3592 = vunpack.c.h.b16 %v3575
      %v3593 = vpack.c.b16 %v3585, %v3583
      %v3594 = vpack.c.b16 %v3586, %v3584
      %v3595 = vpack.c.b16 %v3589, %v3587
      %v3596 = vpack.c.b16 %v3590, %v3588
      %v3597 = vpack.c.b16 %v3591, %v3591
      %v3598 = vpack.c.b16 %v3592, %v3592
      %v3604 = vsel %vm2991, %v3576, 0
      %v3607 = vsel %vm1710, %v3597, 0
      %v3610 = vsel %vm1710, %v3598, 0
      %3612 = vmatpush.bf16.msra.mxu0 0
      %3613 = vmatpush.bf16.msra.mxu0 0
      %3614 = vmatpush.bf16.msra.mxu0 0
      %3615 = vmatpush.bf16.msra.mxu0 0
      %3616 = vmatpush.bf16.msra.mxu0 0
      %3617 = vmatpush.bf16.msra.mxu0 %v3607
      %3618 = vmatpush.bf16.msra.mxu0 %v3595
      %3619 = vmatpush.bf16.msra.mxu0 %v3593
      %3620 = vmatmul.bf16.gmra.mxu0 %v3604
      %v3621 = vpop.f32.mrf.mxu0
      %v3622 = vadd.f32 0.0, %v3621
      %v3623 = vpop.f32.mrf.mxu0
      %3624 = vdwg.mxu0
      %3625 = vmatpush.bf16.msra.mxu0 0
      %3626 = vmatpush.bf16.msra.mxu0 0
      %3627 = vmatpush.bf16.msra.mxu0 0
      %3628 = vmatpush.bf16.msra.mxu0 0
      %3629 = vmatpush.bf16.msra.mxu0 0
      %3630 = vmatpush.bf16.msra.mxu0 %v3610
      %3631 = vmatpush.bf16.msra.mxu0 %v3596
      %3632 = vmatpush.bf16.msra.mxu0 %v3594
      %3633 = vmatmul.bf16.gmra.mxu0 %v3604
      %v3634 = vpop.f32.mrf.mxu0
      %v3635 = vadd.f32 0.0, %v3634
      %v3636 = vpop.f32.mrf.mxu0
      %3637 = vdwg.mxu0
      %v3638 = vadd.f32 %v3568, %v3622
      %v3639 = vadd.f32 %v3569, %v3635
      %s3640 = scalar_lea.vmem %s6, 400
      %v3641 = vld [vmem:[%s3640] sm:$0xff]
      %v3642 = vld [vmem:[%s3640 + $0x8] sm:$0xff]
      %v3643 = vld [vmem:[%s3640 + $0x10] sm:$0xff]
      %v3644 = vld [vmem:[%s3640 + $0x18] sm:$0xff]
      %v3645 = vld [vmem:[%s3640 + $0x20] sm:$0x33]
      %v3647 = vrot.slane %v3507, 1
      %v3653 = vunpack.c.l.b16 %v3641
      %v3654 = vunpack.c.h.b16 %v3641
      %v3655 = vunpack.c.l.b16 %v3642
      %v3656 = vunpack.c.h.b16 %v3642
      %v3657 = vunpack.c.l.b16 %v3643
      %v3658 = vunpack.c.h.b16 %v3643
      %v3659 = vunpack.c.l.b16 %v3644
      %v3660 = vunpack.c.h.b16 %v3644
      %v3661 = vunpack.c.l.b16 %v3645
      %v3662 = vunpack.c.h.b16 %v3645
      %v3663 = vpack.c.b16 %v3655, %v3653
      %v3664 = vpack.c.b16 %v3656, %v3654
      %v3665 = vpack.c.b16 %v3659, %v3657
      %v3666 = vpack.c.b16 %v3660, %v3658
      %v3667 = vpack.c.b16 %v3661, %v3661
      %v3668 = vpack.c.b16 %v3662, %v3662
      %v3674 = vsel %vm2991, %v3647, 0
      %v3677 = vsel %vm1710, %v3667, 0
      %v3680 = vsel %vm1710, %v3668, 0
      %3682 = vmatpush.bf16.msra.mxu0 0
      %3683 = vmatpush.bf16.msra.mxu0 0
      %3684 = vmatpush.bf16.msra.mxu0 0
      %3685 = vmatpush.bf16.msra.mxu0 0
      %3686 = vmatpush.bf16.msra.mxu0 0
      %3687 = vmatpush.bf16.msra.mxu0 %v3677
      %3688 = vmatpush.bf16.msra.mxu0 %v3665
      %3689 = vmatpush.bf16.msra.mxu0 %v3663
      %3690 = vmatmul.bf16.gmra.mxu0 %v3674
      %v3691 = vpop.f32.mrf.mxu0
      %v3692 = vadd.f32 0.0, %v3691
      %v3693 = vpop.f32.mrf.mxu0
      %3694 = vdwg.mxu0
      %3695 = vmatpush.bf16.msra.mxu0 0
      %3696 = vmatpush.bf16.msra.mxu0 0
      %3697 = vmatpush.bf16.msra.mxu0 0
      %3698 = vmatpush.bf16.msra.mxu0 0
      %3699 = vmatpush.bf16.msra.mxu0 0
      %3700 = vmatpush.bf16.msra.mxu0 %v3680
      %3701 = vmatpush.bf16.msra.mxu0 %v3666
      %3702 = vmatpush.bf16.msra.mxu0 %v3664
      %3703 = vmatmul.bf16.gmra.mxu0 %v3674
      %v3704 = vpop.f32.mrf.mxu0
      %v3705 = vadd.f32 0.0, %v3704
      %v3706 = vpop.f32.mrf.mxu0
      %3707 = vdwg.mxu0
      %v3708 = vadd.f32 %v3638, %v3692
      %v3709 = vadd.f32 %v3639, %v3705
      %s3710 = scalar_lea.vmem %s6, 440
      %v3711 = vld [vmem:[%s3710] sm:$0xff]
      %v3712 = vld [vmem:[%s3710 + $0x8] sm:$0xff]
      %v3713 = vld [vmem:[%s3710 + $0x10] sm:$0xff]
      %v3714 = vld [vmem:[%s3710 + $0x18] sm:$0xff]
      %v3715 = vld [vmem:[%s3710 + $0x20] sm:$0x33]
      %v3716 = vrot.slane %v3576, 1
      %v3722 = vunpack.c.l.b16 %v3711
      %v3723 = vunpack.c.h.b16 %v3711
      %v3724 = vunpack.c.l.b16 %v3712
      %v3725 = vunpack.c.h.b16 %v3712
      %v3726 = vunpack.c.l.b16 %v3713
      %v3727 = vunpack.c.h.b16 %v3713
      %v3728 = vunpack.c.l.b16 %v3714
      %v3729 = vunpack.c.h.b16 %v3714
      %v3730 = vunpack.c.l.b16 %v3715
      %v3731 = vunpack.c.h.b16 %v3715
      %v3732 = vpack.c.b16 %v3724, %v3722
      %v3733 = vpack.c.b16 %v3725, %v3723
      %v3734 = vpack.c.b16 %v3728, %v3726
      %v3735 = vpack.c.b16 %v3729, %v3727
      %v3736 = vpack.c.b16 %v3730, %v3730
      %v3737 = vpack.c.b16 %v3731, %v3731
      %v3743 = vsel %vm2991, %v3716, 0
      %v3746 = vsel %vm1710, %v3736, 0
      %v3749 = vsel %vm1710, %v3737, 0
      %3751 = vmatpush.bf16.msra.mxu0 0
      %3752 = vmatpush.bf16.msra.mxu0 0
      %3753 = vmatpush.bf16.msra.mxu0 0
      %3754 = vmatpush.bf16.msra.mxu0 0
      %3755 = vmatpush.bf16.msra.mxu0 0
      %3756 = vmatpush.bf16.msra.mxu0 %v3746
      %3757 = vmatpush.bf16.msra.mxu0 %v3734
      %3758 = vmatpush.bf16.msra.mxu0 %v3732
      %3759 = vmatmul.bf16.gmra.mxu0 %v3743
      %v3760 = vpop.f32.mrf.mxu0
      %v3761 = vadd.f32 0.0, %v3760
      %v3762 = vpop.f32.mrf.mxu0
      %3763 = vdwg.mxu0
      %3764 = vmatpush.bf16.msra.mxu0 0
      %3765 = vmatpush.bf16.msra.mxu0 0
      %3766 = vmatpush.bf16.msra.mxu0 0
      %3767 = vmatpush.bf16.msra.mxu0 0
      %3768 = vmatpush.bf16.msra.mxu0 0
      %3769 = vmatpush.bf16.msra.mxu0 %v3749
      %3770 = vmatpush.bf16.msra.mxu0 %v3735
      %3771 = vmatpush.bf16.msra.mxu0 %v3733
      %3772 = vmatmul.bf16.gmra.mxu0 %v3743
      %v3773 = vpop.f32.mrf.mxu0
      %v3774 = vadd.f32 0.0, %v3773
      %v3775 = vpop.f32.mrf.mxu0
      %3776 = vdwg.mxu0
      %v3777 = vadd.f32 %v3708, %v3761
      %v3778 = vadd.f32 %v3709, %v3774
      %s3779 = scalar_lea.vmem %s6, 480
      %v3780 = vld [vmem:[%s3779] sm:$0xff]
      %v3781 = vld [vmem:[%s3779 + $0x8] sm:$0xff]
      %v3782 = vld [vmem:[%s3779 + $0x10] sm:$0xff]
      %v3783 = vld [vmem:[%s3779 + $0x18] sm:$0xff]
      %v3784 = vld [vmem:[%s3779 + $0x20] sm:$0x33]
      %v3785 = vrot.slane %v3507, 2
      %v3791 = vunpack.c.l.b16 %v3780
      %v3792 = vunpack.c.h.b16 %v3780
      %v3793 = vunpack.c.l.b16 %v3781
      %v3794 = vunpack.c.h.b16 %v3781
      %v3795 = vunpack.c.l.b16 %v3782
      %v3796 = vunpack.c.h.b16 %v3782
      %v3797 = vunpack.c.l.b16 %v3783
      %v3798 = vunpack.c.h.b16 %v3783
      %v3799 = vunpack.c.l.b16 %v3784
      %v3800 = vunpack.c.h.b16 %v3784
      %v3801 = vpack.c.b16 %v3793, %v3791
      %v3802 = vpack.c.b16 %v3794, %v3792
      %v3803 = vpack.c.b16 %v3797, %v3795
      %v3804 = vpack.c.b16 %v3798, %v3796
      %v3805 = vpack.c.b16 %v3799, %v3799
      %v3806 = vpack.c.b16 %v3800, %v3800
      %v3812 = vsel %vm2991, %v3785, 0
      %v3815 = vsel %vm1710, %v3805, 0
      %v3818 = vsel %vm1710, %v3806, 0
      %3820 = vmatpush.bf16.msra.mxu0 0
      %3821 = vmatpush.bf16.msra.mxu0 0
      %3822 = vmatpush.bf16.msra.mxu0 0
      %3823 = vmatpush.bf16.msra.mxu0 0
      %3824 = vmatpush.bf16.msra.mxu0 0
      %3825 = vmatpush.bf16.msra.mxu0 %v3815
      %3826 = vmatpush.bf16.msra.mxu0 %v3803
      %3827 = vmatpush.bf16.msra.mxu0 %v3801
      %3828 = vmatmul.bf16.gmra.mxu0 %v3812
      %v3829 = vpop.f32.mrf.mxu0
      %v3830 = vadd.f32 0.0, %v3829
      %v3831 = vpop.f32.mrf.mxu0
      %3832 = vdwg.mxu0
      %3833 = vmatpush.bf16.msra.mxu0 0
      %3834 = vmatpush.bf16.msra.mxu0 0
      %3835 = vmatpush.bf16.msra.mxu0 0
      %3836 = vmatpush.bf16.msra.mxu0 0
      %3837 = vmatpush.bf16.msra.mxu0 0
      %3838 = vmatpush.bf16.msra.mxu0 %v3818
      %3839 = vmatpush.bf16.msra.mxu0 %v3804
      %3840 = vmatpush.bf16.msra.mxu0 %v3802
      %3841 = vmatmul.bf16.gmra.mxu0 %v3812
      %v3842 = vpop.f32.mrf.mxu0
      %v3843 = vadd.f32 0.0, %v3842
      %v3844 = vpop.f32.mrf.mxu0
      %3845 = vdwg.mxu0
      %v3846 = vadd.f32 %v3777, %v3830
      %v3847 = vadd.f32 %v3778, %v3843
      %s3848 = scalar_lea.vmem %s6, 520
      %v3849 = vld [vmem:[%s3848] sm:$0xff]
      %v3850 = vld [vmem:[%s3848 + $0x8] sm:$0xff]
      %v3851 = vld [vmem:[%s3848 + $0x10] sm:$0xff]
      %v3852 = vld [vmem:[%s3848 + $0x18] sm:$0xff]
      %v3853 = vld [vmem:[%s3848 + $0x20] sm:$0x33]
      %v3854 = vrot.slane %v3576, 2
      %v3860 = vunpack.c.l.b16 %v3849
      %v3861 = vunpack.c.h.b16 %v3849
      %v3862 = vunpack.c.l.b16 %v3850
      %v3863 = vunpack.c.h.b16 %v3850
      %v3864 = vunpack.c.l.b16 %v3851
      %v3865 = vunpack.c.h.b16 %v3851
      %v3866 = vunpack.c.l.b16 %v3852
      %v3867 = vunpack.c.h.b16 %v3852
      %v3868 = vunpack.c.l.b16 %v3853
      %v3869 = vunpack.c.h.b16 %v3853
      %v3870 = vpack.c.b16 %v3862, %v3860
      %v3871 = vpack.c.b16 %v3863, %v3861
      %v3872 = vpack.c.b16 %v3866, %v3864
      %v3873 = vpack.c.b16 %v3867, %v3865
      %v3874 = vpack.c.b16 %v3868, %v3868
      %v3875 = vpack.c.b16 %v3869, %v3869
      %v3881 = vsel %vm2991, %v3854, 0
      %v3884 = vsel %vm1710, %v3874, 0
      %v3887 = vsel %vm1710, %v3875, 0
      %3889 = vmatpush.bf16.msra.mxu0 0
      %3890 = vmatpush.bf16.msra.mxu0 0
      %3891 = vmatpush.bf16.msra.mxu0 0
      %3892 = vmatpush.bf16.msra.mxu0 0
      %3893 = vmatpush.bf16.msra.mxu0 0
      %3894 = vmatpush.bf16.msra.mxu0 %v3884
      %3895 = vmatpush.bf16.msra.mxu0 %v3872
      %3896 = vmatpush.bf16.msra.mxu0 %v3870
      %3897 = vmatmul.bf16.gmra.mxu0 %v3881
      %v3898 = vpop.f32.mrf.mxu0
      %v3899 = vadd.f32 0.0, %v3898
      %v3900 = vpop.f32.mrf.mxu0
      %3901 = vdwg.mxu0
      %3902 = vmatpush.bf16.msra.mxu0 0
      %3903 = vmatpush.bf16.msra.mxu0 0
      %3904 = vmatpush.bf16.msra.mxu0 0
      %3905 = vmatpush.bf16.msra.mxu0 0
      %3906 = vmatpush.bf16.msra.mxu0 0
      %3907 = vmatpush.bf16.msra.mxu0 %v3887
      %3908 = vmatpush.bf16.msra.mxu0 %v3873
      %3909 = vmatpush.bf16.msra.mxu0 %v3871
      %3910 = vmatmul.bf16.gmra.mxu0 %v3881
      %v3911 = vpop.f32.mrf.mxu0
      %v3912 = vadd.f32 0.0, %v3911
      %v3913 = vpop.f32.mrf.mxu0
      %3914 = vdwg.mxu0
      %v3915 = vadd.f32 %v3846, %v3899
      %v3916 = vadd.f32 %v3847, %v3912
      %s3917 = scalar_lea.vmem %s6, 560
      %v3918 = vld [vmem:[%s3917] sm:$0xff]
      %v3919 = vld [vmem:[%s3917 + $0x8] sm:$0xff]
      %v3920 = vld [vmem:[%s3917 + $0x10] sm:$0xff]
      %v3921 = vld [vmem:[%s3917 + $0x18] sm:$0xff]
      %v3922 = vld [vmem:[%s3917 + $0x20] sm:$0x33]
      %v3923 = vrot.slane %v3507, 3
      %v3929 = vunpack.c.l.b16 %v3918
      %v3930 = vunpack.c.h.b16 %v3918
      %v3931 = vunpack.c.l.b16 %v3919
      %v3932 = vunpack.c.h.b16 %v3919
      %v3933 = vunpack.c.l.b16 %v3920
      %v3934 = vunpack.c.h.b16 %v3920
      %v3935 = vunpack.c.l.b16 %v3921
      %v3936 = vunpack.c.h.b16 %v3921
      %v3937 = vunpack.c.l.b16 %v3922
      %v3938 = vunpack.c.h.b16 %v3922
      %v3939 = vpack.c.b16 %v3931, %v3929
      %v3940 = vpack.c.b16 %v3932, %v3930
      %v3941 = vpack.c.b16 %v3935, %v3933
      %v3942 = vpack.c.b16 %v3936, %v3934
      %v3943 = vpack.c.b16 %v3937, %v3937
      %v3944 = vpack.c.b16 %v3938, %v3938
      %v3950 = vsel %vm2991, %v3923, 0
      %v3953 = vsel %vm1710, %v3943, 0
      %v3956 = vsel %vm1710, %v3944, 0
      %3958 = vmatpush.bf16.msra.mxu0 0
      %3959 = vmatpush.bf16.msra.mxu0 0
      %3960 = vmatpush.bf16.msra.mxu0 0
      %3961 = vmatpush.bf16.msra.mxu0 0
      %3962 = vmatpush.bf16.msra.mxu0 0
      %3963 = vmatpush.bf16.msra.mxu0 %v3953
      %3964 = vmatpush.bf16.msra.mxu0 %v3941
      %3965 = vmatpush.bf16.msra.mxu0 %v3939
      %3966 = vmatmul.bf16.gmra.mxu0 %v3950
      %v3967 = vpop.f32.mrf.mxu0
      %v3968 = vadd.f32 0.0, %v3967
      %v3969 = vpop.f32.mrf.mxu0
      %3970 = vdwg.mxu0
      %3971 = vmatpush.bf16.msra.mxu0 0
      %3972 = vmatpush.bf16.msra.mxu0 0
      %3973 = vmatpush.bf16.msra.mxu0 0
      %3974 = vmatpush.bf16.msra.mxu0 0
      %3975 = vmatpush.bf16.msra.mxu0 0
      %3976 = vmatpush.bf16.msra.mxu0 %v3956
      %3977 = vmatpush.bf16.msra.mxu0 %v3942
      %3978 = vmatpush.bf16.msra.mxu0 %v3940
      %3979 = vmatmul.bf16.gmra.mxu0 %v3950
      %v3980 = vpop.f32.mrf.mxu0
      %v3981 = vadd.f32 0.0, %v3980
      %v3982 = vpop.f32.mrf.mxu0
      %3983 = vdwg.mxu0
      %v3984 = vadd.f32 %v3915, %v3968
      %v3985 = vadd.f32 %v3916, %v3981
      %s3986 = scalar_lea.vmem %s6, 600
      %v3987 = vld [vmem:[%s3986] sm:$0xff]
      %v3988 = vld [vmem:[%s3986 + $0x8] sm:$0xff]
      %v3989 = vld [vmem:[%s3986 + $0x10] sm:$0xff]
      %v3990 = vld [vmem:[%s3986 + $0x18] sm:$0xff]
      %v3991 = vld [vmem:[%s3986 + $0x20] sm:$0x33]
      %v3992 = vrot.slane %v3576, 3
      %v3998 = vunpack.c.l.b16 %v3987
      %v3999 = vunpack.c.h.b16 %v3987
      %v4000 = vunpack.c.l.b16 %v3988
      %v4001 = vunpack.c.h.b16 %v3988
      %v4002 = vunpack.c.l.b16 %v3989
      %v4003 = vunpack.c.h.b16 %v3989
      %v4004 = vunpack.c.l.b16 %v3990
      %v4005 = vunpack.c.h.b16 %v3990
      %v4006 = vunpack.c.l.b16 %v3991
      %v4007 = vunpack.c.h.b16 %v3991
      %v4008 = vpack.c.b16 %v4000, %v3998
      %v4009 = vpack.c.b16 %v4001, %v3999
      %v4010 = vpack.c.b16 %v4004, %v4002
      %v4011 = vpack.c.b16 %v4005, %v4003
      %v4012 = vpack.c.b16 %v4006, %v4006
      %v4013 = vpack.c.b16 %v4007, %v4007
      %v4019 = vsel %vm2991, %v3992, 0
      %v4022 = vsel %vm1710, %v4012, 0
      %v4025 = vsel %vm1710, %v4013, 0
      %4027 = vmatpush.bf16.msra.mxu0 0
      %4028 = vmatpush.bf16.msra.mxu0 0
      %4029 = vmatpush.bf16.msra.mxu0 0
      %4030 = vmatpush.bf16.msra.mxu0 0
      %4031 = vmatpush.bf16.msra.mxu0 0
      %4032 = vmatpush.bf16.msra.mxu0 %v4022
      %4033 = vmatpush.bf16.msra.mxu0 %v4010
      %4034 = vmatpush.bf16.msra.mxu0 %v4008
      %4035 = vmatmul.bf16.gmra.mxu0 %v4019
      %v4036 = vpop.f32.mrf.mxu0
      %v4037 = vadd.f32 0.0, %v4036
      %v4038 = vpop.f32.mrf.mxu0
      %4039 = vdwg.mxu0
      %4040 = vmatpush.bf16.msra.mxu0 0
      %4041 = vmatpush.bf16.msra.mxu0 0
      %4042 = vmatpush.bf16.msra.mxu0 0
      %4043 = vmatpush.bf16.msra.mxu0 0
      %4044 = vmatpush.bf16.msra.mxu0 0
      %4045 = vmatpush.bf16.msra.mxu0 %v4025
      %4046 = vmatpush.bf16.msra.mxu0 %v4011
      %4047 = vmatpush.bf16.msra.mxu0 %v4009
      %4048 = vmatmul.bf16.gmra.mxu0 %v4019
      %v4049 = vpop.f32.mrf.mxu0
      %v4050 = vadd.f32 0.0, %v4049
      %v4051 = vpop.f32.mrf.mxu0
      %4052 = vdwg.mxu0
      %v4053 = vadd.f32 %v3984, %v4037
      %v4054 = vadd.f32 %v3985, %v4050
      %s4055 = scalar_lea.vmem %s6, 640
      %v4056 = vld [vmem:[%s4055] sm:$0xff]
      %v4057 = vld [vmem:[%s4055 + $0x8] sm:$0xff]
      %v4058 = vld [vmem:[%s4055 + $0x10] sm:$0xff]
      %v4059 = vld [vmem:[%s4055 + $0x18] sm:$0xff]
      %v4060 = vld [vmem:[%s4055 + $0x20] sm:$0x33]
      %v4061 = vpack.c.bf16 %v2949, %v2949
      %v4067 = vunpack.c.l.b16 %v4056
      %v4068 = vunpack.c.h.b16 %v4056
      %v4069 = vunpack.c.l.b16 %v4057
      %v4070 = vunpack.c.h.b16 %v4057
      %v4071 = vunpack.c.l.b16 %v4058
      %v4072 = vunpack.c.h.b16 %v4058
      %v4073 = vunpack.c.l.b16 %v4059
      %v4074 = vunpack.c.h.b16 %v4059
      %v4075 = vunpack.c.l.b16 %v4060
      %v4076 = vunpack.c.h.b16 %v4060
      %v4077 = vpack.c.b16 %v4069, %v4067
      %v4078 = vpack.c.b16 %v4070, %v4068
      %v4079 = vpack.c.b16 %v4073, %v4071
      %v4080 = vpack.c.b16 %v4074, %v4072
      %v4081 = vpack.c.b16 %v4075, %v4075
      %v4082 = vpack.c.b16 %v4076, %v4076
      %v4088 = vsel %vm2991, %v4061, 0
      %v4091 = vsel %vm1710, %v4081, 0
      %v4094 = vsel %vm1710, %v4082, 0
      %4096 = vmatpush.bf16.msra.mxu0 0
      %4097 = vmatpush.bf16.msra.mxu0 0
      %4098 = vmatpush.bf16.msra.mxu0 0
      %4099 = vmatpush.bf16.msra.mxu0 0
      %4100 = vmatpush.bf16.msra.mxu0 0
      %4101 = vmatpush.bf16.msra.mxu0 %v4091
      %4102 = vmatpush.bf16.msra.mxu0 %v4079
      %4103 = vmatpush.bf16.msra.mxu0 %v4077
      %4104 = vmatmul.bf16.gmra.mxu0 %v4088
      %v4105 = vpop.f32.mrf.mxu0
      %v4106 = vadd.f32 0.0, %v4105
      %v4107 = vpop.f32.mrf.mxu0
      %4108 = vdwg.mxu0
      %4109 = vmatpush.bf16.msra.mxu0 0
      %4110 = vmatpush.bf16.msra.mxu0 0
      %4111 = vmatpush.bf16.msra.mxu0 0
      %4112 = vmatpush.bf16.msra.mxu0 0
      %4113 = vmatpush.bf16.msra.mxu0 0
      %4114 = vmatpush.bf16.msra.mxu0 %v4094
      %4115 = vmatpush.bf16.msra.mxu0 %v4080
      %4116 = vmatpush.bf16.msra.mxu0 %v4078
      %4117 = vmatmul.bf16.gmra.mxu0 %v4088
      %v4118 = vpop.f32.mrf.mxu0
      %v4119 = vadd.f32 0.0, %v4118
      %v4120 = vpop.f32.mrf.mxu0
      %4121 = vdwg.mxu0
      %v4122 = vadd.f32 %v4053, %v4106
      %v4123 = vadd.f32 %v4054, %v4119
      %s4124 = scalar_lea.vmem %s6, 680
      %v4125 = vld [vmem:[%s4124] sm:$0xff]
      %v4126 = vld [vmem:[%s4124 + $0x8] sm:$0xff]
      %v4127 = vld [vmem:[%s4124 + $0x10] sm:$0xff]
      %v4128 = vld [vmem:[%s4124 + $0x18] sm:$0xff]
      %v4129 = vld [vmem:[%s4124 + $0x20] sm:$0x33]
      %v4130 = vshrl.u32 %v4061, 16
      %v4137 = vunpack.c.l.b16 %v4125
      %v4138 = vunpack.c.h.b16 %v4125
      %v4139 = vunpack.c.l.b16 %v4126
      %v4140 = vunpack.c.h.b16 %v4126
      %v4141 = vunpack.c.l.b16 %v4127
      %v4142 = vunpack.c.h.b16 %v4127
      %v4143 = vunpack.c.l.b16 %v4128
      %v4144 = vunpack.c.h.b16 %v4128
      %v4145 = vunpack.c.l.b16 %v4129
      %v4146 = vunpack.c.h.b16 %v4129
      %v4147 = vpack.c.b16 %v4139, %v4137
      %v4148 = vpack.c.b16 %v4140, %v4138
      %v4149 = vpack.c.b16 %v4143, %v4141
      %v4150 = vpack.c.b16 %v4144, %v4142
      %v4151 = vpack.c.b16 %v4145, %v4145
      %v4152 = vpack.c.b16 %v4146, %v4146
      %v4158 = vsel %vm2991, %v4130, 0
      %v4161 = vsel %vm1710, %v4151, 0
      %v4164 = vsel %vm1710, %v4152, 0
      %4166 = vmatpush.bf16.msra.mxu0 0
      %4167 = vmatpush.bf16.msra.mxu0 0
      %4168 = vmatpush.bf16.msra.mxu0 0
      %4169 = vmatpush.bf16.msra.mxu0 0
      %4170 = vmatpush.bf16.msra.mxu0 0
      %4171 = vmatpush.bf16.msra.mxu0 %v4161
      %4172 = vmatpush.bf16.msra.mxu0 %v4149
      %4173 = vmatpush.bf16.msra.mxu0 %v4147
      %4174 = vmatmul.bf16.gmra.mxu0 %v4158
      %v4175 = vpop.f32.mrf.mxu0
      %v4176 = vadd.f32 0.0, %v4175
      %v4177 = vpop.f32.mrf.mxu0
      %4178 = vdwg.mxu0
      %4179 = vmatpush.bf16.msra.mxu0 0
      %4180 = vmatpush.bf16.msra.mxu0 0
      %4181 = vmatpush.bf16.msra.mxu0 0
      %4182 = vmatpush.bf16.msra.mxu0 0
      %4183 = vmatpush.bf16.msra.mxu0 0
      %4184 = vmatpush.bf16.msra.mxu0 %v4164
      %4185 = vmatpush.bf16.msra.mxu0 %v4150
      %4186 = vmatpush.bf16.msra.mxu0 %v4148
      %4187 = vmatmul.bf16.gmra.mxu0 %v4158
      %v4188 = vpop.f32.mrf.mxu0
      %v4189 = vadd.f32 0.0, %v4188
      %v4190 = vpop.f32.mrf.mxu0
      %4191 = vdwg.mxu0
      %v4192 = vadd.f32 %v4122, %v4176
      %v4193 = vadd.f32 %v4123, %v4189
      %s4194 = scalar_lea.vmem %s6, 720
      %v4195 = vld [vmem:[%s4194] sm:$0xff]
      %v4196 = vld [vmem:[%s4194 + $0x8] sm:$0xff]
      %v4197 = vld [vmem:[%s4194 + $0x10] sm:$0xff]
      %v4198 = vld [vmem:[%s4194 + $0x18] sm:$0xff]
      %v4199 = vld [vmem:[%s4194 + $0x20] sm:$0x33]
      %v4201 = vrot.slane %v4061, 1
      %v4207 = vunpack.c.l.b16 %v4195
      %v4208 = vunpack.c.h.b16 %v4195
      %v4209 = vunpack.c.l.b16 %v4196
      %v4210 = vunpack.c.h.b16 %v4196
      %v4211 = vunpack.c.l.b16 %v4197
      %v4212 = vunpack.c.h.b16 %v4197
      %v4213 = vunpack.c.l.b16 %v4198
      %v4214 = vunpack.c.h.b16 %v4198
      %v4215 = vunpack.c.l.b16 %v4199
      %v4216 = vunpack.c.h.b16 %v4199
      %v4217 = vpack.c.b16 %v4209, %v4207
      %v4218 = vpack.c.b16 %v4210, %v4208
      %v4219 = vpack.c.b16 %v4213, %v4211
      %v4220 = vpack.c.b16 %v4214, %v4212
      %v4221 = vpack.c.b16 %v4215, %v4215
      %v4222 = vpack.c.b16 %v4216, %v4216
      %v4228 = vsel %vm2991, %v4201, 0
      %v4231 = vsel %vm1710, %v4221, 0
      %v4234 = vsel %vm1710, %v4222, 0
      %4236 = vmatpush.bf16.msra.mxu0 0
      %4237 = vmatpush.bf16.msra.mxu0 0
      %4238 = vmatpush.bf16.msra.mxu0 0
      %4239 = vmatpush.bf16.msra.mxu0 0
      %4240 = vmatpush.bf16.msra.mxu0 0
      %4241 = vmatpush.bf16.msra.mxu0 %v4231
      %4242 = vmatpush.bf16.msra.mxu0 %v4219
      %4243 = vmatpush.bf16.msra.mxu0 %v4217
      %4244 = vmatmul.bf16.gmra.mxu0 %v4228
      %v4245 = vpop.f32.mrf.mxu0
      %v4246 = vadd.f32 0.0, %v4245
      %v4247 = vpop.f32.mrf.mxu0
      %4248 = vdwg.mxu0
      %4249 = vmatpush.bf16.msra.mxu0 0
      %4250 = vmatpush.bf16.msra.mxu0 0
      %4251 = vmatpush.bf16.msra.mxu0 0
      %4252 = vmatpush.bf16.msra.mxu0 0
      %4253 = vmatpush.bf16.msra.mxu0 0
      %4254 = vmatpush.bf16.msra.mxu0 %v4234
      %4255 = vmatpush.bf16.msra.mxu0 %v4220
      %4256 = vmatpush.bf16.msra.mxu0 %v4218
      %4257 = vmatmul.bf16.gmra.mxu0 %v4228
      %v4258 = vpop.f32.mrf.mxu0
      %v4259 = vadd.f32 0.0, %v4258
      %v4260 = vpop.f32.mrf.mxu0
      %4261 = vdwg.mxu0
      %v4262 = vadd.f32 %v4192, %v4246
      %v4263 = vadd.f32 %v4193, %v4259
      %s4264 = scalar_lea.vmem %s6, 760
      %v4265 = vld [vmem:[%s4264] sm:$0xff]
      %v4266 = vld [vmem:[%s4264 + $0x8] sm:$0xff]
      %v4267 = vld [vmem:[%s4264 + $0x10] sm:$0xff]
      %v4268 = vld [vmem:[%s4264 + $0x18] sm:$0xff]
      %v4269 = vld [vmem:[%s4264 + $0x20] sm:$0x33]
      %v4270 = vrot.slane %v4130, 1
      %v4276 = vunpack.c.l.b16 %v4265
      %v4277 = vunpack.c.h.b16 %v4265
      %v4278 = vunpack.c.l.b16 %v4266
      %v4279 = vunpack.c.h.b16 %v4266
      %v4280 = vunpack.c.l.b16 %v4267
      %v4281 = vunpack.c.h.b16 %v4267
      %v4282 = vunpack.c.l.b16 %v4268
      %v4283 = vunpack.c.h.b16 %v4268
      %v4284 = vunpack.c.l.b16 %v4269
      %v4285 = vunpack.c.h.b16 %v4269
      %v4286 = vpack.c.b16 %v4278, %v4276
      %v4287 = vpack.c.b16 %v4279, %v4277
      %v4288 = vpack.c.b16 %v4282, %v4280
      %v4289 = vpack.c.b16 %v4283, %v4281
      %v4290 = vpack.c.b16 %v4284, %v4284
      %v4291 = vpack.c.b16 %v4285, %v4285
      %v4297 = vsel %vm2991, %v4270, 0
      %v4300 = vsel %vm1710, %v4290, 0
      %v4303 = vsel %vm1710, %v4291, 0
      %4305 = vmatpush.bf16.msra.mxu0 0
      %4306 = vmatpush.bf16.msra.mxu0 0
      %4307 = vmatpush.bf16.msra.mxu0 0
      %4308 = vmatpush.bf16.msra.mxu0 0
      %4309 = vmatpush.bf16.msra.mxu0 0
      %4310 = vmatpush.bf16.msra.mxu0 %v4300
      %4311 = vmatpush.bf16.msra.mxu0 %v4288
      %4312 = vmatpush.bf16.msra.mxu0 %v4286
      %4313 = vmatmul.bf16.gmra.mxu0 %v4297
      %v4314 = vpop.f32.mrf.mxu0
      %v4315 = vadd.f32 0.0, %v4314
      %v4316 = vpop.f32.mrf.mxu0
      %4317 = vdwg.mxu0
      %4318 = vmatpush.bf16.msra.mxu0 0
      %4319 = vmatpush.bf16.msra.mxu0 0
      %4320 = vmatpush.bf16.msra.mxu0 0
      %4321 = vmatpush.bf16.msra.mxu0 0
      %4322 = vmatpush.bf16.msra.mxu0 0
      %4323 = vmatpush.bf16.msra.mxu0 %v4303
      %4324 = vmatpush.bf16.msra.mxu0 %v4289
      %4325 = vmatpush.bf16.msra.mxu0 %v4287
      %4326 = vmatmul.bf16.gmra.mxu0 %v4297
      %v4327 = vpop.f32.mrf.mxu0
      %v4328 = vadd.f32 0.0, %v4327
      %v4329 = vpop.f32.mrf.mxu0
      %4330 = vdwg.mxu0
      %v4331 = vadd.f32 %v4262, %v4315
      %v4332 = vadd.f32 %v4263, %v4328
      %s4333 = scalar_lea.vmem %s6, 800
      %v4334 = vld [vmem:[%s4333] sm:$0xff]
      %v4335 = vld [vmem:[%s4333 + $0x8] sm:$0xff]
      %v4336 = vld [vmem:[%s4333 + $0x10] sm:$0xff]
      %v4337 = vld [vmem:[%s4333 + $0x18] sm:$0xff]
      %v4338 = vld [vmem:[%s4333 + $0x20] sm:$0x33]
      %v4339 = vrot.slane %v4061, 2
      %v4345 = vunpack.c.l.b16 %v4334
      %v4346 = vunpack.c.h.b16 %v4334
      %v4347 = vunpack.c.l.b16 %v4335
      %v4348 = vunpack.c.h.b16 %v4335
      %v4349 = vunpack.c.l.b16 %v4336
      %v4350 = vunpack.c.h.b16 %v4336
      %v4351 = vunpack.c.l.b16 %v4337
      %v4352 = vunpack.c.h.b16 %v4337
      %v4353 = vunpack.c.l.b16 %v4338
      %v4354 = vunpack.c.h.b16 %v4338
      %v4355 = vpack.c.b16 %v4347, %v4345
      %v4356 = vpack.c.b16 %v4348, %v4346
      %v4357 = vpack.c.b16 %v4351, %v4349
      %v4358 = vpack.c.b16 %v4352, %v4350
      %v4359 = vpack.c.b16 %v4353, %v4353
      %v4360 = vpack.c.b16 %v4354, %v4354
      %v4366 = vsel %vm2991, %v4339, 0
      %v4369 = vsel %vm1710, %v4359, 0
      %v4372 = vsel %vm1710, %v4360, 0
      %4374 = vmatpush.bf16.msra.mxu0 0
      %4375 = vmatpush.bf16.msra.mxu0 0
      %4376 = vmatpush.bf16.msra.mxu0 0
      %4377 = vmatpush.bf16.msra.mxu0 0
      %4378 = vmatpush.bf16.msra.mxu0 0
      %4379 = vmatpush.bf16.msra.mxu0 %v4369
      %4380 = vmatpush.bf16.msra.mxu0 %v4357
      %4381 = vmatpush.bf16.msra.mxu0 %v4355
      %4382 = vmatmul.bf16.gmra.mxu0 %v4366
      %v4383 = vpop.f32.mrf.mxu0
      %v4384 = vadd.f32 0.0, %v4383
      %v4385 = vpop.f32.mrf.mxu0
      %4386 = vdwg.mxu0
      %4387 = vmatpush.bf16.msra.mxu0 0
      %4388 = vmatpush.bf16.msra.mxu0 0
      %4389 = vmatpush.bf16.msra.mxu0 0
      %4390 = vmatpush.bf16.msra.mxu0 0
      %4391 = vmatpush.bf16.msra.mxu0 0
      %4392 = vmatpush.bf16.msra.mxu0 %v4372
      %4393 = vmatpush.bf16.msra.mxu0 %v4358
      %4394 = vmatpush.bf16.msra.mxu0 %v4356
      %4395 = vmatmul.bf16.gmra.mxu0 %v4366
      %v4396 = vpop.f32.mrf.mxu0
      %v4397 = vadd.f32 0.0, %v4396
      %v4398 = vpop.f32.mrf.mxu0
      %4399 = vdwg.mxu0
      %v4400 = vadd.f32 %v4331, %v4384
      %v4401 = vadd.f32 %v4332, %v4397
      %s4402 = scalar_lea.vmem %s6, 840
      %v4403 = vld [vmem:[%s4402] sm:$0xff]
      %v4404 = vld [vmem:[%s4402 + $0x8] sm:$0xff]
      %v4405 = vld [vmem:[%s4402 + $0x10] sm:$0xff]
      %v4406 = vld [vmem:[%s4402 + $0x18] sm:$0xff]
      %v4407 = vld [vmem:[%s4402 + $0x20] sm:$0x33]
      %v4408 = vrot.slane %v4130, 2
      %v4414 = vunpack.c.l.b16 %v4403
      %v4415 = vunpack.c.h.b16 %v4403
      %v4416 = vunpack.c.l.b16 %v4404
      %v4417 = vunpack.c.h.b16 %v4404
      %v4418 = vunpack.c.l.b16 %v4405
      %v4419 = vunpack.c.h.b16 %v4405
      %v4420 = vunpack.c.l.b16 %v4406
      %v4421 = vunpack.c.h.b16 %v4406
      %v4422 = vunpack.c.l.b16 %v4407
      %v4423 = vunpack.c.h.b16 %v4407
      %v4424 = vpack.c.b16 %v4416, %v4414
      %v4425 = vpack.c.b16 %v4417, %v4415
      %v4426 = vpack.c.b16 %v4420, %v4418
      %v4427 = vpack.c.b16 %v4421, %v4419
      %v4428 = vpack.c.b16 %v4422, %v4422
      %v4429 = vpack.c.b16 %v4423, %v4423
      %v4435 = vsel %vm2991, %v4408, 0
      %v4438 = vsel %vm1710, %v4428, 0
      %v4441 = vsel %vm1710, %v4429, 0
      %4443 = vmatpush.bf16.msra.mxu0 0
      %4444 = vmatpush.bf16.msra.mxu0 0
      %4445 = vmatpush.bf16.msra.mxu0 0
      %4446 = vmatpush.bf16.msra.mxu0 0
      %4447 = vmatpush.bf16.msra.mxu0 0
      %4448 = vmatpush.bf16.msra.mxu0 %v4438
      %4449 = vmatpush.bf16.msra.mxu0 %v4426
      %4450 = vmatpush.bf16.msra.mxu0 %v4424
      %4451 = vmatmul.bf16.gmra.mxu0 %v4435
      %v4452 = vpop.f32.mrf.mxu0
      %v4453 = vadd.f32 0.0, %v4452
      %v4454 = vpop.f32.mrf.mxu0
      %4455 = vdwg.mxu0
      %4456 = vmatpush.bf16.msra.mxu0 0
      %4457 = vmatpush.bf16.msra.mxu0 0
      %4458 = vmatpush.bf16.msra.mxu0 0
      %4459 = vmatpush.bf16.msra.mxu0 0
      %4460 = vmatpush.bf16.msra.mxu0 0
      %4461 = vmatpush.bf16.msra.mxu0 %v4441
      %4462 = vmatpush.bf16.msra.mxu0 %v4427
      %4463 = vmatpush.bf16.msra.mxu0 %v4425
      %4464 = vmatmul.bf16.gmra.mxu0 %v4435
      %v4465 = vpop.f32.mrf.mxu0
      %v4466 = vadd.f32 0.0, %v4465
      %v4467 = vpop.f32.mrf.mxu0
      %4468 = vdwg.mxu0
      %v4469 = vadd.f32 %v4400, %v4453
      %v4470 = vadd.f32 %v4401, %v4466
      %s4471 = scalar_lea.vmem %s6, 880
      %v4472 = vld [vmem:[%s4471] sm:$0xff]
      %v4473 = vld [vmem:[%s4471 + $0x8] sm:$0xff]
      %v4474 = vld [vmem:[%s4471 + $0x10] sm:$0xff]
      %v4475 = vld [vmem:[%s4471 + $0x18] sm:$0xff]
      %v4476 = vld [vmem:[%s4471 + $0x20] sm:$0x33]
      %v4477 = vrot.slane %v4061, 3
      %v4483 = vunpack.c.l.b16 %v4472
      %v4484 = vunpack.c.h.b16 %v4472
      %v4485 = vunpack.c.l.b16 %v4473
      %v4486 = vunpack.c.h.b16 %v4473
      %v4487 = vunpack.c.l.b16 %v4474
      %v4488 = vunpack.c.h.b16 %v4474
      %v4489 = vunpack.c.l.b16 %v4475
      %v4490 = vunpack.c.h.b16 %v4475
      %v4491 = vunpack.c.l.b16 %v4476
      %v4492 = vunpack.c.h.b16 %v4476
      %v4493 = vpack.c.b16 %v4485, %v4483
      %v4494 = vpack.c.b16 %v4486, %v4484
      %v4495 = vpack.c.b16 %v4489, %v4487
      %v4496 = vpack.c.b16 %v4490, %v4488
      %v4497 = vpack.c.b16 %v4491, %v4491
      %v4498 = vpack.c.b16 %v4492, %v4492
      %v4504 = vsel %vm2991, %v4477, 0
      %v4507 = vsel %vm1710, %v4497, 0
      %v4510 = vsel %vm1710, %v4498, 0
      %4512 = vmatpush.bf16.msra.mxu0 0
      %4513 = vmatpush.bf16.msra.mxu0 0
      %4514 = vmatpush.bf16.msra.mxu0 0
      %4515 = vmatpush.bf16.msra.mxu0 0
      %4516 = vmatpush.bf16.msra.mxu0 0
      %4517 = vmatpush.bf16.msra.mxu0 %v4507
      %4518 = vmatpush.bf16.msra.mxu0 %v4495
      %4519 = vmatpush.bf16.msra.mxu0 %v4493
      %4520 = vmatmul.bf16.gmra.mxu0 %v4504
      %v4521 = vpop.f32.mrf.mxu0
      %v4522 = vadd.f32 0.0, %v4521
      %v4523 = vpop.f32.mrf.mxu0
      %4524 = vdwg.mxu0
      %4525 = vmatpush.bf16.msra.mxu0 0
      %4526 = vmatpush.bf16.msra.mxu0 0
      %4527 = vmatpush.bf16.msra.mxu0 0
      %4528 = vmatpush.bf16.msra.mxu0 0
      %4529 = vmatpush.bf16.msra.mxu0 0
      %4530 = vmatpush.bf16.msra.mxu0 %v4510
      %4531 = vmatpush.bf16.msra.mxu0 %v4496
      %4532 = vmatpush.bf16.msra.mxu0 %v4494
      %4533 = vmatmul.bf16.gmra.mxu0 %v4504
      %v4534 = vpop.f32.mrf.mxu0
      %v4535 = vadd.f32 0.0, %v4534
      %v4536 = vpop.f32.mrf.mxu0
      %4537 = vdwg.mxu0
      %v4538 = vadd.f32 %v4469, %v4522
      %v4539 = vadd.f32 %v4470, %v4535
      %s4540 = scalar_lea.vmem %s6, 920
      %v4541 = vld [vmem:[%s4540] sm:$0xff]
      %v4542 = vld [vmem:[%s4540 + $0x8] sm:$0xff]
      %v4543 = vld [vmem:[%s4540 + $0x10] sm:$0xff]
      %v4544 = vld [vmem:[%s4540 + $0x18] sm:$0xff]
      %v4545 = vld [vmem:[%s4540 + $0x20] sm:$0x33]
      %v4546 = vrot.slane %v4130, 3
      %v4552 = vunpack.c.l.b16 %v4541
      %v4553 = vunpack.c.h.b16 %v4541
      %v4554 = vunpack.c.l.b16 %v4542
      %v4555 = vunpack.c.h.b16 %v4542
      %v4556 = vunpack.c.l.b16 %v4543
      %v4557 = vunpack.c.h.b16 %v4543
      %v4558 = vunpack.c.l.b16 %v4544
      %v4559 = vunpack.c.h.b16 %v4544
      %v4560 = vunpack.c.l.b16 %v4545
      %v4561 = vunpack.c.h.b16 %v4545
      %v4562 = vpack.c.b16 %v4554, %v4552
      %v4563 = vpack.c.b16 %v4555, %v4553
      %v4564 = vpack.c.b16 %v4558, %v4556
      %v4565 = vpack.c.b16 %v4559, %v4557
      %v4566 = vpack.c.b16 %v4560, %v4560
      %v4567 = vpack.c.b16 %v4561, %v4561
      %v4573 = vsel %vm2991, %v4546, 0
      %v4576 = vsel %vm1710, %v4566, 0
      %v4579 = vsel %vm1710, %v4567, 0
      %4581 = vmatpush.bf16.msra.mxu0 0
      %4582 = vmatpush.bf16.msra.mxu0 0
      %4583 = vmatpush.bf16.msra.mxu0 0
      %4584 = vmatpush.bf16.msra.mxu0 0
      %4585 = vmatpush.bf16.msra.mxu0 0
      %4586 = vmatpush.bf16.msra.mxu0 %v4576
      %4587 = vmatpush.bf16.msra.mxu0 %v4564
      %4588 = vmatpush.bf16.msra.mxu0 %v4562
      %4589 = vmatmul.bf16.gmra.mxu0 %v4573
      %v4590 = vpop.f32.mrf.mxu0
      %v4591 = vadd.f32 0.0, %v4590
      %v4592 = vpop.f32.mrf.mxu0
      %4593 = vdwg.mxu0
      %4594 = vmatpush.bf16.msra.mxu0 0
      %4595 = vmatpush.bf16.msra.mxu0 0
      %4596 = vmatpush.bf16.msra.mxu0 0
      %4597 = vmatpush.bf16.msra.mxu0 0
      %4598 = vmatpush.bf16.msra.mxu0 0
      %4599 = vmatpush.bf16.msra.mxu0 %v4579
      %4600 = vmatpush.bf16.msra.mxu0 %v4565
      %4601 = vmatpush.bf16.msra.mxu0 %v4563
      %4602 = vmatmul.bf16.gmra.mxu0 %v4573
      %v4603 = vpop.f32.mrf.mxu0
      %v4604 = vadd.f32 0.0, %v4603
      %v4605 = vpop.f32.mrf.mxu0
      %4606 = vdwg.mxu0
      %v4607 = vadd.f32 %v4538, %v4591
      %v4608 = vadd.f32 %v4539, %v4604
      %s4609 = scalar_lea.vmem %s6, 960
      %v4610 = vld [vmem:[%s4609] sm:$0xff]
      %v4611 = vld [vmem:[%s4609 + $0x8] sm:$0xff]
      %v4612 = vld [vmem:[%s4609 + $0x10] sm:$0xff]
      %v4613 = vld [vmem:[%s4609 + $0x18] sm:$0xff]
      %v4614 = vld [vmem:[%s4609 + $0x20] sm:$0x33]
      %v4615 = vpack.c.bf16 %v2950, %v2950
      %v4621 = vunpack.c.l.b16 %v4610
      %v4622 = vunpack.c.h.b16 %v4610
      %v4623 = vunpack.c.l.b16 %v4611
      %v4624 = vunpack.c.h.b16 %v4611
      %v4625 = vunpack.c.l.b16 %v4612
      %v4626 = vunpack.c.h.b16 %v4612
      %v4627 = vunpack.c.l.b16 %v4613
      %v4628 = vunpack.c.h.b16 %v4613
      %v4629 = vunpack.c.l.b16 %v4614
      %v4630 = vunpack.c.h.b16 %v4614
      %v4631 = vpack.c.b16 %v4623, %v4621
      %v4632 = vpack.c.b16 %v4624, %v4622
      %v4633 = vpack.c.b16 %v4627, %v4625
      %v4634 = vpack.c.b16 %v4628, %v4626
      %v4635 = vpack.c.b16 %v4629, %v4629
      %v4636 = vpack.c.b16 %v4630, %v4630
      %v4642 = vsel %vm2991, %v4615, 0
      %v4645 = vsel %vm1710, %v4635, 0
      %v4648 = vsel %vm1710, %v4636, 0
      %4650 = vmatpush.bf16.msra.mxu0 0
      %4651 = vmatpush.bf16.msra.mxu0 0
      %4652 = vmatpush.bf16.msra.mxu0 0
      %4653 = vmatpush.bf16.msra.mxu0 0
      %4654 = vmatpush.bf16.msra.mxu0 0
      %4655 = vmatpush.bf16.msra.mxu0 %v4645
      %4656 = vmatpush.bf16.msra.mxu0 %v4633
      %4657 = vmatpush.bf16.msra.mxu0 %v4631
      %4658 = vmatmul.bf16.gmra.mxu0 %v4642
      %v4659 = vpop.f32.mrf.mxu0
      %v4660 = vadd.f32 0.0, %v4659
      %v4661 = vpop.f32.mrf.mxu0
      %4662 = vdwg.mxu0
      %4663 = vmatpush.bf16.msra.mxu0 0
      %4664 = vmatpush.bf16.msra.mxu0 0
      %4665 = vmatpush.bf16.msra.mxu0 0
      %4666 = vmatpush.bf16.msra.mxu0 0
      %4667 = vmatpush.bf16.msra.mxu0 0
      %4668 = vmatpush.bf16.msra.mxu0 %v4648
      %4669 = vmatpush.bf16.msra.mxu0 %v4634
      %4670 = vmatpush.bf16.msra.mxu0 %v4632
      %4671 = vmatmul.bf16.gmra.mxu0 %v4642
      %v4672 = vpop.f32.mrf.mxu0
      %v4673 = vadd.f32 0.0, %v4672
      %v4674 = vpop.f32.mrf.mxu0
      %4675 = vdwg.mxu0
      %v4676 = vadd.f32 %v4607, %v4660
      %v4677 = vadd.f32 %v4608, %v4673
      %s4678 = scalar_lea.vmem %s6, 1000
      %v4679 = vld [vmem:[%s4678] sm:$0xff]
      %v4680 = vld [vmem:[%s4678 + $0x8] sm:$0xff]
      %v4681 = vld [vmem:[%s4678 + $0x10] sm:$0xff]
      %v4682 = vld [vmem:[%s4678 + $0x18] sm:$0xff]
      %v4683 = vld [vmem:[%s4678 + $0x20] sm:$0x33]
      %v4684 = vshrl.u32 %v4615, 16
      %v4691 = vunpack.c.l.b16 %v4679
      %v4692 = vunpack.c.h.b16 %v4679
      %v4693 = vunpack.c.l.b16 %v4680
      %v4694 = vunpack.c.h.b16 %v4680
      %v4695 = vunpack.c.l.b16 %v4681
      %v4696 = vunpack.c.h.b16 %v4681
      %v4697 = vunpack.c.l.b16 %v4682
      %v4698 = vunpack.c.h.b16 %v4682
      %v4699 = vunpack.c.l.b16 %v4683
      %v4700 = vunpack.c.h.b16 %v4683
      %v4701 = vpack.c.b16 %v4693, %v4691
      %v4702 = vpack.c.b16 %v4694, %v4692
      %v4703 = vpack.c.b16 %v4697, %v4695
      %v4704 = vpack.c.b16 %v4698, %v4696
      %v4705 = vpack.c.b16 %v4699, %v4699
      %v4706 = vpack.c.b16 %v4700, %v4700
      %v4712 = vsel %vm2991, %v4684, 0
      %v4715 = vsel %vm1710, %v4705, 0
      %v4718 = vsel %vm1710, %v4706, 0
      %4720 = vmatpush.bf16.msra.mxu0 0
      %4721 = vmatpush.bf16.msra.mxu0 0
      %4722 = vmatpush.bf16.msra.mxu0 0
      %4723 = vmatpush.bf16.msra.mxu0 0
      %4724 = vmatpush.bf16.msra.mxu0 0
      %4725 = vmatpush.bf16.msra.mxu0 %v4715
      %4726 = vmatpush.bf16.msra.mxu0 %v4703
      %4727 = vmatpush.bf16.msra.mxu0 %v4701
      %4728 = vmatmul.bf16.gmra.mxu0 %v4712
      %v4729 = vpop.f32.mrf.mxu0
      %v4730 = vadd.f32 0.0, %v4729
      %v4731 = vpop.f32.mrf.mxu0
      %4732 = vdwg.mxu0
      %4733 = vmatpush.bf16.msra.mxu0 0
      %4734 = vmatpush.bf16.msra.mxu0 0
      %4735 = vmatpush.bf16.msra.mxu0 0
      %4736 = vmatpush.bf16.msra.mxu0 0
      %4737 = vmatpush.bf16.msra.mxu0 0
      %4738 = vmatpush.bf16.msra.mxu0 %v4718
      %4739 = vmatpush.bf16.msra.mxu0 %v4704
      %4740 = vmatpush.bf16.msra.mxu0 %v4702
      %4741 = vmatmul.bf16.gmra.mxu0 %v4712
      %v4742 = vpop.f32.mrf.mxu0
      %v4743 = vadd.f32 0.0, %v4742
      %v4744 = vpop.f32.mrf.mxu0
      %4745 = vdwg.mxu0
      %v4746 = vadd.f32 %v4676, %v4730
      %v4747 = vadd.f32 %v4677, %v4743
      %s4748 = scalar_lea.vmem %s6, 1040
      %v4749 = vld [vmem:[%s4748] sm:$0xff]
      %v4750 = vld [vmem:[%s4748 + $0x8] sm:$0xff]
      %v4751 = vld [vmem:[%s4748 + $0x10] sm:$0xff]
      %v4752 = vld [vmem:[%s4748 + $0x18] sm:$0xff]
      %v4753 = vld [vmem:[%s4748 + $0x20] sm:$0x33]
      %v4755 = vrot.slane %v4615, 1
      %v4761 = vunpack.c.l.b16 %v4749
      %v4762 = vunpack.c.h.b16 %v4749
      %v4763 = vunpack.c.l.b16 %v4750
      %v4764 = vunpack.c.h.b16 %v4750
      %v4765 = vunpack.c.l.b16 %v4751
      %v4766 = vunpack.c.h.b16 %v4751
      %v4767 = vunpack.c.l.b16 %v4752
      %v4768 = vunpack.c.h.b16 %v4752
      %v4769 = vunpack.c.l.b16 %v4753
      %v4770 = vunpack.c.h.b16 %v4753
      %v4771 = vpack.c.b16 %v4763, %v4761
      %v4772 = vpack.c.b16 %v4764, %v4762
      %v4773 = vpack.c.b16 %v4767, %v4765
      %v4774 = vpack.c.b16 %v4768, %v4766
      %v4775 = vpack.c.b16 %v4769, %v4769
      %v4776 = vpack.c.b16 %v4770, %v4770
      %v4782 = vsel %vm2991, %v4755, 0
      %v4785 = vsel %vm1710, %v4775, 0
      %v4788 = vsel %vm1710, %v4776, 0
      %4790 = vmatpush.bf16.msra.mxu0 0
      %4791 = vmatpush.bf16.msra.mxu0 0
      %4792 = vmatpush.bf16.msra.mxu0 0
      %4793 = vmatpush.bf16.msra.mxu0 0
      %4794 = vmatpush.bf16.msra.mxu0 0
      %4795 = vmatpush.bf16.msra.mxu0 %v4785
      %4796 = vmatpush.bf16.msra.mxu0 %v4773
      %4797 = vmatpush.bf16.msra.mxu0 %v4771
      %4798 = vmatmul.bf16.gmra.mxu0 %v4782
      %v4799 = vpop.f32.mrf.mxu0
      %v4800 = vadd.f32 0.0, %v4799
      %v4801 = vpop.f32.mrf.mxu0
      %4802 = vdwg.mxu0
      %4803 = vmatpush.bf16.msra.mxu0 0
      %4804 = vmatpush.bf16.msra.mxu0 0
      %4805 = vmatpush.bf16.msra.mxu0 0
      %4806 = vmatpush.bf16.msra.mxu0 0
      %4807 = vmatpush.bf16.msra.mxu0 0
      %4808 = vmatpush.bf16.msra.mxu0 %v4788
      %4809 = vmatpush.bf16.msra.mxu0 %v4774
      %4810 = vmatpush.bf16.msra.mxu0 %v4772
      %4811 = vmatmul.bf16.gmra.mxu0 %v4782
      %v4812 = vpop.f32.mrf.mxu0
      %v4813 = vadd.f32 0.0, %v4812
      %v4814 = vpop.f32.mrf.mxu0
      %4815 = vdwg.mxu0
      %v4816 = vadd.f32 %v4746, %v4800
      %v4817 = vadd.f32 %v4747, %v4813
      %s4818 = scalar_lea.vmem %s6, 1080
      %v4819 = vld [vmem:[%s4818] sm:$0xff]
      %v4820 = vld [vmem:[%s4818 + $0x8] sm:$0xff]
      %v4821 = vld [vmem:[%s4818 + $0x10] sm:$0xff]
      %v4822 = vld [vmem:[%s4818 + $0x18] sm:$0xff]
      %v4823 = vld [vmem:[%s4818 + $0x20] sm:$0x33]
      %v4824 = vrot.slane %v4684, 1
      %v4830 = vunpack.c.l.b16 %v4819
      %v4831 = vunpack.c.h.b16 %v4819
      %v4832 = vunpack.c.l.b16 %v4820
      %v4833 = vunpack.c.h.b16 %v4820
      %v4834 = vunpack.c.l.b16 %v4821
      %v4835 = vunpack.c.h.b16 %v4821
      %v4836 = vunpack.c.l.b16 %v4822
      %v4837 = vunpack.c.h.b16 %v4822
      %v4838 = vunpack.c.l.b16 %v4823
      %v4839 = vunpack.c.h.b16 %v4823
      %v4840 = vpack.c.b16 %v4832, %v4830
      %v4841 = vpack.c.b16 %v4833, %v4831
      %v4842 = vpack.c.b16 %v4836, %v4834
      %v4843 = vpack.c.b16 %v4837, %v4835
      %v4844 = vpack.c.b16 %v4838, %v4838
      %v4845 = vpack.c.b16 %v4839, %v4839
      %v4851 = vsel %vm2991, %v4824, 0
      %v4854 = vsel %vm1710, %v4844, 0
      %v4857 = vsel %vm1710, %v4845, 0
      %4859 = vmatpush.bf16.msra.mxu0 0
      %4860 = vmatpush.bf16.msra.mxu0 0
      %4861 = vmatpush.bf16.msra.mxu0 0
      %4862 = vmatpush.bf16.msra.mxu0 0
      %4863 = vmatpush.bf16.msra.mxu0 0
      %4864 = vmatpush.bf16.msra.mxu0 %v4854
      %4865 = vmatpush.bf16.msra.mxu0 %v4842
      %4866 = vmatpush.bf16.msra.mxu0 %v4840
      %4867 = vmatmul.bf16.gmra.mxu0 %v4851
      %v4868 = vpop.f32.mrf.mxu0
      %v4869 = vadd.f32 0.0, %v4868
      %v4870 = vpop.f32.mrf.mxu0
      %4871 = vdwg.mxu0
      %4872 = vmatpush.bf16.msra.mxu0 0
      %4873 = vmatpush.bf16.msra.mxu0 0
      %4874 = vmatpush.bf16.msra.mxu0 0
      %4875 = vmatpush.bf16.msra.mxu0 0
      %4876 = vmatpush.bf16.msra.mxu0 0
      %4877 = vmatpush.bf16.msra.mxu0 %v4857
      %4878 = vmatpush.bf16.msra.mxu0 %v4843
      %4879 = vmatpush.bf16.msra.mxu0 %v4841
      %4880 = vmatmul.bf16.gmra.mxu0 %v4851
      %v4881 = vpop.f32.mrf.mxu0
      %v4882 = vadd.f32 0.0, %v4881
      %v4883 = vpop.f32.mrf.mxu0
      %4884 = vdwg.mxu0
      %v4885 = vadd.f32 %v4816, %v4869
      %v4886 = vadd.f32 %v4817, %v4882
      %s4887 = scalar_lea.vmem %s6, 1120
      %v4888 = vld [vmem:[%s4887] sm:$0xff]
      %v4889 = vld [vmem:[%s4887 + $0x8] sm:$0xff]
      %v4890 = vld [vmem:[%s4887 + $0x10] sm:$0xff]
      %v4891 = vld [vmem:[%s4887 + $0x18] sm:$0xff]
      %v4892 = vld [vmem:[%s4887 + $0x20] sm:$0x33]
      %v4893 = vrot.slane %v4615, 2
      %v4899 = vunpack.c.l.b16 %v4888
      %v4900 = vunpack.c.h.b16 %v4888
      %v4901 = vunpack.c.l.b16 %v4889
      %v4902 = vunpack.c.h.b16 %v4889
      %v4903 = vunpack.c.l.b16 %v4890
      %v4904 = vunpack.c.h.b16 %v4890
      %v4905 = vunpack.c.l.b16 %v4891
      %v4906 = vunpack.c.h.b16 %v4891
      %v4907 = vunpack.c.l.b16 %v4892
      %v4908 = vunpack.c.h.b16 %v4892
      %v4909 = vpack.c.b16 %v4901, %v4899
      %v4910 = vpack.c.b16 %v4902, %v4900
      %v4911 = vpack.c.b16 %v4905, %v4903
      %v4912 = vpack.c.b16 %v4906, %v4904
      %v4913 = vpack.c.b16 %v4907, %v4907
      %v4914 = vpack.c.b16 %v4908, %v4908
      %v4920 = vsel %vm2991, %v4893, 0
      %v4923 = vsel %vm1710, %v4913, 0
      %v4926 = vsel %vm1710, %v4914, 0
      %4928 = vmatpush.bf16.msra.mxu0 0
      %4929 = vmatpush.bf16.msra.mxu0 0
      %4930 = vmatpush.bf16.msra.mxu0 0
      %4931 = vmatpush.bf16.msra.mxu0 0
      %4932 = vmatpush.bf16.msra.mxu0 0
      %4933 = vmatpush.bf16.msra.mxu0 %v4923
      %4934 = vmatpush.bf16.msra.mxu0 %v4911
      %4935 = vmatpush.bf16.msra.mxu0 %v4909
      %4936 = vmatmul.bf16.gmra.mxu0 %v4920
      %v4937 = vpop.f32.mrf.mxu0
      %v4938 = vadd.f32 0.0, %v4937
      %v4939 = vpop.f32.mrf.mxu0
      %4940 = vdwg.mxu0
      %4941 = vmatpush.bf16.msra.mxu0 0
      %4942 = vmatpush.bf16.msra.mxu0 0
      %4943 = vmatpush.bf16.msra.mxu0 0
      %4944 = vmatpush.bf16.msra.mxu0 0
      %4945 = vmatpush.bf16.msra.mxu0 0
      %4946 = vmatpush.bf16.msra.mxu0 %v4926
      %4947 = vmatpush.bf16.msra.mxu0 %v4912
      %4948 = vmatpush.bf16.msra.mxu0 %v4910
      %4949 = vmatmul.bf16.gmra.mxu0 %v4920
      %v4950 = vpop.f32.mrf.mxu0
      %v4951 = vadd.f32 0.0, %v4950
      %v4952 = vpop.f32.mrf.mxu0
      %4953 = vdwg.mxu0
      %v4954 = vadd.f32 %v4885, %v4938
      %v4955 = vadd.f32 %v4886, %v4951
      %s4956 = scalar_lea.vmem %s6, 1160
      %v4957 = vld [vmem:[%s4956] sm:$0xff]
      %v4958 = vld [vmem:[%s4956 + $0x8] sm:$0xff]
      %v4959 = vld [vmem:[%s4956 + $0x10] sm:$0xff]
      %v4960 = vld [vmem:[%s4956 + $0x18] sm:$0xff]
      %v4961 = vld [vmem:[%s4956 + $0x20] sm:$0x33]
      %v4962 = vrot.slane %v4684, 2
      %v4968 = vunpack.c.l.b16 %v4957
      %v4969 = vunpack.c.h.b16 %v4957
      %v4970 = vunpack.c.l.b16 %v4958
      %v4971 = vunpack.c.h.b16 %v4958
      %v4972 = vunpack.c.l.b16 %v4959
      %v4973 = vunpack.c.h.b16 %v4959
      %v4974 = vunpack.c.l.b16 %v4960
      %v4975 = vunpack.c.h.b16 %v4960
      %v4976 = vunpack.c.l.b16 %v4961
      %v4977 = vunpack.c.h.b16 %v4961
      %v4978 = vpack.c.b16 %v4970, %v4968
      %v4979 = vpack.c.b16 %v4971, %v4969
      %v4980 = vpack.c.b16 %v4974, %v4972
      %v4981 = vpack.c.b16 %v4975, %v4973
      %v4982 = vpack.c.b16 %v4976, %v4976
      %v4983 = vpack.c.b16 %v4977, %v4977
      %v4989 = vsel %vm2991, %v4962, 0
      %v4992 = vsel %vm1710, %v4982, 0
      %v4995 = vsel %vm1710, %v4983, 0
      %4997 = vmatpush.bf16.msra.mxu0 0
      %4998 = vmatpush.bf16.msra.mxu0 0
      %4999 = vmatpush.bf16.msra.mxu0 0
      %5000 = vmatpush.bf16.msra.mxu0 0
      %5001 = vmatpush.bf16.msra.mxu0 0
      %5002 = vmatpush.bf16.msra.mxu0 %v4992
      %5003 = vmatpush.bf16.msra.mxu0 %v4980
      %5004 = vmatpush.bf16.msra.mxu0 %v4978
      %5005 = vmatmul.bf16.gmra.mxu0 %v4989
      %v5006 = vpop.f32.mrf.mxu0
      %v5007 = vadd.f32 0.0, %v5006
      %v5008 = vpop.f32.mrf.mxu0
      %5009 = vdwg.mxu0
      %5010 = vmatpush.bf16.msra.mxu0 0
      %5011 = vmatpush.bf16.msra.mxu0 0
      %5012 = vmatpush.bf16.msra.mxu0 0
      %5013 = vmatpush.bf16.msra.mxu0 0
      %5014 = vmatpush.bf16.msra.mxu0 0
      %5015 = vmatpush.bf16.msra.mxu0 %v4995
      %5016 = vmatpush.bf16.msra.mxu0 %v4981
      %5017 = vmatpush.bf16.msra.mxu0 %v4979
      %5018 = vmatmul.bf16.gmra.mxu0 %v4989
      %v5019 = vpop.f32.mrf.mxu0
      %v5020 = vadd.f32 0.0, %v5019
      %v5021 = vpop.f32.mrf.mxu0
      %5022 = vdwg.mxu0
      %v5023 = vadd.f32 %v4954, %v5007
      %v5024 = vadd.f32 %v4955, %v5020
      %s5025 = scalar_lea.vmem %s6, 1200
      %v5026 = vld [vmem:[%s5025] sm:$0xff]
      %v5027 = vld [vmem:[%s5025 + $0x8] sm:$0xff]
      %v5028 = vld [vmem:[%s5025 + $0x10] sm:$0xff]
      %v5029 = vld [vmem:[%s5025 + $0x18] sm:$0xff]
      %v5030 = vld [vmem:[%s5025 + $0x20] sm:$0x33]
      %v5031 = vrot.slane %v4615, 3
      %v5037 = vunpack.c.l.b16 %v5026
      %v5038 = vunpack.c.h.b16 %v5026
      %v5039 = vunpack.c.l.b16 %v5027
      %v5040 = vunpack.c.h.b16 %v5027
      %v5041 = vunpack.c.l.b16 %v5028
      %v5042 = vunpack.c.h.b16 %v5028
      %v5043 = vunpack.c.l.b16 %v5029
      %v5044 = vunpack.c.h.b16 %v5029
      %v5045 = vunpack.c.l.b16 %v5030
      %v5046 = vunpack.c.h.b16 %v5030
      %v5047 = vpack.c.b16 %v5039, %v5037
      %v5048 = vpack.c.b16 %v5040, %v5038
      %v5049 = vpack.c.b16 %v5043, %v5041
      %v5050 = vpack.c.b16 %v5044, %v5042
      %v5051 = vpack.c.b16 %v5045, %v5045
      %v5052 = vpack.c.b16 %v5046, %v5046
      %v5058 = vsel %vm2991, %v5031, 0
      %v5061 = vsel %vm1710, %v5051, 0
      %v5064 = vsel %vm1710, %v5052, 0
      %5066 = vmatpush.bf16.msra.mxu0 0
      %5067 = vmatpush.bf16.msra.mxu0 0
      %5068 = vmatpush.bf16.msra.mxu0 0
      %5069 = vmatpush.bf16.msra.mxu0 0
      %5070 = vmatpush.bf16.msra.mxu0 0
      %5071 = vmatpush.bf16.msra.mxu0 %v5061
      %5072 = vmatpush.bf16.msra.mxu0 %v5049
      %5073 = vmatpush.bf16.msra.mxu0 %v5047
      %5074 = vmatmul.bf16.gmra.mxu0 %v5058
      %v5075 = vpop.f32.mrf.mxu0
      %v5076 = vadd.f32 0.0, %v5075
      %v5077 = vpop.f32.mrf.mxu0
      %5078 = vdwg.mxu0
      %5079 = vmatpush.bf16.msra.mxu0 0
      %5080 = vmatpush.bf16.msra.mxu0 0
      %5081 = vmatpush.bf16.msra.mxu0 0
      %5082 = vmatpush.bf16.msra.mxu0 0
      %5083 = vmatpush.bf16.msra.mxu0 0
      %5084 = vmatpush.bf16.msra.mxu0 %v5064
      %5085 = vmatpush.bf16.msra.mxu0 %v5050
      %5086 = vmatpush.bf16.msra.mxu0 %v5048
      %5087 = vmatmul.bf16.gmra.mxu0 %v5058
      %v5088 = vpop.f32.mrf.mxu0
      %v5089 = vadd.f32 0.0, %v5088
      %v5090 = vpop.f32.mrf.mxu0
      %5091 = vdwg.mxu0
      %v5092 = vadd.f32 %v5023, %v5076
      %v5093 = vadd.f32 %v5024, %v5089
      %s5094 = scalar_lea.vmem %s6, 1240
      %v5095 = vld [vmem:[%s5094] sm:$0xff]
      %v5096 = vld [vmem:[%s5094 + $0x8] sm:$0xff]
      %v5097 = vld [vmem:[%s5094 + $0x10] sm:$0xff]
      %v5098 = vld [vmem:[%s5094 + $0x18] sm:$0xff]
      %v5099 = vld [vmem:[%s5094 + $0x20] sm:$0x33]
      %v5100 = vrot.slane %v4684, 3
      %v5106 = vunpack.c.l.b16 %v5095
      %v5107 = vunpack.c.h.b16 %v5095
      %v5108 = vunpack.c.l.b16 %v5096
      %v5109 = vunpack.c.h.b16 %v5096
      %v5110 = vunpack.c.l.b16 %v5097
      %v5111 = vunpack.c.h.b16 %v5097
      %v5112 = vunpack.c.l.b16 %v5098
      %v5113 = vunpack.c.h.b16 %v5098
      %v5114 = vunpack.c.l.b16 %v5099
      %v5115 = vunpack.c.h.b16 %v5099
      %v5116 = vpack.c.b16 %v5108, %v5106
      %v5117 = vpack.c.b16 %v5109, %v5107
      %v5118 = vpack.c.b16 %v5112, %v5110
      %v5119 = vpack.c.b16 %v5113, %v5111
      %v5120 = vpack.c.b16 %v5114, %v5114
      %v5121 = vpack.c.b16 %v5115, %v5115
      %v5127 = vsel %vm2991, %v5100, 0
      %v5130 = vsel %vm1710, %v5120, 0
      %v5133 = vsel %vm1710, %v5121, 0
      %5135 = vmatpush.bf16.msra.mxu0 0
      %5136 = vmatpush.bf16.msra.mxu0 0
      %5137 = vmatpush.bf16.msra.mxu0 0
      %5138 = vmatpush.bf16.msra.mxu0 0
      %5139 = vmatpush.bf16.msra.mxu0 0
      %5140 = vmatpush.bf16.msra.mxu0 %v5130
      %5141 = vmatpush.bf16.msra.mxu0 %v5118
      %5142 = vmatpush.bf16.msra.mxu0 %v5116
      %5143 = vmatmul.bf16.gmra.mxu0 %v5127
      %v5144 = vpop.f32.mrf.mxu0
      %v5145 = vadd.f32 0.0, %v5144
      %v5146 = vpop.f32.mrf.mxu0
      %5147 = vdwg.mxu0
      %5148 = vmatpush.bf16.msra.mxu0 0
      %5149 = vmatpush.bf16.msra.mxu0 0
      %5150 = vmatpush.bf16.msra.mxu0 0
      %5151 = vmatpush.bf16.msra.mxu0 0
      %5152 = vmatpush.bf16.msra.mxu0 0
      %5153 = vmatpush.bf16.msra.mxu0 %v5133
      %5154 = vmatpush.bf16.msra.mxu0 %v5119
      %5155 = vmatpush.bf16.msra.mxu0 %v5117
      %5156 = vmatmul.bf16.gmra.mxu0 %v5127
      %v5157 = vpop.f32.mrf.mxu0
      %v5158 = vadd.f32 0.0, %v5157
      %v5159 = vpop.f32.mrf.mxu0
      %5160 = vdwg.mxu0
      %v5161 = vadd.f32 %v5092, %v5145
      %v5162 = vadd.f32 %v5093, %v5158
      %v5163 = vld [vmem:[%s7] sm:$0x3]
      %v5165 = vperm.slane %v5163, 0
      %v5166 = vperm.slane %v5163, 1
      %v5169 = vadd.f32 %v5161, %v5165
      %v5170 = vadd.f32 %v5162, %v5166
      %v5171 = vmax.f32 %v5169, 0.0
      %v5172 = vmax.f32 %v5170, 0.0
      %v5173 = vld [vmem:[%s8] sm:$0xf]
      %v5174 = vld [vmem:[%s8 + $0x4] sm:$0xf]
      %v5175 = vld [vmem:[%s8 + $0x8] sm:$0xf]
      %v5176 = vld [vmem:[%s8 + $0xc] sm:$0xf]
      %v5177 = vld [vmem:[%s8 + $0x10] sm:$0xf]
      %v5178 = vld [vmem:[%s8 + $0x14] sm:$0xf]
      %v5179 = vld [vmem:[%s8 + $0x18] sm:$0xf]
      %v5180 = vld [vmem:[%s8 + $0x1c] sm:$0xf]
      %v5181 = vld [vmem:[%s8 + $0x20] sm:$0xf]
      %v5182 = vld [vmem:[%s8 + $0x24] sm:$0xf]
      %v5183 = vld [vmem:[%s8 + $0x28] sm:$0xf]
      %v5184 = vld [vmem:[%s8 + $0x2c] sm:$0xf]
      %v5185 = vld [vmem:[%s8 + $0x30] sm:$0xf]
      %v5186 = vld [vmem:[%s8 + $0x34] sm:$0xf]
      %v5187 = vld [vmem:[%s8 + $0x38] sm:$0xf]
      %v5188 = vld [vmem:[%s8 + $0x3c] sm:$0xf]
      %v5189 = vld [vmem:[%s8 + $0x40] sm:$0xf]
      %v5190 = vld [vmem:[%s8 + $0x44] sm:$0xf]
      %v5191 = vld [vmem:[%s8 + $0x48] sm:$0xf]
      %v5192 = vld [vmem:[%s8 + $0x4c] sm:$0xf]
      %v5193 = vld [vmem:[%s8 + $0x50] sm:$0xf]
      %v5194 = vld [vmem:[%s8 + $0x54] sm:$0xf]
      %v5195 = vld [vmem:[%s8 + $0x58] sm:$0xf]
      %v5196 = vld [vmem:[%s8 + $0x5c] sm:$0xf]
      %v5197 = vld [vmem:[%s8 + $0x60] sm:$0xf]
      %v5198 = vld [vmem:[%s8 + $0x64] sm:$0xf]
      %v5199 = vld [vmem:[%s8 + $0x68] sm:$0xf]
      %v5200 = vld [vmem:[%s8 + $0x6c] sm:$0xf]
      %v5201 = vld [vmem:[%s8 + $0x70] sm:$0xf]
      %v5202 = vld [vmem:[%s8 + $0x74] sm:$0xf]
      %v5203 = vld [vmem:[%s8 + $0x78] sm:$0xf]
      %v5204 = vld [vmem:[%s8 + $0x7c] sm:$0xf]
      %v5205 = vpack.c.bf16 %v5171, %v5171
      %v5206 = vpack.c.bf16 %v5172, %v5172
      %v5207 = vld [vmem:[%s9] sm:$0x1]
      %v5240 = vunpack.c.l.b16 %v5173
      %v5241 = vunpack.c.l.b16 %v5174
      %v5242 = vunpack.c.l.b16 %v5175
      %v5243 = vunpack.c.l.b16 %v5176
      %v5244 = vunpack.c.l.b16 %v5177
      %v5245 = vunpack.c.l.b16 %v5178
      %v5246 = vunpack.c.l.b16 %v5179
      %v5247 = vunpack.c.l.b16 %v5180
      %v5248 = vunpack.c.l.b16 %v5181
      %v5249 = vunpack.c.l.b16 %v5182
      %v5250 = vunpack.c.l.b16 %v5183
      %v5251 = vunpack.c.l.b16 %v5184
      %v5252 = vunpack.c.l.b16 %v5185
      %v5253 = vunpack.c.l.b16 %v5186
      %v5254 = vunpack.c.l.b16 %v5187
      %v5255 = vunpack.c.l.b16 %v5188
      %v5256 = vunpack.c.l.b16 %v5189
      %v5257 = vunpack.c.l.b16 %v5190
      %v5258 = vunpack.c.l.b16 %v5191
      %v5259 = vunpack.c.l.b16 %v5192
      %v5260 = vunpack.c.l.b16 %v5193
      %v5261 = vunpack.c.l.b16 %v5194
      %v5262 = vunpack.c.l.b16 %v5195
      %v5263 = vunpack.c.l.b16 %v5196
      %v5264 = vunpack.c.l.b16 %v5197
      %v5265 = vunpack.c.l.b16 %v5198
      %v5266 = vunpack.c.l.b16 %v5199
      %v5267 = vunpack.c.l.b16 %v5200
      %v5268 = vunpack.c.l.b16 %v5201
      %v5269 = vunpack.c.l.b16 %v5202
      %v5270 = vunpack.c.l.b16 %v5203
      %v5271 = vunpack.c.l.b16 %v5204
      %v5272 = vpack.c.b16 %v5241, %v5240
      %v5273 = vpack.c.b16 %v5243, %v5242
      %v5274 = vpack.c.b16 %v5245, %v5244
      %v5275 = vpack.c.b16 %v5247, %v5246
      %v5276 = vpack.c.b16 %v5249, %v5248
      %v5277 = vpack.c.b16 %v5251, %v5250
      %v5278 = vpack.c.b16 %v5253, %v5252
      %v5279 = vpack.c.b16 %v5255, %v5254
      %v5280 = vpack.c.b16 %v5257, %v5256
      %v5281 = vpack.c.b16 %v5259, %v5258
      %v5282 = vpack.c.b16 %v5261, %v5260
      %v5283 = vpack.c.b16 %v5263, %v5262
      %v5284 = vpack.c.b16 %v5265, %v5264
      %v5285 = vpack.c.b16 %v5267, %v5266
      %v5286 = vpack.c.b16 %v5269, %v5268
      %v5287 = vpack.c.b16 %v5271, %v5270
      %5304 = vmatpush.bf16.msra.mxu0 %v5279
      %5305 = vmatpush.bf16.msra.mxu0 %v5278
      %5306 = vmatpush.bf16.msra.mxu0 %v5277
      %5307 = vmatpush.bf16.msra.mxu0 %v5276
      %5308 = vmatpush.bf16.msra.mxu0 %v5275
      %5309 = vmatpush.bf16.msra.mxu0 %v5274
      %5310 = vmatpush.bf16.msra.mxu0 %v5273
      %5311 = vmatpush.bf16.msra.mxu0 %v5272
      %5312 = vmatmul.bf16.gmra.mxu0 %v5205
      %v5313 = vpop.f32.mrf.mxu0
      %v5314 = vadd.f32 %v5207, %v5313
      %v5315 = vpop.f32.mrf.mxu0
      %5316 = vdwg.mxu0
      %5317 = vmatpush.bf16.msra.mxu0 %v5287
      %5318 = vmatpush.bf16.msra.mxu0 %v5286
      %5319 = vmatpush.bf16.msra.mxu0 %v5285
      %5320 = vmatpush.bf16.msra.mxu0 %v5284
      %5321 = vmatpush.bf16.msra.mxu0 %v5283
      %5322 = vmatpush.bf16.msra.mxu0 %v5282
      %5323 = vmatpush.bf16.msra.mxu0 %v5281
      %5324 = vmatpush.bf16.msra.mxu0 %v5280
      %5325 = vmatmul.bf16.gmra.mxu0 %v5206
      %v5326 = vpop.f32.mrf.mxu0
      %v5327 = vadd.f32 %v5314, %v5326
      %v5328 = vpop.f32.mrf.mxu0
      %5329 = vdwg.mxu0
      %v5330 = vmax.f32 %v5327, 0.0
      %v5331 = vld [vmem:[%s10] sm:$0xff]
      %v5332 = vld [vmem:[%s10 + $0x8] sm:$0xff]
      %v5333 = vld [vmem:[%s10 + $0x10] sm:$0xff]
      %v5334 = vld [vmem:[%s10 + $0x18] sm:$0xff]
      %v5335 = vld [vmem:[%s10 + $0x20] sm:$0xff]
      %v5336 = vld [vmem:[%s10 + $0x28] sm:$0xff]
      %v5337 = vld [vmem:[%s10 + $0x30] sm:$0xff]
      %v5338 = vld [vmem:[%s10 + $0x38] sm:$0xff]
      %v5339 = vld [vmem:[%s10 + $0x40] sm:$0xff]
      %v5340 = vld [vmem:[%s10 + $0x48] sm:$0xf]
      %v5341 = vld [vmem:[%s10 + $0x4c] sm:$0xff]
      %v5342 = vld [vmem:[%s10 + $0x54] sm:$0xff]
      %v5343 = vld [vmem:[%s10 + $0x5c] sm:$0xff]
      %v5344 = vld [vmem:[%s10 + $0x64] sm:$0xff]
      %v5345 = vld [vmem:[%s10 + $0x6c] sm:$0xff]
      %v5346 = vld [vmem:[%s10 + $0x74] sm:$0xff]
      %v5347 = vld [vmem:[%s10 + $0x7c] sm:$0xff]
      %v5348 = vld [vmem:[%s10 + $0x84] sm:$0xff]
      %v5349 = vld [vmem:[%s10 + $0x8c] sm:$0xff]
      %v5350 = vld [vmem:[%s10 + $0x94] sm:$0xf]
      %v5351 = vld [vmem:[%s10 + $0x98] sm:$0xff]
      %v5352 = vld [vmem:[%s10 + $0xa0] sm:$0xff]
      %v5353 = vld [vmem:[%s10 + $0xa8] sm:$0xff]
      %v5354 = vld [vmem:[%s10 + $0xb0] sm:$0xff]
      %v5355 = vld [vmem:[%s10 + $0xb8] sm:$0xff]
      %v5356 = vld [vmem:[%s10 + $0xc0] sm:$0xff]
      %v5357 = vld [vmem:[%s10 + $0xc8] sm:$0xff]
      %v5358 = vld [vmem:[%s10 + $0xd0] sm:$0xff]
      %v5359 = vld [vmem:[%s10 + $0xd8] sm:$0xff]
      %v5360 = vld [vmem:[%s10 + $0xe0] sm:$0xf]
      %v5361 = vld [vmem:[%s10 + $0xe4] sm:$0xff]
      %v5362 = vld [vmem:[%s10 + $0xec] sm:$0xff]
      %v5363 = vld [vmem:[%s10 + $0xf4] sm:$0xff]
      %v5364 = vld [vmem:[%s10 + $0xfc] sm:$0xff]
      %v5365 = vld [vmem:[%s10 + $0x104] sm:$0xff]
      %v5366 = vld [vmem:[%s10 + $0x10c] sm:$0xff]
      %v5367 = vld [vmem:[%s10 + $0x114] sm:$0xff]
      %v5368 = vld [vmem:[%s10 + $0x11c] sm:$0xff]
      %v5369 = vld [vmem:[%s10 + $0x124] sm:$0xff]
      %v5370 = vld [vmem:[%s10 + $0x12c] sm:$0xf]
      %v5371 = vld [vmem:[%s10 + $0x130] sm:$0xff]
      %v5372 = vld [vmem:[%s10 + $0x138] sm:$0xff]
      %v5373 = vld [vmem:[%s10 + $0x140] sm:$0xff]
      %v5374 = vld [vmem:[%s10 + $0x148] sm:$0xff]
      %v5375 = vld [vmem:[%s10 + $0x150] sm:$0xff]
      %v5376 = vld [vmem:[%s10 + $0x158] sm:$0xff]
      %v5377 = vld [vmem:[%s10 + $0x160] sm:$0xff]
      %v5378 = vld [vmem:[%s10 + $0x168] sm:$0xff]
      %v5379 = vld [vmem:[%s10 + $0x170] sm:$0xff]
      %v5380 = vld [vmem:[%s10 + $0x178] sm:$0xf]
      %v5381 = vld [vmem:[%s10 + $0x17c] sm:$0xff]
      %v5382 = vld [vmem:[%s10 + $0x184] sm:$0xff]
      %v5383 = vld [vmem:[%s10 + $0x18c] sm:$0xff]
      %v5384 = vld [vmem:[%s10 + $0x194] sm:$0xff]
      %v5385 = vld [vmem:[%s10 + $0x19c] sm:$0xff]
      %v5386 = vld [vmem:[%s10 + $0x1a4] sm:$0xff]
      %v5387 = vld [vmem:[%s10 + $0x1ac] sm:$0xff]
      %v5388 = vld [vmem:[%s10 + $0x1b4] sm:$0xff]
      %v5389 = vld [vmem:[%s10 + $0x1bc] sm:$0xff]
      %v5390 = vld [vmem:[%s10 + $0x1c4] sm:$0xf]
      %v5391 = vld [vmem:[%s10 + $0x1c8] sm:$0xff]
      %v5392 = vld [vmem:[%s10 + $0x1d0] sm:$0xff]
      %v5393 = vld [vmem:[%s10 + $0x1d8] sm:$0xff]
      %v5394 = vld [vmem:[%s10 + $0x1e0] sm:$0xff]
      %v5395 = vld [vmem:[%s10 + $0x1e8] sm:$0xff]
      %v5396 = vld [vmem:[%s10 + $0x1f0] sm:$0xff]
      %v5397 = vld [vmem:[%s10 + $0x1f8] sm:$0xff]
      %v5398 = vld [vmem:[%s10 + $0x200] sm:$0xff]
      %v5399 = vld [vmem:[%s10 + $0x208] sm:$0xff]
      %v5400 = vld [vmem:[%s10 + $0x210] sm:$0xf]
      %v5401 = vld [vmem:[%s10 + $0x214] sm:$0xff]
      %v5402 = vld [vmem:[%s10 + $0x21c] sm:$0xff]
      %v5403 = vld [vmem:[%s10 + $0x224] sm:$0xff]
      %v5404 = vld [vmem:[%s10 + $0x22c] sm:$0xff]
      %v5405 = vld [vmem:[%s10 + $0x234] sm:$0xff]
      %v5406 = vld [vmem:[%s10 + $0x23c] sm:$0xff]
      %v5407 = vld [vmem:[%s10 + $0x244] sm:$0xff]
      %v5408 = vld [vmem:[%s10 + $0x24c] sm:$0xff]
      %v5409 = vld [vmem:[%s10 + $0x254] sm:$0xff]
      %v5410 = vld [vmem:[%s10 + $0x25c] sm:$0xf]
      %v5411 = vld [vmem:[%s10 + $0x260] sm:$0xff]
      %v5412 = vld [vmem:[%s10 + $0x268] sm:$0xff]
      %v5413 = vld [vmem:[%s10 + $0x270] sm:$0xff]
      %v5414 = vld [vmem:[%s10 + $0x278] sm:$0xff]
      %v5415 = vld [vmem:[%s10 + $0x280] sm:$0xff]
      %v5416 = vld [vmem:[%s10 + $0x288] sm:$0xff]
      %v5417 = vld [vmem:[%s10 + $0x290] sm:$0xff]
      %v5418 = vld [vmem:[%s10 + $0x298] sm:$0xff]
      %v5419 = vld [vmem:[%s10 + $0x2a0] sm:$0xff]
      %v5420 = vld [vmem:[%s10 + $0x2a8] sm:$0xf]
      %v5421 = vld [vmem:[%s10 + $0x2ac] sm:$0xff]
      %v5422 = vld [vmem:[%s10 + $0x2b4] sm:$0xff]
      %v5423 = vld [vmem:[%s10 + $0x2bc] sm:$0xff]
      %v5424 = vld [vmem:[%s10 + $0x2c4] sm:$0xff]
      %v5425 = vld [vmem:[%s10 + $0x2cc] sm:$0xff]
      %v5426 = vld [vmem:[%s10 + $0x2d4] sm:$0xff]
      %v5427 = vld [vmem:[%s10 + $0x2dc] sm:$0xff]
      %v5428 = vld [vmem:[%s10 + $0x2e4] sm:$0xff]
      %v5429 = vld [vmem:[%s10 + $0x2ec] sm:$0xff]
      %v5430 = vld [vmem:[%s10 + $0x2f4] sm:$0xf]
      %v5431 = vld [vmem:[%s10 + $0x2f8] sm:$0xff]
      %v5432 = vld [vmem:[%s10 + $0x300] sm:$0xff]
      %v5433 = vld [vmem:[%s10 + $0x308] sm:$0xff]
      %v5434 = vld [vmem:[%s10 + $0x310] sm:$0xff]
      %v5435 = vld [vmem:[%s10 + $0x318] sm:$0xff]
      %v5436 = vld [vmem:[%s10 + $0x320] sm:$0xff]
      %v5437 = vld [vmem:[%s10 + $0x328] sm:$0xff]
      %v5438 = vld [vmem:[%s10 + $0x330] sm:$0xff]
      %v5439 = vld [vmem:[%s10 + $0x338] sm:$0xff]
      %v5440 = vld [vmem:[%s10 + $0x340] sm:$0xf]
      %v5441 = vld [vmem:[%s10 + $0x344] sm:$0xff]
      %v5442 = vld [vmem:[%s10 + $0x34c] sm:$0xff]
      %v5443 = vld [vmem:[%s10 + $0x354] sm:$0xff]
      %v5444 = vld [vmem:[%s10 + $0x35c] sm:$0xff]
      %v5445 = vld [vmem:[%s10 + $0x364] sm:$0xff]
      %v5446 = vld [vmem:[%s10 + $0x36c] sm:$0xff]
      %v5447 = vld [vmem:[%s10 + $0x374] sm:$0xff]
      %v5448 = vld [vmem:[%s10 + $0x37c] sm:$0xff]
      %v5449 = vld [vmem:[%s10 + $0x384] sm:$0xff]
      %v5450 = vld [vmem:[%s10 + $0x38c] sm:$0xf]
      %v5451 = vld [vmem:[%s10 + $0x390] sm:$0x33]
      %v5452 = vld [vmem:[%s10 + $0x398] sm:$0x33]
      %v5453 = vld [vmem:[%s10 + $0x3a0] sm:$0x33]
      %v5454 = vld [vmem:[%s10 + $0x3a8] sm:$0x33]
      %v5455 = vld [vmem:[%s10 + $0x3b0] sm:$0x33]
      %v5456 = vld [vmem:[%s10 + $0x3b8] sm:$0x33]
      %v5457 = vld [vmem:[%s10 + $0x3c0] sm:$0x33]
      %v5458 = vld [vmem:[%s10 + $0x3c8] sm:$0x33]
      %v5459 = vld [vmem:[%s10 + $0x3d0] sm:$0x33]
      %v5460 = vld [vmem:[%s10 + $0x3d8] sm:$0x3]
      %v5461 = vpack.c.bf16 %v5330, %v5330
      %v5462 = vld [vmem:[%s11] sm:$0xff]
      %v5463 = vld [vmem:[%s11 + $0x8] sm:$0xff]
      %v5464 = vld [vmem:[%s11 + $0x10] sm:$0x7]
      %v5595 = vunpack.c.l.b16 %v5331
      %v5596 = vunpack.c.h.b16 %v5331
      %v5597 = vunpack.c.l.b16 %v5332
      %v5598 = vunpack.c.h.b16 %v5332
      %v5599 = vunpack.c.l.b16 %v5333
      %v5600 = vunpack.c.h.b16 %v5333
      %v5601 = vunpack.c.l.b16 %v5334
      %v5602 = vunpack.c.h.b16 %v5334
      %v5603 = vunpack.c.l.b16 %v5335
      %v5604 = vunpack.c.h.b16 %v5335
      %v5605 = vunpack.c.l.b16 %v5336
      %v5606 = vunpack.c.h.b16 %v5336
      %v5607 = vunpack.c.l.b16 %v5337
      %v5608 = vunpack.c.h.b16 %v5337
      %v5609 = vunpack.c.l.b16 %v5338
      %v5610 = vunpack.c.h.b16 %v5338
      %v5611 = vunpack.c.l.b16 %v5339
      %v5612 = vunpack.c.h.b16 %v5339
      %v5613 = vunpack.c.l.b16 %v5340
      %v5614 = vunpack.c.l.b16 %v5341
      %v5615 = vunpack.c.h.b16 %v5341
      %v5616 = vunpack.c.l.b16 %v5342
      %v5617 = vunpack.c.h.b16 %v5342
      %v5618 = vunpack.c.l.b16 %v5343
      %v5619 = vunpack.c.h.b16 %v5343
      %v5620 = vunpack.c.l.b16 %v5344
      %v5621 = vunpack.c.h.b16 %v5344
      %v5622 = vunpack.c.l.b16 %v5345
      %v5623 = vunpack.c.h.b16 %v5345
      %v5624 = vunpack.c.l.b16 %v5346
      %v5625 = vunpack.c.h.b16 %v5346
      %v5626 = vunpack.c.l.b16 %v5347
      %v5627 = vunpack.c.h.b16 %v5347
      %v5628 = vunpack.c.l.b16 %v5348
      %v5629 = vunpack.c.h.b16 %v5348
      %v5630 = vunpack.c.l.b16 %v5349
      %v5631 = vunpack.c.h.b16 %v5349
      %v5632 = vunpack.c.l.b16 %v5350
      %v5633 = vunpack.c.l.b16 %v5351
      %v5634 = vunpack.c.h.b16 %v5351
      %v5635 = vunpack.c.l.b16 %v5352
      %v5636 = vunpack.c.h.b16 %v5352
      %v5637 = vunpack.c.l.b16 %v5353
      %v5638 = vunpack.c.h.b16 %v5353
      %v5639 = vunpack.c.l.b16 %v5354
      %v5640 = vunpack.c.h.b16 %v5354
      %v5641 = vunpack.c.l.b16 %v5355
      %v5642 = vunpack.c.h.b16 %v5355
      %v5643 = vunpack.c.l.b16 %v5356
      %v5644 = vunpack.c.h.b16 %v5356
      %v5645 = vunpack.c.l.b16 %v5357
      %v5646 = vunpack.c.h.b16 %v5357
      %v5647 = vunpack.c.l.b16 %v5358
      %v5648 = vunpack.c.h.b16 %v5358
      %v5649 = vunpack.c.l.b16 %v5359
      %v5650 = vunpack.c.h.b16 %v5359
      %v5651 = vunpack.c.l.b16 %v5360
      %v5652 = vunpack.c.l.b16 %v5361
      %v5653 = vunpack.c.h.b16 %v5361
      %v5654 = vunpack.c.l.b16 %v5362
      %v5655 = vunpack.c.h.b16 %v5362
      %v5656 = vunpack.c.l.b16 %v5363
      %v5657 = vunpack.c.h.b16 %v5363
      %v5658 = vunpack.c.l.b16 %v5364
      %v5659 = vunpack.c.h.b16 %v5364
      %v5660 = vunpack.c.l.b16 %v5365
      %v5661 = vunpack.c.h.b16 %v5365
      %v5662 = vunpack.c.l.b16 %v5366
      %v5663 = vunpack.c.h.b16 %v5366
      %v5664 = vunpack.c.l.b16 %v5367
      %v5665 = vunpack.c.h.b16 %v5367
      %v5666 = vunpack.c.l.b16 %v5368
      %v5667 = vunpack.c.h.b16 %v5368
      %v5668 = vunpack.c.l.b16 %v5369
      %v5669 = vunpack.c.h.b16 %v5369
      %v5670 = vunpack.c.l.b16 %v5370
      %v5671 = vunpack.c.l.b16 %v5371
      %v5672 = vunpack.c.h.b16 %v5371
      %v5673 = vunpack.c.l.b16 %v5372
      %v5674 = vunpack.c.h.b16 %v5372
      %v5675 = vunpack.c.l.b16 %v5373
      %v5676 = vunpack.c.h.b16 %v5373
      %v5677 = vunpack.c.l.b16 %v5374
      %v5678 = vunpack.c.h.b16 %v5374
      %v5679 = vunpack.c.l.b16 %v5375
      %v5680 = vunpack.c.h.b16 %v5375
      %v5681 = vunpack.c.l.b16 %v5376
      %v5682 = vunpack.c.h.b16 %v5376
      %v5683 = vunpack.c.l.b16 %v5377
      %v5684 = vunpack.c.h.b16 %v5377
      %v5685 = vunpack.c.l.b16 %v5378
      %v5686 = vunpack.c.h.b16 %v5378
      %v5687 = vunpack.c.l.b16 %v5379
      %v5688 = vunpack.c.h.b16 %v5379
      %v5689 = vunpack.c.l.b16 %v5380
      %v5690 = vunpack.c.l.b16 %v5381
      %v5691 = vunpack.c.h.b16 %v5381
      %v5692 = vunpack.c.l.b16 %v5382
      %v5693 = vunpack.c.h.b16 %v5382
      %v5694 = vunpack.c.l.b16 %v5383
      %v5695 = vunpack.c.h.b16 %v5383
      %v5696 = vunpack.c.l.b16 %v5384
      %v5697 = vunpack.c.h.b16 %v5384
      %v5698 = vunpack.c.l.b16 %v5385
      %v5699 = vunpack.c.h.b16 %v5385
      %v5700 = vunpack.c.l.b16 %v5386
      %v5701 = vunpack.c.h.b16 %v5386
      %v5702 = vunpack.c.l.b16 %v5387
      %v5703 = vunpack.c.h.b16 %v5387
      %v5704 = vunpack.c.l.b16 %v5388
      %v5705 = vunpack.c.h.b16 %v5388
      %v5706 = vunpack.c.l.b16 %v5389
      %v5707 = vunpack.c.h.b16 %v5389
      %v5708 = vunpack.c.l.b16 %v5390
      %v5709 = vunpack.c.l.b16 %v5391
      %v5710 = vunpack.c.h.b16 %v5391
      %v5711 = vunpack.c.l.b16 %v5392
      %v5712 = vunpack.c.h.b16 %v5392
      %v5713 = vunpack.c.l.b16 %v5393
      %v5714 = vunpack.c.h.b16 %v5393
      %v5715 = vunpack.c.l.b16 %v5394
      %v5716 = vunpack.c.h.b16 %v5394
      %v5717 = vunpack.c.l.b16 %v5395
      %v5718 = vunpack.c.h.b16 %v5395
      %v5719 = vunpack.c.l.b16 %v5396
      %v5720 = vunpack.c.h.b16 %v5396
      %v5721 = vunpack.c.l.b16 %v5397
      %v5722 = vunpack.c.h.b16 %v5397
      %v5723 = vunpack.c.l.b16 %v5398
      %v5724 = vunpack.c.h.b16 %v5398
      %v5725 = vunpack.c.l.b16 %v5399
      %v5726 = vunpack.c.h.b16 %v5399
      %v5727 = vunpack.c.l.b16 %v5400
      %v5728 = vunpack.c.l.b16 %v5401
      %v5729 = vunpack.c.h.b16 %v5401
      %v5730 = vunpack.c.l.b16 %v5402
      %v5731 = vunpack.c.h.b16 %v5402
      %v5732 = vunpack.c.l.b16 %v5403
      %v5733 = vunpack.c.h.b16 %v5403
      %v5734 = vunpack.c.l.b16 %v5404
      %v5735 = vunpack.c.h.b16 %v5404
      %v5736 = vunpack.c.l.b16 %v5405
      %v5737 = vunpack.c.h.b16 %v5405
      %v5738 = vunpack.c.l.b16 %v5406
      %v5739 = vunpack.c.h.b16 %v5406
      %v5740 = vunpack.c.l.b16 %v5407
      %v5741 = vunpack.c.h.b16 %v5407
      %v5742 = vunpack.c.l.b16 %v5408
      %v5743 = vunpack.c.h.b16 %v5408
      %v5744 = vunpack.c.l.b16 %v5409
      %v5745 = vunpack.c.h.b16 %v5409
      %v5746 = vunpack.c.l.b16 %v5410
      %v5747 = vunpack.c.l.b16 %v5411
      %v5748 = vunpack.c.h.b16 %v5411
      %v5749 = vunpack.c.l.b16 %v5412
      %v5750 = vunpack.c.h.b16 %v5412
      %v5751 = vunpack.c.l.b16 %v5413
      %v5752 = vunpack.c.h.b16 %v5413
      %v5753 = vunpack.c.l.b16 %v5414
      %v5754 = vunpack.c.h.b16 %v5414
      %v5755 = vunpack.c.l.b16 %v5415
      %v5756 = vunpack.c.h.b16 %v5415
      %v5757 = vunpack.c.l.b16 %v5416
      %v5758 = vunpack.c.h.b16 %v5416
      %v5759 = vunpack.c.l.b16 %v5417
      %v5760 = vunpack.c.h.b16 %v5417
      %v5761 = vunpack.c.l.b16 %v5418
      %v5762 = vunpack.c.h.b16 %v5418
      %v5763 = vunpack.c.l.b16 %v5419
      %v5764 = vunpack.c.h.b16 %v5419
      %v5765 = vunpack.c.l.b16 %v5420
      %v5766 = vunpack.c.l.b16 %v5421
      %v5767 = vunpack.c.h.b16 %v5421
      %v5768 = vunpack.c.l.b16 %v5422
      %v5769 = vunpack.c.h.b16 %v5422
      %v5770 = vunpack.c.l.b16 %v5423
      %v5771 = vunpack.c.h.b16 %v5423
      %v5772 = vunpack.c.l.b16 %v5424
      %v5773 = vunpack.c.h.b16 %v5424
      %v5774 = vunpack.c.l.b16 %v5425
      %v5775 = vunpack.c.h.b16 %v5425
      %v5776 = vunpack.c.l.b16 %v5426
      %v5777 = vunpack.c.h.b16 %v5426
      %v5778 = vunpack.c.l.b16 %v5427
      %v5779 = vunpack.c.h.b16 %v5427
      %v5780 = vunpack.c.l.b16 %v5428
      %v5781 = vunpack.c.h.b16 %v5428
      %v5782 = vunpack.c.l.b16 %v5429
      %v5783 = vunpack.c.h.b16 %v5429
      %v5784 = vunpack.c.l.b16 %v5430
      %v5785 = vunpack.c.l.b16 %v5431
      %v5786 = vunpack.c.h.b16 %v5431
      %v5787 = vunpack.c.l.b16 %v5432
      %v5788 = vunpack.c.h.b16 %v5432
      %v5789 = vunpack.c.l.b16 %v5433
      %v5790 = vunpack.c.h.b16 %v5433
      %v5791 = vunpack.c.l.b16 %v5434
      %v5792 = vunpack.c.h.b16 %v5434
      %v5793 = vunpack.c.l.b16 %v5435
      %v5794 = vunpack.c.h.b16 %v5435
      %v5795 = vunpack.c.l.b16 %v5436
      %v5796 = vunpack.c.h.b16 %v5436
      %v5797 = vunpack.c.l.b16 %v5437
      %v5798 = vunpack.c.h.b16 %v5437
      %v5799 = vunpack.c.l.b16 %v5438
      %v5800 = vunpack.c.h.b16 %v5438
      %v5801 = vunpack.c.l.b16 %v5439
      %v5802 = vunpack.c.h.b16 %v5439
      %v5803 = vunpack.c.l.b16 %v5440
      %v5804 = vunpack.c.l.b16 %v5441
      %v5805 = vunpack.c.h.b16 %v5441
      %v5806 = vunpack.c.l.b16 %v5442
      %v5807 = vunpack.c.h.b16 %v5442
      %v5808 = vunpack.c.l.b16 %v5443
      %v5809 = vunpack.c.h.b16 %v5443
      %v5810 = vunpack.c.l.b16 %v5444
      %v5811 = vunpack.c.h.b16 %v5444
      %v5812 = vunpack.c.l.b16 %v5445
      %v5813 = vunpack.c.h.b16 %v5445
      %v5814 = vunpack.c.l.b16 %v5446
      %v5815 = vunpack.c.h.b16 %v5446
      %v5816 = vunpack.c.l.b16 %v5447
      %v5817 = vunpack.c.h.b16 %v5447
      %v5818 = vunpack.c.l.b16 %v5448
      %v5819 = vunpack.c.h.b16 %v5448
      %v5820 = vunpack.c.l.b16 %v5449
      %v5821 = vunpack.c.h.b16 %v5449
      %v5822 = vunpack.c.l.b16 %v5450
      %v5823 = vunpack.c.l.b16 %v5451
      %v5824 = vunpack.c.h.b16 %v5451
      %v5825 = vunpack.c.l.b16 %v5452
      %v5826 = vunpack.c.h.b16 %v5452
      %v5827 = vunpack.c.l.b16 %v5453
      %v5828 = vunpack.c.h.b16 %v5453
      %v5829 = vunpack.c.l.b16 %v5454
      %v5830 = vunpack.c.h.b16 %v5454
      %v5831 = vunpack.c.l.b16 %v5455
      %v5832 = vunpack.c.h.b16 %v5455
      %v5833 = vunpack.c.l.b16 %v5456
      %v5834 = vunpack.c.h.b16 %v5456
      %v5835 = vunpack.c.l.b16 %v5457
      %v5836 = vunpack.c.h.b16 %v5457
      %v5837 = vunpack.c.l.b16 %v5458
      %v5838 = vunpack.c.h.b16 %v5458
      %v5839 = vunpack.c.l.b16 %v5459
      %v5840 = vunpack.c.h.b16 %v5459
      %v5841 = vunpack.c.l.b16 %v5460
      %v5842 = vpack.c.b16 %v5614, %v5595
      %v5843 = vpack.c.b16 %v5615, %v5596
      %v5844 = vpack.c.b16 %v5616, %v5597
      %v5845 = vpack.c.b16 %v5617, %v5598
      %v5846 = vpack.c.b16 %v5618, %v5599
      %v5847 = vpack.c.b16 %v5619, %v5600
      %v5848 = vpack.c.b16 %v5620, %v5601
      %v5849 = vpack.c.b16 %v5621, %v5602
      %v5850 = vpack.c.b16 %v5622, %v5603
      %v5851 = vpack.c.b16 %v5623, %v5604
      %v5852 = vpack.c.b16 %v5624, %v5605
      %v5853 = vpack.c.b16 %v5625, %v5606
      %v5854 = vpack.c.b16 %v5626, %v5607
      %v5855 = vpack.c.b16 %v5627, %v5608
      %v5856 = vpack.c.b16 %v5628, %v5609
      %v5857 = vpack.c.b16 %v5629, %v5610
      %v5858 = vpack.c.b16 %v5630, %v5611
      %v5859 = vpack.c.b16 %v5631, %v5612
      %v5860 = vpack.c.b16 %v5632, %v5613
      %v5861 = vpack.c.b16 %v5652, %v5633
      %v5862 = vpack.c.b16 %v5653, %v5634
      %v5863 = vpack.c.b16 %v5654, %v5635
      %v5864 = vpack.c.b16 %v5655, %v5636
      %v5865 = vpack.c.b16 %v5656, %v5637
      %v5866 = vpack.c.b16 %v5657, %v5638
      %v5867 = vpack.c.b16 %v5658, %v5639
      %v5868 = vpack.c.b16 %v5659, %v5640
      %v5869 = vpack.c.b16 %v5660, %v5641
      %v5870 = vpack.c.b16 %v5661, %v5642
      %v5871 = vpack.c.b16 %v5662, %v5643
      %v5872 = vpack.c.b16 %v5663, %v5644
      %v5873 = vpack.c.b16 %v5664, %v5645
      %v5874 = vpack.c.b16 %v5665, %v5646
      %v5875 = vpack.c.b16 %v5666, %v5647
      %v5876 = vpack.c.b16 %v5667, %v5648
      %v5877 = vpack.c.b16 %v5668, %v5649
      %v5878 = vpack.c.b16 %v5669, %v5650
      %v5879 = vpack.c.b16 %v5670, %v5651
      %v5880 = vpack.c.b16 %v5690, %v5671
      %v5881 = vpack.c.b16 %v5691, %v5672
      %v5882 = vpack.c.b16 %v5692, %v5673
      %v5883 = vpack.c.b16 %v5693, %v5674
      %v5884 = vpack.c.b16 %v5694, %v5675
      %v5885 = vpack.c.b16 %v5695, %v5676
      %v5886 = vpack.c.b16 %v5696, %v5677
      %v5887 = vpack.c.b16 %v5697, %v5678
      %v5888 = vpack.c.b16 %v5698, %v5679
      %v5889 = vpack.c.b16 %v5699, %v5680
      %v5890 = vpack.c.b16 %v5700, %v5681
      %v5891 = vpack.c.b16 %v5701, %v5682
      %v5892 = vpack.c.b16 %v5702, %v5683
      %v5893 = vpack.c.b16 %v5703, %v5684
      %v5894 = vpack.c.b16 %v5704, %v5685
      %v5895 = vpack.c.b16 %v5705, %v5686
      %v5896 = vpack.c.b16 %v5706, %v5687
      %v5897 = vpack.c.b16 %v5707, %v5688
      %v5898 = vpack.c.b16 %v5708, %v5689
      %v5899 = vpack.c.b16 %v5728, %v5709
      %v5900 = vpack.c.b16 %v5729, %v5710
      %v5901 = vpack.c.b16 %v5730, %v5711
      %v5902 = vpack.c.b16 %v5731, %v5712
      %v5903 = vpack.c.b16 %v5732, %v5713
      %v5904 = vpack.c.b16 %v5733, %v5714
      %v5905 = vpack.c.b16 %v5734, %v5715
      %v5906 = vpack.c.b16 %v5735, %v5716
      %v5907 = vpack.c.b16 %v5736, %v5717
      %v5908 = vpack.c.b16 %v5737, %v5718
      %v5909 = vpack.c.b16 %v5738, %v5719
      %v5910 = vpack.c.b16 %v5739, %v5720
      %v5911 = vpack.c.b16 %v5740, %v5721
      %v5912 = vpack.c.b16 %v5741, %v5722
      %v5913 = vpack.c.b16 %v5742, %v5723
      %v5914 = vpack.c.b16 %v5743, %v5724
      %v5915 = vpack.c.b16 %v5744, %v5725
      %v5916 = vpack.c.b16 %v5745, %v5726
      %v5917 = vpack.c.b16 %v5746, %v5727
      %v5918 = vpack.c.b16 %v5766, %v5747
      %v5919 = vpack.c.b16 %v5767, %v5748
      %v5920 = vpack.c.b16 %v5768, %v5749
      %v5921 = vpack.c.b16 %v5769, %v5750
      %v5922 = vpack.c.b16 %v5770, %v5751
      %v5923 = vpack.c.b16 %v5771, %v5752
      %v5924 = vpack.c.b16 %v5772, %v5753
      %v5925 = vpack.c.b16 %v5773, %v5754
      %v5926 = vpack.c.b16 %v5774, %v5755
      %v5927 = vpack.c.b16 %v5775, %v5756
      %v5928 = vpack.c.b16 %v5776, %v5757
      %v5929 = vpack.c.b16 %v5777, %v5758
      %v5930 = vpack.c.b16 %v5778, %v5759
      %v5931 = vpack.c.b16 %v5779, %v5760
      %v5932 = vpack.c.b16 %v5780, %v5761
      %v5933 = vpack.c.b16 %v5781, %v5762
      %v5934 = vpack.c.b16 %v5782, %v5763
      %v5935 = vpack.c.b16 %v5783, %v5764
      %v5936 = vpack.c.b16 %v5784, %v5765
      %v5937 = vpack.c.b16 %v5804, %v5785
      %v5938 = vpack.c.b16 %v5805, %v5786
      %v5939 = vpack.c.b16 %v5806, %v5787
      %v5940 = vpack.c.b16 %v5807, %v5788
      %v5941 = vpack.c.b16 %v5808, %v5789
      %v5942 = vpack.c.b16 %v5809, %v5790
      %v5943 = vpack.c.b16 %v5810, %v5791
      %v5944 = vpack.c.b16 %v5811, %v5792
      %v5945 = vpack.c.b16 %v5812, %v5793
      %v5946 = vpack.c.b16 %v5813, %v5794
      %v5947 = vpack.c.b16 %v5814, %v5795
      %v5948 = vpack.c.b16 %v5815, %v5796
      %v5949 = vpack.c.b16 %v5816, %v5797
      %v5950 = vpack.c.b16 %v5817, %v5798
      %v5951 = vpack.c.b16 %v5818, %v5799
      %v5952 = vpack.c.b16 %v5819, %v5800
      %v5953 = vpack.c.b16 %v5820, %v5801
      %v5954 = vpack.c.b16 %v5821, %v5802
      %v5955 = vpack.c.b16 %v5822, %v5803
      %v5956 = vpack.c.b16 %v5823, %v5823
      %v5957 = vpack.c.b16 %v5824, %v5824
      %v5958 = vpack.c.b16 %v5825, %v5825
      %v5959 = vpack.c.b16 %v5826, %v5826
      %v5960 = vpack.c.b16 %v5827, %v5827
      %v5961 = vpack.c.b16 %v5828, %v5828
      %v5962 = vpack.c.b16 %v5829, %v5829
      %v5963 = vpack.c.b16 %v5830, %v5830
      %v5964 = vpack.c.b16 %v5831, %v5831
      %v5965 = vpack.c.b16 %v5832, %v5832
      %v5966 = vpack.c.b16 %v5833, %v5833
      %v5967 = vpack.c.b16 %v5834, %v5834
      %v5968 = vpack.c.b16 %v5835, %v5835
      %v5969 = vpack.c.b16 %v5836, %v5836
      %v5970 = vpack.c.b16 %v5837, %v5837
      %v5971 = vpack.c.b16 %v5838, %v5838
      %v5972 = vpack.c.b16 %v5839, %v5839
      %v5973 = vpack.c.b16 %v5840, %v5840
      %v5974 = vpack.c.b16 %v5841, %v5841
      %v6092 = vperm.slane %v5462, 0
      %v6093 = vperm.slane %v5462, 1
      %v6094 = vperm.slane %v5462, 2
      %v6095 = vperm.slane %v5462, 3
      %v6096 = vperm.slane %v5462, 4
      %v6097 = vperm.slane %v5462, 5
      %v6098 = vperm.slane %v5462, 6
      %v6099 = vperm.slane %v5462, 7
      %v6100 = vperm.slane %v5463, 0
      %v6101 = vperm.slane %v5463, 1
      %v6102 = vperm.slane %v5463, 2
      %v6103 = vperm.slane %v5463, 3
      %v6104 = vperm.slane %v5463, 4
      %v6105 = vperm.slane %v5463, 5
      %v6106 = vperm.slane %v5463, 6
      %v6107 = vperm.slane %v5463, 7
      %v6108 = vperm.slane %v5464, 0
      %v6109 = vperm.slane %v5464, 1
      %v6110 = vperm.slane %v5464, 2
      %vm6130 = vcmask 818176
      %v6132 = vsel %vm6130, %v5461, 0
      %v6135 = vsel %vm1710, %v5956, 0
      %v6138 = vsel %vm1710, %v5957, 0
      %v6141 = vsel %vm1710, %v5958, 0
      %v6144 = vsel %vm1710, %v5959, 0
      %v6147 = vsel %vm1710, %v5960, 0
      %v6150 = vsel %vm1710, %v5961, 0
      %v6153 = vsel %vm1710, %v5962, 0
      %v6156 = vsel %vm1710, %v5963, 0
      %v6159 = vsel %vm1710, %v5964, 0
      %v6162 = vsel %vm1710, %v5965, 0
      %v6165 = vsel %vm1710, %v5966, 0
      %v6168 = vsel %vm1710, %v5967, 0
      %v6171 = vsel %vm1710, %v5968, 0
      %v6174 = vsel %vm1710, %v5969, 0
      %v6177 = vsel %vm1710, %v5970, 0
      %v6180 = vsel %vm1710, %v5971, 0
      %v6183 = vsel %vm1710, %v5972, 0
      %v6186 = vsel %vm1710, %v5973, 0
      %v6189 = vsel %vm1710, %v5974, 0
      %6191 = vmatpush.bf16.msra.mxu0 0
      %6192 = vmatpush.bf16.msra.mxu0 %v6135
      %6193 = vmatpush.bf16.msra.mxu0 %v5937
      %6194 = vmatpush.bf16.msra.mxu0 %v5918
      %6195 = vmatpush.bf16.msra.mxu0 %v5899
      %6196 = vmatpush.bf16.msra.mxu0 %v5880
      %6197 = vmatpush.bf16.msra.mxu0 %v5861
      %6198 = vmatpush.bf16.msra.mxu0 %v5842
      %6199 = vmatmul.bf16.gmra.mxu0 %v6132
      %v6200 = vpop.f32.mrf.mxu0
      %v6201 = vadd.f32 %v6092, %v6200
      %v6202 = vpop.f32.mrf.mxu0
      %6203 = vdwg.mxu0
      %6204 = vmatpush.bf16.msra.mxu0 0
      %6205 = vmatpush.bf16.msra.mxu0 %v6138
      %6206 = vmatpush.bf16.msra.mxu0 %v5938
      %6207 = vmatpush.bf16.msra.mxu0 %v5919
      %6208 = vmatpush.bf16.msra.mxu0 %v5900
      %6209 = vmatpush.bf16.msra.mxu0 %v5881
      %6210 = vmatpush.bf16.msra.mxu0 %v5862
      %6211 = vmatpush.bf16.msra.mxu0 %v5843
      %6212 = vmatmul.bf16.gmra.mxu0 %v6132
      %v6213 = vpop.f32.mrf.mxu0
      %v6214 = vadd.f32 %v6093, %v6213
      %v6215 = vpop.f32.mrf.mxu0
      %6216 = vdwg.mxu0
      %6217 = vmatpush.bf16.msra.mxu0 0
      %6218 = vmatpush.bf16.msra.mxu0 %v6141
      %6219 = vmatpush.bf16.msra.mxu0 %v5939
      %6220 = vmatpush.bf16.msra.mxu0 %v5920
      %6221 = vmatpush.bf16.msra.mxu0 %v5901
      %6222 = vmatpush.bf16.msra.mxu0 %v5882
      %6223 = vmatpush.bf16.msra.mxu0 %v5863
      %6224 = vmatpush.bf16.msra.mxu0 %v5844
      %6225 = vmatmul.bf16.gmra.mxu0 %v6132
      %v6226 = vpop.f32.mrf.mxu0
      %v6227 = vadd.f32 %v6094, %v6226
      %v6228 = vpop.f32.mrf.mxu0
      %6229 = vdwg.mxu0
      %6230 = vmatpush.bf16.msra.mxu0 0
      %6231 = vmatpush.bf16.msra.mxu0 %v6144
      %6232 = vmatpush.bf16.msra.mxu0 %v5940
      %6233 = vmatpush.bf16.msra.mxu0 %v5921
      %6234 = vmatpush.bf16.msra.mxu0 %v5902
      %6235 = vmatpush.bf16.msra.mxu0 %v5883
      %6236 = vmatpush.bf16.msra.mxu0 %v5864
      %6237 = vmatpush.bf16.msra.mxu0 %v5845
      %6238 = vmatmul.bf16.gmra.mxu0 %v6132
      %v6239 = vpop.f32.mrf.mxu0
      %v6240 = vadd.f32 %v6095, %v6239
      %v6241 = vpop.f32.mrf.mxu0
      %6242 = vdwg.mxu0
      %6243 = vmatpush.bf16.msra.mxu0 0
      %6244 = vmatpush.bf16.msra.mxu0 %v6147
      %6245 = vmatpush.bf16.msra.mxu0 %v5941
      %6246 = vmatpush.bf16.msra.mxu0 %v5922
      %6247 = vmatpush.bf16.msra.mxu0 %v5903
      %6248 = vmatpush.bf16.msra.mxu0 %v5884
      %6249 = vmatpush.bf16.msra.mxu0 %v5865
      %6250 = vmatpush.bf16.msra.mxu0 %v5846
      %6251 = vmatmul.bf16.gmra.mxu0 %v6132
      %v6252 = vpop.f32.mrf.mxu0
      %v6253 = vadd.f32 %v6096, %v6252
      %v6254 = vpop.f32.mrf.mxu0
      %6255 = vdwg.mxu0
      %6256 = vmatpush.bf16.msra.mxu0 0
      %6257 = vmatpush.bf16.msra.mxu0 %v6150
      %6258 = vmatpush.bf16.msra.mxu0 %v5942
      %6259 = vmatpush.bf16.msra.mxu0 %v5923
      %6260 = vmatpush.bf16.msra.mxu0 %v5904
      %6261 = vmatpush.bf16.msra.mxu0 %v5885
      %6262 = vmatpush.bf16.msra.mxu0 %v5866
      %6263 = vmatpush.bf16.msra.mxu0 %v5847
      %6264 = vmatmul.bf16.gmra.mxu0 %v6132
      %v6265 = vpop.f32.mrf.mxu0
      %v6266 = vadd.f32 %v6097, %v6265
      %v6267 = vpop.f32.mrf.mxu0
      %6268 = vdwg.mxu0
      %6269 = vmatpush.bf16.msra.mxu0 0
      %6270 = vmatpush.bf16.msra.mxu0 %v6153
      %6271 = vmatpush.bf16.msra.mxu0 %v5943
      %6272 = vmatpush.bf16.msra.mxu0 %v5924
      %6273 = vmatpush.bf16.msra.mxu0 %v5905
      %6274 = vmatpush.bf16.msra.mxu0 %v5886
      %6275 = vmatpush.bf16.msra.mxu0 %v5867
      %6276 = vmatpush.bf16.msra.mxu0 %v5848
      %6277 = vmatmul.bf16.gmra.mxu0 %v6132
      %v6278 = vpop.f32.mrf.mxu0
      %v6279 = vadd.f32 %v6098, %v6278
      %v6280 = vpop.f32.mrf.mxu0
      %6281 = vdwg.mxu0
      %6282 = vmatpush.bf16.msra.mxu0 0
      %6283 = vmatpush.bf16.msra.mxu0 %v6156
      %6284 = vmatpush.bf16.msra.mxu0 %v5944
      %6285 = vmatpush.bf16.msra.mxu0 %v5925
      %6286 = vmatpush.bf16.msra.mxu0 %v5906
      %6287 = vmatpush.bf16.msra.mxu0 %v5887
      %6288 = vmatpush.bf16.msra.mxu0 %v5868
      %6289 = vmatpush.bf16.msra.mxu0 %v5849
      %6290 = vmatmul.bf16.gmra.mxu0 %v6132
      %v6291 = vpop.f32.mrf.mxu0
      %v6292 = vadd.f32 %v6099, %v6291
      %v6293 = vpop.f32.mrf.mxu0
      %6294 = vdwg.mxu0
      %6295 = vmatpush.bf16.msra.mxu0 0
      %6296 = vmatpush.bf16.msra.mxu0 %v6159
      %6297 = vmatpush.bf16.msra.mxu0 %v5945
      %6298 = vmatpush.bf16.msra.mxu0 %v5926
      %6299 = vmatpush.bf16.msra.mxu0 %v5907
      %6300 = vmatpush.bf16.msra.mxu0 %v5888
      %6301 = vmatpush.bf16.msra.mxu0 %v5869
      %6302 = vmatpush.bf16.msra.mxu0 %v5850
      %6303 = vmatmul.bf16.gmra.mxu0 %v6132
      %v6304 = vpop.f32.mrf.mxu0
      %v6305 = vadd.f32 %v6100, %v6304
      %v6306 = vpop.f32.mrf.mxu0
      %6307 = vdwg.mxu0
      %6308 = vmatpush.bf16.msra.mxu0 0
      %6309 = vmatpush.bf16.msra.mxu0 %v6162
      %6310 = vmatpush.bf16.msra.mxu0 %v5946
      %6311 = vmatpush.bf16.msra.mxu0 %v5927
      %6312 = vmatpush.bf16.msra.mxu0 %v5908
      %6313 = vmatpush.bf16.msra.mxu0 %v5889
      %6314 = vmatpush.bf16.msra.mxu0 %v5870
      %6315 = vmatpush.bf16.msra.mxu0 %v5851
      %6316 = vmatmul.bf16.gmra.mxu0 %v6132
      %v6317 = vpop.f32.mrf.mxu0
      %v6318 = vadd.f32 %v6101, %v6317
      %v6319 = vpop.f32.mrf.mxu0
      %6320 = vdwg.mxu0
      %6321 = vmatpush.bf16.msra.mxu0 0
      %6322 = vmatpush.bf16.msra.mxu0 %v6165
      %6323 = vmatpush.bf16.msra.mxu0 %v5947
      %6324 = vmatpush.bf16.msra.mxu0 %v5928
      %6325 = vmatpush.bf16.msra.mxu0 %v5909
      %6326 = vmatpush.bf16.msra.mxu0 %v5890
      %6327 = vmatpush.bf16.msra.mxu0 %v5871
      %6328 = vmatpush.bf16.msra.mxu0 %v5852
      %6329 = vmatmul.bf16.gmra.mxu0 %v6132
      %v6330 = vpop.f32.mrf.mxu0
      %v6331 = vadd.f32 %v6102, %v6330
      %v6332 = vpop.f32.mrf.mxu0
      %6333 = vdwg.mxu0
      %6334 = vmatpush.bf16.msra.mxu0 0
      %6335 = vmatpush.bf16.msra.mxu0 %v6168
      %6336 = vmatpush.bf16.msra.mxu0 %v5948
      %6337 = vmatpush.bf16.msra.mxu0 %v5929
      %6338 = vmatpush.bf16.msra.mxu0 %v5910
      %6339 = vmatpush.bf16.msra.mxu0 %v5891
      %6340 = vmatpush.bf16.msra.mxu0 %v5872
      %6341 = vmatpush.bf16.msra.mxu0 %v5853
      %6342 = vmatmul.bf16.gmra.mxu0 %v6132
      %v6343 = vpop.f32.mrf.mxu0
      %v6344 = vadd.f32 %v6103, %v6343
      %v6345 = vpop.f32.mrf.mxu0
      %6346 = vdwg.mxu0
      %6347 = vmatpush.bf16.msra.mxu0 0
      %6348 = vmatpush.bf16.msra.mxu0 %v6171
      %6349 = vmatpush.bf16.msra.mxu0 %v5949
      %6350 = vmatpush.bf16.msra.mxu0 %v5930
      %6351 = vmatpush.bf16.msra.mxu0 %v5911
      %6352 = vmatpush.bf16.msra.mxu0 %v5892
      %6353 = vmatpush.bf16.msra.mxu0 %v5873
      %6354 = vmatpush.bf16.msra.mxu0 %v5854
      %6355 = vmatmul.bf16.gmra.mxu0 %v6132
      %v6356 = vpop.f32.mrf.mxu0
      %v6357 = vadd.f32 %v6104, %v6356
      %v6358 = vpop.f32.mrf.mxu0
      %6359 = vdwg.mxu0
      %6360 = vmatpush.bf16.msra.mxu0 0
      %6361 = vmatpush.bf16.msra.mxu0 %v6174
      %6362 = vmatpush.bf16.msra.mxu0 %v5950
      %6363 = vmatpush.bf16.msra.mxu0 %v5931
      %6364 = vmatpush.bf16.msra.mxu0 %v5912
      %6365 = vmatpush.bf16.msra.mxu0 %v5893
      %6366 = vmatpush.bf16.msra.mxu0 %v5874
      %6367 = vmatpush.bf16.msra.mxu0 %v5855
      %6368 = vmatmul.bf16.gmra.mxu0 %v6132
      %v6369 = vpop.f32.mrf.mxu0
      %v6370 = vadd.f32 %v6105, %v6369
      %v6371 = vpop.f32.mrf.mxu0
      %6372 = vdwg.mxu0
      %6373 = vmatpush.bf16.msra.mxu0 0
      %6374 = vmatpush.bf16.msra.mxu0 %v6177
      %6375 = vmatpush.bf16.msra.mxu0 %v5951
      %6376 = vmatpush.bf16.msra.mxu0 %v5932
      %6377 = vmatpush.bf16.msra.mxu0 %v5913
      %6378 = vmatpush.bf16.msra.mxu0 %v5894
      %6379 = vmatpush.bf16.msra.mxu0 %v5875
      %6380 = vmatpush.bf16.msra.mxu0 %v5856
      %6381 = vmatmul.bf16.gmra.mxu0 %v6132
      %v6382 = vpop.f32.mrf.mxu0
      %v6383 = vadd.f32 %v6106, %v6382
      %v6384 = vpop.f32.mrf.mxu0
      %6385 = vdwg.mxu0
      %6386 = vmatpush.bf16.msra.mxu0 0
      %6387 = vmatpush.bf16.msra.mxu0 %v6180
      %6388 = vmatpush.bf16.msra.mxu0 %v5952
      %6389 = vmatpush.bf16.msra.mxu0 %v5933
      %6390 = vmatpush.bf16.msra.mxu0 %v5914
      %6391 = vmatpush.bf16.msra.mxu0 %v5895
      %6392 = vmatpush.bf16.msra.mxu0 %v5876
      %6393 = vmatpush.bf16.msra.mxu0 %v5857
      %6394 = vmatmul.bf16.gmra.mxu0 %v6132
      %v6395 = vpop.f32.mrf.mxu0
      %v6396 = vadd.f32 %v6107, %v6395
      %v6397 = vpop.f32.mrf.mxu0
      %6398 = vdwg.mxu0
      %6399 = vmatpush.bf16.msra.mxu0 0
      %6400 = vmatpush.bf16.msra.mxu0 %v6183
      %6401 = vmatpush.bf16.msra.mxu0 %v5953
      %6402 = vmatpush.bf16.msra.mxu0 %v5934
      %6403 = vmatpush.bf16.msra.mxu0 %v5915
      %6404 = vmatpush.bf16.msra.mxu0 %v5896
      %6405 = vmatpush.bf16.msra.mxu0 %v5877
      %6406 = vmatpush.bf16.msra.mxu0 %v5858
      %6407 = vmatmul.bf16.gmra.mxu0 %v6132
      %v6408 = vpop.f32.mrf.mxu0
      %v6409 = vadd.f32 %v6108, %v6408
      %v6410 = vpop.f32.mrf.mxu0
      %6411 = vdwg.mxu0
      %6412 = vmatpush.bf16.msra.mxu0 0
      %6413 = vmatpush.bf16.msra.mxu0 %v6186
      %6414 = vmatpush.bf16.msra.mxu0 %v5954
      %6415 = vmatpush.bf16.msra.mxu0 %v5935
      %6416 = vmatpush.bf16.msra.mxu0 %v5916
      %6417 = vmatpush.bf16.msra.mxu0 %v5897
      %6418 = vmatpush.bf16.msra.mxu0 %v5878
      %6419 = vmatpush.bf16.msra.mxu0 %v5859
      %6420 = vmatmul.bf16.gmra.mxu0 %v6132
      %v6421 = vpop.f32.mrf.mxu0
      %v6422 = vadd.f32 %v6109, %v6421
      %v6423 = vpop.f32.mrf.mxu0
      %6424 = vdwg.mxu0
      %6425 = vmatpush.bf16.msra.mxu0 0
      %6426 = vmatpush.bf16.msra.mxu0 %v6189
      %6427 = vmatpush.bf16.msra.mxu0 %v5955
      %6428 = vmatpush.bf16.msra.mxu0 %v5936
      %6429 = vmatpush.bf16.msra.mxu0 %v5917
      %6430 = vmatpush.bf16.msra.mxu0 %v5898
      %6431 = vmatpush.bf16.msra.mxu0 %v5879
      %6432 = vmatpush.bf16.msra.mxu0 %v5860
      %6433 = vmatmul.bf16.gmra.mxu0 %v6132
      %v6434 = vpop.f32.mrf.mxu0
      %v6435 = vadd.f32 %v6110, %v6434
      %v6436 = vpop.f32.mrf.mxu0
      %6437 = vdwg.mxu0
      %v6438 = vsub.f32 0.0, %v6201
      %v6439 = vsub.f32 0.0, %v6214
      %v6440 = vsub.f32 0.0, %v6227
      %v6441 = vsub.f32 0.0, %v6240
      %v6442 = vsub.f32 0.0, %v6253
      %v6443 = vsub.f32 0.0, %v6266
      %v6444 = vsub.f32 0.0, %v6279
      %v6445 = vsub.f32 0.0, %v6292
      %v6446 = vsub.f32 0.0, %v6305
      %v6447 = vsub.f32 0.0, %v6318
      %v6448 = vsub.f32 0.0, %v6331
      %v6449 = vsub.f32 0.0, %v6344
      %v6450 = vsub.f32 0.0, %v6357
      %v6451 = vsub.f32 0.0, %v6370
      %v6452 = vsub.f32 0.0, %v6383
      %v6453 = vsub.f32 0.0, %v6396
      %v6454 = vsub.f32 0.0, %v6409
      %v6455 = vsub.f32 0.0, %v6422
      %v6456 = vsub.f32 0.0, %v6435
      %v6457 = vmul.f32 %v6438, 1.442695
      %v6458 = vpow.pop %v6457
      %v6459 = vmul.f32 %v6439, 1.442695
      %v6460 = vpow.pop %v6459
      %v6461 = vmul.f32 %v6440, 1.442695
      %v6462 = vpow.pop %v6461
      %v6463 = vmul.f32 %v6441, 1.442695
      %v6464 = vpow.pop %v6463
      %v6465 = vmul.f32 %v6442, 1.442695
      %v6466 = vpow.pop %v6465
      %v6467 = vmul.f32 %v6443, 1.442695
      %v6468 = vpow.pop %v6467
      %v6469 = vmul.f32 %v6444, 1.442695
      %v6470 = vpow.pop %v6469
      %v6471 = vmul.f32 %v6445, 1.442695
      %v6472 = vpow.pop %v6471
      %v6473 = vmul.f32 %v6446, 1.442695
      %v6474 = vpow.pop %v6473
      %v6475 = vmul.f32 %v6447, 1.442695
      %v6476 = vpow.pop %v6475
      %v6477 = vmul.f32 %v6448, 1.442695
      %v6478 = vpow.pop %v6477
      %v6479 = vmul.f32 %v6449, 1.442695
      %v6480 = vpow.pop %v6479
      %v6481 = vmul.f32 %v6450, 1.442695
      %v6482 = vpow.pop %v6481
      %v6483 = vmul.f32 %v6451, 1.442695
      %v6484 = vpow.pop %v6483
      %v6485 = vmul.f32 %v6452, 1.442695
      %v6486 = vpow.pop %v6485
      %v6487 = vmul.f32 %v6453, 1.442695
      %v6488 = vpow.pop %v6487
      %v6489 = vmul.f32 %v6454, 1.442695
      %v6490 = vpow.pop %v6489
      %v6491 = vmul.f32 %v6455, 1.442695
      %v6492 = vpow.pop %v6491
      %v6493 = vmul.f32 %v6456, 1.442695
      %v6494 = vpow.pop %v6493
      %v6495 = vadd.f32 %v6458, 1.0
      %v6496 = vadd.f32 %v6460, 1.0
      %v6497 = vadd.f32 %v6462, 1.0
      %v6498 = vadd.f32 %v6464, 1.0
      %v6499 = vadd.f32 %v6466, 1.0
      %v6500 = vadd.f32 %v6468, 1.0
      %v6501 = vadd.f32 %v6470, 1.0
      %v6502 = vadd.f32 %v6472, 1.0
      %v6503 = vadd.f32 %v6474, 1.0
      %v6504 = vadd.f32 %v6476, 1.0
      %v6505 = vadd.f32 %v6478, 1.0
      %v6506 = vadd.f32 %v6480, 1.0
      %v6507 = vadd.f32 %v6482, 1.0
      %v6508 = vadd.f32 %v6484, 1.0
      %v6509 = vadd.f32 %v6486, 1.0
      %v6510 = vadd.f32 %v6488, 1.0
      %v6511 = vadd.f32 %v6490, 1.0
      %v6512 = vadd.f32 %v6492, 1.0
      %v6513 = vadd.f32 %v6494, 1.0
      %v6514 = vrcp.pop %v6495
      %v6515 = vmul.f32 %v6495, %v6514
      %v6516 = vsub.f32 1.0, %v6515
      %v6517 = vmul.f32 %v6514, %v6516
      %v6518 = vadd.f32 %v6514, %v6517
      %vm6519 = vweird.f32 %v6495
      %vm6520 = vweird.f32 %v6514
      %vm6521 = vmor %vm6519, %vm6520
      %v6522 = vsel %vm6521, %v6514, %v6518
      %v6523 = vand.u32 2147483647, %v6495
      %vm6524 = vcmp.eq.f32.partialorder %v6523, 8.507059e+37
      %v6525 = vand.u32 %v6495, 2147483648
      %v6526 = vor.u32 1.1754944e-38, %v6525
      %v6527 = vsel %vm6524, %v6526, %v6522
      %v6528 = vmul.f32 1.0, %v6527
      %v6529 = vrcp.pop %v6496
      %v6530 = vmul.f32 %v6496, %v6529
      %v6531 = vsub.f32 1.0, %v6530
      %v6532 = vmul.f32 %v6529, %v6531
      %v6533 = vadd.f32 %v6529, %v6532
      %vm6534 = vweird.f32 %v6496
      %vm6535 = vweird.f32 %v6529
      %vm6536 = vmor %vm6534, %vm6535
      %v6537 = vsel %vm6536, %v6529, %v6533
      %v6538 = vand.u32 2147483647, %v6496
      %vm6539 = vcmp.eq.f32.partialorder %v6538, 8.507059e+37
      %v6540 = vand.u32 %v6496, 2147483648
      %v6541 = vor.u32 1.1754944e-38, %v6540
      %v6542 = vsel %vm6539, %v6541, %v6537
      %v6543 = vmul.f32 1.0, %v6542
      %v6544 = vrcp.pop %v6497
      %v6545 = vmul.f32 %v6497, %v6544
      %v6546 = vsub.f32 1.0, %v6545
      %v6547 = vmul.f32 %v6544, %v6546
      %v6548 = vadd.f32 %v6544, %v6547
      %vm6549 = vweird.f32 %v6497
      %vm6550 = vweird.f32 %v6544
      %vm6551 = vmor %vm6549, %vm6550
      %v6552 = vsel %vm6551, %v6544, %v6548
      %v6553 = vand.u32 2147483647, %v6497
      %vm6554 = vcmp.eq.f32.partialorder %v6553, 8.507059e+37
      %v6555 = vand.u32 %v6497, 2147483648
      %v6556 = vor.u32 1.1754944e-38, %v6555
      %v6557 = vsel %vm6554, %v6556, %v6552
      %v6558 = vmul.f32 1.0, %v6557
      %v6559 = vrcp.pop %v6498
      %v6560 = vmul.f32 %v6498, %v6559
      %v6561 = vsub.f32 1.0, %v6560
      %v6562 = vmul.f32 %v6559, %v6561
      %v6563 = vadd.f32 %v6559, %v6562
      %vm6564 = vweird.f32 %v6498
      %vm6565 = vweird.f32 %v6559
      %vm6566 = vmor %vm6564, %vm6565
      %v6567 = vsel %vm6566, %v6559, %v6563
      %v6568 = vand.u32 2147483647, %v6498
      %vm6569 = vcmp.eq.f32.partialorder %v6568, 8.507059e+37
      %v6570 = vand.u32 %v6498, 2147483648
      %v6571 = vor.u32 1.1754944e-38, %v6570
      %v6572 = vsel %vm6569, %v6571, %v6567
      %v6573 = vmul.f32 1.0, %v6572
      %v6574 = vrcp.pop %v6499
      %v6575 = vmul.f32 %v6499, %v6574
      %v6576 = vsub.f32 1.0, %v6575
      %v6577 = vmul.f32 %v6574, %v6576
      %v6578 = vadd.f32 %v6574, %v6577
      %vm6579 = vweird.f32 %v6499
      %vm6580 = vweird.f32 %v6574
      %vm6581 = vmor %vm6579, %vm6580
      %v6582 = vsel %vm6581, %v6574, %v6578
      %v6583 = vand.u32 2147483647, %v6499
      %vm6584 = vcmp.eq.f32.partialorder %v6583, 8.507059e+37
      %v6585 = vand.u32 %v6499, 2147483648
      %v6586 = vor.u32 1.1754944e-38, %v6585
      %v6587 = vsel %vm6584, %v6586, %v6582
      %v6588 = vmul.f32 1.0, %v6587
      %v6589 = vrcp.pop %v6500
      %v6590 = vmul.f32 %v6500, %v6589
      %v6591 = vsub.f32 1.0, %v6590
      %v6592 = vmul.f32 %v6589, %v6591
      %v6593 = vadd.f32 %v6589, %v6592
      %vm6594 = vweird.f32 %v6500
      %vm6595 = vweird.f32 %v6589
      %vm6596 = vmor %vm6594, %vm6595
      %v6597 = vsel %vm6596, %v6589, %v6593
      %v6598 = vand.u32 2147483647, %v6500
      %vm6599 = vcmp.eq.f32.partialorder %v6598, 8.507059e+37
      %v6600 = vand.u32 %v6500, 2147483648
      %v6601 = vor.u32 1.1754944e-38, %v6600
      %v6602 = vsel %vm6599, %v6601, %v6597
      %v6603 = vmul.f32 1.0, %v6602
      %v6604 = vrcp.pop %v6501
      %v6605 = vmul.f32 %v6501, %v6604
      %v6606 = vsub.f32 1.0, %v6605
      %v6607 = vmul.f32 %v6604, %v6606
      %v6608 = vadd.f32 %v6604, %v6607
      %vm6609 = vweird.f32 %v6501
      %vm6610 = vweird.f32 %v6604
      %vm6611 = vmor %vm6609, %vm6610
      %v6612 = vsel %vm6611, %v6604, %v6608
      %v6613 = vand.u32 2147483647, %v6501
      %vm6614 = vcmp.eq.f32.partialorder %v6613, 8.507059e+37
      %v6615 = vand.u32 %v6501, 2147483648
      %v6616 = vor.u32 1.1754944e-38, %v6615
      %v6617 = vsel %vm6614, %v6616, %v6612
      %v6618 = vmul.f32 1.0, %v6617
      %v6619 = vrcp.pop %v6502
      %v6620 = vmul.f32 %v6502, %v6619
      %v6621 = vsub.f32 1.0, %v6620
      %v6622 = vmul.f32 %v6619, %v6621
      %v6623 = vadd.f32 %v6619, %v6622
      %vm6624 = vweird.f32 %v6502
      %vm6625 = vweird.f32 %v6619
      %vm6626 = vmor %vm6624, %vm6625
      %v6627 = vsel %vm6626, %v6619, %v6623
      %v6628 = vand.u32 2147483647, %v6502
      %vm6629 = vcmp.eq.f32.partialorder %v6628, 8.507059e+37
      %v6630 = vand.u32 %v6502, 2147483648
      %v6631 = vor.u32 1.1754944e-38, %v6630
      %v6632 = vsel %vm6629, %v6631, %v6627
      %v6633 = vmul.f32 1.0, %v6632
      %v6634 = vrcp.pop %v6503
      %v6635 = vmul.f32 %v6503, %v6634
      %v6636 = vsub.f32 1.0, %v6635
      %v6637 = vmul.f32 %v6634, %v6636
      %v6638 = vadd.f32 %v6634, %v6637
      %vm6639 = vweird.f32 %v6503
      %vm6640 = vweird.f32 %v6634
      %vm6641 = vmor %vm6639, %vm6640
      %v6642 = vsel %vm6641, %v6634, %v6638
      %v6643 = vand.u32 2147483647, %v6503
      %vm6644 = vcmp.eq.f32.partialorder %v6643, 8.507059e+37
      %v6645 = vand.u32 %v6503, 2147483648
      %v6646 = vor.u32 1.1754944e-38, %v6645
      %v6647 = vsel %vm6644, %v6646, %v6642
      %v6648 = vmul.f32 1.0, %v6647
      %v6649 = vrcp.pop %v6504
      %v6650 = vmul.f32 %v6504, %v6649
      %v6651 = vsub.f32 1.0, %v6650
      %v6652 = vmul.f32 %v6649, %v6651
      %v6653 = vadd.f32 %v6649, %v6652
      %vm6654 = vweird.f32 %v6504
      %vm6655 = vweird.f32 %v6649
      %vm6656 = vmor %vm6654, %vm6655
      %v6657 = vsel %vm6656, %v6649, %v6653
      %v6658 = vand.u32 2147483647, %v6504
      %vm6659 = vcmp.eq.f32.partialorder %v6658, 8.507059e+37
      %v6660 = vand.u32 %v6504, 2147483648
      %v6661 = vor.u32 1.1754944e-38, %v6660
      %v6662 = vsel %vm6659, %v6661, %v6657
      %v6663 = vmul.f32 1.0, %v6662
      %v6664 = vrcp.pop %v6505
      %v6665 = vmul.f32 %v6505, %v6664
      %v6666 = vsub.f32 1.0, %v6665
      %v6667 = vmul.f32 %v6664, %v6666
      %v6668 = vadd.f32 %v6664, %v6667
      %vm6669 = vweird.f32 %v6505
      %vm6670 = vweird.f32 %v6664
      %vm6671 = vmor %vm6669, %vm6670
      %v6672 = vsel %vm6671, %v6664, %v6668
      %v6673 = vand.u32 2147483647, %v6505
      %vm6674 = vcmp.eq.f32.partialorder %v6673, 8.507059e+37
      %v6675 = vand.u32 %v6505, 2147483648
      %v6676 = vor.u32 1.1754944e-38, %v6675
      %v6677 = vsel %vm6674, %v6676, %v6672
      %v6678 = vmul.f32 1.0, %v6677
      %v6679 = vrcp.pop %v6506
      %v6680 = vmul.f32 %v6506, %v6679
      %v6681 = vsub.f32 1.0, %v6680
      %v6682 = vmul.f32 %v6679, %v6681
      %v6683 = vadd.f32 %v6679, %v6682
      %vm6684 = vweird.f32 %v6506
      %vm6685 = vweird.f32 %v6679
      %vm6686 = vmor %vm6684, %vm6685
      %v6687 = vsel %vm6686, %v6679, %v6683
      %v6688 = vand.u32 2147483647, %v6506
      %vm6689 = vcmp.eq.f32.partialorder %v6688, 8.507059e+37
      %v6690 = vand.u32 %v6506, 2147483648
      %v6691 = vor.u32 1.1754944e-38, %v6690
      %v6692 = vsel %vm6689, %v6691, %v6687
      %v6693 = vmul.f32 1.0, %v6692
      %v6694 = vrcp.pop %v6507
      %v6695 = vmul.f32 %v6507, %v6694
      %v6696 = vsub.f32 1.0, %v6695
      %v6697 = vmul.f32 %v6694, %v6696
      %v6698 = vadd.f32 %v6694, %v6697
      %vm6699 = vweird.f32 %v6507
      %vm6700 = vweird.f32 %v6694
      %vm6701 = vmor %vm6699, %vm6700
      %v6702 = vsel %vm6701, %v6694, %v6698
      %v6703 = vand.u32 2147483647, %v6507
      %vm6704 = vcmp.eq.f32.partialorder %v6703, 8.507059e+37
      %v6705 = vand.u32 %v6507, 2147483648
      %v6706 = vor.u32 1.1754944e-38, %v6705
      %v6707 = vsel %vm6704, %v6706, %v6702
      %v6708 = vmul.f32 1.0, %v6707
      %v6709 = vrcp.pop %v6508
      %v6710 = vmul.f32 %v6508, %v6709
      %v6711 = vsub.f32 1.0, %v6710
      %v6712 = vmul.f32 %v6709, %v6711
      %v6713 = vadd.f32 %v6709, %v6712
      %vm6714 = vweird.f32 %v6508
      %vm6715 = vweird.f32 %v6709
      %vm6716 = vmor %vm6714, %vm6715
      %v6717 = vsel %vm6716, %v6709, %v6713
      %v6718 = vand.u32 2147483647, %v6508
      %vm6719 = vcmp.eq.f32.partialorder %v6718, 8.507059e+37
      %v6720 = vand.u32 %v6508, 2147483648
      %v6721 = vor.u32 1.1754944e-38, %v6720
      %v6722 = vsel %vm6719, %v6721, %v6717
      %v6723 = vmul.f32 1.0, %v6722
      %v6724 = vrcp.pop %v6509
      %v6725 = vmul.f32 %v6509, %v6724
      %v6726 = vsub.f32 1.0, %v6725
      %v6727 = vmul.f32 %v6724, %v6726
      %v6728 = vadd.f32 %v6724, %v6727
      %vm6729 = vweird.f32 %v6509
      %vm6730 = vweird.f32 %v6724
      %vm6731 = vmor %vm6729, %vm6730
      %v6732 = vsel %vm6731, %v6724, %v6728
      %v6733 = vand.u32 2147483647, %v6509
      %vm6734 = vcmp.eq.f32.partialorder %v6733, 8.507059e+37
      %v6735 = vand.u32 %v6509, 2147483648
      %v6736 = vor.u32 1.1754944e-38, %v6735
      %v6737 = vsel %vm6734, %v6736, %v6732
      %v6738 = vmul.f32 1.0, %v6737
      %v6739 = vrcp.pop %v6510
      %v6740 = vmul.f32 %v6510, %v6739
      %v6741 = vsub.f32 1.0, %v6740
      %v6742 = vmul.f32 %v6739, %v6741
      %v6743 = vadd.f32 %v6739, %v6742
      %vm6744 = vweird.f32 %v6510
      %vm6745 = vweird.f32 %v6739
      %vm6746 = vmor %vm6744, %vm6745
      %v6747 = vsel %vm6746, %v6739, %v6743
      %v6748 = vand.u32 2147483647, %v6510
      %vm6749 = vcmp.eq.f32.partialorder %v6748, 8.507059e+37
      %v6750 = vand.u32 %v6510, 2147483648
      %v6751 = vor.u32 1.1754944e-38, %v6750
      %v6752 = vsel %vm6749, %v6751, %v6747
      %v6753 = vmul.f32 1.0, %v6752
      %v6754 = vrcp.pop %v6511
      %v6755 = vmul.f32 %v6511, %v6754
      %v6756 = vsub.f32 1.0, %v6755
      %v6757 = vmul.f32 %v6754, %v6756
      %v6758 = vadd.f32 %v6754, %v6757
      %vm6759 = vweird.f32 %v6511
      %vm6760 = vweird.f32 %v6754
      %vm6761 = vmor %vm6759, %vm6760
      %v6762 = vsel %vm6761, %v6754, %v6758
      %v6763 = vand.u32 2147483647, %v6511
      %vm6764 = vcmp.eq.f32.partialorder %v6763, 8.507059e+37
      %v6765 = vand.u32 %v6511, 2147483648
      %v6766 = vor.u32 1.1754944e-38, %v6765
      %v6767 = vsel %vm6764, %v6766, %v6762
      %v6768 = vmul.f32 1.0, %v6767
      %v6769 = vrcp.pop %v6512
      %v6770 = vmul.f32 %v6512, %v6769
      %v6771 = vsub.f32 1.0, %v6770
      %v6772 = vmul.f32 %v6769, %v6771
      %v6773 = vadd.f32 %v6769, %v6772
      %vm6774 = vweird.f32 %v6512
      %vm6775 = vweird.f32 %v6769
      %vm6776 = vmor %vm6774, %vm6775
      %v6777 = vsel %vm6776, %v6769, %v6773
      %v6778 = vand.u32 2147483647, %v6512
      %vm6779 = vcmp.eq.f32.partialorder %v6778, 8.507059e+37
      %v6780 = vand.u32 %v6512, 2147483648
      %v6781 = vor.u32 1.1754944e-38, %v6780
      %v6782 = vsel %vm6779, %v6781, %v6777
      %v6783 = vmul.f32 1.0, %v6782
      %v6784 = vrcp.pop %v6513
      %v6785 = vmul.f32 %v6513, %v6784
      %v6786 = vsub.f32 1.0, %v6785
      %v6787 = vmul.f32 %v6784, %v6786
      %v6788 = vadd.f32 %v6784, %v6787
      %vm6789 = vweird.f32 %v6513
      %vm6790 = vweird.f32 %v6784
      %vm6791 = vmor %vm6789, %vm6790
      %v6792 = vsel %vm6791, %v6784, %v6788
      %v6793 = vand.u32 2147483647, %v6513
      %vm6794 = vcmp.eq.f32.partialorder %v6793, 8.507059e+37
      %v6795 = vand.u32 %v6513, 2147483648
      %v6796 = vor.u32 1.1754944e-38, %v6795
      %v6797 = vsel %vm6794, %v6796, %v6792
      %v6798 = vmul.f32 1.0, %v6797
      %v6818 = vrot.slane %v6543, 7
      %v6819 = vrot.slane %v6558, 6
      %v6820 = vrot.slane %v6573, 5
      %v6821 = vrot.slane %v6588, 4
      %v6822 = vrot.slane %v6603, 3
      %v6823 = vrot.slane %v6618, 2
      %v6824 = vrot.slane %v6633, 1
      %v6825 = vrot.slane %v6663, 7
      %v6826 = vrot.slane %v6678, 6
      %v6827 = vrot.slane %v6693, 5
      %v6828 = vrot.slane %v6708, 4
      %v6829 = vrot.slane %v6723, 3
      %v6830 = vrot.slane %v6738, 2
      %v6831 = vrot.slane %v6753, 1
      %v6832 = vrot.slane %v6783, 7
      %v6833 = vrot.slane %v6798, 6
      %vm6834 = vcmask 1040384
      %v6835 = vsel %vm6834, %v6528, %v6818
      %vm6836 = vcmask 1042434
      %v6837 = vsel %vm6836, %v6819, %v6820
      %v6838 = vsel %vm1710, %v6835, %v6837
      %vm6839 = vcmask 1044484
      %v6840 = vsel %vm6839, %v6821, %v6822
      %vm6841 = vcmask 1046534
      %v6842 = vsel %vm6841, %v6823, %v6824
      %vm6843 = vcmask 1045508
      %v6844 = vsel %vm6843, %v6840, %v6842
      %vm6845 = vcmask 1043456
      %v6846 = vsel %vm6845, %v6838, %v6844
      %v6847 = vsel %vm6834, %v6648, %v6825
      %v6848 = vsel %vm6836, %v6826, %v6827
      %v6849 = vsel %vm1710, %v6847, %v6848
      %v6850 = vsel %vm6839, %v6828, %v6829
      %v6851 = vsel %vm6841, %v6830, %v6831
      %v6852 = vsel %vm6843, %v6850, %v6851
      %v6853 = vsel %vm6845, %v6849, %v6852
      %v6854 = vsel %vm6834, %v6768, %v6832
      %v6855 = vsel %vm1710, %v6854, %v6833
      %6859 = vst [vmem:[%s411] sm:$0xff] %v6846
      %6860 = vst [vmem:[%s411 + $0x8] sm:$0xff] %v6853
      %v6861 = vlaneseq
      %vm6862 = vcmp.ge.s32.totalorder %v6861, 0
      %vm6863 = vcmp.lt.s32.totalorder %v6861, 304
      %vm6864 = vmand %vm6862, %vm6863
      %6865 = vst.msk [vmem:[%s411 + $0x10] sm:$0x7] %vm6864, %v6855
      %p6866 = scmp.lt.s32.totalorder %s23, 1
      %s6867 = scalar_select %p6866, %s23, 1
      %s6868 = smul.addr %s6867, 19
      %s6869 = scalar_lea.vmem %s12, %s6868
      // Predicated region
      $region69: #{conv_autoencoder_forward.1} parent=67 // pred_check
        %p6870 = pneg %p298
      $region70: #{conv_autoencoder_forward.1} parent=67 // pred_check_branch
        %6872 = sbr.rel (%p6870) target = $region72
      $region71: #{conv_autoencoder_forward.1} parent=67 // pred_region
        _
      $region72: #{conv_autoencoder_forward.1} parent=67 // pred_fallthru
        _
    $region68: #{conv_autoencoder_forward.1} parent=5 // pred_fallthru
      _
    %p6873 = scmp.le.s32.totalorder 2, %s18
    // Predicated region
    $region73: #{conv_autoencoder_forward.1} parent=5 // pred_check
      %p6874 = pneg %p6873
    $region74: #{conv_autoencoder_forward.1} parent=5 // pred_check_branch
      %6876 = sbr.rel (%p6874) target = $region76
    $region75: #{conv_autoencoder_forward.1} parent=5 // pred_region
      %s6877 = ssub.s32 %s18, 2
      // Predicated region
      $region77: #{conv_autoencoder_forward.1} parent=75 // pred_check
        %p6878 = pneg %p304
      $region78: #{conv_autoencoder_forward.1} parent=75 // pred_check_branch
        %6880 = sbr.rel (%p6878) target = $region80
      $region79: #{conv_autoencoder_forward.1} parent=75 // pred_region
        %p6881 = scmp.lt.s32.totalorder %s24, 1
        %s6882 = scalar_select %p6881, %s24, 1
        %s6883 = smul.addr %s6882, 19
        %s6884 = scalar_lea.vmem %s12, %s6883
      $region80: #{conv_autoencoder_forward.1} parent=75 // pred_fallthru
        _
    $region76: #{conv_autoencoder_forward.1} parent=5 // pred_fallthru
      _
  $region6: #{conv_autoencoder_forward.1} parent=0 // loop_footer
    %s22 = sadd.s32 1, %s18
  $region7: #{conv_autoencoder_forward.1} parent=0 // loop_footer_branch
    %17 = sbr.rel target = $region3
  $region8: #{conv_autoencoder_forward.1} parent=0 // loop_exit
    _

</llo_original>
